<compile_context>
chip_gen: v7x
topology: tpu7x:2x2x1
jax: 0.10.0
libtpu: 0.0.40
codegen_flags: <defaults>
</compile_context>

<pallas_src>
import jax
import jax.numpy as jnp
from jax import lax
from jax.experimental import pallas as pl
from jax.experimental.pallas import tpu as pltpu


def neural_grid_kernel(p_ref, x_ref, o_ref):
    """p_ref: (W, 4, H) rows = [wl, wc, wr, bias]; x_ref/o_ref: (block_b, H)."""
    W = p_ref.shape[0]
    H = x_ref.shape[1]
    x = x_ref[...].astype(jnp.float32)

    def layer_step(layer, x):
        # (1, H) sublane views; the broadcast fuses into the multiplies
        # (no (block_b, H) weight temporaries are materialized).
        wl = p_ref[layer, 0, :][None, :]
        wc = p_ref[layer, 1, :][None, :]
        wr = p_ref[layer, 2, :][None, :]
        b = p_ref[layer, 3, :][None, :]
        x_left = pltpu.roll(x, shift=1, axis=1)       # x[b, i-1]; wrap lane killed by wl[:,0]==0
        x_right = pltpu.roll(x, shift=H - 1, axis=1)  # x[b, i+1]; wrap lane killed by wr[:,H-1]==0
        return jnp.sin(wl * x_left + wc * x + wr * x_right + b)

    if W <= 16:
        # Small, static layer count: full unroll gives the LLO scheduler
        # maximum visibility to interleave XLU / VPU / EUP work across rows.
        for layer in range(W):
            x = layer_step(layer, x)
    else:
        # Large W: bound code size / vreg pressure, keep some unroll for ILP.
        x = lax.fori_loop(0, W, layer_step, x, unroll=4)

    o_ref[...] = x.astype(o_ref.dtype)


def _choose_block_b(B):
    """Batch tile: multiple of 8, 64..256 rows, >= 4 grid steps when B allows."""
    if B <= 64:
        # Whole batch in one block (full-array block, exempt from the (8,128)
        # divisibility rule).  Still many vreg rows of independent work.
        return B
    cand = pl.cdiv(B, 4)              # aim for >= 4 grid steps (v7x megacore)
    cand = max(64, min(256, cand))    # never a tiny tile, never a huge one
    cand = ((cand + 7) // 8) * 8      # sublane multiple
    return min(cand, B)


def neural_grid(x, w_pad, bias, *, block_b=None, interpret=False):
    """x: (B, H), w_pad: (W, H+2) f32 (F.pad-style), bias: (W, H) f32 -> (B, H).

    x may be float32 (all chips) or bfloat16 (v6e/v7x HBM-traffic saver);
    in-kernel arithmetic is always float32.
    """
    B, H = x.shape
    W, Hp2 = w_pad.shape
    assert Hp2 == H + 2 and bias.shape == (W, H)

    # Three lane-aligned (W, H) diagonal slabs of the padded weight + bias,
    # fused into one (W, 4, H) parameter slab (single resident DMA).
    # Edge taps forced to zero so the rolled wrap-around lanes contribute
    # nothing even if an unpadded weight is ever passed in.
    wl = w_pad[:, 0:H].at[:, 0].set(0.0)
    wc = w_pad[:, 1:H + 1]
    wr = w_pad[:, 2:H + 2].at[:, H - 1].set(0.0)
    params = jnp.stack([wl, wc, wr, bias], axis=1).astype(jnp.float32)  # (W, 4, H)

    if block_b is None:
        block_b = _choose_block_b(B)
    block_b = min(block_b, B)
    if block_b != B and block_b % 8 != 0:
        block_b = max(8, (block_b // 8) * 8)
    grid = (pl.cdiv(B, block_b),)

    # Explicit VMEM budget from the real tile footprint:
    #   in/out activation blocks, double-buffered, + the resident param slab.
    io_itemsize = jnp.dtype(x.dtype).itemsize
    act_block_bytes = block_b * H * io_itemsize
    footprint = 2 * 2 * act_block_bytes + 2 * params.size * 4
    vmem_limit = int(min(48 << 20, max(16 << 20, 4 * footprint)))

    # Parameter slab: constant index_map -> stays VMEM-resident across the grid.
    p_spec = pl.BlockSpec((W, 4, H), lambda i: (0, 0, 0))
    act_in_spec = pl.BlockSpec((block_b, H), lambda i: (i, 0))
    act_out_spec = pl.BlockSpec((block_b, H), lambda i: (i, 0))

    cost = pl.CostEstimate(
        flops=7 * B * H * W,            # 3 mul + 3 add + bias add per elem/layer
        transcendentals=B * H * W,      # one sin per elem per layer
        bytes_accessed=io_itemsize * 2 * B * H + 4 * params.size,
    )

    return pl.pallas_call(
        neural_grid_kernel,
        out_shape=jax.ShapeDtypeStruct((B, H), x.dtype),
        grid=grid,
        in_specs=[p_spec, act_in_spec],
        out_specs=act_out_spec,
        compiler_params=pltpu.CompilerParams(
            dimension_semantics=("parallel",),   # batch axis: megacore-shardable
            vmem_limit_bytes=vmem_limit,
        ),
        cost_estimate=cost,
        interpret=interpret,
    )(params, x)


def neural_grid_reference(x, w_pad, bias):
    """Pure-JAX reference mirroring the PyTorch forward."""
    W = w_pad.shape[0]
    H = x.shape[1]
    for l in range(W):
        xp = jnp.pad(x, ((0, 0), (1, 1)))
        t = xp * w_pad[l][None, :]
        x = jnp.sin(t[:, :H] + t[:, 1:H + 1] + t[:, 2:] + bias[l][None, :])
    return x


if __name__ == "__main__":
    B = 256   # batch: 4 grid steps of 64 rows -> real pipelining / megacore work
    H = 128   # grid_2d height (feature dim of each layer, lane-aligned)
    W = 8     # grid_2d width  (number of sequential GridLayers)

    key = jax.random.PRNGKey(0)
    kx, kw = jax.random.split(key)

    x = jax.random.normal(kx, (B, H), dtype=jnp.float32)

    # xavier_init(size=(H,), fan_in=3, fan_out=3): uniform(-limit, limit),
    # limit = sqrt(6 / (3 + 3)) = 1.0 ; then zero-padded to H+2 per layer.
    w = jax.random.uniform(kw, (W, H), minval=-1.0, maxval=1.0, dtype=jnp.float32)
    w_pad = jnp.pad(w, ((0, 0), (1, 1)))
    bias = jnp.zeros((W, H), dtype=jnp.float32)

    # f32 path (all chips): default block_b heuristic -> block_b=64, grid=(4,).
    out = jax.block_until_ready(neural_grid(x, w_pad, bias))
    ref = neural_grid_reference(x, w_pad, bias)
    assert out.shape == (B, H) and out.dtype == jnp.float32
    if not jnp.allclose(out, ref, atol=1e-4, rtol=1e-4):
        raise SystemExit("Pallas kernel does not match reference")

    # bf16 activation-I/O path (v6e/v7x HBM saver; compute stays f32 in-kernel).
    # Only sanity-checked (bf16 storage rounding compounds over W layers).
    out_bf16 = jax.block_until_ready(
        neural_grid(x.astype(jnp.bfloat16), w_pad, bias))
    assert out_bf16.shape == (B, H) and out_bf16.dtype == jnp.bfloat16
    assert bool(jnp.all(jnp.isfinite(out_bf16.astype(jnp.float32))))

    print("KERNEL_OK")
</pallas_src>

<mosaic_0001>
module attributes {stable_mosaic.version = 11 : i64} {
  func.func @neural_grid_kernel(%arg0: i32, %arg1: memref<8x4x128xf32, #tpu.memory_space<vmem>>, %arg2: memref<64x128xf32, #tpu.memory_space<vmem>>, %arg3: memref<64x128xf32, #tpu.memory_space<vmem>>) attributes {dimension_semantics = [#tpu.dimension_semantics<parallel>], iteration_bounds = array<i64: 4>, scalar_prefetch = 0 : i64, scratch_operands = 0 : i64, tpu.core_type = #tpu.core_type<tc>, window_params = [{pipeline_mode = #tpu.pipeline_mode<synchronous>, transform_indices = @transform_0, window_bounds = array<i64: 8, 4, 128>}, {transform_indices = @transform_1, window_bounds = array<i64: 64, 128>}, {transform_indices = @transform_2, window_bounds = array<i64: 64, 128>}]} {
    %c0 = arith.constant 0 : index
    %c0_0 = arith.constant 0 : index
    %0 = vector.load %arg2[%c0, %c0_0] : memref<64x128xf32, #tpu.memory_space<vmem>>, vector<64x128xf32>
    %c0_1 = arith.constant 0 : index
    %c0_2 = arith.constant 0 : index
    %c0_3 = arith.constant 0 : index
    %1 = vector.load %arg1[%c0_1, %c0_2, %c0_3] : memref<8x4x128xf32, #tpu.memory_space<vmem>>, vector<1x1x128xf32>
    %2 = vector.shape_cast %1 : vector<1x1x128xf32> to vector<128xf32>
    %3 = vector.shape_cast %2 : vector<128xf32> to vector<1x128xf32>
    %c0_4 = arith.constant 0 : index
    %c1 = arith.constant 1 : index
    %c0_5 = arith.constant 0 : index
    %4 = vector.load %arg1[%c0_4, %c1, %c0_5] : memref<8x4x128xf32, #tpu.memory_space<vmem>>, vector<1x1x128xf32>
    %5 = vector.shape_cast %4 : vector<1x1x128xf32> to vector<128xf32>
    %6 = vector.shape_cast %5 : vector<128xf32> to vector<1x128xf32>
    %c0_6 = arith.constant 0 : index
    %c2 = arith.constant 2 : index
    %c0_7 = arith.constant 0 : index
    %7 = vector.load %arg1[%c0_6, %c2, %c0_7] : memref<8x4x128xf32, #tpu.memory_space<vmem>>, vector<1x1x128xf32>
    %8 = vector.shape_cast %7 : vector<1x1x128xf32> to vector<128xf32>
    %9 = vector.shape_cast %8 : vector<128xf32> to vector<1x128xf32>
    %c0_8 = arith.constant 0 : index
    %c3 = arith.constant 3 : index
    %c0_9 = arith.constant 0 : index
    %10 = vector.load %arg1[%c0_8, %c3, %c0_9] : memref<8x4x128xf32, #tpu.memory_space<vmem>>, vector<1x1x128xf32>
    %11 = vector.shape_cast %10 : vector<1x1x128xf32> to vector<128xf32>
    %12 = vector.shape_cast %11 : vector<128xf32> to vector<1x128xf32>
    %c1_i32 = arith.constant 1 : i32
    %13 = tpu.dynamic_rotate %0 by %c1_i32 dim 1 : vector<64x128xf32>, i32 -> vector<64x128xf32>
    %c127_i32 = arith.constant 127 : i32
    %14 = tpu.dynamic_rotate %0 by %c127_i32 dim 1 : vector<64x128xf32>, i32 -> vector<64x128xf32>
    %15 = vector.broadcast %3 : vector<1x128xf32> to vector<64x128xf32>
    %16 = arith.mulf %15, %13 : vector<64x128xf32>
    %17 = vector.broadcast %6 : vector<1x128xf32> to vector<64x128xf32>
    %18 = arith.mulf %17, %0 : vector<64x128xf32>
    %19 = arith.addf %16, %18 : vector<64x128xf32>
    %20 = vector.broadcast %9 : vector<1x128xf32> to vector<64x128xf32>
    %21 = arith.mulf %20, %14 : vector<64x128xf32>
    %22 = arith.addf %19, %21 : vector<64x128xf32>
    %23 = vector.broadcast %12 : vector<1x128xf32> to vector<64x128xf32>
    %24 = arith.addf %22, %23 : vector<64x128xf32>
    %25 = math.sin %24 : vector<64x128xf32>
    %c1_10 = arith.constant 1 : index
    %c0_11 = arith.constant 0 : index
    %c0_12 = arith.constant 0 : index
    %26 = vector.load %arg1[%c1_10, %c0_11, %c0_12] : memref<8x4x128xf32, #tpu.memory_space<vmem>>, vector<1x1x128xf32>
    %27 = vector.shape_cast %26 : vector<1x1x128xf32> to vector<128xf32>
    %28 = vector.shape_cast %27 : vector<128xf32> to vector<1x128xf32>
    %c1_13 = arith.constant 1 : index
    %c1_14 = arith.constant 1 : index
    %c0_15 = arith.constant 0 : index
    %29 = vector.load %arg1[%c1_13, %c1_14, %c0_15] : memref<8x4x128xf32, #tpu.memory_space<vmem>>, vector<1x1x128xf32>
    %30 = vector.shape_cast %29 : vector<1x1x128xf32> to vector<128xf32>
    %31 = vector.shape_cast %30 : vector<128xf32> to vector<1x128xf32>
    %c1_16 = arith.constant 1 : index
    %c2_17 = arith.constant 2 : index
    %c0_18 = arith.constant 0 : index
    %32 = vector.load %arg1[%c1_16, %c2_17, %c0_18] : memref<8x4x128xf32, #tpu.memory_space<vmem>>, vector<1x1x128xf32>
    %33 = vector.shape_cast %32 : vector<1x1x128xf32> to vector<128xf32>
    %34 = vector.shape_cast %33 : vector<128xf32> to vector<1x128xf32>
    %c1_19 = arith.constant 1 : index
    %c3_20 = arith.constant 3 : index
    %c0_21 = arith.constant 0 : index
    %35 = vector.load %arg1[%c1_19, %c3_20, %c0_21] : memref<8x4x128xf32, #tpu.memory_space<vmem>>, vector<1x1x128xf32>
    %36 = vector.shape_cast %35 : vector<1x1x128xf32> to vector<128xf32>
    %37 = vector.shape_cast %36 : vector<128xf32> to vector<1x128xf32>
    %c1_i32_22 = arith.constant 1 : i32
    %38 = tpu.dynamic_rotate %25 by %c1_i32_22 dim 1 : vector<64x128xf32>, i32 -> vector<64x128xf32>
    %c127_i32_23 = arith.constant 127 : i32
    %39 = tpu.dynamic_rotate %25 by %c127_i32_23 dim 1 : vector<64x128xf32>, i32 -> vector<64x128xf32>
    %40 = vector.broadcast %28 : vector<1x128xf32> to vector<64x128xf32>
    %41 = arith.mulf %40, %38 : vector<64x128xf32>
    %42 = vector.broadcast %31 : vector<1x128xf32> to vector<64x128xf32>
    %43 = arith.mulf %42, %25 : vector<64x128xf32>
    %44 = arith.addf %41, %43 : vector<64x128xf32>
    %45 = vector.broadcast %34 : vector<1x128xf32> to vector<64x128xf32>
    %46 = arith.mulf %45, %39 : vector<64x128xf32>
    %47 = arith.addf %44, %46 : vector<64x128xf32>
    %48 = vector.broadcast %37 : vector<1x128xf32> to vector<64x128xf32>
    %49 = arith.addf %47, %48 : vector<64x128xf32>
    %50 = math.sin %49 : vector<64x128xf32>
    %c2_24 = arith.constant 2 : index
    %c0_25 = arith.constant 0 : index
    %c0_26 = arith.constant 0 : index
    %51 = vector.load %arg1[%c2_24, %c0_25, %c0_26] : memref<8x4x128xf32, #tpu.memory_space<vmem>>, vector<1x1x128xf32>
    %52 = vector.shape_cast %51 : vector<1x1x128xf32> to vector<128xf32>
    %53 = vector.shape_cast %52 : vector<128xf32> to vector<1x128xf32>
    %c2_27 = arith.constant 2 : index
    %c1_28 = arith.constant 1 : index
    %c0_29 = arith.constant 0 : index
    %54 = vector.load %arg1[%c2_27, %c1_28, %c0_29] : memref<8x4x128xf32, #tpu.memory_space<vmem>>, vector<1x1x128xf32>
    %55 = vector.shape_cast %54 : vector<1x1x128xf32> to vector<128xf32>
    %56 = vector.shape_cast %55 : vector<128xf32> to vector<1x128xf32>
    %c2_30 = arith.constant 2 : index
    %c2_31 = arith.constant 2 : index
    %c0_32 = arith.constant 0 : index
    %57 = vector.load %arg1[%c2_30, %c2_31, %c0_32] : memref<8x4x128xf32, #tpu.memory_space<vmem>>, vector<1x1x128xf32>
    %58 = vector.shape_cast %57 : vector<1x1x128xf32> to vector<128xf32>
    %59 = vector.shape_cast %58 : vector<128xf32> to vector<1x128xf32>
    %c2_33 = arith.constant 2 : index
    %c3_34 = arith.constant 3 : index
    %c0_35 = arith.constant 0 : index
    %60 = vector.load %arg1[%c2_33, %c3_34, %c0_35] : memref<8x4x128xf32, #tpu.memory_space<vmem>>, vector<1x1x128xf32>
    %61 = vector.shape_cast %60 : vector<1x1x128xf32> to vector<128xf32>
    %62 = vector.shape_cast %61 : vector<128xf32> to vector<1x128xf32>
    %c1_i32_36 = arith.constant 1 : i32
    %63 = tpu.dynamic_rotate %50 by %c1_i32_36 dim 1 : vector<64x128xf32>, i32 -> vector<64x128xf32>
    %c127_i32_37 = arith.constant 127 : i32
    %64 = tpu.dynamic_rotate %50 by %c127_i32_37 dim 1 : vector<64x128xf32>, i32 -> vector<64x128xf32>
    %65 = vector.broadcast %53 : vector<1x128xf32> to vector<64x128xf32>
    %66 = arith.mulf %65, %63 : vector<64x128xf32>
    %67 = vector.broadcast %56 : vector<1x128xf32> to vector<64x128xf32>
    %68 = arith.mulf %67, %50 : vector<64x128xf32>
    %69 = arith.addf %66, %68 : vector<64x128xf32>
    %70 = vector.broadcast %59 : vector<1x128xf32> to vector<64x128xf32>
    %71 = arith.mulf %70, %64 : vector<64x128xf32>
    %72 = arith.addf %69, %71 : vector<64x128xf32>
    %73 = vector.broadcast %62 : vector<1x128xf32> to vector<64x128xf32>
    %74 = arith.addf %72, %73 : vector<64x128xf32>
    %75 = math.sin %74 : vector<64x128xf32>
    %c3_38 = arith.constant 3 : index
    %c0_39 = arith.constant 0 : index
    %c0_40 = arith.constant 0 : index
    %76 = vector.load %arg1[%c3_38, %c0_39, %c0_40] : memref<8x4x128xf32, #tpu.memory_space<vmem>>, vector<1x1x128xf32>
    %77 = vector.shape_cast %76 : vector<1x1x128xf32> to vector<128xf32>
    %78 = vector.shape_cast %77 : vector<128xf32> to vector<1x128xf32>
    %c3_41 = arith.constant 3 : index
    %c1_42 = arith.constant 1 : index
    %c0_43 = arith.constant 0 : index
    %79 = vector.load %arg1[%c3_41, %c1_42, %c0_43] : memref<8x4x128xf32, #tpu.memory_space<vmem>>, vector<1x1x128xf32>
    %80 = vector.shape_cast %79 : vector<1x1x128xf32> to vector<128xf32>
    %81 = vector.shape_cast %80 : vector<128xf32> to vector<1x128xf32>
    %c3_44 = arith.constant 3 : index
    %c2_45 = arith.constant 2 : index
    %c0_46 = arith.constant 0 : index
    %82 = vector.load %arg1[%c3_44, %c2_45, %c0_46] : memref<8x4x128xf32, #tpu.memory_space<vmem>>, vector<1x1x128xf32>
    %83 = vector.shape_cast %82 : vector<1x1x128xf32> to vector<128xf32>
    %84 = vector.shape_cast %83 : vector<128xf32> to vector<1x128xf32>
    %c3_47 = arith.constant 3 : index
    %c3_48 = arith.constant 3 : index
    %c0_49 = arith.constant 0 : index
    %85 = vector.load %arg1[%c3_47, %c3_48, %c0_49] : memref<8x4x128xf32, #tpu.memory_space<vmem>>, vector<1x1x128xf32>
    %86 = vector.shape_cast %85 : vector<1x1x128xf32> to vector<128xf32>
    %87 = vector.shape_cast %86 : vector<128xf32> to vector<1x128xf32>
    %c1_i32_50 = arith.constant 1 : i32
    %88 = tpu.dynamic_rotate %75 by %c1_i32_50 dim 1 : vector<64x128xf32>, i32 -> vector<64x128xf32>
    %c127_i32_51 = arith.constant 127 : i32
    %89 = tpu.dynamic_rotate %75 by %c127_i32_51 dim 1 : vector<64x128xf32>, i32 -> vector<64x128xf32>
    %90 = vector.broadcast %78 : vector<1x128xf32> to vector<64x128xf32>
    %91 = arith.mulf %90, %88 : vector<64x128xf32>
    %92 = vector.broadcast %81 : vector<1x128xf32> to vector<64x128xf32>
    %93 = arith.mulf %92, %75 : vector<64x128xf32>
    %94 = arith.addf %91, %93 : vector<64x128xf32>
    %95 = vector.broadcast %84 : vector<1x128xf32> to vector<64x128xf32>
    %96 = arith.mulf %95, %89 : vector<64x128xf32>
    %97 = arith.addf %94, %96 : vector<64x128xf32>
    %98 = vector.broadcast %87 : vector<1x128xf32> to vector<64x128xf32>
    %99 = arith.addf %97, %98 : vector<64x128xf32>
    %100 = math.sin %99 : vector<64x128xf32>
    %c4 = arith.constant 4 : index
    %c0_52 = arith.constant 0 : index
    %c0_53 = arith.constant 0 : index
    %101 = vector.load %arg1[%c4, %c0_52, %c0_53] : memref<8x4x128xf32, #tpu.memory_space<vmem>>, vector<1x1x128xf32>
    %102 = vector.shape_cast %101 : vector<1x1x128xf32> to vector<128xf32>
    %103 = vector.shape_cast %102 : vector<128xf32> to vector<1x128xf32>
    %c4_54 = arith.constant 4 : index
    %c1_55 = arith.constant 1 : index
    %c0_56 = arith.constant 0 : index
    %104 = vector.load %arg1[%c4_54, %c1_55, %c0_56] : memref<8x4x128xf32, #tpu.memory_space<vmem>>, vector<1x1x128xf32>
    %105 = vector.shape_cast %104 : vector<1x1x128xf32> to vector<128xf32>
    %106 = vector.shape_cast %105 : vector<128xf32> to vector<1x128xf32>
    %c4_57 = arith.constant 4 : index
    %c2_58 = arith.constant 2 : index
    %c0_59 = arith.constant 0 : index
    %107 = vector.load %arg1[%c4_57, %c2_58, %c0_59] : memref<8x4x128xf32, #tpu.memory_space<vmem>>, vector<1x1x128xf32>
    %108 = vector.shape_cast %107 : vector<1x1x128xf32> to vector<128xf32>
    %109 = vector.shape_cast %108 : vector<128xf32> to vector<1x128xf32>
    %c4_60 = arith.constant 4 : index
    %c3_61 = arith.constant 3 : index
    %c0_62 = arith.constant 0 : index
    %110 = vector.load %arg1[%c4_60, %c3_61, %c0_62] : memref<8x4x128xf32, #tpu.memory_space<vmem>>, vector<1x1x128xf32>
    %111 = vector.shape_cast %110 : vector<1x1x128xf32> to vector<128xf32>
    %112 = vector.shape_cast %111 : vector<128xf32> to vector<1x128xf32>
    %c1_i32_63 = arith.constant 1 : i32
    %113 = tpu.dynamic_rotate %100 by %c1_i32_63 dim 1 : vector<64x128xf32>, i32 -> vector<64x128xf32>
    %c127_i32_64 = arith.constant 127 : i32
    %114 = tpu.dynamic_rotate %100 by %c127_i32_64 dim 1 : vector<64x128xf32>, i32 -> vector<64x128xf32>
    %115 = vector.broadcast %103 : vector<1x128xf32> to vector<64x128xf32>
    %116 = arith.mulf %115, %113 : vector<64x128xf32>
    %117 = vector.broadcast %106 : vector<1x128xf32> to vector<64x128xf32>
    %118 = arith.mulf %117, %100 : vector<64x128xf32>
    %119 = arith.addf %116, %118 : vector<64x128xf32>
    %120 = vector.broadcast %109 : vector<1x128xf32> to vector<64x128xf32>
    %121 = arith.mulf %120, %114 : vector<64x128xf32>
    %122 = arith.addf %119, %121 : vector<64x128xf32>
    %123 = vector.broadcast %112 : vector<1x128xf32> to vector<64x128xf32>
    %124 = arith.addf %122, %123 : vector<64x128xf32>
    %125 = math.sin %124 : vector<64x128xf32>
    %c5 = arith.constant 5 : index
    %c0_65 = arith.constant 0 : index
    %c0_66 = arith.constant 0 : index
    %126 = vector.load %arg1[%c5, %c0_65, %c0_66] : memref<8x4x128xf32, #tpu.memory_space<vmem>>, vector<1x1x128xf32>
    %127 = vector.shape_cast %126 : vector<1x1x128xf32> to vector<128xf32>
    %128 = vector.shape_cast %127 : vector<128xf32> to vector<1x128xf32>
    %c5_67 = arith.constant 5 : index
    %c1_68 = arith.constant 1 : index
    %c0_69 = arith.constant 0 : index
    %129 = vector.load %arg1[%c5_67, %c1_68, %c0_69] : memref<8x4x128xf32, #tpu.memory_space<vmem>>, vector<1x1x128xf32>
    %130 = vector.shape_cast %129 : vector<1x1x128xf32> to vector<128xf32>
    %131 = vector.shape_cast %130 : vector<128xf32> to vector<1x128xf32>
    %c5_70 = arith.constant 5 : index
    %c2_71 = arith.constant 2 : index
    %c0_72 = arith.constant 0 : index
    %132 = vector.load %arg1[%c5_70, %c2_71, %c0_72] : memref<8x4x128xf32, #tpu.memory_space<vmem>>, vector<1x1x128xf32>
    %133 = vector.shape_cast %132 : vector<1x1x128xf32> to vector<128xf32>
    %134 = vector.shape_cast %133 : vector<128xf32> to vector<1x128xf32>
    %c5_73 = arith.constant 5 : index
    %c3_74 = arith.constant 3 : index
    %c0_75 = arith.constant 0 : index
    %135 = vector.load %arg1[%c5_73, %c3_74, %c0_75] : memref<8x4x128xf32, #tpu.memory_space<vmem>>, vector<1x1x128xf32>
    %136 = vector.shape_cast %135 : vector<1x1x128xf32> to vector<128xf32>
    %137 = vector.shape_cast %136 : vector<128xf32> to vector<1x128xf32>
    %c1_i32_76 = arith.constant 1 : i32
    %138 = tpu.dynamic_rotate %125 by %c1_i32_76 dim 1 : vector<64x128xf32>, i32 -> vector<64x128xf32>
    %c127_i32_77 = arith.constant 127 : i32
    %139 = tpu.dynamic_rotate %125 by %c127_i32_77 dim 1 : vector<64x128xf32>, i32 -> vector<64x128xf32>
    %140 = vector.broadcast %128 : vector<1x128xf32> to vector<64x128xf32>
    %141 = arith.mulf %140, %138 : vector<64x128xf32>
    %142 = vector.broadcast %131 : vector<1x128xf32> to vector<64x128xf32>
    %143 = arith.mulf %142, %125 : vector<64x128xf32>
    %144 = arith.addf %141, %143 : vector<64x128xf32>
    %145 = vector.broadcast %134 : vector<1x128xf32> to vector<64x128xf32>
    %146 = arith.mulf %145, %139 : vector<64x128xf32>
    %147 = arith.addf %144, %146 : vector<64x128xf32>
    %148 = vector.broadcast %137 : vector<1x128xf32> to vector<64x128xf32>
    %149 = arith.addf %147, %148 : vector<64x128xf32>
    %150 = math.sin %149 : vector<64x128xf32>
    %c6 = arith.constant 6 : index
    %c0_78 = arith.constant 0 : index
    %c0_79 = arith.constant 0 : index
    %151 = vector.load %arg1[%c6, %c0_78, %c0_79] : memref<8x4x128xf32, #tpu.memory_space<vmem>>, vector<1x1x128xf32>
    %152 = vector.shape_cast %151 : vector<1x1x128xf32> to vector<128xf32>
    %153 = vector.shape_cast %152 : vector<128xf32> to vector<1x128xf32>
    %c6_80 = arith.constant 6 : index
    %c1_81 = arith.constant 1 : index
    %c0_82 = arith.constant 0 : index
    %154 = vector.load %arg1[%c6_80, %c1_81, %c0_82] : memref<8x4x128xf32, #tpu.memory_space<vmem>>, vector<1x1x128xf32>
    %155 = vector.shape_cast %154 : vector<1x1x128xf32> to vector<128xf32>
    %156 = vector.shape_cast %155 : vector<128xf32> to vector<1x128xf32>
    %c6_83 = arith.constant 6 : index
    %c2_84 = arith.constant 2 : index
    %c0_85 = arith.constant 0 : index
    %157 = vector.load %arg1[%c6_83, %c2_84, %c0_85] : memref<8x4x128xf32, #tpu.memory_space<vmem>>, vector<1x1x128xf32>
    %158 = vector.shape_cast %157 : vector<1x1x128xf32> to vector<128xf32>
    %159 = vector.shape_cast %158 : vector<128xf32> to vector<1x128xf32>
    %c6_86 = arith.constant 6 : index
    %c3_87 = arith.constant 3 : index
    %c0_88 = arith.constant 0 : index
    %160 = vector.load %arg1[%c6_86, %c3_87, %c0_88] : memref<8x4x128xf32, #tpu.memory_space<vmem>>, vector<1x1x128xf32>
    %161 = vector.shape_cast %160 : vector<1x1x128xf32> to vector<128xf32>
    %162 = vector.shape_cast %161 : vector<128xf32> to vector<1x128xf32>
    %c1_i32_89 = arith.constant 1 : i32
    %163 = tpu.dynamic_rotate %150 by %c1_i32_89 dim 1 : vector<64x128xf32>, i32 -> vector<64x128xf32>
    %c127_i32_90 = arith.constant 127 : i32
    %164 = tpu.dynamic_rotate %150 by %c127_i32_90 dim 1 : vector<64x128xf32>, i32 -> vector<64x128xf32>
    %165 = vector.broadcast %153 : vector<1x128xf32> to vector<64x128xf32>
    %166 = arith.mulf %165, %163 : vector<64x128xf32>
    %167 = vector.broadcast %156 : vector<1x128xf32> to vector<64x128xf32>
    %168 = arith.mulf %167, %150 : vector<64x128xf32>
    %169 = arith.addf %166, %168 : vector<64x128xf32>
    %170 = vector.broadcast %159 : vector<1x128xf32> to vector<64x128xf32>
    %171 = arith.mulf %170, %164 : vector<64x128xf32>
    %172 = arith.addf %169, %171 : vector<64x128xf32>
    %173 = vector.broadcast %162 : vector<1x128xf32> to vector<64x128xf32>
    %174 = arith.addf %172, %173 : vector<64x128xf32>
    %175 = math.sin %174 : vector<64x128xf32>
    %c7 = arith.constant 7 : index
    %c0_91 = arith.constant 0 : index
    %c0_92 = arith.constant 0 : index
    %176 = vector.load %arg1[%c7, %c0_91, %c0_92] : memref<8x4x128xf32, #tpu.memory_space<vmem>>, vector<1x1x128xf32>
    %177 = vector.shape_cast %176 : vector<1x1x128xf32> to vector<128xf32>
    %178 = vector.shape_cast %177 : vector<128xf32> to vector<1x128xf32>
    %c7_93 = arith.constant 7 : index
    %c1_94 = arith.constant 1 : index
    %c0_95 = arith.constant 0 : index
    %179 = vector.load %arg1[%c7_93, %c1_94, %c0_95] : memref<8x4x128xf32, #tpu.memory_space<vmem>>, vector<1x1x128xf32>
    %180 = vector.shape_cast %179 : vector<1x1x128xf32> to vector<128xf32>
    %181 = vector.shape_cast %180 : vector<128xf32> to vector<1x128xf32>
    %c7_96 = arith.constant 7 : index
    %c2_97 = arith.constant 2 : index
    %c0_98 = arith.constant 0 : index
    %182 = vector.load %arg1[%c7_96, %c2_97, %c0_98] : memref<8x4x128xf32, #tpu.memory_space<vmem>>, vector<1x1x128xf32>
    %183 = vector.shape_cast %182 : vector<1x1x128xf32> to vector<128xf32>
    %184 = vector.shape_cast %183 : vector<128xf32> to vector<1x128xf32>
    %c7_99 = arith.constant 7 : index
    %c3_100 = arith.constant 3 : index
    %c0_101 = arith.constant 0 : index
    %185 = vector.load %arg1[%c7_99, %c3_100, %c0_101] : memref<8x4x128xf32, #tpu.memory_space<vmem>>, vector<1x1x128xf32>
    %186 = vector.shape_cast %185 : vector<1x1x128xf32> to vector<128xf32>
    %187 = vector.shape_cast %186 : vector<128xf32> to vector<1x128xf32>
    %c1_i32_102 = arith.constant 1 : i32
    %188 = tpu.dynamic_rotate %175 by %c1_i32_102 dim 1 : vector<64x128xf32>, i32 -> vector<64x128xf32>
    %c127_i32_103 = arith.constant 127 : i32
    %189 = tpu.dynamic_rotate %175 by %c127_i32_103 dim 1 : vector<64x128xf32>, i32 -> vector<64x128xf32>
    %190 = vector.broadcast %178 : vector<1x128xf32> to vector<64x128xf32>
    %191 = arith.mulf %190, %188 : vector<64x128xf32>
    %192 = vector.broadcast %181 : vector<1x128xf32> to vector<64x128xf32>
    %193 = arith.mulf %192, %175 : vector<64x128xf32>
    %194 = arith.addf %191, %193 : vector<64x128xf32>
    %195 = vector.broadcast %184 : vector<1x128xf32> to vector<64x128xf32>
    %196 = arith.mulf %195, %189 : vector<64x128xf32>
    %197 = arith.addf %194, %196 : vector<64x128xf32>
    %198 = vector.broadcast %187 : vector<1x128xf32> to vector<64x128xf32>
    %199 = arith.addf %197, %198 : vector<64x128xf32>
    %200 = math.sin %199 : vector<64x128xf32>
    %c0_104 = arith.constant 0 : index
    %c0_105 = arith.constant 0 : index
    %201 = vector.load %arg3[%c0_104, %c0_105] : memref<64x128xf32, #tpu.memory_space<vmem>>, vector<64x128xf32>
    tpu.vector_store %arg3[%c0_104, %c0_105], %200 {strides = array<i32>} : memref<64x128xf32, #tpu.memory_space<vmem>>, vector<64x128xf32>,
    return
  }
  func.func @transform_0(%arg0: i32) -> (i32, i32, i32) {
    %c0_i32 = arith.constant 0 : i32
    %c0_i32_0 = arith.constant 0 : i32
    %c0_i32_1 = arith.constant 0 : i32
    %c0_i32_2 = arith.constant 0 : i32
    return %c0_i32, %c0_i32_0, %c0_i32_1 : i32, i32, i32
  }
  func.func @transform_1(%arg0: i32) -> (i32, i32) {
    %c0_i32 = arith.constant 0 : i32
    %c0_i32_0 = arith.constant 0 : i32
    return %arg0, %c0_i32 : i32, i32
  }
  func.func @transform_2(%arg0: i32) -> (i32, i32) {
    %c0_i32 = arith.constant 0 : i32
    %c0_i32_0 = arith.constant 0 : i32
    return %arg0, %c0_i32 : i32, i32
  }
}

</mosaic_0001>

<llo_original>
// kernel: tpu_custom_call.1
$region0: #{tpu_custom_call.1}
  #allocation0 [shape = 'u32[]', space=smem, size = 0x4, offset = 0x4, fixed_abs, tag = 'smem constant byte address 0x4 - core index']
  #allocation1 [shape = 'u32[144,128]{1,0:T(1,128)}', space=vmem, size = 0x12000, scoped, tag = 'internal scratch']
  %s0 = inlined_call_operand.hbm [shape: f32[8,4,128], index: 0, kind: input, shape index: {}]
  %s1 = inlined_call_operand.hbm [shape: f32[256,128], index: 1, kind: input, shape index: {}]
  %s2 = inlined_call_operand.hbm [shape: f32[256,128], index: 2, kind: output, shape index: {}]
  %s3 = sld [smem:[#allocation0]]
  $region49: #{tpu_custom_call.1} parent=0
    _
  %s5 = ssub.s32 1, %s3
  %s6 = scalar_select 0, %s5, %s3
  $region1: #{tpu_custom_call.1} parent=0
    #allocation2 [shape = 'u8[16384]{0}', space=vmem, size = 0x4000, scoped, tag = 'input window, operand 0, single buffered']
    #allocation3 [shape = 's32[2]{0}', space=sflag, size = 0x8, scoped, tag = 'scoped memory for tpu_custom_call.1']
    #allocation4 [shape = 's32[2]{0}', space=sflag, size = 0x8, scoped, tag = 'scoped memory for tpu_custom_call.1']
    #allocation5 [shape = 'u8[65536]{0}', space=vmem, size = 0x10000, scoped, tag = 'input window, operand 1']
    #allocation6 [shape = 's32[2]{0}', space=sflag, size = 0x8, scoped, tag = 'scoped memory for tpu_custom_call.1']
    #allocation7 [shape = 'u8[65536]{0}', space=vmem, size = 0x10000, scoped, tag = 'output window, operand 0']
    %7 = vsyncpa [#allocation3], 0
    %8 = vsyncpa [#allocation6], 0
    %s9 = scalar_lea.sflag [#allocation6], 1
    %10 = vsyncpa %s9, 0
    %11 = vsyncpa [#allocation4], 0
    %s12 = scalar_lea.sflag [#allocation4], 1
    %13 = vsyncpa %s12, 0
    loop: start=0, step=1, limit=6
    $region2: #{tpu_custom_call.1} parent=1 // loop_pre_header
      _
    $region3: #{tpu_custom_call.1} parent=1 // loop_header
      %s15 = sphi 0, %s19
      %p16 = scmp.ge.s32.totalorder %s15, 6
      %s23 = sphi 0, %s23
      %s25 = sphi 0, %s23
      %s26 = sphi 0, %s25
      %s40 = sphi 0, %s26
      %s46 = sphi 0, %s48
      %s49 = sphi 0, %s46
      %s50 = sphi 0, %s49
      %s66 = sphi 0, %s50
      %s72 = sphi 0, %s74
      %s75 = sphi 0, %s72
      %s76 = sphi 0, %s75
      %s92 = sphi 0, %s76
    $region4: #{tpu_custom_call.1} parent=1 // loop_header_branch
      %18 = sbr.rel (%p16) target = $region8
    $region5: #{tpu_custom_call.1} parent=1 // loop_body
      %s20 = ssub.s32 %s15, 1
      %s21 = ssub.s32 %s15, 2
      %s22 = sadd.s32 %s15, 1
      %s24 = sadd.s32 %s23, 1
      %p27 = scmp.eq.s32.totalorder %s15, 3
      %p28 = scmp.ne.s32.totalorder %s23, %s25
      %p29 = scmp.eq.s32.totalorder %s15, 0
      %p30 = por %p28, %p29
      %p31 = scmp.ne.s32.totalorder %s23, %s25
      %p32 = scmp.eq.s32.totalorder %s20, 3
      %p33 = por %p31, %p32
      %p34 = scmp.ne.s32.totalorder %s25, %s26
      %p35 = scmp.eq.s32.totalorder %s20, 0
      %p36 = por %p34, %p35
      %p37 = scmp.ne.s32.totalorder %s25, %s26
      %p38 = scmp.eq.s32.totalorder %s21, 3
      %p39 = por %p37, %p38
      %p41 = scmp.ne.s32.totalorder %s26, %s40
      %p42 = scmp.eq.s32.totalorder %s21, 0
      %p43 = por %p41, %p42
      %s44 = ssub.s32 %s15, %s22
      %p45 = scmp.eq.s32.totalorder %s44, 0
      %s47 = sadd.s32 %s46, 1
      %s48 = scalar_select %p45, %s46, %s47
      %p51 = pneg %p45
      %p52 = scmp.eq.s32.totalorder %s15, 3
      %p53 = por %p51, %p52
      %p54 = scmp.ne.s32.totalorder %s46, %s49
      %p55 = scmp.eq.s32.totalorder %s15, 0
      %p56 = por %p54, %p55
      %p57 = scmp.ne.s32.totalorder %s46, %s49
      %p58 = scmp.eq.s32.totalorder %s20, 3
      %p59 = por %p57, %p58
      %p60 = scmp.ne.s32.totalorder %s49, %s50
      %p61 = scmp.eq.s32.totalorder %s20, 0
      %p62 = por %p60, %p61
      %p63 = scmp.ne.s32.totalorder %s49, %s50
      %p64 = scmp.eq.s32.totalorder %s21, 3
      %p65 = por %p63, %p64
      %p67 = scmp.ne.s32.totalorder %s50, %s66
      %p68 = scmp.eq.s32.totalorder %s21, 0
      %p69 = por %p67, %p68
      %s70 = ssub.s32 %s15, %s22
      %p71 = scmp.eq.s32.totalorder %s70, 0
      %s73 = sadd.s32 %s72, 1
      %s74 = scalar_select %p71, %s72, %s73
      %p77 = pneg %p71
      %p78 = scmp.eq.s32.totalorder %s15, 3
      %p79 = por %p77, %p78
      %p80 = scmp.ne.s32.totalorder %s72, %s75
      %p81 = scmp.eq.s32.totalorder %s15, 0
      %p82 = por %p80, %p81
      %p83 = scmp.ne.s32.totalorder %s72, %s75
      %p84 = scmp.eq.s32.totalorder %s20, 3
      %p85 = por %p83, %p84
      %p86 = scmp.ne.s32.totalorder %s75, %s76
      %p87 = scmp.eq.s32.totalorder %s20, 0
      %p88 = por %p86, %p87
      %p89 = scmp.ne.s32.totalorder %s75, %s76
      %p90 = scmp.eq.s32.totalorder %s21, 3
      %p91 = por %p89, %p90
      %p93 = scmp.ne.s32.totalorder %s76, %s92
      %p94 = scmp.eq.s32.totalorder %s21, 0
      %p95 = por %p93, %p94
      %p96 = scmp.le.s32.totalorder 1, %s15
      %p97 = scmp.lt.s32.totalorder %s15, 5
      %p98 = pnand %p96, %p97
      %p99 = pneg %p98
      // Predicated region
      $region9: #{tpu_custom_call.1} parent=5 // pred_check
        _
      $region10: #{tpu_custom_call.1} parent=5 // pred_check_branch
        %101 = sbr.rel (%p98) target = $region12
      $region11: #{tpu_custom_call.1} parent=5 // pred_region
        %s102 = ssub.s32 %s15, 1
        // Predicated region
        $region13: #{tpu_custom_call.1} parent=11 // pred_check
          %p103 = pneg %p36
        $region14: #{tpu_custom_call.1} parent=11 // pred_check_branch
          %105 = sbr.rel (%p103) target = $region16
        $region15: #{tpu_custom_call.1} parent=11 // pred_region
          %s107 = ssub.s32 512, 512
          %108 = vsyncadd [#allocation3], %s107
          %s109 = sshll.u32 [#allocation2], 4
          %s110 = int_to_ptr.vmem [resolvable:$true] %s109
          %115 = dma.hbm_to_vmem [thread:$0]  %s0, 512, %s110, [#allocation3], 64, 64, 4
        $region16: #{tpu_custom_call.1} parent=11 // pred_fallthru
          _
      $region12: #{tpu_custom_call.1} parent=5 // pred_fallthru
        _
      %p116 = scmp.lt.s32.totalorder %s15, 4
      // Predicated region
      $region17: #{tpu_custom_call.1} parent=5 // pred_check
        %p117 = pneg %p116
      $region18: #{tpu_custom_call.1} parent=5 // pred_check_branch
        %119 = sbr.rel (%p117) target = $region20
      $region19: #{tpu_custom_call.1} parent=5 // pred_region
        // Predicated region
        $region21: #{tpu_custom_call.1} parent=19 // pred_check
          %p120 = pneg %p56
        $region22: #{tpu_custom_call.1} parent=19 // pred_check_branch
          %122 = sbr.rel (%p120) target = $region24
        $region23: #{tpu_custom_call.1} parent=19 // pred_region
          %s123 = sand.u32 %s46, 1
          %s124 = scalar_lea.sflag [#allocation6], %s123
          %s125 = sand.u32 %s46, 1
          %s126 = smul.addr %s125, 64
          %s127 = scalar_lea.vmem [#allocation5], %s126
          %s128 = smul.u32 8, %s15
          %s130 = ssub.s32 1024, 1024
          %131 = vsyncadd %s124, %s130
          %s132 = smul.addr %s128, 128
          %s133 = scalar_lea.hbm %s1, %s132
          %s134 = sshll.u32 %s127, 4
          %s135 = int_to_ptr.vmem [resolvable:$true] %s134
          %140 = dma.hbm_to_vmem [thread:$0]  %s133, 1024, %s135, %s124, 128, 128, 8
        $region24: #{tpu_custom_call.1} parent=19 // pred_fallthru
          _
      $region20: #{tpu_custom_call.1} parent=5 // pred_fallthru
        _
      %p141 = scmp.le.s32.totalorder 1, %s15
      %p142 = scmp.lt.s32.totalorder %s15, 5
      %p143 = pnand %p141, %p142
      %p144 = pneg %p143
      // Predicated region
      $region25: #{tpu_custom_call.1} parent=5 // pred_check
        _
      $region26: #{tpu_custom_call.1} parent=5 // pred_check_branch
        %146 = sbr.rel (%p143) target = $region28
      $region27: #{tpu_custom_call.1} parent=5 // pred_region
        %s147 = ssub.s32 %s15, 1
        // Predicated region
        $region29: #{tpu_custom_call.1} parent=27 // pred_check
          %p148 = pneg %p36
        $region30: #{tpu_custom_call.1} parent=27 // pred_check_branch
          %150 = sbr.rel (%p148) target = $region32
        $region31: #{tpu_custom_call.1} parent=27 // pred_region
          %151 = dma.done [#allocation3], 512
        $region32: #{tpu_custom_call.1} parent=27 // pred_fallthru
          _
        %s152 = sand.u32 %s49, 1
        %s153 = scalar_lea.sflag [#allocation6], %s152
        %s154 = sand.u32 %s49, 1
        %s155 = smul.addr %s154, 64
        %s156 = scalar_lea.vmem [#allocation5], %s155
        // Predicated region
        $region33: #{tpu_custom_call.1} parent=27 // pred_check
          %p157 = pneg %p62
        $region34: #{tpu_custom_call.1} parent=27 // pred_check_branch
          %159 = sbr.rel (%p157) target = $region36
        $region35: #{tpu_custom_call.1} parent=27 // pred_region
          %160 = dma.done %s153, 1024
        $region36: #{tpu_custom_call.1} parent=27 // pred_fallthru
          _
        %p161 = pneg %p36
        %p162 = pneg %p33
        %s163 = sand.u32 %s49, 1
        %s164 = scalar_lea.sflag [#allocation6], %s163
        %s165 = sand.u32 %s49, 1
        %s166 = smul.addr %s165, 64
        %s167 = scalar_lea.vmem [#allocation5], %s166
        %p168 = pneg %p62
        %p169 = pneg %p59
        %p170 = pneg %p88
        %p171 = pneg %p85
        %s172 = sand.u32 %s75, 1
        %s173 = scalar_lea.sflag [#allocation4], %s172
        %s174 = sand.u32 %s75, 1
        %s175 = smul.addr %s174, 64
        %s176 = scalar_lea.vmem [#allocation7], %s175
        %s177 = smul.u32 8, %s20
        %s178 = smul.u32 8, %s20
        %v179 = vld [vmem:[%s156] sm:$0xff]
        %v180 = vld [vmem:[%s156 + $0x8] sm:$0xff]
        %v181 = vld [vmem:[%s156 + $0x10] sm:$0xff]
        %v182 = vld [vmem:[%s156 + $0x18] sm:$0xff]
        %v183 = vld [vmem:[%s156 + $0x20] sm:$0xff]
        %v184 = vld [vmem:[%s156 + $0x28] sm:$0xff]
        %v185 = vld [vmem:[%s156 + $0x30] sm:$0xff]
        %v186 = vld [vmem:[%s156 + $0x38] sm:$0xff]
        %v187 = vld [vmem:[#allocation2] sm:$0x1]
        %v188 = vld [vmem:[#allocation2 + $0x1] sm:$0x1]
        %v189 = vld [vmem:[#allocation2 + $0x2] sm:$0x1]
        %v190 = vld [vmem:[#allocation2 + $0x3] sm:$0x1]
        %191 = vrot.lane.b32.xlu0 %v179, 1
        %v192 = vpop.permute.xlu0 %191
        %193 = vrot.lane.b32.xlu0 %v180, 1
        %v194 = vpop.permute.xlu0 %193
        %195 = vrot.lane.b32.xlu0 %v181, 1
        %v196 = vpop.permute.xlu0 %195
        %197 = vrot.lane.b32.xlu0 %v182, 1
        %v198 = vpop.permute.xlu0 %197
        %199 = vrot.lane.b32.xlu0 %v183, 1
        %v200 = vpop.permute.xlu0 %199
        %201 = vrot.lane.b32.xlu0 %v184, 1
        %v202 = vpop.permute.xlu0 %201
        %203 = vrot.lane.b32.xlu0 %v185, 1
        %v204 = vpop.permute.xlu0 %203
        %205 = vrot.lane.b32.xlu0 %v186, 1
        %v206 = vpop.permute.xlu0 %205
        %207 = vrot.lane.b32.xlu0 %v179, 127
        %v208 = vpop.permute.xlu0 %207
        %209 = vrot.lane.b32.xlu0 %v180, 127
        %v210 = vpop.permute.xlu0 %209
        %211 = vrot.lane.b32.xlu0 %v181, 127
        %v212 = vpop.permute.xlu0 %211
        %213 = vrot.lane.b32.xlu0 %v182, 127
        %v214 = vpop.permute.xlu0 %213
        %215 = vrot.lane.b32.xlu0 %v183, 127
        %v216 = vpop.permute.xlu0 %215
        %217 = vrot.lane.b32.xlu0 %v184, 127
        %v218 = vpop.permute.xlu0 %217
        %219 = vrot.lane.b32.xlu0 %v185, 127
        %v220 = vpop.permute.xlu0 %219
        %221 = vrot.lane.b32.xlu0 %v186, 127
        %v222 = vpop.permute.xlu0 %221
        %v223 = vlaneseq
        %v224 = vshrl.u32 %v223, 7
        %v225 = vsub.s32 0, %v224
        %v226 = vrot.slane %v187, %v225
        %v227 = vmul.f32 %v226, %v192
        %v228 = vmul.f32 %v226, %v194
        %v229 = vmul.f32 %v226, %v196
        %v230 = vmul.f32 %v226, %v198
        %v231 = vmul.f32 %v226, %v200
        %v232 = vmul.f32 %v226, %v202
        %v233 = vmul.f32 %v226, %v204
        %v234 = vmul.f32 %v226, %v206
        %v235 = vlaneseq
        %v236 = vshrl.u32 %v235, 7
        %v237 = vsub.s32 0, %v236
        %v238 = vrot.slane %v188, %v237
        %v239 = vmul.f32 %v238, %v179
        %v240 = vmul.f32 %v238, %v180
        %v241 = vmul.f32 %v238, %v181
        %v242 = vmul.f32 %v238, %v182
        %v243 = vmul.f32 %v238, %v183
        %v244 = vmul.f32 %v238, %v184
        %v245 = vmul.f32 %v238, %v185
        %v246 = vmul.f32 %v238, %v186
        %v247 = vadd.f32 %v227, %v239
        %v248 = vadd.f32 %v228, %v240
        %v249 = vadd.f32 %v229, %v241
        %v250 = vadd.f32 %v230, %v242
        %v251 = vadd.f32 %v231, %v243
        %v252 = vadd.f32 %v232, %v244
        %v253 = vadd.f32 %v233, %v245
        %v254 = vadd.f32 %v234, %v246
        %v255 = vlaneseq
        %v256 = vshrl.u32 %v255, 7
        %v257 = vsub.s32 0, %v256
        %v258 = vrot.slane %v189, %v257
        %v259 = vmul.f32 %v258, %v208
        %v260 = vmul.f32 %v258, %v210
        %v261 = vmul.f32 %v258, %v212
        %v262 = vmul.f32 %v258, %v214
        %v263 = vmul.f32 %v258, %v216
        %v264 = vmul.f32 %v258, %v218
        %v265 = vmul.f32 %v258, %v220
        %v266 = vmul.f32 %v258, %v222
        %v267 = vadd.f32 %v247, %v259
        %v268 = vadd.f32 %v248, %v260
        %v269 = vadd.f32 %v249, %v261
        %v270 = vadd.f32 %v250, %v262
        %v271 = vadd.f32 %v251, %v263
        %v272 = vadd.f32 %v252, %v264
        %v273 = vadd.f32 %v253, %v265
        %v274 = vadd.f32 %v254, %v266
        %v275 = vlaneseq
        %v276 = vshrl.u32 %v275, 7
        %v277 = vsub.s32 0, %v276
        %v278 = vrot.slane %v190, %v277
        %v279 = vadd.f32 %v267, %v278
        %v280 = vadd.f32 %v268, %v278
        %v281 = vadd.f32 %v269, %v278
        %v282 = vadd.f32 %v270, %v278
        %v283 = vadd.f32 %v271, %v278
        %v284 = vadd.f32 %v272, %v278
        %v285 = vadd.f32 %v273, %v278
        %v286 = vadd.f32 %v274, %v278
        %v287 = vand.u32 2147483647, %v279
        %vm288 = vcmp.le.f32.partialorder %v287, 0.7853982
        %vm289 = vcmp.lt.s32.totalorder %v279, 0
        %v290 = vand.u32 %v279, 2139095040
        %v291 = vshrl.u32 %v290, 23
        %v292 = vsub.s32 %v291, 127
        %v293 = vand.u32 2147483647, %v279
        %v294 = vand.u32 %v293, 8388607
        %v295 = vor.u32 %v294, 8388608
        %v296 = vsub.s32 0, %v295
        %v297 = vadd.s32 %v292, 1
        %vm298 = vcmp.gt.s32.totalorder %v297, 0
        %v299 = vsel %vm298, %v297, 0
        %v300 = vshrl.u32 %v299, 5
        %v301 = vand.u32 %v299, 31
        %v302 = vsub.s32 32, %v301
        %v303 = vshrl.u32 683565275, %v302
        %v304 = vshll.u32 683565275, %v301
        %v305 = vshrl.u32 2475754826, %v302
        %v306 = vor.u32 %v304, %v305
        %v307 = vshll.u32 2475754826, %v301
        %v308 = vshrl.u32 2131351028, %v302
        %v309 = vor.u32 %v307, %v308
        %v310 = vshll.u32 2131351028, %v301
        %v311 = vshrl.u32 2102212464, %v302
        %v312 = vor.u32 %v310, %v311
        %v313 = vshll.u32 2102212464, %v301
        %v314 = vshrl.u32 920167782, %v302
        %v315 = vor.u32 %v313, %v314
        %v316 = vshll.u32 920167782, %v301
        %v317 = vshrl.u32 1326507024, %v302
        %v318 = vor.u32 %v316, %v317
        %vm319 = vcmp.lt.s32.totalorder %v300, 1
        %vm320 = vcmp.lt.s32.totalorder %v300, 2
        %vm321 = vcmp.lt.s32.totalorder %v300, 3
        %vm322 = vcmp.lt.s32.totalorder %v300, 4
        %v323 = vsel %vm319, %v303, %v306
        %v324 = vsel %vm322, %v312, 2102212464
        %v325 = vsel %vm321, %v309, %v324
        %v326 = vsel %vm320, %v323, %v325
        %v327 = vsel %vm319, %v306, %v309
        %v328 = vsel %vm322, %v315, 920167782
        %v329 = vsel %vm321, %v312, %v328
        %v330 = vsel %vm320, %v327, %v329
        %v331 = vsel %vm319, %v309, %v312
        %v332 = vsel %vm322, %v318, 1326507024
        %v333 = vsel %vm321, %v315, %v332
        %v334 = vsel %vm320, %v331, %v333
        %v335 = vshll.u32 %v295, 8
        %v336 = vmul.u32.u64.compose %v335, %v334
        %v337 = vextract.low.u32 %v336
        %v338 = vextract.high.u32 %v336
        %v339 = vmul.u32.u64.compose %v335, %v330
        %v340 = vextract.low.u32 %v339
        %v341 = vextract.high.u32 %v339
        %v342 = vmul.u32 %v335, %v326
        %v343 = vadd.s32 %v338, %v340
        %vm344 = vc.u32 %v338, %v340
        %v345 = vadd.s32 %v341, 1
        %v346 = vsel %vm344, %v345, %v341
        %v347 = vadd.s32 %v342, %v346
        %v348 = vadd.s32 %v347, 536870912
        %v349 = vshrl.u32 %v348, 30
        %v350 = vshll.u32 %v349, 30
        %v351 = vsub.s32 %v347, %v350
        %vm352 = vcmp.lt.s32.totalorder %v351, 0
        %v353 = vsub.s32 0, %v351
        %v354 = vsel %vm352, %v353, %v351
        %v355 = vclz %v354
        %v356 = vsub.s32 %v355, 2
        %vm357 = vcmp.gt.s32.totalorder 0, %v356
        %v358 = vsel %vm357, 0, %v356
        %v359 = vsub.s32 32, %v358
        %v360 = vshll.u32 %v351, %v358
        %v361 = vshrl.u32 %v343, %v359
        %v362 = vor.u32 %v360, %v361
        %v363 = vsub.s32 4294967266, %v358
        %v364 = vadd.s32 %v363, 127
        %v365 = vshll.u32 %v364, 23
        %v366 = vor.u32 4788187, %v365
        %v367 = vand.u32 2147483647, %v366
        %v369 = vcvt.s32.f32 %v362
        %v370 = vmul.f32 %v369, %v367
        %v371 = vxor.u32 %v370, 2147483648
        %v372 = vsel %vm289, %v371, %v370
        %v373 = vsub.s32 4, %v349
        %v374 = vsel %vm289, %v373, %v349
        %v375 = vsel %vm288, %v279, %v372
        %v376 = vsel %vm288, 0, %v374
        %v377 = vcosq.f32.pop %v375
        %v378 = vsinq.f32.pop %v375
        %vm379 = vweird.f32 %v279
        %v380 = vadd.s32 %v376, 3
        %v381 = vand.u32 %v380, 3
        %vm382 = vcmp.lt.s32.totalorder %v381, 2
        %vm383 = vcmp.eq.s32.totalorder %v381, 0
        %v384 = vxor.u32 %v378, 2147483648
        %v385 = vsel %vm383, %v377, %v384
        %vm386 = vcmp.eq.s32.totalorder %v381, 2
        %v387 = vxor.u32 %v377, 2147483648
        %v388 = vsel %vm386, %v387, %v378
        %v389 = vsel %vm382, %v385, %v388
        %v390 = vsel %vm379, nan, %v389
        %v391 = vand.u32 2147483647, %v280
        %vm392 = vcmp.le.f32.partialorder %v391, 0.7853982
        %vm393 = vcmp.lt.s32.totalorder %v280, 0
        %v394 = vand.u32 %v280, 2139095040
        %v395 = vshrl.u32 %v394, 23
        %v396 = vsub.s32 %v395, 127
        %v397 = vand.u32 2147483647, %v280
        %v398 = vand.u32 %v397, 8388607
        %v399 = vor.u32 %v398, 8388608
        %v400 = vsub.s32 0, %v399
        %v401 = vadd.s32 %v396, 1
        %vm402 = vcmp.gt.s32.totalorder %v401, 0
        %v403 = vsel %vm402, %v401, 0
        %v404 = vshrl.u32 %v403, 5
        %v405 = vand.u32 %v403, 31
        %v406 = vsub.s32 32, %v405
        %v407 = vshrl.u32 683565275, %v406
        %v408 = vshll.u32 683565275, %v405
        %v409 = vshrl.u32 2475754826, %v406
        %v410 = vor.u32 %v408, %v409
        %v411 = vshll.u32 2475754826, %v405
        %v412 = vshrl.u32 2131351028, %v406
        %v413 = vor.u32 %v411, %v412
        %v414 = vshll.u32 2131351028, %v405
        %v415 = vshrl.u32 2102212464, %v406
        %v416 = vor.u32 %v414, %v415
        %v417 = vshll.u32 2102212464, %v405
        %v418 = vshrl.u32 920167782, %v406
        %v419 = vor.u32 %v417, %v418
        %v420 = vshll.u32 920167782, %v405
        %v421 = vshrl.u32 1326507024, %v406
        %v422 = vor.u32 %v420, %v421
        %vm423 = vcmp.lt.s32.totalorder %v404, 1
        %vm424 = vcmp.lt.s32.totalorder %v404, 2
        %vm425 = vcmp.lt.s32.totalorder %v404, 3
        %vm426 = vcmp.lt.s32.totalorder %v404, 4
        %v427 = vsel %vm423, %v407, %v410
        %v428 = vsel %vm426, %v416, 2102212464
        %v429 = vsel %vm425, %v413, %v428
        %v430 = vsel %vm424, %v427, %v429
        %v431 = vsel %vm423, %v410, %v413
        %v432 = vsel %vm426, %v419, 920167782
        %v433 = vsel %vm425, %v416, %v432
        %v434 = vsel %vm424, %v431, %v433
        %v435 = vsel %vm423, %v413, %v416
        %v436 = vsel %vm426, %v422, 1326507024
        %v437 = vsel %vm425, %v419, %v436
        %v438 = vsel %vm424, %v435, %v437
        %v439 = vshll.u32 %v399, 8
        %v440 = vmul.u32.u64.compose %v439, %v438
        %v441 = vextract.low.u32 %v440
        %v442 = vextract.high.u32 %v440
        %v443 = vmul.u32.u64.compose %v439, %v434
        %v444 = vextract.low.u32 %v443
        %v445 = vextract.high.u32 %v443
        %v446 = vmul.u32 %v439, %v430
        %v447 = vadd.s32 %v442, %v444
        %vm448 = vc.u32 %v442, %v444
        %v449 = vadd.s32 %v445, 1
        %v450 = vsel %vm448, %v449, %v445
        %v451 = vadd.s32 %v446, %v450
        %v452 = vadd.s32 %v451, 536870912
        %v453 = vshrl.u32 %v452, 30
        %v454 = vshll.u32 %v453, 30
        %v455 = vsub.s32 %v451, %v454
        %vm456 = vcmp.lt.s32.totalorder %v455, 0
        %v457 = vsub.s32 0, %v455
        %v458 = vsel %vm456, %v457, %v455
        %v459 = vclz %v458
        %v460 = vsub.s32 %v459, 2
        %vm461 = vcmp.gt.s32.totalorder 0, %v460
        %v462 = vsel %vm461, 0, %v460
        %v463 = vsub.s32 32, %v462
        %v464 = vshll.u32 %v455, %v462
        %v465 = vshrl.u32 %v447, %v463
        %v466 = vor.u32 %v464, %v465
        %v467 = vsub.s32 4294967266, %v462
        %v468 = vadd.s32 %v467, 127
        %v469 = vshll.u32 %v468, 23
        %v470 = vor.u32 4788187, %v469
        %v471 = vand.u32 2147483647, %v470
        %v473 = vcvt.s32.f32 %v466
        %v474 = vmul.f32 %v473, %v471
        %v475 = vxor.u32 %v474, 2147483648
        %v476 = vsel %vm393, %v475, %v474
        %v477 = vsub.s32 4, %v453
        %v478 = vsel %vm393, %v477, %v453
        %v479 = vsel %vm392, %v280, %v476
        %v480 = vsel %vm392, 0, %v478
        %v481 = vcosq.f32.pop %v479
        %v482 = vsinq.f32.pop %v479
        %vm483 = vweird.f32 %v280
        %v484 = vadd.s32 %v480, 3
        %v485 = vand.u32 %v484, 3
        %vm486 = vcmp.lt.s32.totalorder %v485, 2
        %vm487 = vcmp.eq.s32.totalorder %v485, 0
        %v488 = vxor.u32 %v482, 2147483648
        %v489 = vsel %vm487, %v481, %v488
        %vm490 = vcmp.eq.s32.totalorder %v485, 2
        %v491 = vxor.u32 %v481, 2147483648
        %v492 = vsel %vm490, %v491, %v482
        %v493 = vsel %vm486, %v489, %v492
        %v494 = vsel %vm483, nan, %v493
        %v495 = vand.u32 2147483647, %v281
        %vm496 = vcmp.le.f32.partialorder %v495, 0.7853982
        %vm497 = vcmp.lt.s32.totalorder %v281, 0
        %v498 = vand.u32 %v281, 2139095040
        %v499 = vshrl.u32 %v498, 23
        %v500 = vsub.s32 %v499, 127
        %v501 = vand.u32 2147483647, %v281
        %v502 = vand.u32 %v501, 8388607
        %v503 = vor.u32 %v502, 8388608
        %v504 = vsub.s32 0, %v503
        %v505 = vadd.s32 %v500, 1
        %vm506 = vcmp.gt.s32.totalorder %v505, 0
        %v507 = vsel %vm506, %v505, 0
        %v508 = vshrl.u32 %v507, 5
        %v509 = vand.u32 %v507, 31
        %v510 = vsub.s32 32, %v509
        %v511 = vshrl.u32 683565275, %v510
        %v512 = vshll.u32 683565275, %v509
        %v513 = vshrl.u32 2475754826, %v510
        %v514 = vor.u32 %v512, %v513
        %v515 = vshll.u32 2475754826, %v509
        %v516 = vshrl.u32 2131351028, %v510
        %v517 = vor.u32 %v515, %v516
        %v518 = vshll.u32 2131351028, %v509
        %v519 = vshrl.u32 2102212464, %v510
        %v520 = vor.u32 %v518, %v519
        %v521 = vshll.u32 2102212464, %v509
        %v522 = vshrl.u32 920167782, %v510
        %v523 = vor.u32 %v521, %v522
        %v524 = vshll.u32 920167782, %v509
        %v525 = vshrl.u32 1326507024, %v510
        %v526 = vor.u32 %v524, %v525
        %vm527 = vcmp.lt.s32.totalorder %v508, 1
        %vm528 = vcmp.lt.s32.totalorder %v508, 2
        %vm529 = vcmp.lt.s32.totalorder %v508, 3
        %vm530 = vcmp.lt.s32.totalorder %v508, 4
        %v531 = vsel %vm527, %v511, %v514
        %v532 = vsel %vm530, %v520, 2102212464
        %v533 = vsel %vm529, %v517, %v532
        %v534 = vsel %vm528, %v531, %v533
        %v535 = vsel %vm527, %v514, %v517
        %v536 = vsel %vm530, %v523, 920167782
        %v537 = vsel %vm529, %v520, %v536
        %v538 = vsel %vm528, %v535, %v537
        %v539 = vsel %vm527, %v517, %v520
        %v540 = vsel %vm530, %v526, 1326507024
        %v541 = vsel %vm529, %v523, %v540
        %v542 = vsel %vm528, %v539, %v541
        %v543 = vshll.u32 %v503, 8
        %v544 = vmul.u32.u64.compose %v543, %v542
        %v545 = vextract.low.u32 %v544
        %v546 = vextract.high.u32 %v544
        %v547 = vmul.u32.u64.compose %v543, %v538
        %v548 = vextract.low.u32 %v547
        %v549 = vextract.high.u32 %v547
        %v550 = vmul.u32 %v543, %v534
        %v551 = vadd.s32 %v546, %v548
        %vm552 = vc.u32 %v546, %v548
        %v553 = vadd.s32 %v549, 1
        %v554 = vsel %vm552, %v553, %v549
        %v555 = vadd.s32 %v550, %v554
        %v556 = vadd.s32 %v555, 536870912
        %v557 = vshrl.u32 %v556, 30
        %v558 = vshll.u32 %v557, 30
        %v559 = vsub.s32 %v555, %v558
        %vm560 = vcmp.lt.s32.totalorder %v559, 0
        %v561 = vsub.s32 0, %v559
        %v562 = vsel %vm560, %v561, %v559
        %v563 = vclz %v562
        %v564 = vsub.s32 %v563, 2
        %vm565 = vcmp.gt.s32.totalorder 0, %v564
        %v566 = vsel %vm565, 0, %v564
        %v567 = vsub.s32 32, %v566
        %v568 = vshll.u32 %v559, %v566
        %v569 = vshrl.u32 %v551, %v567
        %v570 = vor.u32 %v568, %v569
        %v571 = vsub.s32 4294967266, %v566
        %v572 = vadd.s32 %v571, 127
        %v573 = vshll.u32 %v572, 23
        %v574 = vor.u32 4788187, %v573
        %v575 = vand.u32 2147483647, %v574
        %v577 = vcvt.s32.f32 %v570
        %v578 = vmul.f32 %v577, %v575
        %v579 = vxor.u32 %v578, 2147483648
        %v580 = vsel %vm497, %v579, %v578
        %v581 = vsub.s32 4, %v557
        %v582 = vsel %vm497, %v581, %v557
        %v583 = vsel %vm496, %v281, %v580
        %v584 = vsel %vm496, 0, %v582
        %v585 = vcosq.f32.pop %v583
        %v586 = vsinq.f32.pop %v583
        %vm587 = vweird.f32 %v281
        %v588 = vadd.s32 %v584, 3
        %v589 = vand.u32 %v588, 3
        %vm590 = vcmp.lt.s32.totalorder %v589, 2
        %vm591 = vcmp.eq.s32.totalorder %v589, 0
        %v592 = vxor.u32 %v586, 2147483648
        %v593 = vsel %vm591, %v585, %v592
        %vm594 = vcmp.eq.s32.totalorder %v589, 2
        %v595 = vxor.u32 %v585, 2147483648
        %v596 = vsel %vm594, %v595, %v586
        %v597 = vsel %vm590, %v593, %v596
        %v598 = vsel %vm587, nan, %v597
        %v599 = vand.u32 2147483647, %v282
        %vm600 = vcmp.le.f32.partialorder %v599, 0.7853982
        %vm601 = vcmp.lt.s32.totalorder %v282, 0
        %v602 = vand.u32 %v282, 2139095040
        %v603 = vshrl.u32 %v602, 23
        %v604 = vsub.s32 %v603, 127
        %v605 = vand.u32 2147483647, %v282
        %v606 = vand.u32 %v605, 8388607
        %v607 = vor.u32 %v606, 8388608
        %v608 = vsub.s32 0, %v607
        %v609 = vadd.s32 %v604, 1
        %vm610 = vcmp.gt.s32.totalorder %v609, 0
        %v611 = vsel %vm610, %v609, 0
        %v612 = vshrl.u32 %v611, 5
        %v613 = vand.u32 %v611, 31
        %v614 = vsub.s32 32, %v613
        %v615 = vshrl.u32 683565275, %v614
        %v616 = vshll.u32 683565275, %v613
        %v617 = vshrl.u32 2475754826, %v614
        %v618 = vor.u32 %v616, %v617
        %v619 = vshll.u32 2475754826, %v613
        %v620 = vshrl.u32 2131351028, %v614
        %v621 = vor.u32 %v619, %v620
        %v622 = vshll.u32 2131351028, %v613
        %v623 = vshrl.u32 2102212464, %v614
        %v624 = vor.u32 %v622, %v623
        %v625 = vshll.u32 2102212464, %v613
        %v626 = vshrl.u32 920167782, %v614
        %v627 = vor.u32 %v625, %v626
        %v628 = vshll.u32 920167782, %v613
        %v629 = vshrl.u32 1326507024, %v614
        %v630 = vor.u32 %v628, %v629
        %vm631 = vcmp.lt.s32.totalorder %v612, 1
        %vm632 = vcmp.lt.s32.totalorder %v612, 2
        %vm633 = vcmp.lt.s32.totalorder %v612, 3
        %vm634 = vcmp.lt.s32.totalorder %v612, 4
        %v635 = vsel %vm631, %v615, %v618
        %v636 = vsel %vm634, %v624, 2102212464
        %v637 = vsel %vm633, %v621, %v636
        %v638 = vsel %vm632, %v635, %v637
        %v639 = vsel %vm631, %v618, %v621
        %v640 = vsel %vm634, %v627, 920167782
        %v641 = vsel %vm633, %v624, %v640
        %v642 = vsel %vm632, %v639, %v641
        %v643 = vsel %vm631, %v621, %v624
        %v644 = vsel %vm634, %v630, 1326507024
        %v645 = vsel %vm633, %v627, %v644
        %v646 = vsel %vm632, %v643, %v645
        %v647 = vshll.u32 %v607, 8
        %v648 = vmul.u32.u64.compose %v647, %v646
        %v649 = vextract.low.u32 %v648
        %v650 = vextract.high.u32 %v648
        %v651 = vmul.u32.u64.compose %v647, %v642
        %v652 = vextract.low.u32 %v651
        %v653 = vextract.high.u32 %v651
        %v654 = vmul.u32 %v647, %v638
        %v655 = vadd.s32 %v650, %v652
        %vm656 = vc.u32 %v650, %v652
        %v657 = vadd.s32 %v653, 1
        %v658 = vsel %vm656, %v657, %v653
        %v659 = vadd.s32 %v654, %v658
        %v660 = vadd.s32 %v659, 536870912
        %v661 = vshrl.u32 %v660, 30
        %v662 = vshll.u32 %v661, 30
        %v663 = vsub.s32 %v659, %v662
        %vm664 = vcmp.lt.s32.totalorder %v663, 0
        %v665 = vsub.s32 0, %v663
        %v666 = vsel %vm664, %v665, %v663
        %v667 = vclz %v666
        %v668 = vsub.s32 %v667, 2
        %vm669 = vcmp.gt.s32.totalorder 0, %v668
        %v670 = vsel %vm669, 0, %v668
        %v671 = vsub.s32 32, %v670
        %v672 = vshll.u32 %v663, %v670
        %v673 = vshrl.u32 %v655, %v671
        %v674 = vor.u32 %v672, %v673
        %v675 = vsub.s32 4294967266, %v670
        %v676 = vadd.s32 %v675, 127
        %v677 = vshll.u32 %v676, 23
        %v678 = vor.u32 4788187, %v677
        %v679 = vand.u32 2147483647, %v678
        %v681 = vcvt.s32.f32 %v674
        %v682 = vmul.f32 %v681, %v679
        %v683 = vxor.u32 %v682, 2147483648
        %v684 = vsel %vm601, %v683, %v682
        %v685 = vsub.s32 4, %v661
        %v686 = vsel %vm601, %v685, %v661
        %v687 = vsel %vm600, %v282, %v684
        %v688 = vsel %vm600, 0, %v686
        %v689 = vcosq.f32.pop %v687
        %v690 = vsinq.f32.pop %v687
        %vm691 = vweird.f32 %v282
        %v692 = vadd.s32 %v688, 3
        %v693 = vand.u32 %v692, 3
        %vm694 = vcmp.lt.s32.totalorder %v693, 2
        %vm695 = vcmp.eq.s32.totalorder %v693, 0
        %v696 = vxor.u32 %v690, 2147483648
        %v697 = vsel %vm695, %v689, %v696
        %vm698 = vcmp.eq.s32.totalorder %v693, 2
        %v699 = vxor.u32 %v689, 2147483648
        %v700 = vsel %vm698, %v699, %v690
        %v701 = vsel %vm694, %v697, %v700
        %v702 = vsel %vm691, nan, %v701
        %v703 = vand.u32 2147483647, %v283
        %vm704 = vcmp.le.f32.partialorder %v703, 0.7853982
        %vm705 = vcmp.lt.s32.totalorder %v283, 0
        %v706 = vand.u32 %v283, 2139095040
        %v707 = vshrl.u32 %v706, 23
        %v708 = vsub.s32 %v707, 127
        %v709 = vand.u32 2147483647, %v283
        %v710 = vand.u32 %v709, 8388607
        %v711 = vor.u32 %v710, 8388608
        %v712 = vsub.s32 0, %v711
        %v713 = vadd.s32 %v708, 1
        %vm714 = vcmp.gt.s32.totalorder %v713, 0
        %v715 = vsel %vm714, %v713, 0
        %v716 = vshrl.u32 %v715, 5
        %v717 = vand.u32 %v715, 31
        %v718 = vsub.s32 32, %v717
        %v719 = vshrl.u32 683565275, %v718
        %v720 = vshll.u32 683565275, %v717
        %v721 = vshrl.u32 2475754826, %v718
        %v722 = vor.u32 %v720, %v721
        %v723 = vshll.u32 2475754826, %v717
        %v724 = vshrl.u32 2131351028, %v718
        %v725 = vor.u32 %v723, %v724
        %v726 = vshll.u32 2131351028, %v717
        %v727 = vshrl.u32 2102212464, %v718
        %v728 = vor.u32 %v726, %v727
        %v729 = vshll.u32 2102212464, %v717
        %v730 = vshrl.u32 920167782, %v718
        %v731 = vor.u32 %v729, %v730
        %v732 = vshll.u32 920167782, %v717
        %v733 = vshrl.u32 1326507024, %v718
        %v734 = vor.u32 %v732, %v733
        %vm735 = vcmp.lt.s32.totalorder %v716, 1
        %vm736 = vcmp.lt.s32.totalorder %v716, 2
        %vm737 = vcmp.lt.s32.totalorder %v716, 3
        %vm738 = vcmp.lt.s32.totalorder %v716, 4
        %v739 = vsel %vm735, %v719, %v722
        %v740 = vsel %vm738, %v728, 2102212464
        %v741 = vsel %vm737, %v725, %v740
        %v742 = vsel %vm736, %v739, %v741
        %v743 = vsel %vm735, %v722, %v725
        %v744 = vsel %vm738, %v731, 920167782
        %v745 = vsel %vm737, %v728, %v744
        %v746 = vsel %vm736, %v743, %v745
        %v747 = vsel %vm735, %v725, %v728
        %v748 = vsel %vm738, %v734, 1326507024
        %v749 = vsel %vm737, %v731, %v748
        %v750 = vsel %vm736, %v747, %v749
        %v751 = vshll.u32 %v711, 8
        %v752 = vmul.u32.u64.compose %v751, %v750
        %v753 = vextract.low.u32 %v752
        %v754 = vextract.high.u32 %v752
        %v755 = vmul.u32.u64.compose %v751, %v746
        %v756 = vextract.low.u32 %v755
        %v757 = vextract.high.u32 %v755
        %v758 = vmul.u32 %v751, %v742
        %v759 = vadd.s32 %v754, %v756
        %vm760 = vc.u32 %v754, %v756
        %v761 = vadd.s32 %v757, 1
        %v762 = vsel %vm760, %v761, %v757
        %v763 = vadd.s32 %v758, %v762
        %v764 = vadd.s32 %v763, 536870912
        %v765 = vshrl.u32 %v764, 30
        %v766 = vshll.u32 %v765, 30
        %v767 = vsub.s32 %v763, %v766
        %vm768 = vcmp.lt.s32.totalorder %v767, 0
        %v769 = vsub.s32 0, %v767
        %v770 = vsel %vm768, %v769, %v767
        %v771 = vclz %v770
        %v772 = vsub.s32 %v771, 2
        %vm773 = vcmp.gt.s32.totalorder 0, %v772
        %v774 = vsel %vm773, 0, %v772
        %v775 = vsub.s32 32, %v774
        %v776 = vshll.u32 %v767, %v774
        %v777 = vshrl.u32 %v759, %v775
        %v778 = vor.u32 %v776, %v777
        %v779 = vsub.s32 4294967266, %v774
        %v780 = vadd.s32 %v779, 127
        %v781 = vshll.u32 %v780, 23
        %v782 = vor.u32 4788187, %v781
        %v783 = vand.u32 2147483647, %v782
        %v785 = vcvt.s32.f32 %v778
        %v786 = vmul.f32 %v785, %v783
        %v787 = vxor.u32 %v786, 2147483648
        %v788 = vsel %vm705, %v787, %v786
        %v789 = vsub.s32 4, %v765
        %v790 = vsel %vm705, %v789, %v765
        %v791 = vsel %vm704, %v283, %v788
        %v792 = vsel %vm704, 0, %v790
        %v793 = vcosq.f32.pop %v791
        %v794 = vsinq.f32.pop %v791
        %vm795 = vweird.f32 %v283
        %v796 = vadd.s32 %v792, 3
        %v797 = vand.u32 %v796, 3
        %vm798 = vcmp.lt.s32.totalorder %v797, 2
        %vm799 = vcmp.eq.s32.totalorder %v797, 0
        %v800 = vxor.u32 %v794, 2147483648
        %v801 = vsel %vm799, %v793, %v800
        %vm802 = vcmp.eq.s32.totalorder %v797, 2
        %v803 = vxor.u32 %v793, 2147483648
        %v804 = vsel %vm802, %v803, %v794
        %v805 = vsel %vm798, %v801, %v804
        %v806 = vsel %vm795, nan, %v805
        %v807 = vand.u32 2147483647, %v284
        %vm808 = vcmp.le.f32.partialorder %v807, 0.7853982
        %vm809 = vcmp.lt.s32.totalorder %v284, 0
        %v810 = vand.u32 %v284, 2139095040
        %v811 = vshrl.u32 %v810, 23
        %v812 = vsub.s32 %v811, 127
        %v813 = vand.u32 2147483647, %v284
        %v814 = vand.u32 %v813, 8388607
        %v815 = vor.u32 %v814, 8388608
        %v816 = vsub.s32 0, %v815
        %v817 = vadd.s32 %v812, 1
        %vm818 = vcmp.gt.s32.totalorder %v817, 0
        %v819 = vsel %vm818, %v817, 0
        %v820 = vshrl.u32 %v819, 5
        %v821 = vand.u32 %v819, 31
        %v822 = vsub.s32 32, %v821
        %v823 = vshrl.u32 683565275, %v822
        %v824 = vshll.u32 683565275, %v821
        %v825 = vshrl.u32 2475754826, %v822
        %v826 = vor.u32 %v824, %v825
        %v827 = vshll.u32 2475754826, %v821
        %v828 = vshrl.u32 2131351028, %v822
        %v829 = vor.u32 %v827, %v828
        %v830 = vshll.u32 2131351028, %v821
        %v831 = vshrl.u32 2102212464, %v822
        %v832 = vor.u32 %v830, %v831
        %v833 = vshll.u32 2102212464, %v821
        %v834 = vshrl.u32 920167782, %v822
        %v835 = vor.u32 %v833, %v834
        %v836 = vshll.u32 920167782, %v821
        %v837 = vshrl.u32 1326507024, %v822
        %v838 = vor.u32 %v836, %v837
        %vm839 = vcmp.lt.s32.totalorder %v820, 1
        %vm840 = vcmp.lt.s32.totalorder %v820, 2
        %vm841 = vcmp.lt.s32.totalorder %v820, 3
        %vm842 = vcmp.lt.s32.totalorder %v820, 4
        %v843 = vsel %vm839, %v823, %v826
        %v844 = vsel %vm842, %v832, 2102212464
        %v845 = vsel %vm841, %v829, %v844
        %v846 = vsel %vm840, %v843, %v845
        %v847 = vsel %vm839, %v826, %v829
        %v848 = vsel %vm842, %v835, 920167782
        %v849 = vsel %vm841, %v832, %v848
        %v850 = vsel %vm840, %v847, %v849
        %v851 = vsel %vm839, %v829, %v832
        %v852 = vsel %vm842, %v838, 1326507024
        %v853 = vsel %vm841, %v835, %v852
        %v854 = vsel %vm840, %v851, %v853
        %v855 = vshll.u32 %v815, 8
        %v856 = vmul.u32.u64.compose %v855, %v854
        %v857 = vextract.low.u32 %v856
        %v858 = vextract.high.u32 %v856
        %v859 = vmul.u32.u64.compose %v855, %v850
        %v860 = vextract.low.u32 %v859
        %v861 = vextract.high.u32 %v859
        %v862 = vmul.u32 %v855, %v846
        %v863 = vadd.s32 %v858, %v860
        %vm864 = vc.u32 %v858, %v860
        %v865 = vadd.s32 %v861, 1
        %v866 = vsel %vm864, %v865, %v861
        %v867 = vadd.s32 %v862, %v866
        %v868 = vadd.s32 %v867, 536870912
        %v869 = vshrl.u32 %v868, 30
        %v870 = vshll.u32 %v869, 30
        %v871 = vsub.s32 %v867, %v870
        %vm872 = vcmp.lt.s32.totalorder %v871, 0
        %v873 = vsub.s32 0, %v871
        %v874 = vsel %vm872, %v873, %v871
        %v875 = vclz %v874
        %v876 = vsub.s32 %v875, 2
        %vm877 = vcmp.gt.s32.totalorder 0, %v876
        %v878 = vsel %vm877, 0, %v876
        %v879 = vsub.s32 32, %v878
        %v880 = vshll.u32 %v871, %v878
        %v881 = vshrl.u32 %v863, %v879
        %v882 = vor.u32 %v880, %v881
        %v883 = vsub.s32 4294967266, %v878
        %v884 = vadd.s32 %v883, 127
        %v885 = vshll.u32 %v884, 23
        %v886 = vor.u32 4788187, %v885
        %v887 = vand.u32 2147483647, %v886
        %v889 = vcvt.s32.f32 %v882
        %v890 = vmul.f32 %v889, %v887
        %v891 = vxor.u32 %v890, 2147483648
        %v892 = vsel %vm809, %v891, %v890
        %v893 = vsub.s32 4, %v869
        %v894 = vsel %vm809, %v893, %v869
        %v895 = vsel %vm808, %v284, %v892
        %v896 = vsel %vm808, 0, %v894
        %v897 = vcosq.f32.pop %v895
        %v898 = vsinq.f32.pop %v895
        %vm899 = vweird.f32 %v284
        %v900 = vadd.s32 %v896, 3
        %v901 = vand.u32 %v900, 3
        %vm902 = vcmp.lt.s32.totalorder %v901, 2
        %vm903 = vcmp.eq.s32.totalorder %v901, 0
        %v904 = vxor.u32 %v898, 2147483648
        %v905 = vsel %vm903, %v897, %v904
        %vm906 = vcmp.eq.s32.totalorder %v901, 2
        %v907 = vxor.u32 %v897, 2147483648
        %v908 = vsel %vm906, %v907, %v898
        %v909 = vsel %vm902, %v905, %v908
        %v910 = vsel %vm899, nan, %v909
        %v911 = vand.u32 2147483647, %v285
        %vm912 = vcmp.le.f32.partialorder %v911, 0.7853982
        %vm913 = vcmp.lt.s32.totalorder %v285, 0
        %v914 = vand.u32 %v285, 2139095040
        %v915 = vshrl.u32 %v914, 23
        %v916 = vsub.s32 %v915, 127
        %v917 = vand.u32 2147483647, %v285
        %v918 = vand.u32 %v917, 8388607
        %v919 = vor.u32 %v918, 8388608
        %v920 = vsub.s32 0, %v919
        %v921 = vadd.s32 %v916, 1
        %vm922 = vcmp.gt.s32.totalorder %v921, 0
        %v923 = vsel %vm922, %v921, 0
        %v924 = vshrl.u32 %v923, 5
        %v925 = vand.u32 %v923, 31
        %v926 = vsub.s32 32, %v925
        %v927 = vshrl.u32 683565275, %v926
        %v928 = vshll.u32 683565275, %v925
        %v929 = vshrl.u32 2475754826, %v926
        %v930 = vor.u32 %v928, %v929
        %v931 = vshll.u32 2475754826, %v925
        %v932 = vshrl.u32 2131351028, %v926
        %v933 = vor.u32 %v931, %v932
        %v934 = vshll.u32 2131351028, %v925
        %v935 = vshrl.u32 2102212464, %v926
        %v936 = vor.u32 %v934, %v935
        %v937 = vshll.u32 2102212464, %v925
        %v938 = vshrl.u32 920167782, %v926
        %v939 = vor.u32 %v937, %v938
        %v940 = vshll.u32 920167782, %v925
        %v941 = vshrl.u32 1326507024, %v926
        %v942 = vor.u32 %v940, %v941
        %vm943 = vcmp.lt.s32.totalorder %v924, 1
        %vm944 = vcmp.lt.s32.totalorder %v924, 2
        %vm945 = vcmp.lt.s32.totalorder %v924, 3
        %vm946 = vcmp.lt.s32.totalorder %v924, 4
        %v947 = vsel %vm943, %v927, %v930
        %v948 = vsel %vm946, %v936, 2102212464
        %v949 = vsel %vm945, %v933, %v948
        %v950 = vsel %vm944, %v947, %v949
        %v951 = vsel %vm943, %v930, %v933
        %v952 = vsel %vm946, %v939, 920167782
        %v953 = vsel %vm945, %v936, %v952
        %v954 = vsel %vm944, %v951, %v953
        %v955 = vsel %vm943, %v933, %v936
        %v956 = vsel %vm946, %v942, 1326507024
        %v957 = vsel %vm945, %v939, %v956
        %v958 = vsel %vm944, %v955, %v957
        %v959 = vshll.u32 %v919, 8
        %v960 = vmul.u32.u64.compose %v959, %v958
        %v961 = vextract.low.u32 %v960
        %v962 = vextract.high.u32 %v960
        %v963 = vmul.u32.u64.compose %v959, %v954
        %v964 = vextract.low.u32 %v963
        %v965 = vextract.high.u32 %v963
        %v966 = vmul.u32 %v959, %v950
        %v967 = vadd.s32 %v962, %v964
        %vm968 = vc.u32 %v962, %v964
        %v969 = vadd.s32 %v965, 1
        %v970 = vsel %vm968, %v969, %v965
        %v971 = vadd.s32 %v966, %v970
        %v972 = vadd.s32 %v971, 536870912
        %v973 = vshrl.u32 %v972, 30
        %v974 = vshll.u32 %v973, 30
        %v975 = vsub.s32 %v971, %v974
        %vm976 = vcmp.lt.s32.totalorder %v975, 0
        %v977 = vsub.s32 0, %v975
        %v978 = vsel %vm976, %v977, %v975
        %v979 = vclz %v978
        %v980 = vsub.s32 %v979, 2
        %vm981 = vcmp.gt.s32.totalorder 0, %v980
        %v982 = vsel %vm981, 0, %v980
        %v983 = vsub.s32 32, %v982
        %v984 = vshll.u32 %v975, %v982
        %v985 = vshrl.u32 %v967, %v983
        %v986 = vor.u32 %v984, %v985
        %v987 = vsub.s32 4294967266, %v982
        %v988 = vadd.s32 %v987, 127
        %v989 = vshll.u32 %v988, 23
        %v990 = vor.u32 4788187, %v989
        %v991 = vand.u32 2147483647, %v990
        %v993 = vcvt.s32.f32 %v986
        %v994 = vmul.f32 %v993, %v991
        %v995 = vxor.u32 %v994, 2147483648
        %v996 = vsel %vm913, %v995, %v994
        %v997 = vsub.s32 4, %v973
        %v998 = vsel %vm913, %v997, %v973
        %v999 = vsel %vm912, %v285, %v996
        %v1000 = vsel %vm912, 0, %v998
        %v1001 = vcosq.f32.pop %v999
        %v1002 = vsinq.f32.pop %v999
        %vm1003 = vweird.f32 %v285
        %v1004 = vadd.s32 %v1000, 3
        %v1005 = vand.u32 %v1004, 3
        %vm1006 = vcmp.lt.s32.totalorder %v1005, 2
        %vm1007 = vcmp.eq.s32.totalorder %v1005, 0
        %v1008 = vxor.u32 %v1002, 2147483648
        %v1009 = vsel %vm1007, %v1001, %v1008
        %vm1010 = vcmp.eq.s32.totalorder %v1005, 2
        %v1011 = vxor.u32 %v1001, 2147483648
        %v1012 = vsel %vm1010, %v1011, %v1002
        %v1013 = vsel %vm1006, %v1009, %v1012
        %v1014 = vsel %vm1003, nan, %v1013
        %v1015 = vand.u32 2147483647, %v286
        %vm1016 = vcmp.le.f32.partialorder %v1015, 0.7853982
        %vm1017 = vcmp.lt.s32.totalorder %v286, 0
        %v1018 = vand.u32 %v286, 2139095040
        %v1019 = vshrl.u32 %v1018, 23
        %v1020 = vsub.s32 %v1019, 127
        %v1021 = vand.u32 2147483647, %v286
        %v1022 = vand.u32 %v1021, 8388607
        %v1023 = vor.u32 %v1022, 8388608
        %v1024 = vsub.s32 0, %v1023
        %v1025 = vadd.s32 %v1020, 1
        %vm1026 = vcmp.gt.s32.totalorder %v1025, 0
        %v1027 = vsel %vm1026, %v1025, 0
        %v1028 = vshrl.u32 %v1027, 5
        %v1029 = vand.u32 %v1027, 31
        %v1030 = vsub.s32 32, %v1029
        %v1031 = vshrl.u32 683565275, %v1030
        %v1032 = vshll.u32 683565275, %v1029
        %v1033 = vshrl.u32 2475754826, %v1030
        %v1034 = vor.u32 %v1032, %v1033
        %v1035 = vshll.u32 2475754826, %v1029
        %v1036 = vshrl.u32 2131351028, %v1030
        %v1037 = vor.u32 %v1035, %v1036
        %v1038 = vshll.u32 2131351028, %v1029
        %v1039 = vshrl.u32 2102212464, %v1030
        %v1040 = vor.u32 %v1038, %v1039
        %v1041 = vshll.u32 2102212464, %v1029
        %v1042 = vshrl.u32 920167782, %v1030
        %v1043 = vor.u32 %v1041, %v1042
        %v1044 = vshll.u32 920167782, %v1029
        %v1045 = vshrl.u32 1326507024, %v1030
        %v1046 = vor.u32 %v1044, %v1045
        %vm1047 = vcmp.lt.s32.totalorder %v1028, 1
        %vm1048 = vcmp.lt.s32.totalorder %v1028, 2
        %vm1049 = vcmp.lt.s32.totalorder %v1028, 3
        %vm1050 = vcmp.lt.s32.totalorder %v1028, 4
        %v1051 = vsel %vm1047, %v1031, %v1034
        %v1052 = vsel %vm1050, %v1040, 2102212464
        %v1053 = vsel %vm1049, %v1037, %v1052
        %v1054 = vsel %vm1048, %v1051, %v1053
        %v1055 = vsel %vm1047, %v1034, %v1037
        %v1056 = vsel %vm1050, %v1043, 920167782
        %v1057 = vsel %vm1049, %v1040, %v1056
        %v1058 = vsel %vm1048, %v1055, %v1057
        %v1059 = vsel %vm1047, %v1037, %v1040
        %v1060 = vsel %vm1050, %v1046, 1326507024
        %v1061 = vsel %vm1049, %v1043, %v1060
        %v1062 = vsel %vm1048, %v1059, %v1061
        %v1063 = vshll.u32 %v1023, 8
        %v1064 = vmul.u32.u64.compose %v1063, %v1062
        %v1065 = vextract.low.u32 %v1064
        %v1066 = vextract.high.u32 %v1064
        %v1067 = vmul.u32.u64.compose %v1063, %v1058
        %v1068 = vextract.low.u32 %v1067
        %v1069 = vextract.high.u32 %v1067
        %v1070 = vmul.u32 %v1063, %v1054
        %v1071 = vadd.s32 %v1066, %v1068
        %vm1072 = vc.u32 %v1066, %v1068
        %v1073 = vadd.s32 %v1069, 1
        %v1074 = vsel %vm1072, %v1073, %v1069
        %v1075 = vadd.s32 %v1070, %v1074
        %v1076 = vadd.s32 %v1075, 536870912
        %v1077 = vshrl.u32 %v1076, 30
        %v1078 = vshll.u32 %v1077, 30
        %v1079 = vsub.s32 %v1075, %v1078
        %vm1080 = vcmp.lt.s32.totalorder %v1079, 0
        %v1081 = vsub.s32 0, %v1079
        %v1082 = vsel %vm1080, %v1081, %v1079
        %v1083 = vclz %v1082
        %v1084 = vsub.s32 %v1083, 2
        %vm1085 = vcmp.gt.s32.totalorder 0, %v1084
        %v1086 = vsel %vm1085, 0, %v1084
        %v1087 = vsub.s32 32, %v1086
        %v1088 = vshll.u32 %v1079, %v1086
        %v1089 = vshrl.u32 %v1071, %v1087
        %v1090 = vor.u32 %v1088, %v1089
        %v1091 = vsub.s32 4294967266, %v1086
        %v1092 = vadd.s32 %v1091, 127
        %v1093 = vshll.u32 %v1092, 23
        %v1094 = vor.u32 4788187, %v1093
        %v1095 = vand.u32 2147483647, %v1094
        %v1097 = vcvt.s32.f32 %v1090
        %v1098 = vmul.f32 %v1097, %v1095
        %v1099 = vxor.u32 %v1098, 2147483648
        %v1100 = vsel %vm1017, %v1099, %v1098
        %v1101 = vsub.s32 4, %v1077
        %v1102 = vsel %vm1017, %v1101, %v1077
        %v1103 = vsel %vm1016, %v286, %v1100
        %v1104 = vsel %vm1016, 0, %v1102
        %v1105 = vcosq.f32.pop %v1103
        %v1106 = vsinq.f32.pop %v1103
        %vm1107 = vweird.f32 %v286
        %v1108 = vadd.s32 %v1104, 3
        %v1109 = vand.u32 %v1108, 3
        %vm1110 = vcmp.lt.s32.totalorder %v1109, 2
        %vm1111 = vcmp.eq.s32.totalorder %v1109, 0
        %v1112 = vxor.u32 %v1106, 2147483648
        %v1113 = vsel %vm1111, %v1105, %v1112
        %vm1114 = vcmp.eq.s32.totalorder %v1109, 2
        %v1115 = vxor.u32 %v1105, 2147483648
        %v1116 = vsel %vm1114, %v1115, %v1106
        %v1117 = vsel %vm1110, %v1113, %v1116
        %v1118 = vsel %vm1107, nan, %v1117
        %s1119 = scalar_lea.vmem [#allocation2], 4
        %v1120 = vld [vmem:[%s1119] sm:$0x1]
        %v1121 = vld [vmem:[%s1119 + $0x1] sm:$0x1]
        %v1122 = vld [vmem:[%s1119 + $0x2] sm:$0x1]
        %v1123 = vld [vmem:[%s1119 + $0x3] sm:$0x1]
        %1124 = vrot.lane.b32.xlu0 %v390, 1
        %v1125 = vpop.permute.xlu0 %1124
        %1126 = vrot.lane.b32.xlu0 %v494, 1
        %v1127 = vpop.permute.xlu0 %1126
        %1128 = vrot.lane.b32.xlu0 %v598, 1
        %v1129 = vpop.permute.xlu0 %1128
        %1130 = vrot.lane.b32.xlu0 %v702, 1
        %v1131 = vpop.permute.xlu0 %1130
        %1132 = vrot.lane.b32.xlu0 %v806, 1
        %v1133 = vpop.permute.xlu0 %1132
        %1134 = vrot.lane.b32.xlu0 %v910, 1
        %v1135 = vpop.permute.xlu0 %1134
        %1136 = vrot.lane.b32.xlu0 %v1014, 1
        %v1137 = vpop.permute.xlu0 %1136
        %1138 = vrot.lane.b32.xlu0 %v1118, 1
        %v1139 = vpop.permute.xlu0 %1138
        %1140 = vrot.lane.b32.xlu0 %v390, 127
        %v1141 = vpop.permute.xlu0 %1140
        %1142 = vrot.lane.b32.xlu0 %v494, 127
        %v1143 = vpop.permute.xlu0 %1142
        %1144 = vrot.lane.b32.xlu0 %v598, 127
        %v1145 = vpop.permute.xlu0 %1144
        %1146 = vrot.lane.b32.xlu0 %v702, 127
        %v1147 = vpop.permute.xlu0 %1146
        %1148 = vrot.lane.b32.xlu0 %v806, 127
        %v1149 = vpop.permute.xlu0 %1148
        %1150 = vrot.lane.b32.xlu0 %v910, 127
        %v1151 = vpop.permute.xlu0 %1150
        %1152 = vrot.lane.b32.xlu0 %v1014, 127
        %v1153 = vpop.permute.xlu0 %1152
        %1154 = vrot.lane.b32.xlu0 %v1118, 127
        %v1155 = vpop.permute.xlu0 %1154
        %v1156 = vlaneseq
        %v1157 = vshrl.u32 %v1156, 7
        %v1158 = vsub.s32 0, %v1157
        %v1159 = vrot.slane %v1120, %v1158
        %v1160 = vmul.f32 %v1159, %v1125
        %v1161 = vmul.f32 %v1159, %v1127
        %v1162 = vmul.f32 %v1159, %v1129
        %v1163 = vmul.f32 %v1159, %v1131
        %v1164 = vmul.f32 %v1159, %v1133
        %v1165 = vmul.f32 %v1159, %v1135
        %v1166 = vmul.f32 %v1159, %v1137
        %v1167 = vmul.f32 %v1159, %v1139
        %v1168 = vlaneseq
        %v1169 = vshrl.u32 %v1168, 7
        %v1170 = vsub.s32 0, %v1169
        %v1171 = vrot.slane %v1121, %v1170
        %v1172 = vmul.f32 %v1171, %v390
        %v1173 = vmul.f32 %v1171, %v494
        %v1174 = vmul.f32 %v1171, %v598
        %v1175 = vmul.f32 %v1171, %v702
        %v1176 = vmul.f32 %v1171, %v806
        %v1177 = vmul.f32 %v1171, %v910
        %v1178 = vmul.f32 %v1171, %v1014
        %v1179 = vmul.f32 %v1171, %v1118
        %v1180 = vadd.f32 %v1160, %v1172
        %v1181 = vadd.f32 %v1161, %v1173
        %v1182 = vadd.f32 %v1162, %v1174
        %v1183 = vadd.f32 %v1163, %v1175
        %v1184 = vadd.f32 %v1164, %v1176
        %v1185 = vadd.f32 %v1165, %v1177
        %v1186 = vadd.f32 %v1166, %v1178
        %v1187 = vadd.f32 %v1167, %v1179
        %v1188 = vlaneseq
        %v1189 = vshrl.u32 %v1188, 7
        %v1190 = vsub.s32 0, %v1189
        %v1191 = vrot.slane %v1122, %v1190
        %v1192 = vmul.f32 %v1191, %v1141
        %v1193 = vmul.f32 %v1191, %v1143
        %v1194 = vmul.f32 %v1191, %v1145
        %v1195 = vmul.f32 %v1191, %v1147
        %v1196 = vmul.f32 %v1191, %v1149
        %v1197 = vmul.f32 %v1191, %v1151
        %v1198 = vmul.f32 %v1191, %v1153
        %v1199 = vmul.f32 %v1191, %v1155
        %v1200 = vadd.f32 %v1180, %v1192
        %v1201 = vadd.f32 %v1181, %v1193
        %v1202 = vadd.f32 %v1182, %v1194
        %v1203 = vadd.f32 %v1183, %v1195
        %v1204 = vadd.f32 %v1184, %v1196
        %v1205 = vadd.f32 %v1185, %v1197
        %v1206 = vadd.f32 %v1186, %v1198
        %v1207 = vadd.f32 %v1187, %v1199
        %v1208 = vlaneseq
        %v1209 = vshrl.u32 %v1208, 7
        %v1210 = vsub.s32 0, %v1209
        %v1211 = vrot.slane %v1123, %v1210
        %v1212 = vadd.f32 %v1200, %v1211
        %v1213 = vadd.f32 %v1201, %v1211
        %v1214 = vadd.f32 %v1202, %v1211
        %v1215 = vadd.f32 %v1203, %v1211
        %v1216 = vadd.f32 %v1204, %v1211
        %v1217 = vadd.f32 %v1205, %v1211
        %v1218 = vadd.f32 %v1206, %v1211
        %v1219 = vadd.f32 %v1207, %v1211
        %v1220 = vand.u32 2147483647, %v1212
        %vm1221 = vcmp.le.f32.partialorder %v1220, 0.7853982
        %vm1222 = vcmp.lt.s32.totalorder %v1212, 0
        %v1223 = vand.u32 %v1212, 2139095040
        %v1224 = vshrl.u32 %v1223, 23
        %v1225 = vsub.s32 %v1224, 127
        %v1226 = vand.u32 2147483647, %v1212
        %v1227 = vand.u32 %v1226, 8388607
        %v1228 = vor.u32 %v1227, 8388608
        %v1229 = vsub.s32 0, %v1228
        %v1230 = vadd.s32 %v1225, 1
        %vm1231 = vcmp.gt.s32.totalorder %v1230, 0
        %v1232 = vsel %vm1231, %v1230, 0
        %v1233 = vshrl.u32 %v1232, 5
        %v1234 = vand.u32 %v1232, 31
        %v1235 = vsub.s32 32, %v1234
        %v1236 = vshrl.u32 683565275, %v1235
        %v1237 = vshll.u32 683565275, %v1234
        %v1238 = vshrl.u32 2475754826, %v1235
        %v1239 = vor.u32 %v1237, %v1238
        %v1240 = vshll.u32 2475754826, %v1234
        %v1241 = vshrl.u32 2131351028, %v1235
        %v1242 = vor.u32 %v1240, %v1241
        %v1243 = vshll.u32 2131351028, %v1234
        %v1244 = vshrl.u32 2102212464, %v1235
        %v1245 = vor.u32 %v1243, %v1244
        %v1246 = vshll.u32 2102212464, %v1234
        %v1247 = vshrl.u32 920167782, %v1235
        %v1248 = vor.u32 %v1246, %v1247
        %v1249 = vshll.u32 920167782, %v1234
        %v1250 = vshrl.u32 1326507024, %v1235
        %v1251 = vor.u32 %v1249, %v1250
        %vm1252 = vcmp.lt.s32.totalorder %v1233, 1
        %vm1253 = vcmp.lt.s32.totalorder %v1233, 2
        %vm1254 = vcmp.lt.s32.totalorder %v1233, 3
        %vm1255 = vcmp.lt.s32.totalorder %v1233, 4
        %v1256 = vsel %vm1252, %v1236, %v1239
        %v1257 = vsel %vm1255, %v1245, 2102212464
        %v1258 = vsel %vm1254, %v1242, %v1257
        %v1259 = vsel %vm1253, %v1256, %v1258
        %v1260 = vsel %vm1252, %v1239, %v1242
        %v1261 = vsel %vm1255, %v1248, 920167782
        %v1262 = vsel %vm1254, %v1245, %v1261
        %v1263 = vsel %vm1253, %v1260, %v1262
        %v1264 = vsel %vm1252, %v1242, %v1245
        %v1265 = vsel %vm1255, %v1251, 1326507024
        %v1266 = vsel %vm1254, %v1248, %v1265
        %v1267 = vsel %vm1253, %v1264, %v1266
        %v1268 = vshll.u32 %v1228, 8
        %v1269 = vmul.u32.u64.compose %v1268, %v1267
        %v1270 = vextract.low.u32 %v1269
        %v1271 = vextract.high.u32 %v1269
        %v1272 = vmul.u32.u64.compose %v1268, %v1263
        %v1273 = vextract.low.u32 %v1272
        %v1274 = vextract.high.u32 %v1272
        %v1275 = vmul.u32 %v1268, %v1259
        %v1276 = vadd.s32 %v1271, %v1273
        %vm1277 = vc.u32 %v1271, %v1273
        %v1278 = vadd.s32 %v1274, 1
        %v1279 = vsel %vm1277, %v1278, %v1274
        %v1280 = vadd.s32 %v1275, %v1279
        %v1281 = vadd.s32 %v1280, 536870912
        %v1282 = vshrl.u32 %v1281, 30
        %v1283 = vshll.u32 %v1282, 30
        %v1284 = vsub.s32 %v1280, %v1283
        %vm1285 = vcmp.lt.s32.totalorder %v1284, 0
        %v1286 = vsub.s32 0, %v1284
        %v1287 = vsel %vm1285, %v1286, %v1284
        %v1288 = vclz %v1287
        %v1289 = vsub.s32 %v1288, 2
        %vm1290 = vcmp.gt.s32.totalorder 0, %v1289
        %v1291 = vsel %vm1290, 0, %v1289
        %v1292 = vsub.s32 32, %v1291
        %v1293 = vshll.u32 %v1284, %v1291
        %v1294 = vshrl.u32 %v1276, %v1292
        %v1295 = vor.u32 %v1293, %v1294
        %v1296 = vsub.s32 4294967266, %v1291
        %v1297 = vadd.s32 %v1296, 127
        %v1298 = vshll.u32 %v1297, 23
        %v1299 = vor.u32 4788187, %v1298
        %v1300 = vand.u32 2147483647, %v1299
        %v1302 = vcvt.s32.f32 %v1295
        %v1303 = vmul.f32 %v1302, %v1300
        %v1304 = vxor.u32 %v1303, 2147483648
        %v1305 = vsel %vm1222, %v1304, %v1303
        %v1306 = vsub.s32 4, %v1282
        %v1307 = vsel %vm1222, %v1306, %v1282
        %v1308 = vsel %vm1221, %v1212, %v1305
        %v1309 = vsel %vm1221, 0, %v1307
        %v1310 = vcosq.f32.pop %v1308
        %v1311 = vsinq.f32.pop %v1308
        %vm1312 = vweird.f32 %v1212
        %v1313 = vadd.s32 %v1309, 3
        %v1314 = vand.u32 %v1313, 3
        %vm1315 = vcmp.lt.s32.totalorder %v1314, 2
        %vm1316 = vcmp.eq.s32.totalorder %v1314, 0
        %v1317 = vxor.u32 %v1311, 2147483648
        %v1318 = vsel %vm1316, %v1310, %v1317
        %vm1319 = vcmp.eq.s32.totalorder %v1314, 2
        %v1320 = vxor.u32 %v1310, 2147483648
        %v1321 = vsel %vm1319, %v1320, %v1311
        %v1322 = vsel %vm1315, %v1318, %v1321
        %v1323 = vsel %vm1312, nan, %v1322
        %v1324 = vand.u32 2147483647, %v1213
        %vm1325 = vcmp.le.f32.partialorder %v1324, 0.7853982
        %vm1326 = vcmp.lt.s32.totalorder %v1213, 0
        %v1327 = vand.u32 %v1213, 2139095040
        %v1328 = vshrl.u32 %v1327, 23
        %v1329 = vsub.s32 %v1328, 127
        %v1330 = vand.u32 2147483647, %v1213
        %v1331 = vand.u32 %v1330, 8388607
        %v1332 = vor.u32 %v1331, 8388608
        %v1333 = vsub.s32 0, %v1332
        %v1334 = vadd.s32 %v1329, 1
        %vm1335 = vcmp.gt.s32.totalorder %v1334, 0
        %v1336 = vsel %vm1335, %v1334, 0
        %v1337 = vshrl.u32 %v1336, 5
        %v1338 = vand.u32 %v1336, 31
        %v1339 = vsub.s32 32, %v1338
        %v1340 = vshrl.u32 683565275, %v1339
        %v1341 = vshll.u32 683565275, %v1338
        %v1342 = vshrl.u32 2475754826, %v1339
        %v1343 = vor.u32 %v1341, %v1342
        %v1344 = vshll.u32 2475754826, %v1338
        %v1345 = vshrl.u32 2131351028, %v1339
        %v1346 = vor.u32 %v1344, %v1345
        %v1347 = vshll.u32 2131351028, %v1338
        %v1348 = vshrl.u32 2102212464, %v1339
        %v1349 = vor.u32 %v1347, %v1348
        %v1350 = vshll.u32 2102212464, %v1338
        %v1351 = vshrl.u32 920167782, %v1339
        %v1352 = vor.u32 %v1350, %v1351
        %v1353 = vshll.u32 920167782, %v1338
        %v1354 = vshrl.u32 1326507024, %v1339
        %v1355 = vor.u32 %v1353, %v1354
        %vm1356 = vcmp.lt.s32.totalorder %v1337, 1
        %vm1357 = vcmp.lt.s32.totalorder %v1337, 2
        %vm1358 = vcmp.lt.s32.totalorder %v1337, 3
        %vm1359 = vcmp.lt.s32.totalorder %v1337, 4
        %v1360 = vsel %vm1356, %v1340, %v1343
        %v1361 = vsel %vm1359, %v1349, 2102212464
        %v1362 = vsel %vm1358, %v1346, %v1361
        %v1363 = vsel %vm1357, %v1360, %v1362
        %v1364 = vsel %vm1356, %v1343, %v1346
        %v1365 = vsel %vm1359, %v1352, 920167782
        %v1366 = vsel %vm1358, %v1349, %v1365
        %v1367 = vsel %vm1357, %v1364, %v1366
        %v1368 = vsel %vm1356, %v1346, %v1349
        %v1369 = vsel %vm1359, %v1355, 1326507024
        %v1370 = vsel %vm1358, %v1352, %v1369
        %v1371 = vsel %vm1357, %v1368, %v1370
        %v1372 = vshll.u32 %v1332, 8
        %v1373 = vmul.u32.u64.compose %v1372, %v1371
        %v1374 = vextract.low.u32 %v1373
        %v1375 = vextract.high.u32 %v1373
        %v1376 = vmul.u32.u64.compose %v1372, %v1367
        %v1377 = vextract.low.u32 %v1376
        %v1378 = vextract.high.u32 %v1376
        %v1379 = vmul.u32 %v1372, %v1363
        %v1380 = vadd.s32 %v1375, %v1377
        %vm1381 = vc.u32 %v1375, %v1377
        %v1382 = vadd.s32 %v1378, 1
        %v1383 = vsel %vm1381, %v1382, %v1378
        %v1384 = vadd.s32 %v1379, %v1383
        %v1385 = vadd.s32 %v1384, 536870912
        %v1386 = vshrl.u32 %v1385, 30
        %v1387 = vshll.u32 %v1386, 30
        %v1388 = vsub.s32 %v1384, %v1387
        %vm1389 = vcmp.lt.s32.totalorder %v1388, 0
        %v1390 = vsub.s32 0, %v1388
        %v1391 = vsel %vm1389, %v1390, %v1388
        %v1392 = vclz %v1391
        %v1393 = vsub.s32 %v1392, 2
        %vm1394 = vcmp.gt.s32.totalorder 0, %v1393
        %v1395 = vsel %vm1394, 0, %v1393
        %v1396 = vsub.s32 32, %v1395
        %v1397 = vshll.u32 %v1388, %v1395
        %v1398 = vshrl.u32 %v1380, %v1396
        %v1399 = vor.u32 %v1397, %v1398
        %v1400 = vsub.s32 4294967266, %v1395
        %v1401 = vadd.s32 %v1400, 127
        %v1402 = vshll.u32 %v1401, 23
        %v1403 = vor.u32 4788187, %v1402
        %v1404 = vand.u32 2147483647, %v1403
        %v1406 = vcvt.s32.f32 %v1399
        %v1407 = vmul.f32 %v1406, %v1404
        %v1408 = vxor.u32 %v1407, 2147483648
        %v1409 = vsel %vm1326, %v1408, %v1407
        %v1410 = vsub.s32 4, %v1386
        %v1411 = vsel %vm1326, %v1410, %v1386
        %v1412 = vsel %vm1325, %v1213, %v1409
        %v1413 = vsel %vm1325, 0, %v1411
        %v1414 = vcosq.f32.pop %v1412
        %v1415 = vsinq.f32.pop %v1412
        %vm1416 = vweird.f32 %v1213
        %v1417 = vadd.s32 %v1413, 3
        %v1418 = vand.u32 %v1417, 3
        %vm1419 = vcmp.lt.s32.totalorder %v1418, 2
        %vm1420 = vcmp.eq.s32.totalorder %v1418, 0
        %v1421 = vxor.u32 %v1415, 2147483648
        %v1422 = vsel %vm1420, %v1414, %v1421
        %vm1423 = vcmp.eq.s32.totalorder %v1418, 2
        %v1424 = vxor.u32 %v1414, 2147483648
        %v1425 = vsel %vm1423, %v1424, %v1415
        %v1426 = vsel %vm1419, %v1422, %v1425
        %v1427 = vsel %vm1416, nan, %v1426
        %v1428 = vand.u32 2147483647, %v1214
        %vm1429 = vcmp.le.f32.partialorder %v1428, 0.7853982
        %vm1430 = vcmp.lt.s32.totalorder %v1214, 0
        %v1431 = vand.u32 %v1214, 2139095040
        %v1432 = vshrl.u32 %v1431, 23
        %v1433 = vsub.s32 %v1432, 127
        %v1434 = vand.u32 2147483647, %v1214
        %v1435 = vand.u32 %v1434, 8388607
        %v1436 = vor.u32 %v1435, 8388608
        %v1437 = vsub.s32 0, %v1436
        %v1438 = vadd.s32 %v1433, 1
        %vm1439 = vcmp.gt.s32.totalorder %v1438, 0
        %v1440 = vsel %vm1439, %v1438, 0
        %v1441 = vshrl.u32 %v1440, 5
        %v1442 = vand.u32 %v1440, 31
        %v1443 = vsub.s32 32, %v1442
        %v1444 = vshrl.u32 683565275, %v1443
        %v1445 = vshll.u32 683565275, %v1442
        %v1446 = vshrl.u32 2475754826, %v1443
        %v1447 = vor.u32 %v1445, %v1446
        %v1448 = vshll.u32 2475754826, %v1442
        %v1449 = vshrl.u32 2131351028, %v1443
        %v1450 = vor.u32 %v1448, %v1449
        %v1451 = vshll.u32 2131351028, %v1442
        %v1452 = vshrl.u32 2102212464, %v1443
        %v1453 = vor.u32 %v1451, %v1452
        %v1454 = vshll.u32 2102212464, %v1442
        %v1455 = vshrl.u32 920167782, %v1443
        %v1456 = vor.u32 %v1454, %v1455
        %v1457 = vshll.u32 920167782, %v1442
        %v1458 = vshrl.u32 1326507024, %v1443
        %v1459 = vor.u32 %v1457, %v1458
        %vm1460 = vcmp.lt.s32.totalorder %v1441, 1
        %vm1461 = vcmp.lt.s32.totalorder %v1441, 2
        %vm1462 = vcmp.lt.s32.totalorder %v1441, 3
        %vm1463 = vcmp.lt.s32.totalorder %v1441, 4
        %v1464 = vsel %vm1460, %v1444, %v1447
        %v1465 = vsel %vm1463, %v1453, 2102212464
        %v1466 = vsel %vm1462, %v1450, %v1465
        %v1467 = vsel %vm1461, %v1464, %v1466
        %v1468 = vsel %vm1460, %v1447, %v1450
        %v1469 = vsel %vm1463, %v1456, 920167782
        %v1470 = vsel %vm1462, %v1453, %v1469
        %v1471 = vsel %vm1461, %v1468, %v1470
        %v1472 = vsel %vm1460, %v1450, %v1453
        %v1473 = vsel %vm1463, %v1459, 1326507024
        %v1474 = vsel %vm1462, %v1456, %v1473
        %v1475 = vsel %vm1461, %v1472, %v1474
        %v1476 = vshll.u32 %v1436, 8
        %v1477 = vmul.u32.u64.compose %v1476, %v1475
        %v1478 = vextract.low.u32 %v1477
        %v1479 = vextract.high.u32 %v1477
        %v1480 = vmul.u32.u64.compose %v1476, %v1471
        %v1481 = vextract.low.u32 %v1480
        %v1482 = vextract.high.u32 %v1480
        %v1483 = vmul.u32 %v1476, %v1467
        %v1484 = vadd.s32 %v1479, %v1481
        %vm1485 = vc.u32 %v1479, %v1481
        %v1486 = vadd.s32 %v1482, 1
        %v1487 = vsel %vm1485, %v1486, %v1482
        %v1488 = vadd.s32 %v1483, %v1487
        %v1489 = vadd.s32 %v1488, 536870912
        %v1490 = vshrl.u32 %v1489, 30
        %v1491 = vshll.u32 %v1490, 30
        %v1492 = vsub.s32 %v1488, %v1491
        %vm1493 = vcmp.lt.s32.totalorder %v1492, 0
        %v1494 = vsub.s32 0, %v1492
        %v1495 = vsel %vm1493, %v1494, %v1492
        %v1496 = vclz %v1495
        %v1497 = vsub.s32 %v1496, 2
        %vm1498 = vcmp.gt.s32.totalorder 0, %v1497
        %v1499 = vsel %vm1498, 0, %v1497
        %v1500 = vsub.s32 32, %v1499
        %v1501 = vshll.u32 %v1492, %v1499
        %v1502 = vshrl.u32 %v1484, %v1500
        %v1503 = vor.u32 %v1501, %v1502
        %v1504 = vsub.s32 4294967266, %v1499
        %v1505 = vadd.s32 %v1504, 127
        %v1506 = vshll.u32 %v1505, 23
        %v1507 = vor.u32 4788187, %v1506
        %v1508 = vand.u32 2147483647, %v1507
        %v1510 = vcvt.s32.f32 %v1503
        %v1511 = vmul.f32 %v1510, %v1508
        %v1512 = vxor.u32 %v1511, 2147483648
        %v1513 = vsel %vm1430, %v1512, %v1511
        %v1514 = vsub.s32 4, %v1490
        %v1515 = vsel %vm1430, %v1514, %v1490
        %v1516 = vsel %vm1429, %v1214, %v1513
        %v1517 = vsel %vm1429, 0, %v1515
        %v1518 = vcosq.f32.pop %v1516
        %v1519 = vsinq.f32.pop %v1516
        %vm1520 = vweird.f32 %v1214
        %v1521 = vadd.s32 %v1517, 3
        %v1522 = vand.u32 %v1521, 3
        %vm1523 = vcmp.lt.s32.totalorder %v1522, 2
        %vm1524 = vcmp.eq.s32.totalorder %v1522, 0
        %v1525 = vxor.u32 %v1519, 2147483648
        %v1526 = vsel %vm1524, %v1518, %v1525
        %vm1527 = vcmp.eq.s32.totalorder %v1522, 2
        %v1528 = vxor.u32 %v1518, 2147483648
        %v1529 = vsel %vm1527, %v1528, %v1519
        %v1530 = vsel %vm1523, %v1526, %v1529
        %v1531 = vsel %vm1520, nan, %v1530
        %v1532 = vand.u32 2147483647, %v1215
        %vm1533 = vcmp.le.f32.partialorder %v1532, 0.7853982
        %vm1534 = vcmp.lt.s32.totalorder %v1215, 0
        %v1535 = vand.u32 %v1215, 2139095040
        %v1536 = vshrl.u32 %v1535, 23
        %v1537 = vsub.s32 %v1536, 127
        %v1538 = vand.u32 2147483647, %v1215
        %v1539 = vand.u32 %v1538, 8388607
        %v1540 = vor.u32 %v1539, 8388608
        %v1541 = vsub.s32 0, %v1540
        %v1542 = vadd.s32 %v1537, 1
        %vm1543 = vcmp.gt.s32.totalorder %v1542, 0
        %v1544 = vsel %vm1543, %v1542, 0
        %v1545 = vshrl.u32 %v1544, 5
        %v1546 = vand.u32 %v1544, 31
        %v1547 = vsub.s32 32, %v1546
        %v1548 = vshrl.u32 683565275, %v1547
        %v1549 = vshll.u32 683565275, %v1546
        %v1550 = vshrl.u32 2475754826, %v1547
        %v1551 = vor.u32 %v1549, %v1550
        %v1552 = vshll.u32 2475754826, %v1546
        %v1553 = vshrl.u32 2131351028, %v1547
        %v1554 = vor.u32 %v1552, %v1553
        %v1555 = vshll.u32 2131351028, %v1546
        %v1556 = vshrl.u32 2102212464, %v1547
        %v1557 = vor.u32 %v1555, %v1556
        %v1558 = vshll.u32 2102212464, %v1546
        %v1559 = vshrl.u32 920167782, %v1547
        %v1560 = vor.u32 %v1558, %v1559
        %v1561 = vshll.u32 920167782, %v1546
        %v1562 = vshrl.u32 1326507024, %v1547
        %v1563 = vor.u32 %v1561, %v1562
        %vm1564 = vcmp.lt.s32.totalorder %v1545, 1
        %vm1565 = vcmp.lt.s32.totalorder %v1545, 2
        %vm1566 = vcmp.lt.s32.totalorder %v1545, 3
        %vm1567 = vcmp.lt.s32.totalorder %v1545, 4
        %v1568 = vsel %vm1564, %v1548, %v1551
        %v1569 = vsel %vm1567, %v1557, 2102212464
        %v1570 = vsel %vm1566, %v1554, %v1569
        %v1571 = vsel %vm1565, %v1568, %v1570
        %v1572 = vsel %vm1564, %v1551, %v1554
        %v1573 = vsel %vm1567, %v1560, 920167782
        %v1574 = vsel %vm1566, %v1557, %v1573
        %v1575 = vsel %vm1565, %v1572, %v1574
        %v1576 = vsel %vm1564, %v1554, %v1557
        %v1577 = vsel %vm1567, %v1563, 1326507024
        %v1578 = vsel %vm1566, %v1560, %v1577
        %v1579 = vsel %vm1565, %v1576, %v1578
        %v1580 = vshll.u32 %v1540, 8
        %v1581 = vmul.u32.u64.compose %v1580, %v1579
        %v1582 = vextract.low.u32 %v1581
        %v1583 = vextract.high.u32 %v1581
        %v1584 = vmul.u32.u64.compose %v1580, %v1575
        %v1585 = vextract.low.u32 %v1584
        %v1586 = vextract.high.u32 %v1584
        %v1587 = vmul.u32 %v1580, %v1571
        %v1588 = vadd.s32 %v1583, %v1585
        %vm1589 = vc.u32 %v1583, %v1585
        %v1590 = vadd.s32 %v1586, 1
        %v1591 = vsel %vm1589, %v1590, %v1586
        %v1592 = vadd.s32 %v1587, %v1591
        %v1593 = vadd.s32 %v1592, 536870912
        %v1594 = vshrl.u32 %v1593, 30
        %v1595 = vshll.u32 %v1594, 30
        %v1596 = vsub.s32 %v1592, %v1595
        %vm1597 = vcmp.lt.s32.totalorder %v1596, 0
        %v1598 = vsub.s32 0, %v1596
        %v1599 = vsel %vm1597, %v1598, %v1596
        %v1600 = vclz %v1599
        %v1601 = vsub.s32 %v1600, 2
        %vm1602 = vcmp.gt.s32.totalorder 0, %v1601
        %v1603 = vsel %vm1602, 0, %v1601
        %v1604 = vsub.s32 32, %v1603
        %v1605 = vshll.u32 %v1596, %v1603
        %v1606 = vshrl.u32 %v1588, %v1604
        %v1607 = vor.u32 %v1605, %v1606
        %v1608 = vsub.s32 4294967266, %v1603
        %v1609 = vadd.s32 %v1608, 127
        %v1610 = vshll.u32 %v1609, 23
        %v1611 = vor.u32 4788187, %v1610
        %v1612 = vand.u32 2147483647, %v1611
        %v1614 = vcvt.s32.f32 %v1607
        %v1615 = vmul.f32 %v1614, %v1612
        %v1616 = vxor.u32 %v1615, 2147483648
        %v1617 = vsel %vm1534, %v1616, %v1615
        %v1618 = vsub.s32 4, %v1594
        %v1619 = vsel %vm1534, %v1618, %v1594
        %v1620 = vsel %vm1533, %v1215, %v1617
        %v1621 = vsel %vm1533, 0, %v1619
        %v1622 = vcosq.f32.pop %v1620
        %v1623 = vsinq.f32.pop %v1620
        %vm1624 = vweird.f32 %v1215
        %v1625 = vadd.s32 %v1621, 3
        %v1626 = vand.u32 %v1625, 3
        %vm1627 = vcmp.lt.s32.totalorder %v1626, 2
        %vm1628 = vcmp.eq.s32.totalorder %v1626, 0
        %v1629 = vxor.u32 %v1623, 2147483648
        %v1630 = vsel %vm1628, %v1622, %v1629
        %vm1631 = vcmp.eq.s32.totalorder %v1626, 2
        %v1632 = vxor.u32 %v1622, 2147483648
        %v1633 = vsel %vm1631, %v1632, %v1623
        %v1634 = vsel %vm1627, %v1630, %v1633
        %v1635 = vsel %vm1624, nan, %v1634
        %v1636 = vand.u32 2147483647, %v1216
        %vm1637 = vcmp.le.f32.partialorder %v1636, 0.7853982
        %vm1638 = vcmp.lt.s32.totalorder %v1216, 0
        %v1639 = vand.u32 %v1216, 2139095040
        %v1640 = vshrl.u32 %v1639, 23
        %v1641 = vsub.s32 %v1640, 127
        %v1642 = vand.u32 2147483647, %v1216
        %v1643 = vand.u32 %v1642, 8388607
        %v1644 = vor.u32 %v1643, 8388608
        %v1645 = vsub.s32 0, %v1644
        %v1646 = vadd.s32 %v1641, 1
        %vm1647 = vcmp.gt.s32.totalorder %v1646, 0
        %v1648 = vsel %vm1647, %v1646, 0
        %v1649 = vshrl.u32 %v1648, 5
        %v1650 = vand.u32 %v1648, 31
        %v1651 = vsub.s32 32, %v1650
        %v1652 = vshrl.u32 683565275, %v1651
        %v1653 = vshll.u32 683565275, %v1650
        %v1654 = vshrl.u32 2475754826, %v1651
        %v1655 = vor.u32 %v1653, %v1654
        %v1656 = vshll.u32 2475754826, %v1650
        %v1657 = vshrl.u32 2131351028, %v1651
        %v1658 = vor.u32 %v1656, %v1657
        %v1659 = vshll.u32 2131351028, %v1650
        %v1660 = vshrl.u32 2102212464, %v1651
        %v1661 = vor.u32 %v1659, %v1660
        %v1662 = vshll.u32 2102212464, %v1650
        %v1663 = vshrl.u32 920167782, %v1651
        %v1664 = vor.u32 %v1662, %v1663
        %v1665 = vshll.u32 920167782, %v1650
        %v1666 = vshrl.u32 1326507024, %v1651
        %v1667 = vor.u32 %v1665, %v1666
        %vm1668 = vcmp.lt.s32.totalorder %v1649, 1
        %vm1669 = vcmp.lt.s32.totalorder %v1649, 2
        %vm1670 = vcmp.lt.s32.totalorder %v1649, 3
        %vm1671 = vcmp.lt.s32.totalorder %v1649, 4
        %v1672 = vsel %vm1668, %v1652, %v1655
        %v1673 = vsel %vm1671, %v1661, 2102212464
        %v1674 = vsel %vm1670, %v1658, %v1673
        %v1675 = vsel %vm1669, %v1672, %v1674
        %v1676 = vsel %vm1668, %v1655, %v1658
        %v1677 = vsel %vm1671, %v1664, 920167782
        %v1678 = vsel %vm1670, %v1661, %v1677
        %v1679 = vsel %vm1669, %v1676, %v1678
        %v1680 = vsel %vm1668, %v1658, %v1661
        %v1681 = vsel %vm1671, %v1667, 1326507024
        %v1682 = vsel %vm1670, %v1664, %v1681
        %v1683 = vsel %vm1669, %v1680, %v1682
        %v1684 = vshll.u32 %v1644, 8
        %v1685 = vmul.u32.u64.compose %v1684, %v1683
        %v1686 = vextract.low.u32 %v1685
        %v1687 = vextract.high.u32 %v1685
        %v1688 = vmul.u32.u64.compose %v1684, %v1679
        %v1689 = vextract.low.u32 %v1688
        %v1690 = vextract.high.u32 %v1688
        %v1691 = vmul.u32 %v1684, %v1675
        %v1692 = vadd.s32 %v1687, %v1689
        %vm1693 = vc.u32 %v1687, %v1689
        %v1694 = vadd.s32 %v1690, 1
        %v1695 = vsel %vm1693, %v1694, %v1690
        %v1696 = vadd.s32 %v1691, %v1695
        %v1697 = vadd.s32 %v1696, 536870912
        %v1698 = vshrl.u32 %v1697, 30
        %v1699 = vshll.u32 %v1698, 30
        %v1700 = vsub.s32 %v1696, %v1699
        %vm1701 = vcmp.lt.s32.totalorder %v1700, 0
        %v1702 = vsub.s32 0, %v1700
        %v1703 = vsel %vm1701, %v1702, %v1700
        %v1704 = vclz %v1703
        %v1705 = vsub.s32 %v1704, 2
        %vm1706 = vcmp.gt.s32.totalorder 0, %v1705
        %v1707 = vsel %vm1706, 0, %v1705
        %v1708 = vsub.s32 32, %v1707
        %v1709 = vshll.u32 %v1700, %v1707
        %v1710 = vshrl.u32 %v1692, %v1708
        %v1711 = vor.u32 %v1709, %v1710
        %v1712 = vsub.s32 4294967266, %v1707
        %v1713 = vadd.s32 %v1712, 127
        %v1714 = vshll.u32 %v1713, 23
        %v1715 = vor.u32 4788187, %v1714
        %v1716 = vand.u32 2147483647, %v1715
        %v1718 = vcvt.s32.f32 %v1711
        %v1719 = vmul.f32 %v1718, %v1716
        %v1720 = vxor.u32 %v1719, 2147483648
        %v1721 = vsel %vm1638, %v1720, %v1719
        %v1722 = vsub.s32 4, %v1698
        %v1723 = vsel %vm1638, %v1722, %v1698
        %v1724 = vsel %vm1637, %v1216, %v1721
        %v1725 = vsel %vm1637, 0, %v1723
        %v1726 = vcosq.f32.pop %v1724
        %v1727 = vsinq.f32.pop %v1724
        %vm1728 = vweird.f32 %v1216
        %v1729 = vadd.s32 %v1725, 3
        %v1730 = vand.u32 %v1729, 3
        %vm1731 = vcmp.lt.s32.totalorder %v1730, 2
        %vm1732 = vcmp.eq.s32.totalorder %v1730, 0
        %v1733 = vxor.u32 %v1727, 2147483648
        %v1734 = vsel %vm1732, %v1726, %v1733
        %vm1735 = vcmp.eq.s32.totalorder %v1730, 2
        %v1736 = vxor.u32 %v1726, 2147483648
        %v1737 = vsel %vm1735, %v1736, %v1727
        %v1738 = vsel %vm1731, %v1734, %v1737
        %v1739 = vsel %vm1728, nan, %v1738
        %v1740 = vand.u32 2147483647, %v1217
        %vm1741 = vcmp.le.f32.partialorder %v1740, 0.7853982
        %vm1742 = vcmp.lt.s32.totalorder %v1217, 0
        %v1743 = vand.u32 %v1217, 2139095040
        %v1744 = vshrl.u32 %v1743, 23
        %v1745 = vsub.s32 %v1744, 127
        %v1746 = vand.u32 2147483647, %v1217
        %v1747 = vand.u32 %v1746, 8388607
        %v1748 = vor.u32 %v1747, 8388608
        %v1749 = vsub.s32 0, %v1748
        %v1750 = vadd.s32 %v1745, 1
        %vm1751 = vcmp.gt.s32.totalorder %v1750, 0
        %v1752 = vsel %vm1751, %v1750, 0
        %v1753 = vshrl.u32 %v1752, 5
        %v1754 = vand.u32 %v1752, 31
        %v1755 = vsub.s32 32, %v1754
        %v1756 = vshrl.u32 683565275, %v1755
        %v1757 = vshll.u32 683565275, %v1754
        %v1758 = vshrl.u32 2475754826, %v1755
        %v1759 = vor.u32 %v1757, %v1758
        %v1760 = vshll.u32 2475754826, %v1754
        %v1761 = vshrl.u32 2131351028, %v1755
        %v1762 = vor.u32 %v1760, %v1761
        %v1763 = vshll.u32 2131351028, %v1754
        %v1764 = vshrl.u32 2102212464, %v1755
        %v1765 = vor.u32 %v1763, %v1764
        %v1766 = vshll.u32 2102212464, %v1754
        %v1767 = vshrl.u32 920167782, %v1755
        %v1768 = vor.u32 %v1766, %v1767
        %v1769 = vshll.u32 920167782, %v1754
        %v1770 = vshrl.u32 1326507024, %v1755
        %v1771 = vor.u32 %v1769, %v1770
        %vm1772 = vcmp.lt.s32.totalorder %v1753, 1
        %vm1773 = vcmp.lt.s32.totalorder %v1753, 2
        %vm1774 = vcmp.lt.s32.totalorder %v1753, 3
        %vm1775 = vcmp.lt.s32.totalorder %v1753, 4
        %v1776 = vsel %vm1772, %v1756, %v1759
        %v1777 = vsel %vm1775, %v1765, 2102212464
        %v1778 = vsel %vm1774, %v1762, %v1777
        %v1779 = vsel %vm1773, %v1776, %v1778
        %v1780 = vsel %vm1772, %v1759, %v1762
        %v1781 = vsel %vm1775, %v1768, 920167782
        %v1782 = vsel %vm1774, %v1765, %v1781
        %v1783 = vsel %vm1773, %v1780, %v1782
        %v1784 = vsel %vm1772, %v1762, %v1765
        %v1785 = vsel %vm1775, %v1771, 1326507024
        %v1786 = vsel %vm1774, %v1768, %v1785
        %v1787 = vsel %vm1773, %v1784, %v1786
        %v1788 = vshll.u32 %v1748, 8
        %v1789 = vmul.u32.u64.compose %v1788, %v1787
        %v1790 = vextract.low.u32 %v1789
        %v1791 = vextract.high.u32 %v1789
        %v1792 = vmul.u32.u64.compose %v1788, %v1783
        %v1793 = vextract.low.u32 %v1792
        %v1794 = vextract.high.u32 %v1792
        %v1795 = vmul.u32 %v1788, %v1779
        %v1796 = vadd.s32 %v1791, %v1793
        %vm1797 = vc.u32 %v1791, %v1793
        %v1798 = vadd.s32 %v1794, 1
        %v1799 = vsel %vm1797, %v1798, %v1794
        %v1800 = vadd.s32 %v1795, %v1799
        %v1801 = vadd.s32 %v1800, 536870912
        %v1802 = vshrl.u32 %v1801, 30
        %v1803 = vshll.u32 %v1802, 30
        %v1804 = vsub.s32 %v1800, %v1803
        %vm1805 = vcmp.lt.s32.totalorder %v1804, 0
        %v1806 = vsub.s32 0, %v1804
        %v1807 = vsel %vm1805, %v1806, %v1804
        %v1808 = vclz %v1807
        %v1809 = vsub.s32 %v1808, 2
        %vm1810 = vcmp.gt.s32.totalorder 0, %v1809
        %v1811 = vsel %vm1810, 0, %v1809
        %v1812 = vsub.s32 32, %v1811
        %v1813 = vshll.u32 %v1804, %v1811
        %v1814 = vshrl.u32 %v1796, %v1812
        %v1815 = vor.u32 %v1813, %v1814
        %v1816 = vsub.s32 4294967266, %v1811
        %v1817 = vadd.s32 %v1816, 127
        %v1818 = vshll.u32 %v1817, 23
        %v1819 = vor.u32 4788187, %v1818
        %v1820 = vand.u32 2147483647, %v1819
        %v1822 = vcvt.s32.f32 %v1815
        %v1823 = vmul.f32 %v1822, %v1820
        %v1824 = vxor.u32 %v1823, 2147483648
        %v1825 = vsel %vm1742, %v1824, %v1823
        %v1826 = vsub.s32 4, %v1802
        %v1827 = vsel %vm1742, %v1826, %v1802
        %v1828 = vsel %vm1741, %v1217, %v1825
        %v1829 = vsel %vm1741, 0, %v1827
        %v1830 = vcosq.f32.pop %v1828
        %v1831 = vsinq.f32.pop %v1828
        %vm1832 = vweird.f32 %v1217
        %v1833 = vadd.s32 %v1829, 3
        %v1834 = vand.u32 %v1833, 3
        %vm1835 = vcmp.lt.s32.totalorder %v1834, 2
        %vm1836 = vcmp.eq.s32.totalorder %v1834, 0
        %v1837 = vxor.u32 %v1831, 2147483648
        %v1838 = vsel %vm1836, %v1830, %v1837
        %vm1839 = vcmp.eq.s32.totalorder %v1834, 2
        %v1840 = vxor.u32 %v1830, 2147483648
        %v1841 = vsel %vm1839, %v1840, %v1831
        %v1842 = vsel %vm1835, %v1838, %v1841
        %v1843 = vsel %vm1832, nan, %v1842
        %v1844 = vand.u32 2147483647, %v1218
        %vm1845 = vcmp.le.f32.partialorder %v1844, 0.7853982
        %vm1846 = vcmp.lt.s32.totalorder %v1218, 0
        %v1847 = vand.u32 %v1218, 2139095040
        %v1848 = vshrl.u32 %v1847, 23
        %v1849 = vsub.s32 %v1848, 127
        %v1850 = vand.u32 2147483647, %v1218
        %v1851 = vand.u32 %v1850, 8388607
        %v1852 = vor.u32 %v1851, 8388608
        %v1853 = vsub.s32 0, %v1852
        %v1854 = vadd.s32 %v1849, 1
        %vm1855 = vcmp.gt.s32.totalorder %v1854, 0
        %v1856 = vsel %vm1855, %v1854, 0
        %v1857 = vshrl.u32 %v1856, 5
        %v1858 = vand.u32 %v1856, 31
        %v1859 = vsub.s32 32, %v1858
        %v1860 = vshrl.u32 683565275, %v1859
        %v1861 = vshll.u32 683565275, %v1858
        %v1862 = vshrl.u32 2475754826, %v1859
        %v1863 = vor.u32 %v1861, %v1862
        %v1864 = vshll.u32 2475754826, %v1858
        %v1865 = vshrl.u32 2131351028, %v1859
        %v1866 = vor.u32 %v1864, %v1865
        %v1867 = vshll.u32 2131351028, %v1858
        %v1868 = vshrl.u32 2102212464, %v1859
        %v1869 = vor.u32 %v1867, %v1868
        %v1870 = vshll.u32 2102212464, %v1858
        %v1871 = vshrl.u32 920167782, %v1859
        %v1872 = vor.u32 %v1870, %v1871
        %v1873 = vshll.u32 920167782, %v1858
        %v1874 = vshrl.u32 1326507024, %v1859
        %v1875 = vor.u32 %v1873, %v1874
        %vm1876 = vcmp.lt.s32.totalorder %v1857, 1
        %vm1877 = vcmp.lt.s32.totalorder %v1857, 2
        %vm1878 = vcmp.lt.s32.totalorder %v1857, 3
        %vm1879 = vcmp.lt.s32.totalorder %v1857, 4
        %v1880 = vsel %vm1876, %v1860, %v1863
        %v1881 = vsel %vm1879, %v1869, 2102212464
        %v1882 = vsel %vm1878, %v1866, %v1881
        %v1883 = vsel %vm1877, %v1880, %v1882
        %v1884 = vsel %vm1876, %v1863, %v1866
        %v1885 = vsel %vm1879, %v1872, 920167782
        %v1886 = vsel %vm1878, %v1869, %v1885
        %v1887 = vsel %vm1877, %v1884, %v1886
        %v1888 = vsel %vm1876, %v1866, %v1869
        %v1889 = vsel %vm1879, %v1875, 1326507024
        %v1890 = vsel %vm1878, %v1872, %v1889
        %v1891 = vsel %vm1877, %v1888, %v1890
        %v1892 = vshll.u32 %v1852, 8
        %v1893 = vmul.u32.u64.compose %v1892, %v1891
        %v1894 = vextract.low.u32 %v1893
        %v1895 = vextract.high.u32 %v1893
        %v1896 = vmul.u32.u64.compose %v1892, %v1887
        %v1897 = vextract.low.u32 %v1896
        %v1898 = vextract.high.u32 %v1896
        %v1899 = vmul.u32 %v1892, %v1883
        %v1900 = vadd.s32 %v1895, %v1897
        %vm1901 = vc.u32 %v1895, %v1897
        %v1902 = vadd.s32 %v1898, 1
        %v1903 = vsel %vm1901, %v1902, %v1898
        %v1904 = vadd.s32 %v1899, %v1903
        %v1905 = vadd.s32 %v1904, 536870912
        %v1906 = vshrl.u32 %v1905, 30
        %v1907 = vshll.u32 %v1906, 30
        %v1908 = vsub.s32 %v1904, %v1907
        %vm1909 = vcmp.lt.s32.totalorder %v1908, 0
        %v1910 = vsub.s32 0, %v1908
        %v1911 = vsel %vm1909, %v1910, %v1908
        %v1912 = vclz %v1911
        %v1913 = vsub.s32 %v1912, 2
        %vm1914 = vcmp.gt.s32.totalorder 0, %v1913
        %v1915 = vsel %vm1914, 0, %v1913
        %v1916 = vsub.s32 32, %v1915
        %v1917 = vshll.u32 %v1908, %v1915
        %v1918 = vshrl.u32 %v1900, %v1916
        %v1919 = vor.u32 %v1917, %v1918
        %v1920 = vsub.s32 4294967266, %v1915
        %v1921 = vadd.s32 %v1920, 127
        %v1922 = vshll.u32 %v1921, 23
        %v1923 = vor.u32 4788187, %v1922
        %v1924 = vand.u32 2147483647, %v1923
        %v1926 = vcvt.s32.f32 %v1919
        %v1927 = vmul.f32 %v1926, %v1924
        %v1928 = vxor.u32 %v1927, 2147483648
        %v1929 = vsel %vm1846, %v1928, %v1927
        %v1930 = vsub.s32 4, %v1906
        %v1931 = vsel %vm1846, %v1930, %v1906
        %v1932 = vsel %vm1845, %v1218, %v1929
        %v1933 = vsel %vm1845, 0, %v1931
        %v1934 = vcosq.f32.pop %v1932
        %v1935 = vsinq.f32.pop %v1932
        %vm1936 = vweird.f32 %v1218
        %v1937 = vadd.s32 %v1933, 3
        %v1938 = vand.u32 %v1937, 3
        %vm1939 = vcmp.lt.s32.totalorder %v1938, 2
        %vm1940 = vcmp.eq.s32.totalorder %v1938, 0
        %v1941 = vxor.u32 %v1935, 2147483648
        %v1942 = vsel %vm1940, %v1934, %v1941
        %vm1943 = vcmp.eq.s32.totalorder %v1938, 2
        %v1944 = vxor.u32 %v1934, 2147483648
        %v1945 = vsel %vm1943, %v1944, %v1935
        %v1946 = vsel %vm1939, %v1942, %v1945
        %v1947 = vsel %vm1936, nan, %v1946
        %v1948 = vand.u32 2147483647, %v1219
        %vm1949 = vcmp.le.f32.partialorder %v1948, 0.7853982
        %vm1950 = vcmp.lt.s32.totalorder %v1219, 0
        %v1951 = vand.u32 %v1219, 2139095040
        %v1952 = vshrl.u32 %v1951, 23
        %v1953 = vsub.s32 %v1952, 127
        %v1954 = vand.u32 2147483647, %v1219
        %v1955 = vand.u32 %v1954, 8388607
        %v1956 = vor.u32 %v1955, 8388608
        %v1957 = vsub.s32 0, %v1956
        %v1958 = vadd.s32 %v1953, 1
        %vm1959 = vcmp.gt.s32.totalorder %v1958, 0
        %v1960 = vsel %vm1959, %v1958, 0
        %v1961 = vshrl.u32 %v1960, 5
        %v1962 = vand.u32 %v1960, 31
        %v1963 = vsub.s32 32, %v1962
        %v1964 = vshrl.u32 683565275, %v1963
        %v1965 = vshll.u32 683565275, %v1962
        %v1966 = vshrl.u32 2475754826, %v1963
        %v1967 = vor.u32 %v1965, %v1966
        %v1968 = vshll.u32 2475754826, %v1962
        %v1969 = vshrl.u32 2131351028, %v1963
        %v1970 = vor.u32 %v1968, %v1969
        %v1971 = vshll.u32 2131351028, %v1962
        %v1972 = vshrl.u32 2102212464, %v1963
        %v1973 = vor.u32 %v1971, %v1972
        %v1974 = vshll.u32 2102212464, %v1962
        %v1975 = vshrl.u32 920167782, %v1963
        %v1976 = vor.u32 %v1974, %v1975
        %v1977 = vshll.u32 920167782, %v1962
        %v1978 = vshrl.u32 1326507024, %v1963
        %v1979 = vor.u32 %v1977, %v1978
        %vm1980 = vcmp.lt.s32.totalorder %v1961, 1
        %vm1981 = vcmp.lt.s32.totalorder %v1961, 2
        %vm1982 = vcmp.lt.s32.totalorder %v1961, 3
        %vm1983 = vcmp.lt.s32.totalorder %v1961, 4
        %v1984 = vsel %vm1980, %v1964, %v1967
        %v1985 = vsel %vm1983, %v1973, 2102212464
        %v1986 = vsel %vm1982, %v1970, %v1985
        %v1987 = vsel %vm1981, %v1984, %v1986
        %v1988 = vsel %vm1980, %v1967, %v1970
        %v1989 = vsel %vm1983, %v1976, 920167782
        %v1990 = vsel %vm1982, %v1973, %v1989
        %v1991 = vsel %vm1981, %v1988, %v1990
        %v1992 = vsel %vm1980, %v1970, %v1973
        %v1993 = vsel %vm1983, %v1979, 1326507024
        %v1994 = vsel %vm1982, %v1976, %v1993
        %v1995 = vsel %vm1981, %v1992, %v1994
        %v1996 = vshll.u32 %v1956, 8
        %v1997 = vmul.u32.u64.compose %v1996, %v1995
        %v1998 = vextract.low.u32 %v1997
        %v1999 = vextract.high.u32 %v1997
        %v2000 = vmul.u32.u64.compose %v1996, %v1991
        %v2001 = vextract.low.u32 %v2000
        %v2002 = vextract.high.u32 %v2000
        %v2003 = vmul.u32 %v1996, %v1987
        %v2004 = vadd.s32 %v1999, %v2001
        %vm2005 = vc.u32 %v1999, %v2001
        %v2006 = vadd.s32 %v2002, 1
        %v2007 = vsel %vm2005, %v2006, %v2002
        %v2008 = vadd.s32 %v2003, %v2007
        %v2009 = vadd.s32 %v2008, 536870912
        %v2010 = vshrl.u32 %v2009, 30
        %v2011 = vshll.u32 %v2010, 30
        %v2012 = vsub.s32 %v2008, %v2011
        %vm2013 = vcmp.lt.s32.totalorder %v2012, 0
        %v2014 = vsub.s32 0, %v2012
        %v2015 = vsel %vm2013, %v2014, %v2012
        %v2016 = vclz %v2015
        %v2017 = vsub.s32 %v2016, 2
        %vm2018 = vcmp.gt.s32.totalorder 0, %v2017
        %v2019 = vsel %vm2018, 0, %v2017
        %v2020 = vsub.s32 32, %v2019
        %v2021 = vshll.u32 %v2012, %v2019
        %v2022 = vshrl.u32 %v2004, %v2020
        %v2023 = vor.u32 %v2021, %v2022
        %v2024 = vsub.s32 4294967266, %v2019
        %v2025 = vadd.s32 %v2024, 127
        %v2026 = vshll.u32 %v2025, 23
        %v2027 = vor.u32 4788187, %v2026
        %v2028 = vand.u32 2147483647, %v2027
        %v2030 = vcvt.s32.f32 %v2023
        %v2031 = vmul.f32 %v2030, %v2028
        %v2032 = vxor.u32 %v2031, 2147483648
        %v2033 = vsel %vm1950, %v2032, %v2031
        %v2034 = vsub.s32 4, %v2010
        %v2035 = vsel %vm1950, %v2034, %v2010
        %v2036 = vsel %vm1949, %v1219, %v2033
        %v2037 = vsel %vm1949, 0, %v2035
        %v2038 = vcosq.f32.pop %v2036
        %v2039 = vsinq.f32.pop %v2036
        %vm2040 = vweird.f32 %v1219
        %v2041 = vadd.s32 %v2037, 3
        %v2042 = vand.u32 %v2041, 3
        %vm2043 = vcmp.lt.s32.totalorder %v2042, 2
        %vm2044 = vcmp.eq.s32.totalorder %v2042, 0
        %v2045 = vxor.u32 %v2039, 2147483648
        %v2046 = vsel %vm2044, %v2038, %v2045
        %vm2047 = vcmp.eq.s32.totalorder %v2042, 2
        %v2048 = vxor.u32 %v2038, 2147483648
        %v2049 = vsel %vm2047, %v2048, %v2039
        %v2050 = vsel %vm2043, %v2046, %v2049
        %v2051 = vsel %vm2040, nan, %v2050
        %s2052 = scalar_lea.vmem [#allocation2], 8
        %v2053 = vld [vmem:[%s2052] sm:$0x1]
        %v2054 = vld [vmem:[%s2052 + $0x1] sm:$0x1]
        %v2055 = vld [vmem:[%s2052 + $0x2] sm:$0x1]
        %v2056 = vld [vmem:[%s2052 + $0x3] sm:$0x1]
        %2057 = vrot.lane.b32.xlu0 %v1323, 1
        %v2058 = vpop.permute.xlu0 %2057
        %2059 = vrot.lane.b32.xlu0 %v1427, 1
        %v2060 = vpop.permute.xlu0 %2059
        %2061 = vrot.lane.b32.xlu0 %v1531, 1
        %v2062 = vpop.permute.xlu0 %2061
        %2063 = vrot.lane.b32.xlu0 %v1635, 1
        %v2064 = vpop.permute.xlu0 %2063
        %2065 = vrot.lane.b32.xlu0 %v1739, 1
        %v2066 = vpop.permute.xlu0 %2065
        %2067 = vrot.lane.b32.xlu0 %v1843, 1
        %v2068 = vpop.permute.xlu0 %2067
        %2069 = vrot.lane.b32.xlu0 %v1947, 1
        %v2070 = vpop.permute.xlu0 %2069
        %2071 = vrot.lane.b32.xlu0 %v2051, 1
        %v2072 = vpop.permute.xlu0 %2071
        %2073 = vrot.lane.b32.xlu0 %v1323, 127
        %v2074 = vpop.permute.xlu0 %2073
        %2075 = vrot.lane.b32.xlu0 %v1427, 127
        %v2076 = vpop.permute.xlu0 %2075
        %2077 = vrot.lane.b32.xlu0 %v1531, 127
        %v2078 = vpop.permute.xlu0 %2077
        %2079 = vrot.lane.b32.xlu0 %v1635, 127
        %v2080 = vpop.permute.xlu0 %2079
        %2081 = vrot.lane.b32.xlu0 %v1739, 127
        %v2082 = vpop.permute.xlu0 %2081
        %2083 = vrot.lane.b32.xlu0 %v1843, 127
        %v2084 = vpop.permute.xlu0 %2083
        %2085 = vrot.lane.b32.xlu0 %v1947, 127
        %v2086 = vpop.permute.xlu0 %2085
        %2087 = vrot.lane.b32.xlu0 %v2051, 127
        %v2088 = vpop.permute.xlu0 %2087
        %v2089 = vlaneseq
        %v2090 = vshrl.u32 %v2089, 7
        %v2091 = vsub.s32 0, %v2090
        %v2092 = vrot.slane %v2053, %v2091
        %v2093 = vmul.f32 %v2092, %v2058
        %v2094 = vmul.f32 %v2092, %v2060
        %v2095 = vmul.f32 %v2092, %v2062
        %v2096 = vmul.f32 %v2092, %v2064
        %v2097 = vmul.f32 %v2092, %v2066
        %v2098 = vmul.f32 %v2092, %v2068
        %v2099 = vmul.f32 %v2092, %v2070
        %v2100 = vmul.f32 %v2092, %v2072
        %v2101 = vlaneseq
        %v2102 = vshrl.u32 %v2101, 7
        %v2103 = vsub.s32 0, %v2102
        %v2104 = vrot.slane %v2054, %v2103
        %v2105 = vmul.f32 %v2104, %v1323
        %v2106 = vmul.f32 %v2104, %v1427
        %v2107 = vmul.f32 %v2104, %v1531
        %v2108 = vmul.f32 %v2104, %v1635
        %v2109 = vmul.f32 %v2104, %v1739
        %v2110 = vmul.f32 %v2104, %v1843
        %v2111 = vmul.f32 %v2104, %v1947
        %v2112 = vmul.f32 %v2104, %v2051
        %v2113 = vadd.f32 %v2093, %v2105
        %v2114 = vadd.f32 %v2094, %v2106
        %v2115 = vadd.f32 %v2095, %v2107
        %v2116 = vadd.f32 %v2096, %v2108
        %v2117 = vadd.f32 %v2097, %v2109
        %v2118 = vadd.f32 %v2098, %v2110
        %v2119 = vadd.f32 %v2099, %v2111
        %v2120 = vadd.f32 %v2100, %v2112
        %v2121 = vlaneseq
        %v2122 = vshrl.u32 %v2121, 7
        %v2123 = vsub.s32 0, %v2122
        %v2124 = vrot.slane %v2055, %v2123
        %v2125 = vmul.f32 %v2124, %v2074
        %v2126 = vmul.f32 %v2124, %v2076
        %v2127 = vmul.f32 %v2124, %v2078
        %v2128 = vmul.f32 %v2124, %v2080
        %v2129 = vmul.f32 %v2124, %v2082
        %v2130 = vmul.f32 %v2124, %v2084
        %v2131 = vmul.f32 %v2124, %v2086
        %v2132 = vmul.f32 %v2124, %v2088
        %v2133 = vadd.f32 %v2113, %v2125
        %v2134 = vadd.f32 %v2114, %v2126
        %v2135 = vadd.f32 %v2115, %v2127
        %v2136 = vadd.f32 %v2116, %v2128
        %v2137 = vadd.f32 %v2117, %v2129
        %v2138 = vadd.f32 %v2118, %v2130
        %v2139 = vadd.f32 %v2119, %v2131
        %v2140 = vadd.f32 %v2120, %v2132
        %v2141 = vlaneseq
        %v2142 = vshrl.u32 %v2141, 7
        %v2143 = vsub.s32 0, %v2142
        %v2144 = vrot.slane %v2056, %v2143
        %v2145 = vadd.f32 %v2133, %v2144
        %v2146 = vadd.f32 %v2134, %v2144
        %v2147 = vadd.f32 %v2135, %v2144
        %v2148 = vadd.f32 %v2136, %v2144
        %v2149 = vadd.f32 %v2137, %v2144
        %v2150 = vadd.f32 %v2138, %v2144
        %v2151 = vadd.f32 %v2139, %v2144
        %v2152 = vadd.f32 %v2140, %v2144
        %v2153 = vand.u32 2147483647, %v2145
        %vm2154 = vcmp.le.f32.partialorder %v2153, 0.7853982
        %vm2155 = vcmp.lt.s32.totalorder %v2145, 0
        %v2156 = vand.u32 %v2145, 2139095040
        %v2157 = vshrl.u32 %v2156, 23
        %v2158 = vsub.s32 %v2157, 127
        %v2159 = vand.u32 2147483647, %v2145
        %v2160 = vand.u32 %v2159, 8388607
        %v2161 = vor.u32 %v2160, 8388608
        %v2162 = vsub.s32 0, %v2161
        %v2163 = vadd.s32 %v2158, 1
        %vm2164 = vcmp.gt.s32.totalorder %v2163, 0
        %v2165 = vsel %vm2164, %v2163, 0
        %v2166 = vshrl.u32 %v2165, 5
        %v2167 = vand.u32 %v2165, 31
        %v2168 = vsub.s32 32, %v2167
        %v2169 = vshrl.u32 683565275, %v2168
        %v2170 = vshll.u32 683565275, %v2167
        %v2171 = vshrl.u32 2475754826, %v2168
        %v2172 = vor.u32 %v2170, %v2171
        %v2173 = vshll.u32 2475754826, %v2167
        %v2174 = vshrl.u32 2131351028, %v2168
        %v2175 = vor.u32 %v2173, %v2174
        %v2176 = vshll.u32 2131351028, %v2167
        %v2177 = vshrl.u32 2102212464, %v2168
        %v2178 = vor.u32 %v2176, %v2177
        %v2179 = vshll.u32 2102212464, %v2167
        %v2180 = vshrl.u32 920167782, %v2168
        %v2181 = vor.u32 %v2179, %v2180
        %v2182 = vshll.u32 920167782, %v2167
        %v2183 = vshrl.u32 1326507024, %v2168
        %v2184 = vor.u32 %v2182, %v2183
        %vm2185 = vcmp.lt.s32.totalorder %v2166, 1
        %vm2186 = vcmp.lt.s32.totalorder %v2166, 2
        %vm2187 = vcmp.lt.s32.totalorder %v2166, 3
        %vm2188 = vcmp.lt.s32.totalorder %v2166, 4
        %v2189 = vsel %vm2185, %v2169, %v2172
        %v2190 = vsel %vm2188, %v2178, 2102212464
        %v2191 = vsel %vm2187, %v2175, %v2190
        %v2192 = vsel %vm2186, %v2189, %v2191
        %v2193 = vsel %vm2185, %v2172, %v2175
        %v2194 = vsel %vm2188, %v2181, 920167782
        %v2195 = vsel %vm2187, %v2178, %v2194
        %v2196 = vsel %vm2186, %v2193, %v2195
        %v2197 = vsel %vm2185, %v2175, %v2178
        %v2198 = vsel %vm2188, %v2184, 1326507024
        %v2199 = vsel %vm2187, %v2181, %v2198
        %v2200 = vsel %vm2186, %v2197, %v2199
        %v2201 = vshll.u32 %v2161, 8
        %v2202 = vmul.u32.u64.compose %v2201, %v2200
        %v2203 = vextract.low.u32 %v2202
        %v2204 = vextract.high.u32 %v2202
        %v2205 = vmul.u32.u64.compose %v2201, %v2196
        %v2206 = vextract.low.u32 %v2205
        %v2207 = vextract.high.u32 %v2205
        %v2208 = vmul.u32 %v2201, %v2192
        %v2209 = vadd.s32 %v2204, %v2206
        %vm2210 = vc.u32 %v2204, %v2206
        %v2211 = vadd.s32 %v2207, 1
        %v2212 = vsel %vm2210, %v2211, %v2207
        %v2213 = vadd.s32 %v2208, %v2212
        %v2214 = vadd.s32 %v2213, 536870912
        %v2215 = vshrl.u32 %v2214, 30
        %v2216 = vshll.u32 %v2215, 30
        %v2217 = vsub.s32 %v2213, %v2216
        %vm2218 = vcmp.lt.s32.totalorder %v2217, 0
        %v2219 = vsub.s32 0, %v2217
        %v2220 = vsel %vm2218, %v2219, %v2217
        %v2221 = vclz %v2220
        %v2222 = vsub.s32 %v2221, 2
        %vm2223 = vcmp.gt.s32.totalorder 0, %v2222
        %v2224 = vsel %vm2223, 0, %v2222
        %v2225 = vsub.s32 32, %v2224
        %v2226 = vshll.u32 %v2217, %v2224
        %v2227 = vshrl.u32 %v2209, %v2225
        %v2228 = vor.u32 %v2226, %v2227
        %v2229 = vsub.s32 4294967266, %v2224
        %v2230 = vadd.s32 %v2229, 127
        %v2231 = vshll.u32 %v2230, 23
        %v2232 = vor.u32 4788187, %v2231
        %v2233 = vand.u32 2147483647, %v2232
        %v2235 = vcvt.s32.f32 %v2228
        %v2236 = vmul.f32 %v2235, %v2233
        %v2237 = vxor.u32 %v2236, 2147483648
        %v2238 = vsel %vm2155, %v2237, %v2236
        %v2239 = vsub.s32 4, %v2215
        %v2240 = vsel %vm2155, %v2239, %v2215
        %v2241 = vsel %vm2154, %v2145, %v2238
        %v2242 = vsel %vm2154, 0, %v2240
        %v2243 = vcosq.f32.pop %v2241
        %v2244 = vsinq.f32.pop %v2241
        %vm2245 = vweird.f32 %v2145
        %v2246 = vadd.s32 %v2242, 3
        %v2247 = vand.u32 %v2246, 3
        %vm2248 = vcmp.lt.s32.totalorder %v2247, 2
        %vm2249 = vcmp.eq.s32.totalorder %v2247, 0
        %v2250 = vxor.u32 %v2244, 2147483648
        %v2251 = vsel %vm2249, %v2243, %v2250
        %vm2252 = vcmp.eq.s32.totalorder %v2247, 2
        %v2253 = vxor.u32 %v2243, 2147483648
        %v2254 = vsel %vm2252, %v2253, %v2244
        %v2255 = vsel %vm2248, %v2251, %v2254
        %v2256 = vsel %vm2245, nan, %v2255
        %v2257 = vand.u32 2147483647, %v2146
        %vm2258 = vcmp.le.f32.partialorder %v2257, 0.7853982
        %vm2259 = vcmp.lt.s32.totalorder %v2146, 0
        %v2260 = vand.u32 %v2146, 2139095040
        %v2261 = vshrl.u32 %v2260, 23
        %v2262 = vsub.s32 %v2261, 127
        %v2263 = vand.u32 2147483647, %v2146
        %v2264 = vand.u32 %v2263, 8388607
        %v2265 = vor.u32 %v2264, 8388608
        %v2266 = vsub.s32 0, %v2265
        %v2267 = vadd.s32 %v2262, 1
        %vm2268 = vcmp.gt.s32.totalorder %v2267, 0
        %v2269 = vsel %vm2268, %v2267, 0
        %v2270 = vshrl.u32 %v2269, 5
        %v2271 = vand.u32 %v2269, 31
        %v2272 = vsub.s32 32, %v2271
        %v2273 = vshrl.u32 683565275, %v2272
        %v2274 = vshll.u32 683565275, %v2271
        %v2275 = vshrl.u32 2475754826, %v2272
        %v2276 = vor.u32 %v2274, %v2275
        %v2277 = vshll.u32 2475754826, %v2271
        %v2278 = vshrl.u32 2131351028, %v2272
        %v2279 = vor.u32 %v2277, %v2278
        %v2280 = vshll.u32 2131351028, %v2271
        %v2281 = vshrl.u32 2102212464, %v2272
        %v2282 = vor.u32 %v2280, %v2281
        %v2283 = vshll.u32 2102212464, %v2271
        %v2284 = vshrl.u32 920167782, %v2272
        %v2285 = vor.u32 %v2283, %v2284
        %v2286 = vshll.u32 920167782, %v2271
        %v2287 = vshrl.u32 1326507024, %v2272
        %v2288 = vor.u32 %v2286, %v2287
        %vm2289 = vcmp.lt.s32.totalorder %v2270, 1
        %vm2290 = vcmp.lt.s32.totalorder %v2270, 2
        %vm2291 = vcmp.lt.s32.totalorder %v2270, 3
        %vm2292 = vcmp.lt.s32.totalorder %v2270, 4
        %v2293 = vsel %vm2289, %v2273, %v2276
        %v2294 = vsel %vm2292, %v2282, 2102212464
        %v2295 = vsel %vm2291, %v2279, %v2294
        %v2296 = vsel %vm2290, %v2293, %v2295
        %v2297 = vsel %vm2289, %v2276, %v2279
        %v2298 = vsel %vm2292, %v2285, 920167782
        %v2299 = vsel %vm2291, %v2282, %v2298
        %v2300 = vsel %vm2290, %v2297, %v2299
        %v2301 = vsel %vm2289, %v2279, %v2282
        %v2302 = vsel %vm2292, %v2288, 1326507024
        %v2303 = vsel %vm2291, %v2285, %v2302
        %v2304 = vsel %vm2290, %v2301, %v2303
        %v2305 = vshll.u32 %v2265, 8
        %v2306 = vmul.u32.u64.compose %v2305, %v2304
        %v2307 = vextract.low.u32 %v2306
        %v2308 = vextract.high.u32 %v2306
        %v2309 = vmul.u32.u64.compose %v2305, %v2300
        %v2310 = vextract.low.u32 %v2309
        %v2311 = vextract.high.u32 %v2309
        %v2312 = vmul.u32 %v2305, %v2296
        %v2313 = vadd.s32 %v2308, %v2310
        %vm2314 = vc.u32 %v2308, %v2310
        %v2315 = vadd.s32 %v2311, 1
        %v2316 = vsel %vm2314, %v2315, %v2311
        %v2317 = vadd.s32 %v2312, %v2316
        %v2318 = vadd.s32 %v2317, 536870912
        %v2319 = vshrl.u32 %v2318, 30
        %v2320 = vshll.u32 %v2319, 30
        %v2321 = vsub.s32 %v2317, %v2320
        %vm2322 = vcmp.lt.s32.totalorder %v2321, 0
        %v2323 = vsub.s32 0, %v2321
        %v2324 = vsel %vm2322, %v2323, %v2321
        %v2325 = vclz %v2324
        %v2326 = vsub.s32 %v2325, 2
        %vm2327 = vcmp.gt.s32.totalorder 0, %v2326
        %v2328 = vsel %vm2327, 0, %v2326
        %v2329 = vsub.s32 32, %v2328
        %v2330 = vshll.u32 %v2321, %v2328
        %v2331 = vshrl.u32 %v2313, %v2329
        %v2332 = vor.u32 %v2330, %v2331
        %v2333 = vsub.s32 4294967266, %v2328
        %v2334 = vadd.s32 %v2333, 127
        %v2335 = vshll.u32 %v2334, 23
        %v2336 = vor.u32 4788187, %v2335
        %v2337 = vand.u32 2147483647, %v2336
        %v2339 = vcvt.s32.f32 %v2332
        %v2340 = vmul.f32 %v2339, %v2337
        %v2341 = vxor.u32 %v2340, 2147483648
        %v2342 = vsel %vm2259, %v2341, %v2340
        %v2343 = vsub.s32 4, %v2319
        %v2344 = vsel %vm2259, %v2343, %v2319
        %v2345 = vsel %vm2258, %v2146, %v2342
        %v2346 = vsel %vm2258, 0, %v2344
        %v2347 = vcosq.f32.pop %v2345
        %v2348 = vsinq.f32.pop %v2345
        %vm2349 = vweird.f32 %v2146
        %v2350 = vadd.s32 %v2346, 3
        %v2351 = vand.u32 %v2350, 3
        %vm2352 = vcmp.lt.s32.totalorder %v2351, 2
        %vm2353 = vcmp.eq.s32.totalorder %v2351, 0
        %v2354 = vxor.u32 %v2348, 2147483648
        %v2355 = vsel %vm2353, %v2347, %v2354
        %vm2356 = vcmp.eq.s32.totalorder %v2351, 2
        %v2357 = vxor.u32 %v2347, 2147483648
        %v2358 = vsel %vm2356, %v2357, %v2348
        %v2359 = vsel %vm2352, %v2355, %v2358
        %v2360 = vsel %vm2349, nan, %v2359
        %v2361 = vand.u32 2147483647, %v2147
        %vm2362 = vcmp.le.f32.partialorder %v2361, 0.7853982
        %vm2363 = vcmp.lt.s32.totalorder %v2147, 0
        %v2364 = vand.u32 %v2147, 2139095040
        %v2365 = vshrl.u32 %v2364, 23
        %v2366 = vsub.s32 %v2365, 127
        %v2367 = vand.u32 2147483647, %v2147
        %v2368 = vand.u32 %v2367, 8388607
        %v2369 = vor.u32 %v2368, 8388608
        %v2370 = vsub.s32 0, %v2369
        %v2371 = vadd.s32 %v2366, 1
        %vm2372 = vcmp.gt.s32.totalorder %v2371, 0
        %v2373 = vsel %vm2372, %v2371, 0
        %v2374 = vshrl.u32 %v2373, 5
        %v2375 = vand.u32 %v2373, 31
        %v2376 = vsub.s32 32, %v2375
        %v2377 = vshrl.u32 683565275, %v2376
        %v2378 = vshll.u32 683565275, %v2375
        %v2379 = vshrl.u32 2475754826, %v2376
        %v2380 = vor.u32 %v2378, %v2379
        %v2381 = vshll.u32 2475754826, %v2375
        %v2382 = vshrl.u32 2131351028, %v2376
        %v2383 = vor.u32 %v2381, %v2382
        %v2384 = vshll.u32 2131351028, %v2375
        %v2385 = vshrl.u32 2102212464, %v2376
        %v2386 = vor.u32 %v2384, %v2385
        %v2387 = vshll.u32 2102212464, %v2375
        %v2388 = vshrl.u32 920167782, %v2376
        %v2389 = vor.u32 %v2387, %v2388
        %v2390 = vshll.u32 920167782, %v2375
        %v2391 = vshrl.u32 1326507024, %v2376
        %v2392 = vor.u32 %v2390, %v2391
        %vm2393 = vcmp.lt.s32.totalorder %v2374, 1
        %vm2394 = vcmp.lt.s32.totalorder %v2374, 2
        %vm2395 = vcmp.lt.s32.totalorder %v2374, 3
        %vm2396 = vcmp.lt.s32.totalorder %v2374, 4
        %v2397 = vsel %vm2393, %v2377, %v2380
        %v2398 = vsel %vm2396, %v2386, 2102212464
        %v2399 = vsel %vm2395, %v2383, %v2398
        %v2400 = vsel %vm2394, %v2397, %v2399
        %v2401 = vsel %vm2393, %v2380, %v2383
        %v2402 = vsel %vm2396, %v2389, 920167782
        %v2403 = vsel %vm2395, %v2386, %v2402
        %v2404 = vsel %vm2394, %v2401, %v2403
        %v2405 = vsel %vm2393, %v2383, %v2386
        %v2406 = vsel %vm2396, %v2392, 1326507024
        %v2407 = vsel %vm2395, %v2389, %v2406
        %v2408 = vsel %vm2394, %v2405, %v2407
        %v2409 = vshll.u32 %v2369, 8
        %v2410 = vmul.u32.u64.compose %v2409, %v2408
        %v2411 = vextract.low.u32 %v2410
        %v2412 = vextract.high.u32 %v2410
        %v2413 = vmul.u32.u64.compose %v2409, %v2404
        %v2414 = vextract.low.u32 %v2413
        %v2415 = vextract.high.u32 %v2413
        %v2416 = vmul.u32 %v2409, %v2400
        %v2417 = vadd.s32 %v2412, %v2414
        %vm2418 = vc.u32 %v2412, %v2414
        %v2419 = vadd.s32 %v2415, 1
        %v2420 = vsel %vm2418, %v2419, %v2415
        %v2421 = vadd.s32 %v2416, %v2420
        %v2422 = vadd.s32 %v2421, 536870912
        %v2423 = vshrl.u32 %v2422, 30
        %v2424 = vshll.u32 %v2423, 30
        %v2425 = vsub.s32 %v2421, %v2424
        %vm2426 = vcmp.lt.s32.totalorder %v2425, 0
        %v2427 = vsub.s32 0, %v2425
        %v2428 = vsel %vm2426, %v2427, %v2425
        %v2429 = vclz %v2428
        %v2430 = vsub.s32 %v2429, 2
        %vm2431 = vcmp.gt.s32.totalorder 0, %v2430
        %v2432 = vsel %vm2431, 0, %v2430
        %v2433 = vsub.s32 32, %v2432
        %v2434 = vshll.u32 %v2425, %v2432
        %v2435 = vshrl.u32 %v2417, %v2433
        %v2436 = vor.u32 %v2434, %v2435
        %v2437 = vsub.s32 4294967266, %v2432
        %v2438 = vadd.s32 %v2437, 127
        %v2439 = vshll.u32 %v2438, 23
        %v2440 = vor.u32 4788187, %v2439
        %v2441 = vand.u32 2147483647, %v2440
        %v2443 = vcvt.s32.f32 %v2436
        %v2444 = vmul.f32 %v2443, %v2441
        %v2445 = vxor.u32 %v2444, 2147483648
        %v2446 = vsel %vm2363, %v2445, %v2444
        %v2447 = vsub.s32 4, %v2423
        %v2448 = vsel %vm2363, %v2447, %v2423
        %v2449 = vsel %vm2362, %v2147, %v2446
        %v2450 = vsel %vm2362, 0, %v2448
        %v2451 = vcosq.f32.pop %v2449
        %v2452 = vsinq.f32.pop %v2449
        %vm2453 = vweird.f32 %v2147
        %v2454 = vadd.s32 %v2450, 3
        %v2455 = vand.u32 %v2454, 3
        %vm2456 = vcmp.lt.s32.totalorder %v2455, 2
        %vm2457 = vcmp.eq.s32.totalorder %v2455, 0
        %v2458 = vxor.u32 %v2452, 2147483648
        %v2459 = vsel %vm2457, %v2451, %v2458
        %vm2460 = vcmp.eq.s32.totalorder %v2455, 2
        %v2461 = vxor.u32 %v2451, 2147483648
        %v2462 = vsel %vm2460, %v2461, %v2452
        %v2463 = vsel %vm2456, %v2459, %v2462
        %v2464 = vsel %vm2453, nan, %v2463
        %v2465 = vand.u32 2147483647, %v2148
        %vm2466 = vcmp.le.f32.partialorder %v2465, 0.7853982
        %vm2467 = vcmp.lt.s32.totalorder %v2148, 0
        %v2468 = vand.u32 %v2148, 2139095040
        %v2469 = vshrl.u32 %v2468, 23
        %v2470 = vsub.s32 %v2469, 127
        %v2471 = vand.u32 2147483647, %v2148
        %v2472 = vand.u32 %v2471, 8388607
        %v2473 = vor.u32 %v2472, 8388608
        %v2474 = vsub.s32 0, %v2473
        %v2475 = vadd.s32 %v2470, 1
        %vm2476 = vcmp.gt.s32.totalorder %v2475, 0
        %v2477 = vsel %vm2476, %v2475, 0
        %v2478 = vshrl.u32 %v2477, 5
        %v2479 = vand.u32 %v2477, 31
        %v2480 = vsub.s32 32, %v2479
        %v2481 = vshrl.u32 683565275, %v2480
        %v2482 = vshll.u32 683565275, %v2479
        %v2483 = vshrl.u32 2475754826, %v2480
        %v2484 = vor.u32 %v2482, %v2483
        %v2485 = vshll.u32 2475754826, %v2479
        %v2486 = vshrl.u32 2131351028, %v2480
        %v2487 = vor.u32 %v2485, %v2486
        %v2488 = vshll.u32 2131351028, %v2479
        %v2489 = vshrl.u32 2102212464, %v2480
        %v2490 = vor.u32 %v2488, %v2489
        %v2491 = vshll.u32 2102212464, %v2479
        %v2492 = vshrl.u32 920167782, %v2480
        %v2493 = vor.u32 %v2491, %v2492
        %v2494 = vshll.u32 920167782, %v2479
        %v2495 = vshrl.u32 1326507024, %v2480
        %v2496 = vor.u32 %v2494, %v2495
        %vm2497 = vcmp.lt.s32.totalorder %v2478, 1
        %vm2498 = vcmp.lt.s32.totalorder %v2478, 2
        %vm2499 = vcmp.lt.s32.totalorder %v2478, 3
        %vm2500 = vcmp.lt.s32.totalorder %v2478, 4
        %v2501 = vsel %vm2497, %v2481, %v2484
        %v2502 = vsel %vm2500, %v2490, 2102212464
        %v2503 = vsel %vm2499, %v2487, %v2502
        %v2504 = vsel %vm2498, %v2501, %v2503
        %v2505 = vsel %vm2497, %v2484, %v2487
        %v2506 = vsel %vm2500, %v2493, 920167782
        %v2507 = vsel %vm2499, %v2490, %v2506
        %v2508 = vsel %vm2498, %v2505, %v2507
        %v2509 = vsel %vm2497, %v2487, %v2490
        %v2510 = vsel %vm2500, %v2496, 1326507024
        %v2511 = vsel %vm2499, %v2493, %v2510
        %v2512 = vsel %vm2498, %v2509, %v2511
        %v2513 = vshll.u32 %v2473, 8
        %v2514 = vmul.u32.u64.compose %v2513, %v2512
        %v2515 = vextract.low.u32 %v2514
        %v2516 = vextract.high.u32 %v2514
        %v2517 = vmul.u32.u64.compose %v2513, %v2508
        %v2518 = vextract.low.u32 %v2517
        %v2519 = vextract.high.u32 %v2517
        %v2520 = vmul.u32 %v2513, %v2504
        %v2521 = vadd.s32 %v2516, %v2518
        %vm2522 = vc.u32 %v2516, %v2518
        %v2523 = vadd.s32 %v2519, 1
        %v2524 = vsel %vm2522, %v2523, %v2519
        %v2525 = vadd.s32 %v2520, %v2524
        %v2526 = vadd.s32 %v2525, 536870912
        %v2527 = vshrl.u32 %v2526, 30
        %v2528 = vshll.u32 %v2527, 30
        %v2529 = vsub.s32 %v2525, %v2528
        %vm2530 = vcmp.lt.s32.totalorder %v2529, 0
        %v2531 = vsub.s32 0, %v2529
        %v2532 = vsel %vm2530, %v2531, %v2529
        %v2533 = vclz %v2532
        %v2534 = vsub.s32 %v2533, 2
        %vm2535 = vcmp.gt.s32.totalorder 0, %v2534
        %v2536 = vsel %vm2535, 0, %v2534
        %v2537 = vsub.s32 32, %v2536
        %v2538 = vshll.u32 %v2529, %v2536
        %v2539 = vshrl.u32 %v2521, %v2537
        %v2540 = vor.u32 %v2538, %v2539
        %v2541 = vsub.s32 4294967266, %v2536
        %v2542 = vadd.s32 %v2541, 127
        %v2543 = vshll.u32 %v2542, 23
        %v2544 = vor.u32 4788187, %v2543
        %v2545 = vand.u32 2147483647, %v2544
        %v2547 = vcvt.s32.f32 %v2540
        %v2548 = vmul.f32 %v2547, %v2545
        %v2549 = vxor.u32 %v2548, 2147483648
        %v2550 = vsel %vm2467, %v2549, %v2548
        %v2551 = vsub.s32 4, %v2527
        %v2552 = vsel %vm2467, %v2551, %v2527
        %v2553 = vsel %vm2466, %v2148, %v2550
        %v2554 = vsel %vm2466, 0, %v2552
        %v2555 = vcosq.f32.pop %v2553
        %v2556 = vsinq.f32.pop %v2553
        %vm2557 = vweird.f32 %v2148
        %v2558 = vadd.s32 %v2554, 3
        %v2559 = vand.u32 %v2558, 3
        %vm2560 = vcmp.lt.s32.totalorder %v2559, 2
        %vm2561 = vcmp.eq.s32.totalorder %v2559, 0
        %v2562 = vxor.u32 %v2556, 2147483648
        %v2563 = vsel %vm2561, %v2555, %v2562
        %vm2564 = vcmp.eq.s32.totalorder %v2559, 2
        %v2565 = vxor.u32 %v2555, 2147483648
        %v2566 = vsel %vm2564, %v2565, %v2556
        %v2567 = vsel %vm2560, %v2563, %v2566
        %v2568 = vsel %vm2557, nan, %v2567
        %v2569 = vand.u32 2147483647, %v2149
        %vm2570 = vcmp.le.f32.partialorder %v2569, 0.7853982
        %vm2571 = vcmp.lt.s32.totalorder %v2149, 0
        %v2572 = vand.u32 %v2149, 2139095040
        %v2573 = vshrl.u32 %v2572, 23
        %v2574 = vsub.s32 %v2573, 127
        %v2575 = vand.u32 2147483647, %v2149
        %v2576 = vand.u32 %v2575, 8388607
        %v2577 = vor.u32 %v2576, 8388608
        %v2578 = vsub.s32 0, %v2577
        %v2579 = vadd.s32 %v2574, 1
        %vm2580 = vcmp.gt.s32.totalorder %v2579, 0
        %v2581 = vsel %vm2580, %v2579, 0
        %v2582 = vshrl.u32 %v2581, 5
        %v2583 = vand.u32 %v2581, 31
        %v2584 = vsub.s32 32, %v2583
        %v2585 = vshrl.u32 683565275, %v2584
        %v2586 = vshll.u32 683565275, %v2583
        %v2587 = vshrl.u32 2475754826, %v2584
        %v2588 = vor.u32 %v2586, %v2587
        %v2589 = vshll.u32 2475754826, %v2583
        %v2590 = vshrl.u32 2131351028, %v2584
        %v2591 = vor.u32 %v2589, %v2590
        %v2592 = vshll.u32 2131351028, %v2583
        %v2593 = vshrl.u32 2102212464, %v2584
        %v2594 = vor.u32 %v2592, %v2593
        %v2595 = vshll.u32 2102212464, %v2583
        %v2596 = vshrl.u32 920167782, %v2584
        %v2597 = vor.u32 %v2595, %v2596
        %v2598 = vshll.u32 920167782, %v2583
        %v2599 = vshrl.u32 1326507024, %v2584
        %v2600 = vor.u32 %v2598, %v2599
        %vm2601 = vcmp.lt.s32.totalorder %v2582, 1
        %vm2602 = vcmp.lt.s32.totalorder %v2582, 2
        %vm2603 = vcmp.lt.s32.totalorder %v2582, 3
        %vm2604 = vcmp.lt.s32.totalorder %v2582, 4
        %v2605 = vsel %vm2601, %v2585, %v2588
        %v2606 = vsel %vm2604, %v2594, 2102212464
        %v2607 = vsel %vm2603, %v2591, %v2606
        %v2608 = vsel %vm2602, %v2605, %v2607
        %v2609 = vsel %vm2601, %v2588, %v2591
        %v2610 = vsel %vm2604, %v2597, 920167782
        %v2611 = vsel %vm2603, %v2594, %v2610
        %v2612 = vsel %vm2602, %v2609, %v2611
        %v2613 = vsel %vm2601, %v2591, %v2594
        %v2614 = vsel %vm2604, %v2600, 1326507024
        %v2615 = vsel %vm2603, %v2597, %v2614
        %v2616 = vsel %vm2602, %v2613, %v2615
        %v2617 = vshll.u32 %v2577, 8
        %v2618 = vmul.u32.u64.compose %v2617, %v2616
        %v2619 = vextract.low.u32 %v2618
        %v2620 = vextract.high.u32 %v2618
        %v2621 = vmul.u32.u64.compose %v2617, %v2612
        %v2622 = vextract.low.u32 %v2621
        %v2623 = vextract.high.u32 %v2621
        %v2624 = vmul.u32 %v2617, %v2608
        %v2625 = vadd.s32 %v2620, %v2622
        %vm2626 = vc.u32 %v2620, %v2622
        %v2627 = vadd.s32 %v2623, 1
        %v2628 = vsel %vm2626, %v2627, %v2623
        %v2629 = vadd.s32 %v2624, %v2628
        %v2630 = vadd.s32 %v2629, 536870912
        %v2631 = vshrl.u32 %v2630, 30
        %v2632 = vshll.u32 %v2631, 30
        %v2633 = vsub.s32 %v2629, %v2632
        %vm2634 = vcmp.lt.s32.totalorder %v2633, 0
        %v2635 = vsub.s32 0, %v2633
        %v2636 = vsel %vm2634, %v2635, %v2633
        %v2637 = vclz %v2636
        %v2638 = vsub.s32 %v2637, 2
        %vm2639 = vcmp.gt.s32.totalorder 0, %v2638
        %v2640 = vsel %vm2639, 0, %v2638
        %v2641 = vsub.s32 32, %v2640
        %v2642 = vshll.u32 %v2633, %v2640
        %v2643 = vshrl.u32 %v2625, %v2641
        %v2644 = vor.u32 %v2642, %v2643
        %v2645 = vsub.s32 4294967266, %v2640
        %v2646 = vadd.s32 %v2645, 127
        %v2647 = vshll.u32 %v2646, 23
        %v2648 = vor.u32 4788187, %v2647
        %v2649 = vand.u32 2147483647, %v2648
        %v2651 = vcvt.s32.f32 %v2644
        %v2652 = vmul.f32 %v2651, %v2649
        %v2653 = vxor.u32 %v2652, 2147483648
        %v2654 = vsel %vm2571, %v2653, %v2652
        %v2655 = vsub.s32 4, %v2631
        %v2656 = vsel %vm2571, %v2655, %v2631
        %v2657 = vsel %vm2570, %v2149, %v2654
        %v2658 = vsel %vm2570, 0, %v2656
        %v2659 = vcosq.f32.pop %v2657
        %v2660 = vsinq.f32.pop %v2657
        %vm2661 = vweird.f32 %v2149
        %v2662 = vadd.s32 %v2658, 3
        %v2663 = vand.u32 %v2662, 3
        %vm2664 = vcmp.lt.s32.totalorder %v2663, 2
        %vm2665 = vcmp.eq.s32.totalorder %v2663, 0
        %v2666 = vxor.u32 %v2660, 2147483648
        %v2667 = vsel %vm2665, %v2659, %v2666
        %vm2668 = vcmp.eq.s32.totalorder %v2663, 2
        %v2669 = vxor.u32 %v2659, 2147483648
        %v2670 = vsel %vm2668, %v2669, %v2660
        %v2671 = vsel %vm2664, %v2667, %v2670
        %v2672 = vsel %vm2661, nan, %v2671
        %v2673 = vand.u32 2147483647, %v2150
        %vm2674 = vcmp.le.f32.partialorder %v2673, 0.7853982
        %vm2675 = vcmp.lt.s32.totalorder %v2150, 0
        %v2676 = vand.u32 %v2150, 2139095040
        %v2677 = vshrl.u32 %v2676, 23
        %v2678 = vsub.s32 %v2677, 127
        %v2679 = vand.u32 2147483647, %v2150
        %v2680 = vand.u32 %v2679, 8388607
        %v2681 = vor.u32 %v2680, 8388608
        %v2682 = vsub.s32 0, %v2681
        %v2683 = vadd.s32 %v2678, 1
        %vm2684 = vcmp.gt.s32.totalorder %v2683, 0
        %v2685 = vsel %vm2684, %v2683, 0
        %v2686 = vshrl.u32 %v2685, 5
        %v2687 = vand.u32 %v2685, 31
        %v2688 = vsub.s32 32, %v2687
        %v2689 = vshrl.u32 683565275, %v2688
        %v2690 = vshll.u32 683565275, %v2687
        %v2691 = vshrl.u32 2475754826, %v2688
        %v2692 = vor.u32 %v2690, %v2691
        %v2693 = vshll.u32 2475754826, %v2687
        %v2694 = vshrl.u32 2131351028, %v2688
        %v2695 = vor.u32 %v2693, %v2694
        %v2696 = vshll.u32 2131351028, %v2687
        %v2697 = vshrl.u32 2102212464, %v2688
        %v2698 = vor.u32 %v2696, %v2697
        %v2699 = vshll.u32 2102212464, %v2687
        %v2700 = vshrl.u32 920167782, %v2688
        %v2701 = vor.u32 %v2699, %v2700
        %v2702 = vshll.u32 920167782, %v2687
        %v2703 = vshrl.u32 1326507024, %v2688
        %v2704 = vor.u32 %v2702, %v2703
        %vm2705 = vcmp.lt.s32.totalorder %v2686, 1
        %vm2706 = vcmp.lt.s32.totalorder %v2686, 2
        %vm2707 = vcmp.lt.s32.totalorder %v2686, 3
        %vm2708 = vcmp.lt.s32.totalorder %v2686, 4
        %v2709 = vsel %vm2705, %v2689, %v2692
        %v2710 = vsel %vm2708, %v2698, 2102212464
        %v2711 = vsel %vm2707, %v2695, %v2710
        %v2712 = vsel %vm2706, %v2709, %v2711
        %v2713 = vsel %vm2705, %v2692, %v2695
        %v2714 = vsel %vm2708, %v2701, 920167782
        %v2715 = vsel %vm2707, %v2698, %v2714
        %v2716 = vsel %vm2706, %v2713, %v2715
        %v2717 = vsel %vm2705, %v2695, %v2698
        %v2718 = vsel %vm2708, %v2704, 1326507024
        %v2719 = vsel %vm2707, %v2701, %v2718
        %v2720 = vsel %vm2706, %v2717, %v2719
        %v2721 = vshll.u32 %v2681, 8
        %v2722 = vmul.u32.u64.compose %v2721, %v2720
        %v2723 = vextract.low.u32 %v2722
        %v2724 = vextract.high.u32 %v2722
        %v2725 = vmul.u32.u64.compose %v2721, %v2716
        %v2726 = vextract.low.u32 %v2725
        %v2727 = vextract.high.u32 %v2725
        %v2728 = vmul.u32 %v2721, %v2712
        %v2729 = vadd.s32 %v2724, %v2726
        %vm2730 = vc.u32 %v2724, %v2726
        %v2731 = vadd.s32 %v2727, 1
        %v2732 = vsel %vm2730, %v2731, %v2727
        %v2733 = vadd.s32 %v2728, %v2732
        %v2734 = vadd.s32 %v2733, 536870912
        %v2735 = vshrl.u32 %v2734, 30
        %v2736 = vshll.u32 %v2735, 30
        %v2737 = vsub.s32 %v2733, %v2736
        %vm2738 = vcmp.lt.s32.totalorder %v2737, 0
        %v2739 = vsub.s32 0, %v2737
        %v2740 = vsel %vm2738, %v2739, %v2737
        %v2741 = vclz %v2740
        %v2742 = vsub.s32 %v2741, 2
        %vm2743 = vcmp.gt.s32.totalorder 0, %v2742
        %v2744 = vsel %vm2743, 0, %v2742
        %v2745 = vsub.s32 32, %v2744
        %v2746 = vshll.u32 %v2737, %v2744
        %v2747 = vshrl.u32 %v2729, %v2745
        %v2748 = vor.u32 %v2746, %v2747
        %v2749 = vsub.s32 4294967266, %v2744
        %v2750 = vadd.s32 %v2749, 127
        %v2751 = vshll.u32 %v2750, 23
        %v2752 = vor.u32 4788187, %v2751
        %v2753 = vand.u32 2147483647, %v2752
        %v2755 = vcvt.s32.f32 %v2748
        %v2756 = vmul.f32 %v2755, %v2753
        %v2757 = vxor.u32 %v2756, 2147483648
        %v2758 = vsel %vm2675, %v2757, %v2756
        %v2759 = vsub.s32 4, %v2735
        %v2760 = vsel %vm2675, %v2759, %v2735
        %v2761 = vsel %vm2674, %v2150, %v2758
        %v2762 = vsel %vm2674, 0, %v2760
        %v2763 = vcosq.f32.pop %v2761
        %v2764 = vsinq.f32.pop %v2761
        %vm2765 = vweird.f32 %v2150
        %v2766 = vadd.s32 %v2762, 3
        %v2767 = vand.u32 %v2766, 3
        %vm2768 = vcmp.lt.s32.totalorder %v2767, 2
        %vm2769 = vcmp.eq.s32.totalorder %v2767, 0
        %v2770 = vxor.u32 %v2764, 2147483648
        %v2771 = vsel %vm2769, %v2763, %v2770
        %vm2772 = vcmp.eq.s32.totalorder %v2767, 2
        %v2773 = vxor.u32 %v2763, 2147483648
        %v2774 = vsel %vm2772, %v2773, %v2764
        %v2775 = vsel %vm2768, %v2771, %v2774
        %v2776 = vsel %vm2765, nan, %v2775
        %v2777 = vand.u32 2147483647, %v2151
        %vm2778 = vcmp.le.f32.partialorder %v2777, 0.7853982
        %vm2779 = vcmp.lt.s32.totalorder %v2151, 0
        %v2780 = vand.u32 %v2151, 2139095040
        %v2781 = vshrl.u32 %v2780, 23
        %v2782 = vsub.s32 %v2781, 127
        %v2783 = vand.u32 2147483647, %v2151
        %v2784 = vand.u32 %v2783, 8388607
        %v2785 = vor.u32 %v2784, 8388608
        %v2786 = vsub.s32 0, %v2785
        %v2787 = vadd.s32 %v2782, 1
        %vm2788 = vcmp.gt.s32.totalorder %v2787, 0
        %v2789 = vsel %vm2788, %v2787, 0
        %v2790 = vshrl.u32 %v2789, 5
        %v2791 = vand.u32 %v2789, 31
        %v2792 = vsub.s32 32, %v2791
        %v2793 = vshrl.u32 683565275, %v2792
        %v2794 = vshll.u32 683565275, %v2791
        %v2795 = vshrl.u32 2475754826, %v2792
        %v2796 = vor.u32 %v2794, %v2795
        %v2797 = vshll.u32 2475754826, %v2791
        %v2798 = vshrl.u32 2131351028, %v2792
        %v2799 = vor.u32 %v2797, %v2798
        %v2800 = vshll.u32 2131351028, %v2791
        %v2801 = vshrl.u32 2102212464, %v2792
        %v2802 = vor.u32 %v2800, %v2801
        %v2803 = vshll.u32 2102212464, %v2791
        %v2804 = vshrl.u32 920167782, %v2792
        %v2805 = vor.u32 %v2803, %v2804
        %v2806 = vshll.u32 920167782, %v2791
        %v2807 = vshrl.u32 1326507024, %v2792
        %v2808 = vor.u32 %v2806, %v2807
        %vm2809 = vcmp.lt.s32.totalorder %v2790, 1
        %vm2810 = vcmp.lt.s32.totalorder %v2790, 2
        %vm2811 = vcmp.lt.s32.totalorder %v2790, 3
        %vm2812 = vcmp.lt.s32.totalorder %v2790, 4
        %v2813 = vsel %vm2809, %v2793, %v2796
        %v2814 = vsel %vm2812, %v2802, 2102212464
        %v2815 = vsel %vm2811, %v2799, %v2814
        %v2816 = vsel %vm2810, %v2813, %v2815
        %v2817 = vsel %vm2809, %v2796, %v2799
        %v2818 = vsel %vm2812, %v2805, 920167782
        %v2819 = vsel %vm2811, %v2802, %v2818
        %v2820 = vsel %vm2810, %v2817, %v2819
        %v2821 = vsel %vm2809, %v2799, %v2802
        %v2822 = vsel %vm2812, %v2808, 1326507024
        %v2823 = vsel %vm2811, %v2805, %v2822
        %v2824 = vsel %vm2810, %v2821, %v2823
        %v2825 = vshll.u32 %v2785, 8
        %v2826 = vmul.u32.u64.compose %v2825, %v2824
        %v2827 = vextract.low.u32 %v2826
        %v2828 = vextract.high.u32 %v2826
        %v2829 = vmul.u32.u64.compose %v2825, %v2820
        %v2830 = vextract.low.u32 %v2829
        %v2831 = vextract.high.u32 %v2829
        %v2832 = vmul.u32 %v2825, %v2816
        %v2833 = vadd.s32 %v2828, %v2830
        %vm2834 = vc.u32 %v2828, %v2830
        %v2835 = vadd.s32 %v2831, 1
        %v2836 = vsel %vm2834, %v2835, %v2831
        %v2837 = vadd.s32 %v2832, %v2836
        %v2838 = vadd.s32 %v2837, 536870912
        %v2839 = vshrl.u32 %v2838, 30
        %v2840 = vshll.u32 %v2839, 30
        %v2841 = vsub.s32 %v2837, %v2840
        %vm2842 = vcmp.lt.s32.totalorder %v2841, 0
        %v2843 = vsub.s32 0, %v2841
        %v2844 = vsel %vm2842, %v2843, %v2841
        %v2845 = vclz %v2844
        %v2846 = vsub.s32 %v2845, 2
        %vm2847 = vcmp.gt.s32.totalorder 0, %v2846
        %v2848 = vsel %vm2847, 0, %v2846
        %v2849 = vsub.s32 32, %v2848
        %v2850 = vshll.u32 %v2841, %v2848
        %v2851 = vshrl.u32 %v2833, %v2849
        %v2852 = vor.u32 %v2850, %v2851
        %v2853 = vsub.s32 4294967266, %v2848
        %v2854 = vadd.s32 %v2853, 127
        %v2855 = vshll.u32 %v2854, 23
        %v2856 = vor.u32 4788187, %v2855
        %v2857 = vand.u32 2147483647, %v2856
        %v2859 = vcvt.s32.f32 %v2852
        %v2860 = vmul.f32 %v2859, %v2857
        %v2861 = vxor.u32 %v2860, 2147483648
        %v2862 = vsel %vm2779, %v2861, %v2860
        %v2863 = vsub.s32 4, %v2839
        %v2864 = vsel %vm2779, %v2863, %v2839
        %v2865 = vsel %vm2778, %v2151, %v2862
        %v2866 = vsel %vm2778, 0, %v2864
        %v2867 = vcosq.f32.pop %v2865
        %v2868 = vsinq.f32.pop %v2865
        %vm2869 = vweird.f32 %v2151
        %v2870 = vadd.s32 %v2866, 3
        %v2871 = vand.u32 %v2870, 3
        %vm2872 = vcmp.lt.s32.totalorder %v2871, 2
        %vm2873 = vcmp.eq.s32.totalorder %v2871, 0
        %v2874 = vxor.u32 %v2868, 2147483648
        %v2875 = vsel %vm2873, %v2867, %v2874
        %vm2876 = vcmp.eq.s32.totalorder %v2871, 2
        %v2877 = vxor.u32 %v2867, 2147483648
        %v2878 = vsel %vm2876, %v2877, %v2868
        %v2879 = vsel %vm2872, %v2875, %v2878
        %v2880 = vsel %vm2869, nan, %v2879
        %v2881 = vand.u32 2147483647, %v2152
        %vm2882 = vcmp.le.f32.partialorder %v2881, 0.7853982
        %vm2883 = vcmp.lt.s32.totalorder %v2152, 0
        %v2884 = vand.u32 %v2152, 2139095040
        %v2885 = vshrl.u32 %v2884, 23
        %v2886 = vsub.s32 %v2885, 127
        %v2887 = vand.u32 2147483647, %v2152
        %v2888 = vand.u32 %v2887, 8388607
        %v2889 = vor.u32 %v2888, 8388608
        %v2890 = vsub.s32 0, %v2889
        %v2891 = vadd.s32 %v2886, 1
        %vm2892 = vcmp.gt.s32.totalorder %v2891, 0
        %v2893 = vsel %vm2892, %v2891, 0
        %v2894 = vshrl.u32 %v2893, 5
        %v2895 = vand.u32 %v2893, 31
        %v2896 = vsub.s32 32, %v2895
        %v2897 = vshrl.u32 683565275, %v2896
        %v2898 = vshll.u32 683565275, %v2895
        %v2899 = vshrl.u32 2475754826, %v2896
        %v2900 = vor.u32 %v2898, %v2899
        %v2901 = vshll.u32 2475754826, %v2895
        %v2902 = vshrl.u32 2131351028, %v2896
        %v2903 = vor.u32 %v2901, %v2902
        %v2904 = vshll.u32 2131351028, %v2895
        %v2905 = vshrl.u32 2102212464, %v2896
        %v2906 = vor.u32 %v2904, %v2905
        %v2907 = vshll.u32 2102212464, %v2895
        %v2908 = vshrl.u32 920167782, %v2896
        %v2909 = vor.u32 %v2907, %v2908
        %v2910 = vshll.u32 920167782, %v2895
        %v2911 = vshrl.u32 1326507024, %v2896
        %v2912 = vor.u32 %v2910, %v2911
        %vm2913 = vcmp.lt.s32.totalorder %v2894, 1
        %vm2914 = vcmp.lt.s32.totalorder %v2894, 2
        %vm2915 = vcmp.lt.s32.totalorder %v2894, 3
        %vm2916 = vcmp.lt.s32.totalorder %v2894, 4
        %v2917 = vsel %vm2913, %v2897, %v2900
        %v2918 = vsel %vm2916, %v2906, 2102212464
        %v2919 = vsel %vm2915, %v2903, %v2918
        %v2920 = vsel %vm2914, %v2917, %v2919
        %v2921 = vsel %vm2913, %v2900, %v2903
        %v2922 = vsel %vm2916, %v2909, 920167782
        %v2923 = vsel %vm2915, %v2906, %v2922
        %v2924 = vsel %vm2914, %v2921, %v2923
        %v2925 = vsel %vm2913, %v2903, %v2906
        %v2926 = vsel %vm2916, %v2912, 1326507024
        %v2927 = vsel %vm2915, %v2909, %v2926
        %v2928 = vsel %vm2914, %v2925, %v2927
        %v2929 = vshll.u32 %v2889, 8
        %v2930 = vmul.u32.u64.compose %v2929, %v2928
        %v2931 = vextract.low.u32 %v2930
        %v2932 = vextract.high.u32 %v2930
        %v2933 = vmul.u32.u64.compose %v2929, %v2924
        %v2934 = vextract.low.u32 %v2933
        %v2935 = vextract.high.u32 %v2933
        %v2936 = vmul.u32 %v2929, %v2920
        %v2937 = vadd.s32 %v2932, %v2934
        %vm2938 = vc.u32 %v2932, %v2934
        %v2939 = vadd.s32 %v2935, 1
        %v2940 = vsel %vm2938, %v2939, %v2935
        %v2941 = vadd.s32 %v2936, %v2940
        %v2942 = vadd.s32 %v2941, 536870912
        %v2943 = vshrl.u32 %v2942, 30
        %v2944 = vshll.u32 %v2943, 30
        %v2945 = vsub.s32 %v2941, %v2944
        %vm2946 = vcmp.lt.s32.totalorder %v2945, 0
        %v2947 = vsub.s32 0, %v2945
        %v2948 = vsel %vm2946, %v2947, %v2945
        %v2949 = vclz %v2948
        %v2950 = vsub.s32 %v2949, 2
        %vm2951 = vcmp.gt.s32.totalorder 0, %v2950
        %v2952 = vsel %vm2951, 0, %v2950
        %v2953 = vsub.s32 32, %v2952
        %v2954 = vshll.u32 %v2945, %v2952
        %v2955 = vshrl.u32 %v2937, %v2953
        %v2956 = vor.u32 %v2954, %v2955
        %v2957 = vsub.s32 4294967266, %v2952
        %v2958 = vadd.s32 %v2957, 127
        %v2959 = vshll.u32 %v2958, 23
        %v2960 = vor.u32 4788187, %v2959
        %v2961 = vand.u32 2147483647, %v2960
        %v2963 = vcvt.s32.f32 %v2956
        %v2964 = vmul.f32 %v2963, %v2961
        %v2965 = vxor.u32 %v2964, 2147483648
        %v2966 = vsel %vm2883, %v2965, %v2964
        %v2967 = vsub.s32 4, %v2943
        %v2968 = vsel %vm2883, %v2967, %v2943
        %v2969 = vsel %vm2882, %v2152, %v2966
        %v2970 = vsel %vm2882, 0, %v2968
        %v2971 = vcosq.f32.pop %v2969
        %v2972 = vsinq.f32.pop %v2969
        %vm2973 = vweird.f32 %v2152
        %v2974 = vadd.s32 %v2970, 3
        %v2975 = vand.u32 %v2974, 3
        %vm2976 = vcmp.lt.s32.totalorder %v2975, 2
        %vm2977 = vcmp.eq.s32.totalorder %v2975, 0
        %v2978 = vxor.u32 %v2972, 2147483648
        %v2979 = vsel %vm2977, %v2971, %v2978
        %vm2980 = vcmp.eq.s32.totalorder %v2975, 2
        %v2981 = vxor.u32 %v2971, 2147483648
        %v2982 = vsel %vm2980, %v2981, %v2972
        %v2983 = vsel %vm2976, %v2979, %v2982
        %v2984 = vsel %vm2973, nan, %v2983
        %s2985 = scalar_lea.vmem [#allocation2], 12
        %v2986 = vld [vmem:[%s2985] sm:$0x1]
        %v2987 = vld [vmem:[%s2985 + $0x1] sm:$0x1]
        %v2988 = vld [vmem:[%s2985 + $0x2] sm:$0x1]
        %v2989 = vld [vmem:[%s2985 + $0x3] sm:$0x1]
        %2990 = vrot.lane.b32.xlu0 %v2256, 1
        %v2991 = vpop.permute.xlu0 %2990
        %2992 = vrot.lane.b32.xlu0 %v2360, 1
        %v2993 = vpop.permute.xlu0 %2992
        %2994 = vrot.lane.b32.xlu0 %v2464, 1
        %v2995 = vpop.permute.xlu0 %2994
        %2996 = vrot.lane.b32.xlu0 %v2568, 1
        %v2997 = vpop.permute.xlu0 %2996
        %2998 = vrot.lane.b32.xlu0 %v2672, 1
        %v2999 = vpop.permute.xlu0 %2998
        %3000 = vrot.lane.b32.xlu0 %v2776, 1
        %v3001 = vpop.permute.xlu0 %3000
        %3002 = vrot.lane.b32.xlu0 %v2880, 1
        %v3003 = vpop.permute.xlu0 %3002
        %3004 = vrot.lane.b32.xlu0 %v2984, 1
        %v3005 = vpop.permute.xlu0 %3004
        %3006 = vrot.lane.b32.xlu0 %v2256, 127
        %v3007 = vpop.permute.xlu0 %3006
        %3008 = vrot.lane.b32.xlu0 %v2360, 127
        %v3009 = vpop.permute.xlu0 %3008
        %3010 = vrot.lane.b32.xlu0 %v2464, 127
        %v3011 = vpop.permute.xlu0 %3010
        %3012 = vrot.lane.b32.xlu0 %v2568, 127
        %v3013 = vpop.permute.xlu0 %3012
        %3014 = vrot.lane.b32.xlu0 %v2672, 127
        %v3015 = vpop.permute.xlu0 %3014
        %3016 = vrot.lane.b32.xlu0 %v2776, 127
        %v3017 = vpop.permute.xlu0 %3016
        %3018 = vrot.lane.b32.xlu0 %v2880, 127
        %v3019 = vpop.permute.xlu0 %3018
        %3020 = vrot.lane.b32.xlu0 %v2984, 127
        %v3021 = vpop.permute.xlu0 %3020
        %v3022 = vlaneseq
        %v3023 = vshrl.u32 %v3022, 7
        %v3024 = vsub.s32 0, %v3023
        %v3025 = vrot.slane %v2986, %v3024
        %v3026 = vmul.f32 %v3025, %v2991
        %v3027 = vmul.f32 %v3025, %v2993
        %v3028 = vmul.f32 %v3025, %v2995
        %v3029 = vmul.f32 %v3025, %v2997
        %v3030 = vmul.f32 %v3025, %v2999
        %v3031 = vmul.f32 %v3025, %v3001
        %v3032 = vmul.f32 %v3025, %v3003
        %v3033 = vmul.f32 %v3025, %v3005
        %v3034 = vlaneseq
        %v3035 = vshrl.u32 %v3034, 7
        %v3036 = vsub.s32 0, %v3035
        %v3037 = vrot.slane %v2987, %v3036
        %v3038 = vmul.f32 %v3037, %v2256
        %v3039 = vmul.f32 %v3037, %v2360
        %v3040 = vmul.f32 %v3037, %v2464
        %v3041 = vmul.f32 %v3037, %v2568
        %v3042 = vmul.f32 %v3037, %v2672
        %v3043 = vmul.f32 %v3037, %v2776
        %v3044 = vmul.f32 %v3037, %v2880
        %v3045 = vmul.f32 %v3037, %v2984
        %v3046 = vadd.f32 %v3026, %v3038
        %v3047 = vadd.f32 %v3027, %v3039
        %v3048 = vadd.f32 %v3028, %v3040
        %v3049 = vadd.f32 %v3029, %v3041
        %v3050 = vadd.f32 %v3030, %v3042
        %v3051 = vadd.f32 %v3031, %v3043
        %v3052 = vadd.f32 %v3032, %v3044
        %v3053 = vadd.f32 %v3033, %v3045
        %v3054 = vlaneseq
        %v3055 = vshrl.u32 %v3054, 7
        %v3056 = vsub.s32 0, %v3055
        %v3057 = vrot.slane %v2988, %v3056
        %v3058 = vmul.f32 %v3057, %v3007
        %v3059 = vmul.f32 %v3057, %v3009
        %v3060 = vmul.f32 %v3057, %v3011
        %v3061 = vmul.f32 %v3057, %v3013
        %v3062 = vmul.f32 %v3057, %v3015
        %v3063 = vmul.f32 %v3057, %v3017
        %v3064 = vmul.f32 %v3057, %v3019
        %v3065 = vmul.f32 %v3057, %v3021
        %v3066 = vadd.f32 %v3046, %v3058
        %v3067 = vadd.f32 %v3047, %v3059
        %v3068 = vadd.f32 %v3048, %v3060
        %v3069 = vadd.f32 %v3049, %v3061
        %v3070 = vadd.f32 %v3050, %v3062
        %v3071 = vadd.f32 %v3051, %v3063
        %v3072 = vadd.f32 %v3052, %v3064
        %v3073 = vadd.f32 %v3053, %v3065
        %v3074 = vlaneseq
        %v3075 = vshrl.u32 %v3074, 7
        %v3076 = vsub.s32 0, %v3075
        %v3077 = vrot.slane %v2989, %v3076
        %v3078 = vadd.f32 %v3066, %v3077
        %v3079 = vadd.f32 %v3067, %v3077
        %v3080 = vadd.f32 %v3068, %v3077
        %v3081 = vadd.f32 %v3069, %v3077
        %v3082 = vadd.f32 %v3070, %v3077
        %v3083 = vadd.f32 %v3071, %v3077
        %v3084 = vadd.f32 %v3072, %v3077
        %v3085 = vadd.f32 %v3073, %v3077
        %v3086 = vand.u32 2147483647, %v3078
        %vm3087 = vcmp.le.f32.partialorder %v3086, 0.7853982
        %vm3088 = vcmp.lt.s32.totalorder %v3078, 0
        %v3089 = vand.u32 %v3078, 2139095040
        %v3090 = vshrl.u32 %v3089, 23
        %v3091 = vsub.s32 %v3090, 127
        %v3092 = vand.u32 2147483647, %v3078
        %v3093 = vand.u32 %v3092, 8388607
        %v3094 = vor.u32 %v3093, 8388608
        %v3095 = vsub.s32 0, %v3094
        %v3096 = vadd.s32 %v3091, 1
        %vm3097 = vcmp.gt.s32.totalorder %v3096, 0
        %v3098 = vsel %vm3097, %v3096, 0
        %v3099 = vshrl.u32 %v3098, 5
        %v3100 = vand.u32 %v3098, 31
        %v3101 = vsub.s32 32, %v3100
        %v3102 = vshrl.u32 683565275, %v3101
        %v3103 = vshll.u32 683565275, %v3100
        %v3104 = vshrl.u32 2475754826, %v3101
        %v3105 = vor.u32 %v3103, %v3104
        %v3106 = vshll.u32 2475754826, %v3100
        %v3107 = vshrl.u32 2131351028, %v3101
        %v3108 = vor.u32 %v3106, %v3107
        %v3109 = vshll.u32 2131351028, %v3100
        %v3110 = vshrl.u32 2102212464, %v3101
        %v3111 = vor.u32 %v3109, %v3110
        %v3112 = vshll.u32 2102212464, %v3100
        %v3113 = vshrl.u32 920167782, %v3101
        %v3114 = vor.u32 %v3112, %v3113
        %v3115 = vshll.u32 920167782, %v3100
        %v3116 = vshrl.u32 1326507024, %v3101
        %v3117 = vor.u32 %v3115, %v3116
        %vm3118 = vcmp.lt.s32.totalorder %v3099, 1
        %vm3119 = vcmp.lt.s32.totalorder %v3099, 2
        %vm3120 = vcmp.lt.s32.totalorder %v3099, 3
        %vm3121 = vcmp.lt.s32.totalorder %v3099, 4
        %v3122 = vsel %vm3118, %v3102, %v3105
        %v3123 = vsel %vm3121, %v3111, 2102212464
        %v3124 = vsel %vm3120, %v3108, %v3123
        %v3125 = vsel %vm3119, %v3122, %v3124
        %v3126 = vsel %vm3118, %v3105, %v3108
        %v3127 = vsel %vm3121, %v3114, 920167782
        %v3128 = vsel %vm3120, %v3111, %v3127
        %v3129 = vsel %vm3119, %v3126, %v3128
        %v3130 = vsel %vm3118, %v3108, %v3111
        %v3131 = vsel %vm3121, %v3117, 1326507024
        %v3132 = vsel %vm3120, %v3114, %v3131
        %v3133 = vsel %vm3119, %v3130, %v3132
        %v3134 = vshll.u32 %v3094, 8
        %v3135 = vmul.u32.u64.compose %v3134, %v3133
        %v3136 = vextract.low.u32 %v3135
        %v3137 = vextract.high.u32 %v3135
        %v3138 = vmul.u32.u64.compose %v3134, %v3129
        %v3139 = vextract.low.u32 %v3138
        %v3140 = vextract.high.u32 %v3138
        %v3141 = vmul.u32 %v3134, %v3125
        %v3142 = vadd.s32 %v3137, %v3139
        %vm3143 = vc.u32 %v3137, %v3139
        %v3144 = vadd.s32 %v3140, 1
        %v3145 = vsel %vm3143, %v3144, %v3140
        %v3146 = vadd.s32 %v3141, %v3145
        %v3147 = vadd.s32 %v3146, 536870912
        %v3148 = vshrl.u32 %v3147, 30
        %v3149 = vshll.u32 %v3148, 30
        %v3150 = vsub.s32 %v3146, %v3149
        %vm3151 = vcmp.lt.s32.totalorder %v3150, 0
        %v3152 = vsub.s32 0, %v3150
        %v3153 = vsel %vm3151, %v3152, %v3150
        %v3154 = vclz %v3153
        %v3155 = vsub.s32 %v3154, 2
        %vm3156 = vcmp.gt.s32.totalorder 0, %v3155
        %v3157 = vsel %vm3156, 0, %v3155
        %v3158 = vsub.s32 32, %v3157
        %v3159 = vshll.u32 %v3150, %v3157
        %v3160 = vshrl.u32 %v3142, %v3158
        %v3161 = vor.u32 %v3159, %v3160
        %v3162 = vsub.s32 4294967266, %v3157
        %v3163 = vadd.s32 %v3162, 127
        %v3164 = vshll.u32 %v3163, 23
        %v3165 = vor.u32 4788187, %v3164
        %v3166 = vand.u32 2147483647, %v3165
        %v3168 = vcvt.s32.f32 %v3161
        %v3169 = vmul.f32 %v3168, %v3166
        %v3170 = vxor.u32 %v3169, 2147483648
        %v3171 = vsel %vm3088, %v3170, %v3169
        %v3172 = vsub.s32 4, %v3148
        %v3173 = vsel %vm3088, %v3172, %v3148
        %v3174 = vsel %vm3087, %v3078, %v3171
        %v3175 = vsel %vm3087, 0, %v3173
        %v3176 = vcosq.f32.pop %v3174
        %v3177 = vsinq.f32.pop %v3174
        %vm3178 = vweird.f32 %v3078
        %v3179 = vadd.s32 %v3175, 3
        %v3180 = vand.u32 %v3179, 3
        %vm3181 = vcmp.lt.s32.totalorder %v3180, 2
        %vm3182 = vcmp.eq.s32.totalorder %v3180, 0
        %v3183 = vxor.u32 %v3177, 2147483648
        %v3184 = vsel %vm3182, %v3176, %v3183
        %vm3185 = vcmp.eq.s32.totalorder %v3180, 2
        %v3186 = vxor.u32 %v3176, 2147483648
        %v3187 = vsel %vm3185, %v3186, %v3177
        %v3188 = vsel %vm3181, %v3184, %v3187
        %v3189 = vsel %vm3178, nan, %v3188
        %v3190 = vand.u32 2147483647, %v3079
        %vm3191 = vcmp.le.f32.partialorder %v3190, 0.7853982
        %vm3192 = vcmp.lt.s32.totalorder %v3079, 0
        %v3193 = vand.u32 %v3079, 2139095040
        %v3194 = vshrl.u32 %v3193, 23
        %v3195 = vsub.s32 %v3194, 127
        %v3196 = vand.u32 2147483647, %v3079
        %v3197 = vand.u32 %v3196, 8388607
        %v3198 = vor.u32 %v3197, 8388608
        %v3199 = vsub.s32 0, %v3198
        %v3200 = vadd.s32 %v3195, 1
        %vm3201 = vcmp.gt.s32.totalorder %v3200, 0
        %v3202 = vsel %vm3201, %v3200, 0
        %v3203 = vshrl.u32 %v3202, 5
        %v3204 = vand.u32 %v3202, 31
        %v3205 = vsub.s32 32, %v3204
        %v3206 = vshrl.u32 683565275, %v3205
        %v3207 = vshll.u32 683565275, %v3204
        %v3208 = vshrl.u32 2475754826, %v3205
        %v3209 = vor.u32 %v3207, %v3208
        %v3210 = vshll.u32 2475754826, %v3204
        %v3211 = vshrl.u32 2131351028, %v3205
        %v3212 = vor.u32 %v3210, %v3211
        %v3213 = vshll.u32 2131351028, %v3204
        %v3214 = vshrl.u32 2102212464, %v3205
        %v3215 = vor.u32 %v3213, %v3214
        %v3216 = vshll.u32 2102212464, %v3204
        %v3217 = vshrl.u32 920167782, %v3205
        %v3218 = vor.u32 %v3216, %v3217
        %v3219 = vshll.u32 920167782, %v3204
        %v3220 = vshrl.u32 1326507024, %v3205
        %v3221 = vor.u32 %v3219, %v3220
        %vm3222 = vcmp.lt.s32.totalorder %v3203, 1
        %vm3223 = vcmp.lt.s32.totalorder %v3203, 2
        %vm3224 = vcmp.lt.s32.totalorder %v3203, 3
        %vm3225 = vcmp.lt.s32.totalorder %v3203, 4
        %v3226 = vsel %vm3222, %v3206, %v3209
        %v3227 = vsel %vm3225, %v3215, 2102212464
        %v3228 = vsel %vm3224, %v3212, %v3227
        %v3229 = vsel %vm3223, %v3226, %v3228
        %v3230 = vsel %vm3222, %v3209, %v3212
        %v3231 = vsel %vm3225, %v3218, 920167782
        %v3232 = vsel %vm3224, %v3215, %v3231
        %v3233 = vsel %vm3223, %v3230, %v3232
        %v3234 = vsel %vm3222, %v3212, %v3215
        %v3235 = vsel %vm3225, %v3221, 1326507024
        %v3236 = vsel %vm3224, %v3218, %v3235
        %v3237 = vsel %vm3223, %v3234, %v3236
        %v3238 = vshll.u32 %v3198, 8
        %v3239 = vmul.u32.u64.compose %v3238, %v3237
        %v3240 = vextract.low.u32 %v3239
        %v3241 = vextract.high.u32 %v3239
        %v3242 = vmul.u32.u64.compose %v3238, %v3233
        %v3243 = vextract.low.u32 %v3242
        %v3244 = vextract.high.u32 %v3242
        %v3245 = vmul.u32 %v3238, %v3229
        %v3246 = vadd.s32 %v3241, %v3243
        %vm3247 = vc.u32 %v3241, %v3243
        %v3248 = vadd.s32 %v3244, 1
        %v3249 = vsel %vm3247, %v3248, %v3244
        %v3250 = vadd.s32 %v3245, %v3249
        %v3251 = vadd.s32 %v3250, 536870912
        %v3252 = vshrl.u32 %v3251, 30
        %v3253 = vshll.u32 %v3252, 30
        %v3254 = vsub.s32 %v3250, %v3253
        %vm3255 = vcmp.lt.s32.totalorder %v3254, 0
        %v3256 = vsub.s32 0, %v3254
        %v3257 = vsel %vm3255, %v3256, %v3254
        %v3258 = vclz %v3257
        %v3259 = vsub.s32 %v3258, 2
        %vm3260 = vcmp.gt.s32.totalorder 0, %v3259
        %v3261 = vsel %vm3260, 0, %v3259
        %v3262 = vsub.s32 32, %v3261
        %v3263 = vshll.u32 %v3254, %v3261
        %v3264 = vshrl.u32 %v3246, %v3262
        %v3265 = vor.u32 %v3263, %v3264
        %v3266 = vsub.s32 4294967266, %v3261
        %v3267 = vadd.s32 %v3266, 127
        %v3268 = vshll.u32 %v3267, 23
        %v3269 = vor.u32 4788187, %v3268
        %v3270 = vand.u32 2147483647, %v3269
        %v3272 = vcvt.s32.f32 %v3265
        %v3273 = vmul.f32 %v3272, %v3270
        %v3274 = vxor.u32 %v3273, 2147483648
        %v3275 = vsel %vm3192, %v3274, %v3273
        %v3276 = vsub.s32 4, %v3252
        %v3277 = vsel %vm3192, %v3276, %v3252
        %v3278 = vsel %vm3191, %v3079, %v3275
        %v3279 = vsel %vm3191, 0, %v3277
        %v3280 = vcosq.f32.pop %v3278
        %v3281 = vsinq.f32.pop %v3278
        %vm3282 = vweird.f32 %v3079
        %v3283 = vadd.s32 %v3279, 3
        %v3284 = vand.u32 %v3283, 3
        %vm3285 = vcmp.lt.s32.totalorder %v3284, 2
        %vm3286 = vcmp.eq.s32.totalorder %v3284, 0
        %v3287 = vxor.u32 %v3281, 2147483648
        %v3288 = vsel %vm3286, %v3280, %v3287
        %vm3289 = vcmp.eq.s32.totalorder %v3284, 2
        %v3290 = vxor.u32 %v3280, 2147483648
        %v3291 = vsel %vm3289, %v3290, %v3281
        %v3292 = vsel %vm3285, %v3288, %v3291
        %v3293 = vsel %vm3282, nan, %v3292
        %v3294 = vand.u32 2147483647, %v3080
        %vm3295 = vcmp.le.f32.partialorder %v3294, 0.7853982
        %vm3296 = vcmp.lt.s32.totalorder %v3080, 0
        %v3297 = vand.u32 %v3080, 2139095040
        %v3298 = vshrl.u32 %v3297, 23
        %v3299 = vsub.s32 %v3298, 127
        %v3300 = vand.u32 2147483647, %v3080
        %v3301 = vand.u32 %v3300, 8388607
        %v3302 = vor.u32 %v3301, 8388608
        %v3303 = vsub.s32 0, %v3302
        %v3304 = vadd.s32 %v3299, 1
        %vm3305 = vcmp.gt.s32.totalorder %v3304, 0
        %v3306 = vsel %vm3305, %v3304, 0
        %v3307 = vshrl.u32 %v3306, 5
        %v3308 = vand.u32 %v3306, 31
        %v3309 = vsub.s32 32, %v3308
        %v3310 = vshrl.u32 683565275, %v3309
        %v3311 = vshll.u32 683565275, %v3308
        %v3312 = vshrl.u32 2475754826, %v3309
        %v3313 = vor.u32 %v3311, %v3312
        %v3314 = vshll.u32 2475754826, %v3308
        %v3315 = vshrl.u32 2131351028, %v3309
        %v3316 = vor.u32 %v3314, %v3315
        %v3317 = vshll.u32 2131351028, %v3308
        %v3318 = vshrl.u32 2102212464, %v3309
        %v3319 = vor.u32 %v3317, %v3318
        %v3320 = vshll.u32 2102212464, %v3308
        %v3321 = vshrl.u32 920167782, %v3309
        %v3322 = vor.u32 %v3320, %v3321
        %v3323 = vshll.u32 920167782, %v3308
        %v3324 = vshrl.u32 1326507024, %v3309
        %v3325 = vor.u32 %v3323, %v3324
        %vm3326 = vcmp.lt.s32.totalorder %v3307, 1
        %vm3327 = vcmp.lt.s32.totalorder %v3307, 2
        %vm3328 = vcmp.lt.s32.totalorder %v3307, 3
        %vm3329 = vcmp.lt.s32.totalorder %v3307, 4
        %v3330 = vsel %vm3326, %v3310, %v3313
        %v3331 = vsel %vm3329, %v3319, 2102212464
        %v3332 = vsel %vm3328, %v3316, %v3331
        %v3333 = vsel %vm3327, %v3330, %v3332
        %v3334 = vsel %vm3326, %v3313, %v3316
        %v3335 = vsel %vm3329, %v3322, 920167782
        %v3336 = vsel %vm3328, %v3319, %v3335
        %v3337 = vsel %vm3327, %v3334, %v3336
        %v3338 = vsel %vm3326, %v3316, %v3319
        %v3339 = vsel %vm3329, %v3325, 1326507024
        %v3340 = vsel %vm3328, %v3322, %v3339
        %v3341 = vsel %vm3327, %v3338, %v3340
        %v3342 = vshll.u32 %v3302, 8
        %v3343 = vmul.u32.u64.compose %v3342, %v3341
        %v3344 = vextract.low.u32 %v3343
        %v3345 = vextract.high.u32 %v3343
        %v3346 = vmul.u32.u64.compose %v3342, %v3337
        %v3347 = vextract.low.u32 %v3346
        %v3348 = vextract.high.u32 %v3346
        %v3349 = vmul.u32 %v3342, %v3333
        %v3350 = vadd.s32 %v3345, %v3347
        %vm3351 = vc.u32 %v3345, %v3347
        %v3352 = vadd.s32 %v3348, 1
        %v3353 = vsel %vm3351, %v3352, %v3348
        %v3354 = vadd.s32 %v3349, %v3353
        %v3355 = vadd.s32 %v3354, 536870912
        %v3356 = vshrl.u32 %v3355, 30
        %v3357 = vshll.u32 %v3356, 30
        %v3358 = vsub.s32 %v3354, %v3357
        %vm3359 = vcmp.lt.s32.totalorder %v3358, 0
        %v3360 = vsub.s32 0, %v3358
        %v3361 = vsel %vm3359, %v3360, %v3358
        %v3362 = vclz %v3361
        %v3363 = vsub.s32 %v3362, 2
        %vm3364 = vcmp.gt.s32.totalorder 0, %v3363
        %v3365 = vsel %vm3364, 0, %v3363
        %v3366 = vsub.s32 32, %v3365
        %v3367 = vshll.u32 %v3358, %v3365
        %v3368 = vshrl.u32 %v3350, %v3366
        %v3369 = vor.u32 %v3367, %v3368
        %v3370 = vsub.s32 4294967266, %v3365
        %v3371 = vadd.s32 %v3370, 127
        %v3372 = vshll.u32 %v3371, 23
        %v3373 = vor.u32 4788187, %v3372
        %v3374 = vand.u32 2147483647, %v3373
        %v3376 = vcvt.s32.f32 %v3369
        %v3377 = vmul.f32 %v3376, %v3374
        %v3378 = vxor.u32 %v3377, 2147483648
        %v3379 = vsel %vm3296, %v3378, %v3377
        %v3380 = vsub.s32 4, %v3356
        %v3381 = vsel %vm3296, %v3380, %v3356
        %v3382 = vsel %vm3295, %v3080, %v3379
        %v3383 = vsel %vm3295, 0, %v3381
        %v3384 = vcosq.f32.pop %v3382
        %v3385 = vsinq.f32.pop %v3382
        %vm3386 = vweird.f32 %v3080
        %v3387 = vadd.s32 %v3383, 3
        %v3388 = vand.u32 %v3387, 3
        %vm3389 = vcmp.lt.s32.totalorder %v3388, 2
        %vm3390 = vcmp.eq.s32.totalorder %v3388, 0
        %v3391 = vxor.u32 %v3385, 2147483648
        %v3392 = vsel %vm3390, %v3384, %v3391
        %vm3393 = vcmp.eq.s32.totalorder %v3388, 2
        %v3394 = vxor.u32 %v3384, 2147483648
        %v3395 = vsel %vm3393, %v3394, %v3385
        %v3396 = vsel %vm3389, %v3392, %v3395
        %v3397 = vsel %vm3386, nan, %v3396
        %v3398 = vand.u32 2147483647, %v3081
        %vm3399 = vcmp.le.f32.partialorder %v3398, 0.7853982
        %vm3400 = vcmp.lt.s32.totalorder %v3081, 0
        %v3401 = vand.u32 %v3081, 2139095040
        %v3402 = vshrl.u32 %v3401, 23
        %v3403 = vsub.s32 %v3402, 127
        %v3404 = vand.u32 2147483647, %v3081
        %v3405 = vand.u32 %v3404, 8388607
        %v3406 = vor.u32 %v3405, 8388608
        %v3407 = vsub.s32 0, %v3406
        %v3408 = vadd.s32 %v3403, 1
        %vm3409 = vcmp.gt.s32.totalorder %v3408, 0
        %v3410 = vsel %vm3409, %v3408, 0
        %v3411 = vshrl.u32 %v3410, 5
        %v3412 = vand.u32 %v3410, 31
        %v3413 = vsub.s32 32, %v3412
        %v3414 = vshrl.u32 683565275, %v3413
        %v3415 = vshll.u32 683565275, %v3412
        %v3416 = vshrl.u32 2475754826, %v3413
        %v3417 = vor.u32 %v3415, %v3416
        %v3418 = vshll.u32 2475754826, %v3412
        %v3419 = vshrl.u32 2131351028, %v3413
        %v3420 = vor.u32 %v3418, %v3419
        %v3421 = vshll.u32 2131351028, %v3412
        %v3422 = vshrl.u32 2102212464, %v3413
        %v3423 = vor.u32 %v3421, %v3422
        %v3424 = vshll.u32 2102212464, %v3412
        %v3425 = vshrl.u32 920167782, %v3413
        %v3426 = vor.u32 %v3424, %v3425
        %v3427 = vshll.u32 920167782, %v3412
        %v3428 = vshrl.u32 1326507024, %v3413
        %v3429 = vor.u32 %v3427, %v3428
        %vm3430 = vcmp.lt.s32.totalorder %v3411, 1
        %vm3431 = vcmp.lt.s32.totalorder %v3411, 2
        %vm3432 = vcmp.lt.s32.totalorder %v3411, 3
        %vm3433 = vcmp.lt.s32.totalorder %v3411, 4
        %v3434 = vsel %vm3430, %v3414, %v3417
        %v3435 = vsel %vm3433, %v3423, 2102212464
        %v3436 = vsel %vm3432, %v3420, %v3435
        %v3437 = vsel %vm3431, %v3434, %v3436
        %v3438 = vsel %vm3430, %v3417, %v3420
        %v3439 = vsel %vm3433, %v3426, 920167782
        %v3440 = vsel %vm3432, %v3423, %v3439
        %v3441 = vsel %vm3431, %v3438, %v3440
        %v3442 = vsel %vm3430, %v3420, %v3423
        %v3443 = vsel %vm3433, %v3429, 1326507024
        %v3444 = vsel %vm3432, %v3426, %v3443
        %v3445 = vsel %vm3431, %v3442, %v3444
        %v3446 = vshll.u32 %v3406, 8
        %v3447 = vmul.u32.u64.compose %v3446, %v3445
        %v3448 = vextract.low.u32 %v3447
        %v3449 = vextract.high.u32 %v3447
        %v3450 = vmul.u32.u64.compose %v3446, %v3441
        %v3451 = vextract.low.u32 %v3450
        %v3452 = vextract.high.u32 %v3450
        %v3453 = vmul.u32 %v3446, %v3437
        %v3454 = vadd.s32 %v3449, %v3451
        %vm3455 = vc.u32 %v3449, %v3451
        %v3456 = vadd.s32 %v3452, 1
        %v3457 = vsel %vm3455, %v3456, %v3452
        %v3458 = vadd.s32 %v3453, %v3457
        %v3459 = vadd.s32 %v3458, 536870912
        %v3460 = vshrl.u32 %v3459, 30
        %v3461 = vshll.u32 %v3460, 30
        %v3462 = vsub.s32 %v3458, %v3461
        %vm3463 = vcmp.lt.s32.totalorder %v3462, 0
        %v3464 = vsub.s32 0, %v3462
        %v3465 = vsel %vm3463, %v3464, %v3462
        %v3466 = vclz %v3465
        %v3467 = vsub.s32 %v3466, 2
        %vm3468 = vcmp.gt.s32.totalorder 0, %v3467
        %v3469 = vsel %vm3468, 0, %v3467
        %v3470 = vsub.s32 32, %v3469
        %v3471 = vshll.u32 %v3462, %v3469
        %v3472 = vshrl.u32 %v3454, %v3470
        %v3473 = vor.u32 %v3471, %v3472
        %v3474 = vsub.s32 4294967266, %v3469
        %v3475 = vadd.s32 %v3474, 127
        %v3476 = vshll.u32 %v3475, 23
        %v3477 = vor.u32 4788187, %v3476
        %v3478 = vand.u32 2147483647, %v3477
        %v3480 = vcvt.s32.f32 %v3473
        %v3481 = vmul.f32 %v3480, %v3478
        %v3482 = vxor.u32 %v3481, 2147483648
        %v3483 = vsel %vm3400, %v3482, %v3481
        %v3484 = vsub.s32 4, %v3460
        %v3485 = vsel %vm3400, %v3484, %v3460
        %v3486 = vsel %vm3399, %v3081, %v3483
        %v3487 = vsel %vm3399, 0, %v3485
        %v3488 = vcosq.f32.pop %v3486
        %v3489 = vsinq.f32.pop %v3486
        %vm3490 = vweird.f32 %v3081
        %v3491 = vadd.s32 %v3487, 3
        %v3492 = vand.u32 %v3491, 3
        %vm3493 = vcmp.lt.s32.totalorder %v3492, 2
        %vm3494 = vcmp.eq.s32.totalorder %v3492, 0
        %v3495 = vxor.u32 %v3489, 2147483648
        %v3496 = vsel %vm3494, %v3488, %v3495
        %vm3497 = vcmp.eq.s32.totalorder %v3492, 2
        %v3498 = vxor.u32 %v3488, 2147483648
        %v3499 = vsel %vm3497, %v3498, %v3489
        %v3500 = vsel %vm3493, %v3496, %v3499
        %v3501 = vsel %vm3490, nan, %v3500
        %v3502 = vand.u32 2147483647, %v3082
        %vm3503 = vcmp.le.f32.partialorder %v3502, 0.7853982
        %vm3504 = vcmp.lt.s32.totalorder %v3082, 0
        %v3505 = vand.u32 %v3082, 2139095040
        %v3506 = vshrl.u32 %v3505, 23
        %v3507 = vsub.s32 %v3506, 127
        %v3508 = vand.u32 2147483647, %v3082
        %v3509 = vand.u32 %v3508, 8388607
        %v3510 = vor.u32 %v3509, 8388608
        %v3511 = vsub.s32 0, %v3510
        %v3512 = vadd.s32 %v3507, 1
        %vm3513 = vcmp.gt.s32.totalorder %v3512, 0
        %v3514 = vsel %vm3513, %v3512, 0
        %v3515 = vshrl.u32 %v3514, 5
        %v3516 = vand.u32 %v3514, 31
        %v3517 = vsub.s32 32, %v3516
        %v3518 = vshrl.u32 683565275, %v3517
        %v3519 = vshll.u32 683565275, %v3516
        %v3520 = vshrl.u32 2475754826, %v3517
        %v3521 = vor.u32 %v3519, %v3520
        %v3522 = vshll.u32 2475754826, %v3516
        %v3523 = vshrl.u32 2131351028, %v3517
        %v3524 = vor.u32 %v3522, %v3523
        %v3525 = vshll.u32 2131351028, %v3516
        %v3526 = vshrl.u32 2102212464, %v3517
        %v3527 = vor.u32 %v3525, %v3526
        %v3528 = vshll.u32 2102212464, %v3516
        %v3529 = vshrl.u32 920167782, %v3517
        %v3530 = vor.u32 %v3528, %v3529
        %v3531 = vshll.u32 920167782, %v3516
        %v3532 = vshrl.u32 1326507024, %v3517
        %v3533 = vor.u32 %v3531, %v3532
        %vm3534 = vcmp.lt.s32.totalorder %v3515, 1
        %vm3535 = vcmp.lt.s32.totalorder %v3515, 2
        %vm3536 = vcmp.lt.s32.totalorder %v3515, 3
        %vm3537 = vcmp.lt.s32.totalorder %v3515, 4
        %v3538 = vsel %vm3534, %v3518, %v3521
        %v3539 = vsel %vm3537, %v3527, 2102212464
        %v3540 = vsel %vm3536, %v3524, %v3539
        %v3541 = vsel %vm3535, %v3538, %v3540
        %v3542 = vsel %vm3534, %v3521, %v3524
        %v3543 = vsel %vm3537, %v3530, 920167782
        %v3544 = vsel %vm3536, %v3527, %v3543
        %v3545 = vsel %vm3535, %v3542, %v3544
        %v3546 = vsel %vm3534, %v3524, %v3527
        %v3547 = vsel %vm3537, %v3533, 1326507024
        %v3548 = vsel %vm3536, %v3530, %v3547
        %v3549 = vsel %vm3535, %v3546, %v3548
        %v3550 = vshll.u32 %v3510, 8
        %v3551 = vmul.u32.u64.compose %v3550, %v3549
        %v3552 = vextract.low.u32 %v3551
        %v3553 = vextract.high.u32 %v3551
        %v3554 = vmul.u32.u64.compose %v3550, %v3545
        %v3555 = vextract.low.u32 %v3554
        %v3556 = vextract.high.u32 %v3554
        %v3557 = vmul.u32 %v3550, %v3541
        %v3558 = vadd.s32 %v3553, %v3555
        %vm3559 = vc.u32 %v3553, %v3555
        %v3560 = vadd.s32 %v3556, 1
        %v3561 = vsel %vm3559, %v3560, %v3556
        %v3562 = vadd.s32 %v3557, %v3561
        %v3563 = vadd.s32 %v3562, 536870912
        %v3564 = vshrl.u32 %v3563, 30
        %v3565 = vshll.u32 %v3564, 30
        %v3566 = vsub.s32 %v3562, %v3565
        %vm3567 = vcmp.lt.s32.totalorder %v3566, 0
        %v3568 = vsub.s32 0, %v3566
        %v3569 = vsel %vm3567, %v3568, %v3566
        %v3570 = vclz %v3569
        %v3571 = vsub.s32 %v3570, 2
        %vm3572 = vcmp.gt.s32.totalorder 0, %v3571
        %v3573 = vsel %vm3572, 0, %v3571
        %v3574 = vsub.s32 32, %v3573
        %v3575 = vshll.u32 %v3566, %v3573
        %v3576 = vshrl.u32 %v3558, %v3574
        %v3577 = vor.u32 %v3575, %v3576
        %v3578 = vsub.s32 4294967266, %v3573
        %v3579 = vadd.s32 %v3578, 127
        %v3580 = vshll.u32 %v3579, 23
        %v3581 = vor.u32 4788187, %v3580
        %v3582 = vand.u32 2147483647, %v3581
        %v3584 = vcvt.s32.f32 %v3577
        %v3585 = vmul.f32 %v3584, %v3582
        %v3586 = vxor.u32 %v3585, 2147483648
        %v3587 = vsel %vm3504, %v3586, %v3585
        %v3588 = vsub.s32 4, %v3564
        %v3589 = vsel %vm3504, %v3588, %v3564
        %v3590 = vsel %vm3503, %v3082, %v3587
        %v3591 = vsel %vm3503, 0, %v3589
        %v3592 = vcosq.f32.pop %v3590
        %v3593 = vsinq.f32.pop %v3590
        %vm3594 = vweird.f32 %v3082
        %v3595 = vadd.s32 %v3591, 3
        %v3596 = vand.u32 %v3595, 3
        %vm3597 = vcmp.lt.s32.totalorder %v3596, 2
        %vm3598 = vcmp.eq.s32.totalorder %v3596, 0
        %v3599 = vxor.u32 %v3593, 2147483648
        %v3600 = vsel %vm3598, %v3592, %v3599
        %vm3601 = vcmp.eq.s32.totalorder %v3596, 2
        %v3602 = vxor.u32 %v3592, 2147483648
        %v3603 = vsel %vm3601, %v3602, %v3593
        %v3604 = vsel %vm3597, %v3600, %v3603
        %v3605 = vsel %vm3594, nan, %v3604
        %v3606 = vand.u32 2147483647, %v3083
        %vm3607 = vcmp.le.f32.partialorder %v3606, 0.7853982
        %vm3608 = vcmp.lt.s32.totalorder %v3083, 0
        %v3609 = vand.u32 %v3083, 2139095040
        %v3610 = vshrl.u32 %v3609, 23
        %v3611 = vsub.s32 %v3610, 127
        %v3612 = vand.u32 2147483647, %v3083
        %v3613 = vand.u32 %v3612, 8388607
        %v3614 = vor.u32 %v3613, 8388608
        %v3615 = vsub.s32 0, %v3614
        %v3616 = vadd.s32 %v3611, 1
        %vm3617 = vcmp.gt.s32.totalorder %v3616, 0
        %v3618 = vsel %vm3617, %v3616, 0
        %v3619 = vshrl.u32 %v3618, 5
        %v3620 = vand.u32 %v3618, 31
        %v3621 = vsub.s32 32, %v3620
        %v3622 = vshrl.u32 683565275, %v3621
        %v3623 = vshll.u32 683565275, %v3620
        %v3624 = vshrl.u32 2475754826, %v3621
        %v3625 = vor.u32 %v3623, %v3624
        %v3626 = vshll.u32 2475754826, %v3620
        %v3627 = vshrl.u32 2131351028, %v3621
        %v3628 = vor.u32 %v3626, %v3627
        %v3629 = vshll.u32 2131351028, %v3620
        %v3630 = vshrl.u32 2102212464, %v3621
        %v3631 = vor.u32 %v3629, %v3630
        %v3632 = vshll.u32 2102212464, %v3620
        %v3633 = vshrl.u32 920167782, %v3621
        %v3634 = vor.u32 %v3632, %v3633
        %v3635 = vshll.u32 920167782, %v3620
        %v3636 = vshrl.u32 1326507024, %v3621
        %v3637 = vor.u32 %v3635, %v3636
        %vm3638 = vcmp.lt.s32.totalorder %v3619, 1
        %vm3639 = vcmp.lt.s32.totalorder %v3619, 2
        %vm3640 = vcmp.lt.s32.totalorder %v3619, 3
        %vm3641 = vcmp.lt.s32.totalorder %v3619, 4
        %v3642 = vsel %vm3638, %v3622, %v3625
        %v3643 = vsel %vm3641, %v3631, 2102212464
        %v3644 = vsel %vm3640, %v3628, %v3643
        %v3645 = vsel %vm3639, %v3642, %v3644
        %v3646 = vsel %vm3638, %v3625, %v3628
        %v3647 = vsel %vm3641, %v3634, 920167782
        %v3648 = vsel %vm3640, %v3631, %v3647
        %v3649 = vsel %vm3639, %v3646, %v3648
        %v3650 = vsel %vm3638, %v3628, %v3631
        %v3651 = vsel %vm3641, %v3637, 1326507024
        %v3652 = vsel %vm3640, %v3634, %v3651
        %v3653 = vsel %vm3639, %v3650, %v3652
        %v3654 = vshll.u32 %v3614, 8
        %v3655 = vmul.u32.u64.compose %v3654, %v3653
        %v3656 = vextract.low.u32 %v3655
        %v3657 = vextract.high.u32 %v3655
        %v3658 = vmul.u32.u64.compose %v3654, %v3649
        %v3659 = vextract.low.u32 %v3658
        %v3660 = vextract.high.u32 %v3658
        %v3661 = vmul.u32 %v3654, %v3645
        %v3662 = vadd.s32 %v3657, %v3659
        %vm3663 = vc.u32 %v3657, %v3659
        %v3664 = vadd.s32 %v3660, 1
        %v3665 = vsel %vm3663, %v3664, %v3660
        %v3666 = vadd.s32 %v3661, %v3665
        %v3667 = vadd.s32 %v3666, 536870912
        %v3668 = vshrl.u32 %v3667, 30
        %v3669 = vshll.u32 %v3668, 30
        %v3670 = vsub.s32 %v3666, %v3669
        %vm3671 = vcmp.lt.s32.totalorder %v3670, 0
        %v3672 = vsub.s32 0, %v3670
        %v3673 = vsel %vm3671, %v3672, %v3670
        %v3674 = vclz %v3673
        %v3675 = vsub.s32 %v3674, 2
        %vm3676 = vcmp.gt.s32.totalorder 0, %v3675
        %v3677 = vsel %vm3676, 0, %v3675
        %v3678 = vsub.s32 32, %v3677
        %v3679 = vshll.u32 %v3670, %v3677
        %v3680 = vshrl.u32 %v3662, %v3678
        %v3681 = vor.u32 %v3679, %v3680
        %v3682 = vsub.s32 4294967266, %v3677
        %v3683 = vadd.s32 %v3682, 127
        %v3684 = vshll.u32 %v3683, 23
        %v3685 = vor.u32 4788187, %v3684
        %v3686 = vand.u32 2147483647, %v3685
        %v3688 = vcvt.s32.f32 %v3681
        %v3689 = vmul.f32 %v3688, %v3686
        %v3690 = vxor.u32 %v3689, 2147483648
        %v3691 = vsel %vm3608, %v3690, %v3689
        %v3692 = vsub.s32 4, %v3668
        %v3693 = vsel %vm3608, %v3692, %v3668
        %v3694 = vsel %vm3607, %v3083, %v3691
        %v3695 = vsel %vm3607, 0, %v3693
        %v3696 = vcosq.f32.pop %v3694
        %v3697 = vsinq.f32.pop %v3694
        %vm3698 = vweird.f32 %v3083
        %v3699 = vadd.s32 %v3695, 3
        %v3700 = vand.u32 %v3699, 3
        %vm3701 = vcmp.lt.s32.totalorder %v3700, 2
        %vm3702 = vcmp.eq.s32.totalorder %v3700, 0
        %v3703 = vxor.u32 %v3697, 2147483648
        %v3704 = vsel %vm3702, %v3696, %v3703
        %vm3705 = vcmp.eq.s32.totalorder %v3700, 2
        %v3706 = vxor.u32 %v3696, 2147483648
        %v3707 = vsel %vm3705, %v3706, %v3697
        %v3708 = vsel %vm3701, %v3704, %v3707
        %v3709 = vsel %vm3698, nan, %v3708
        %v3710 = vand.u32 2147483647, %v3084
        %vm3711 = vcmp.le.f32.partialorder %v3710, 0.7853982
        %vm3712 = vcmp.lt.s32.totalorder %v3084, 0
        %v3713 = vand.u32 %v3084, 2139095040
        %v3714 = vshrl.u32 %v3713, 23
        %v3715 = vsub.s32 %v3714, 127
        %v3716 = vand.u32 2147483647, %v3084
        %v3717 = vand.u32 %v3716, 8388607
        %v3718 = vor.u32 %v3717, 8388608
        %v3719 = vsub.s32 0, %v3718
        %v3720 = vadd.s32 %v3715, 1
        %vm3721 = vcmp.gt.s32.totalorder %v3720, 0
        %v3722 = vsel %vm3721, %v3720, 0
        %v3723 = vshrl.u32 %v3722, 5
        %v3724 = vand.u32 %v3722, 31
        %v3725 = vsub.s32 32, %v3724
        %v3726 = vshrl.u32 683565275, %v3725
        %v3727 = vshll.u32 683565275, %v3724
        %v3728 = vshrl.u32 2475754826, %v3725
        %v3729 = vor.u32 %v3727, %v3728
        %v3730 = vshll.u32 2475754826, %v3724
        %v3731 = vshrl.u32 2131351028, %v3725
        %v3732 = vor.u32 %v3730, %v3731
        %v3733 = vshll.u32 2131351028, %v3724
        %v3734 = vshrl.u32 2102212464, %v3725
        %v3735 = vor.u32 %v3733, %v3734
        %v3736 = vshll.u32 2102212464, %v3724
        %v3737 = vshrl.u32 920167782, %v3725
        %v3738 = vor.u32 %v3736, %v3737
        %v3739 = vshll.u32 920167782, %v3724
        %v3740 = vshrl.u32 1326507024, %v3725
        %v3741 = vor.u32 %v3739, %v3740
        %vm3742 = vcmp.lt.s32.totalorder %v3723, 1
        %vm3743 = vcmp.lt.s32.totalorder %v3723, 2
        %vm3744 = vcmp.lt.s32.totalorder %v3723, 3
        %vm3745 = vcmp.lt.s32.totalorder %v3723, 4
        %v3746 = vsel %vm3742, %v3726, %v3729
        %v3747 = vsel %vm3745, %v3735, 2102212464
        %v3748 = vsel %vm3744, %v3732, %v3747
        %v3749 = vsel %vm3743, %v3746, %v3748
        %v3750 = vsel %vm3742, %v3729, %v3732
        %v3751 = vsel %vm3745, %v3738, 920167782
        %v3752 = vsel %vm3744, %v3735, %v3751
        %v3753 = vsel %vm3743, %v3750, %v3752
        %v3754 = vsel %vm3742, %v3732, %v3735
        %v3755 = vsel %vm3745, %v3741, 1326507024
        %v3756 = vsel %vm3744, %v3738, %v3755
        %v3757 = vsel %vm3743, %v3754, %v3756
        %v3758 = vshll.u32 %v3718, 8
        %v3759 = vmul.u32.u64.compose %v3758, %v3757
        %v3760 = vextract.low.u32 %v3759
        %v3761 = vextract.high.u32 %v3759
        %v3762 = vmul.u32.u64.compose %v3758, %v3753
        %v3763 = vextract.low.u32 %v3762
        %v3764 = vextract.high.u32 %v3762
        %v3765 = vmul.u32 %v3758, %v3749
        %v3766 = vadd.s32 %v3761, %v3763
        %vm3767 = vc.u32 %v3761, %v3763
        %v3768 = vadd.s32 %v3764, 1
        %v3769 = vsel %vm3767, %v3768, %v3764
        %v3770 = vadd.s32 %v3765, %v3769
        %v3771 = vadd.s32 %v3770, 536870912
        %v3772 = vshrl.u32 %v3771, 30
        %v3773 = vshll.u32 %v3772, 30
        %v3774 = vsub.s32 %v3770, %v3773
        %vm3775 = vcmp.lt.s32.totalorder %v3774, 0
        %v3776 = vsub.s32 0, %v3774
        %v3777 = vsel %vm3775, %v3776, %v3774
        %v3778 = vclz %v3777
        %v3779 = vsub.s32 %v3778, 2
        %vm3780 = vcmp.gt.s32.totalorder 0, %v3779
        %v3781 = vsel %vm3780, 0, %v3779
        %v3782 = vsub.s32 32, %v3781
        %v3783 = vshll.u32 %v3774, %v3781
        %v3784 = vshrl.u32 %v3766, %v3782
        %v3785 = vor.u32 %v3783, %v3784
        %v3786 = vsub.s32 4294967266, %v3781
        %v3787 = vadd.s32 %v3786, 127
        %v3788 = vshll.u32 %v3787, 23
        %v3789 = vor.u32 4788187, %v3788
        %v3790 = vand.u32 2147483647, %v3789
        %v3792 = vcvt.s32.f32 %v3785
        %v3793 = vmul.f32 %v3792, %v3790
        %v3794 = vxor.u32 %v3793, 2147483648
        %v3795 = vsel %vm3712, %v3794, %v3793
        %v3796 = vsub.s32 4, %v3772
        %v3797 = vsel %vm3712, %v3796, %v3772
        %v3798 = vsel %vm3711, %v3084, %v3795
        %v3799 = vsel %vm3711, 0, %v3797
        %v3800 = vcosq.f32.pop %v3798
        %v3801 = vsinq.f32.pop %v3798
        %vm3802 = vweird.f32 %v3084
        %v3803 = vadd.s32 %v3799, 3
        %v3804 = vand.u32 %v3803, 3
        %vm3805 = vcmp.lt.s32.totalorder %v3804, 2
        %vm3806 = vcmp.eq.s32.totalorder %v3804, 0
        %v3807 = vxor.u32 %v3801, 2147483648
        %v3808 = vsel %vm3806, %v3800, %v3807
        %vm3809 = vcmp.eq.s32.totalorder %v3804, 2
        %v3810 = vxor.u32 %v3800, 2147483648
        %v3811 = vsel %vm3809, %v3810, %v3801
        %v3812 = vsel %vm3805, %v3808, %v3811
        %v3813 = vsel %vm3802, nan, %v3812
        %v3814 = vand.u32 2147483647, %v3085
        %vm3815 = vcmp.le.f32.partialorder %v3814, 0.7853982
        %vm3816 = vcmp.lt.s32.totalorder %v3085, 0
        %v3817 = vand.u32 %v3085, 2139095040
        %v3818 = vshrl.u32 %v3817, 23
        %v3819 = vsub.s32 %v3818, 127
        %v3820 = vand.u32 2147483647, %v3085
        %v3821 = vand.u32 %v3820, 8388607
        %v3822 = vor.u32 %v3821, 8388608
        %v3823 = vsub.s32 0, %v3822
        %v3824 = vadd.s32 %v3819, 1
        %vm3825 = vcmp.gt.s32.totalorder %v3824, 0
        %v3826 = vsel %vm3825, %v3824, 0
        %v3827 = vshrl.u32 %v3826, 5
        %v3828 = vand.u32 %v3826, 31
        %v3829 = vsub.s32 32, %v3828
        %v3830 = vshrl.u32 683565275, %v3829
        %v3831 = vshll.u32 683565275, %v3828
        %v3832 = vshrl.u32 2475754826, %v3829
        %v3833 = vor.u32 %v3831, %v3832
        %v3834 = vshll.u32 2475754826, %v3828
        %v3835 = vshrl.u32 2131351028, %v3829
        %v3836 = vor.u32 %v3834, %v3835
        %v3837 = vshll.u32 2131351028, %v3828
        %v3838 = vshrl.u32 2102212464, %v3829
        %v3839 = vor.u32 %v3837, %v3838
        %v3840 = vshll.u32 2102212464, %v3828
        %v3841 = vshrl.u32 920167782, %v3829
        %v3842 = vor.u32 %v3840, %v3841
        %v3843 = vshll.u32 920167782, %v3828
        %v3844 = vshrl.u32 1326507024, %v3829
        %v3845 = vor.u32 %v3843, %v3844
        %vm3846 = vcmp.lt.s32.totalorder %v3827, 1
        %vm3847 = vcmp.lt.s32.totalorder %v3827, 2
        %vm3848 = vcmp.lt.s32.totalorder %v3827, 3
        %vm3849 = vcmp.lt.s32.totalorder %v3827, 4
        %v3850 = vsel %vm3846, %v3830, %v3833
        %v3851 = vsel %vm3849, %v3839, 2102212464
        %v3852 = vsel %vm3848, %v3836, %v3851
        %v3853 = vsel %vm3847, %v3850, %v3852
        %v3854 = vsel %vm3846, %v3833, %v3836
        %v3855 = vsel %vm3849, %v3842, 920167782
        %v3856 = vsel %vm3848, %v3839, %v3855
        %v3857 = vsel %vm3847, %v3854, %v3856
        %v3858 = vsel %vm3846, %v3836, %v3839
        %v3859 = vsel %vm3849, %v3845, 1326507024
        %v3860 = vsel %vm3848, %v3842, %v3859
        %v3861 = vsel %vm3847, %v3858, %v3860
        %v3862 = vshll.u32 %v3822, 8
        %v3863 = vmul.u32.u64.compose %v3862, %v3861
        %v3864 = vextract.low.u32 %v3863
        %v3865 = vextract.high.u32 %v3863
        %v3866 = vmul.u32.u64.compose %v3862, %v3857
        %v3867 = vextract.low.u32 %v3866
        %v3868 = vextract.high.u32 %v3866
        %v3869 = vmul.u32 %v3862, %v3853
        %v3870 = vadd.s32 %v3865, %v3867
        %vm3871 = vc.u32 %v3865, %v3867
        %v3872 = vadd.s32 %v3868, 1
        %v3873 = vsel %vm3871, %v3872, %v3868
        %v3874 = vadd.s32 %v3869, %v3873
        %v3875 = vadd.s32 %v3874, 536870912
        %v3876 = vshrl.u32 %v3875, 30
        %v3877 = vshll.u32 %v3876, 30
        %v3878 = vsub.s32 %v3874, %v3877
        %vm3879 = vcmp.lt.s32.totalorder %v3878, 0
        %v3880 = vsub.s32 0, %v3878
        %v3881 = vsel %vm3879, %v3880, %v3878
        %v3882 = vclz %v3881
        %v3883 = vsub.s32 %v3882, 2
        %vm3884 = vcmp.gt.s32.totalorder 0, %v3883
        %v3885 = vsel %vm3884, 0, %v3883
        %v3886 = vsub.s32 32, %v3885
        %v3887 = vshll.u32 %v3878, %v3885
        %v3888 = vshrl.u32 %v3870, %v3886
        %v3889 = vor.u32 %v3887, %v3888
        %v3890 = vsub.s32 4294967266, %v3885
        %v3891 = vadd.s32 %v3890, 127
        %v3892 = vshll.u32 %v3891, 23
        %v3893 = vor.u32 4788187, %v3892
        %v3894 = vand.u32 2147483647, %v3893
        %v3896 = vcvt.s32.f32 %v3889
        %v3897 = vmul.f32 %v3896, %v3894
        %v3898 = vxor.u32 %v3897, 2147483648
        %v3899 = vsel %vm3816, %v3898, %v3897
        %v3900 = vsub.s32 4, %v3876
        %v3901 = vsel %vm3816, %v3900, %v3876
        %v3902 = vsel %vm3815, %v3085, %v3899
        %v3903 = vsel %vm3815, 0, %v3901
        %v3904 = vcosq.f32.pop %v3902
        %v3905 = vsinq.f32.pop %v3902
        %vm3906 = vweird.f32 %v3085
        %v3907 = vadd.s32 %v3903, 3
        %v3908 = vand.u32 %v3907, 3
        %vm3909 = vcmp.lt.s32.totalorder %v3908, 2
        %vm3910 = vcmp.eq.s32.totalorder %v3908, 0
        %v3911 = vxor.u32 %v3905, 2147483648
        %v3912 = vsel %vm3910, %v3904, %v3911
        %vm3913 = vcmp.eq.s32.totalorder %v3908, 2
        %v3914 = vxor.u32 %v3904, 2147483648
        %v3915 = vsel %vm3913, %v3914, %v3905
        %v3916 = vsel %vm3909, %v3912, %v3915
        %v3917 = vsel %vm3906, nan, %v3916
        %s3918 = scalar_lea.vmem [#allocation2], 16
        %v3919 = vld [vmem:[%s3918] sm:$0x1]
        %v3920 = vld [vmem:[%s3918 + $0x1] sm:$0x1]
        %v3921 = vld [vmem:[%s3918 + $0x2] sm:$0x1]
        %v3922 = vld [vmem:[%s3918 + $0x3] sm:$0x1]
        %3923 = vrot.lane.b32.xlu0 %v3189, 1
        %v3924 = vpop.permute.xlu0 %3923
        %3925 = vrot.lane.b32.xlu0 %v3293, 1
        %v3926 = vpop.permute.xlu0 %3925
        %3927 = vrot.lane.b32.xlu0 %v3397, 1
        %v3928 = vpop.permute.xlu0 %3927
        %3929 = vrot.lane.b32.xlu0 %v3501, 1
        %v3930 = vpop.permute.xlu0 %3929
        %3931 = vrot.lane.b32.xlu0 %v3605, 1
        %v3932 = vpop.permute.xlu0 %3931
        %3933 = vrot.lane.b32.xlu0 %v3709, 1
        %v3934 = vpop.permute.xlu0 %3933
        %3935 = vrot.lane.b32.xlu0 %v3813, 1
        %v3936 = vpop.permute.xlu0 %3935
        %3937 = vrot.lane.b32.xlu0 %v3917, 1
        %v3938 = vpop.permute.xlu0 %3937
        %3939 = vrot.lane.b32.xlu0 %v3189, 127
        %v3940 = vpop.permute.xlu0 %3939
        %3941 = vrot.lane.b32.xlu0 %v3293, 127
        %v3942 = vpop.permute.xlu0 %3941
        %3943 = vrot.lane.b32.xlu0 %v3397, 127
        %v3944 = vpop.permute.xlu0 %3943
        %3945 = vrot.lane.b32.xlu0 %v3501, 127
        %v3946 = vpop.permute.xlu0 %3945
        %3947 = vrot.lane.b32.xlu0 %v3605, 127
        %v3948 = vpop.permute.xlu0 %3947
        %3949 = vrot.lane.b32.xlu0 %v3709, 127
        %v3950 = vpop.permute.xlu0 %3949
        %3951 = vrot.lane.b32.xlu0 %v3813, 127
        %v3952 = vpop.permute.xlu0 %3951
        %3953 = vrot.lane.b32.xlu0 %v3917, 127
        %v3954 = vpop.permute.xlu0 %3953
        %v3955 = vlaneseq
        %v3956 = vshrl.u32 %v3955, 7
        %v3957 = vsub.s32 0, %v3956
        %v3958 = vrot.slane %v3919, %v3957
        %v3959 = vmul.f32 %v3958, %v3924
        %v3960 = vmul.f32 %v3958, %v3926
        %v3961 = vmul.f32 %v3958, %v3928
        %v3962 = vmul.f32 %v3958, %v3930
        %v3963 = vmul.f32 %v3958, %v3932
        %v3964 = vmul.f32 %v3958, %v3934
        %v3965 = vmul.f32 %v3958, %v3936
        %v3966 = vmul.f32 %v3958, %v3938
        %v3967 = vlaneseq
        %v3968 = vshrl.u32 %v3967, 7
        %v3969 = vsub.s32 0, %v3968
        %v3970 = vrot.slane %v3920, %v3969
        %v3971 = vmul.f32 %v3970, %v3189
        %v3972 = vmul.f32 %v3970, %v3293
        %v3973 = vmul.f32 %v3970, %v3397
        %v3974 = vmul.f32 %v3970, %v3501
        %v3975 = vmul.f32 %v3970, %v3605
        %v3976 = vmul.f32 %v3970, %v3709
        %v3977 = vmul.f32 %v3970, %v3813
        %v3978 = vmul.f32 %v3970, %v3917
        %v3979 = vadd.f32 %v3959, %v3971
        %v3980 = vadd.f32 %v3960, %v3972
        %v3981 = vadd.f32 %v3961, %v3973
        %v3982 = vadd.f32 %v3962, %v3974
        %v3983 = vadd.f32 %v3963, %v3975
        %v3984 = vadd.f32 %v3964, %v3976
        %v3985 = vadd.f32 %v3965, %v3977
        %v3986 = vadd.f32 %v3966, %v3978
        %v3987 = vlaneseq
        %v3988 = vshrl.u32 %v3987, 7
        %v3989 = vsub.s32 0, %v3988
        %v3990 = vrot.slane %v3921, %v3989
        %v3991 = vmul.f32 %v3990, %v3940
        %v3992 = vmul.f32 %v3990, %v3942
        %v3993 = vmul.f32 %v3990, %v3944
        %v3994 = vmul.f32 %v3990, %v3946
        %v3995 = vmul.f32 %v3990, %v3948
        %v3996 = vmul.f32 %v3990, %v3950
        %v3997 = vmul.f32 %v3990, %v3952
        %v3998 = vmul.f32 %v3990, %v3954
        %v3999 = vadd.f32 %v3979, %v3991
        %v4000 = vadd.f32 %v3980, %v3992
        %v4001 = vadd.f32 %v3981, %v3993
        %v4002 = vadd.f32 %v3982, %v3994
        %v4003 = vadd.f32 %v3983, %v3995
        %v4004 = vadd.f32 %v3984, %v3996
        %v4005 = vadd.f32 %v3985, %v3997
        %v4006 = vadd.f32 %v3986, %v3998
        %v4007 = vlaneseq
        %v4008 = vshrl.u32 %v4007, 7
        %v4009 = vsub.s32 0, %v4008
        %v4010 = vrot.slane %v3922, %v4009
        %v4011 = vadd.f32 %v3999, %v4010
        %v4012 = vadd.f32 %v4000, %v4010
        %v4013 = vadd.f32 %v4001, %v4010
        %v4014 = vadd.f32 %v4002, %v4010
        %v4015 = vadd.f32 %v4003, %v4010
        %v4016 = vadd.f32 %v4004, %v4010
        %v4017 = vadd.f32 %v4005, %v4010
        %v4018 = vadd.f32 %v4006, %v4010
        %v4019 = vand.u32 2147483647, %v4011
        %vm4020 = vcmp.le.f32.partialorder %v4019, 0.7853982
        %vm4021 = vcmp.lt.s32.totalorder %v4011, 0
        %v4022 = vand.u32 %v4011, 2139095040
        %v4023 = vshrl.u32 %v4022, 23
        %v4024 = vsub.s32 %v4023, 127
        %v4025 = vand.u32 2147483647, %v4011
        %v4026 = vand.u32 %v4025, 8388607
        %v4027 = vor.u32 %v4026, 8388608
        %v4028 = vsub.s32 0, %v4027
        %v4029 = vadd.s32 %v4024, 1
        %vm4030 = vcmp.gt.s32.totalorder %v4029, 0
        %v4031 = vsel %vm4030, %v4029, 0
        %v4032 = vshrl.u32 %v4031, 5
        %v4033 = vand.u32 %v4031, 31
        %v4034 = vsub.s32 32, %v4033
        %v4035 = vshrl.u32 683565275, %v4034
        %v4036 = vshll.u32 683565275, %v4033
        %v4037 = vshrl.u32 2475754826, %v4034
        %v4038 = vor.u32 %v4036, %v4037
        %v4039 = vshll.u32 2475754826, %v4033
        %v4040 = vshrl.u32 2131351028, %v4034
        %v4041 = vor.u32 %v4039, %v4040
        %v4042 = vshll.u32 2131351028, %v4033
        %v4043 = vshrl.u32 2102212464, %v4034
        %v4044 = vor.u32 %v4042, %v4043
        %v4045 = vshll.u32 2102212464, %v4033
        %v4046 = vshrl.u32 920167782, %v4034
        %v4047 = vor.u32 %v4045, %v4046
        %v4048 = vshll.u32 920167782, %v4033
        %v4049 = vshrl.u32 1326507024, %v4034
        %v4050 = vor.u32 %v4048, %v4049
        %vm4051 = vcmp.lt.s32.totalorder %v4032, 1
        %vm4052 = vcmp.lt.s32.totalorder %v4032, 2
        %vm4053 = vcmp.lt.s32.totalorder %v4032, 3
        %vm4054 = vcmp.lt.s32.totalorder %v4032, 4
        %v4055 = vsel %vm4051, %v4035, %v4038
        %v4056 = vsel %vm4054, %v4044, 2102212464
        %v4057 = vsel %vm4053, %v4041, %v4056
        %v4058 = vsel %vm4052, %v4055, %v4057
        %v4059 = vsel %vm4051, %v4038, %v4041
        %v4060 = vsel %vm4054, %v4047, 920167782
        %v4061 = vsel %vm4053, %v4044, %v4060
        %v4062 = vsel %vm4052, %v4059, %v4061
        %v4063 = vsel %vm4051, %v4041, %v4044
        %v4064 = vsel %vm4054, %v4050, 1326507024
        %v4065 = vsel %vm4053, %v4047, %v4064
        %v4066 = vsel %vm4052, %v4063, %v4065
        %v4067 = vshll.u32 %v4027, 8
        %v4068 = vmul.u32.u64.compose %v4067, %v4066
        %v4069 = vextract.low.u32 %v4068
        %v4070 = vextract.high.u32 %v4068
        %v4071 = vmul.u32.u64.compose %v4067, %v4062
        %v4072 = vextract.low.u32 %v4071
        %v4073 = vextract.high.u32 %v4071
        %v4074 = vmul.u32 %v4067, %v4058
        %v4075 = vadd.s32 %v4070, %v4072
        %vm4076 = vc.u32 %v4070, %v4072
        %v4077 = vadd.s32 %v4073, 1
        %v4078 = vsel %vm4076, %v4077, %v4073
        %v4079 = vadd.s32 %v4074, %v4078
        %v4080 = vadd.s32 %v4079, 536870912
        %v4081 = vshrl.u32 %v4080, 30
        %v4082 = vshll.u32 %v4081, 30
        %v4083 = vsub.s32 %v4079, %v4082
        %vm4084 = vcmp.lt.s32.totalorder %v4083, 0
        %v4085 = vsub.s32 0, %v4083
        %v4086 = vsel %vm4084, %v4085, %v4083
        %v4087 = vclz %v4086
        %v4088 = vsub.s32 %v4087, 2
        %vm4089 = vcmp.gt.s32.totalorder 0, %v4088
        %v4090 = vsel %vm4089, 0, %v4088
        %v4091 = vsub.s32 32, %v4090
        %v4092 = vshll.u32 %v4083, %v4090
        %v4093 = vshrl.u32 %v4075, %v4091
        %v4094 = vor.u32 %v4092, %v4093
        %v4095 = vsub.s32 4294967266, %v4090
        %v4096 = vadd.s32 %v4095, 127
        %v4097 = vshll.u32 %v4096, 23
        %v4098 = vor.u32 4788187, %v4097
        %v4099 = vand.u32 2147483647, %v4098
        %v4101 = vcvt.s32.f32 %v4094
        %v4102 = vmul.f32 %v4101, %v4099
        %v4103 = vxor.u32 %v4102, 2147483648
        %v4104 = vsel %vm4021, %v4103, %v4102
        %v4105 = vsub.s32 4, %v4081
        %v4106 = vsel %vm4021, %v4105, %v4081
        %v4107 = vsel %vm4020, %v4011, %v4104
        %v4108 = vsel %vm4020, 0, %v4106
        %v4109 = vcosq.f32.pop %v4107
        %v4110 = vsinq.f32.pop %v4107
        %vm4111 = vweird.f32 %v4011
        %v4112 = vadd.s32 %v4108, 3
        %v4113 = vand.u32 %v4112, 3
        %vm4114 = vcmp.lt.s32.totalorder %v4113, 2
        %vm4115 = vcmp.eq.s32.totalorder %v4113, 0
        %v4116 = vxor.u32 %v4110, 2147483648
        %v4117 = vsel %vm4115, %v4109, %v4116
        %vm4118 = vcmp.eq.s32.totalorder %v4113, 2
        %v4119 = vxor.u32 %v4109, 2147483648
        %v4120 = vsel %vm4118, %v4119, %v4110
        %v4121 = vsel %vm4114, %v4117, %v4120
        %v4122 = vsel %vm4111, nan, %v4121
        %v4123 = vand.u32 2147483647, %v4012
        %vm4124 = vcmp.le.f32.partialorder %v4123, 0.7853982
        %vm4125 = vcmp.lt.s32.totalorder %v4012, 0
        %v4126 = vand.u32 %v4012, 2139095040
        %v4127 = vshrl.u32 %v4126, 23
        %v4128 = vsub.s32 %v4127, 127
        %v4129 = vand.u32 2147483647, %v4012
        %v4130 = vand.u32 %v4129, 8388607
        %v4131 = vor.u32 %v4130, 8388608
        %v4132 = vsub.s32 0, %v4131
        %v4133 = vadd.s32 %v4128, 1
        %vm4134 = vcmp.gt.s32.totalorder %v4133, 0
        %v4135 = vsel %vm4134, %v4133, 0
        %v4136 = vshrl.u32 %v4135, 5
        %v4137 = vand.u32 %v4135, 31
        %v4138 = vsub.s32 32, %v4137
        %v4139 = vshrl.u32 683565275, %v4138
        %v4140 = vshll.u32 683565275, %v4137
        %v4141 = vshrl.u32 2475754826, %v4138
        %v4142 = vor.u32 %v4140, %v4141
        %v4143 = vshll.u32 2475754826, %v4137
        %v4144 = vshrl.u32 2131351028, %v4138
        %v4145 = vor.u32 %v4143, %v4144
        %v4146 = vshll.u32 2131351028, %v4137
        %v4147 = vshrl.u32 2102212464, %v4138
        %v4148 = vor.u32 %v4146, %v4147
        %v4149 = vshll.u32 2102212464, %v4137
        %v4150 = vshrl.u32 920167782, %v4138
        %v4151 = vor.u32 %v4149, %v4150
        %v4152 = vshll.u32 920167782, %v4137
        %v4153 = vshrl.u32 1326507024, %v4138
        %v4154 = vor.u32 %v4152, %v4153
        %vm4155 = vcmp.lt.s32.totalorder %v4136, 1
        %vm4156 = vcmp.lt.s32.totalorder %v4136, 2
        %vm4157 = vcmp.lt.s32.totalorder %v4136, 3
        %vm4158 = vcmp.lt.s32.totalorder %v4136, 4
        %v4159 = vsel %vm4155, %v4139, %v4142
        %v4160 = vsel %vm4158, %v4148, 2102212464
        %v4161 = vsel %vm4157, %v4145, %v4160
        %v4162 = vsel %vm4156, %v4159, %v4161
        %v4163 = vsel %vm4155, %v4142, %v4145
        %v4164 = vsel %vm4158, %v4151, 920167782
        %v4165 = vsel %vm4157, %v4148, %v4164
        %v4166 = vsel %vm4156, %v4163, %v4165
        %v4167 = vsel %vm4155, %v4145, %v4148
        %v4168 = vsel %vm4158, %v4154, 1326507024
        %v4169 = vsel %vm4157, %v4151, %v4168
        %v4170 = vsel %vm4156, %v4167, %v4169
        %v4171 = vshll.u32 %v4131, 8
        %v4172 = vmul.u32.u64.compose %v4171, %v4170
        %v4173 = vextract.low.u32 %v4172
        %v4174 = vextract.high.u32 %v4172
        %v4175 = vmul.u32.u64.compose %v4171, %v4166
        %v4176 = vextract.low.u32 %v4175
        %v4177 = vextract.high.u32 %v4175
        %v4178 = vmul.u32 %v4171, %v4162
        %v4179 = vadd.s32 %v4174, %v4176
        %vm4180 = vc.u32 %v4174, %v4176
        %v4181 = vadd.s32 %v4177, 1
        %v4182 = vsel %vm4180, %v4181, %v4177
        %v4183 = vadd.s32 %v4178, %v4182
        %v4184 = vadd.s32 %v4183, 536870912
        %v4185 = vshrl.u32 %v4184, 30
        %v4186 = vshll.u32 %v4185, 30
        %v4187 = vsub.s32 %v4183, %v4186
        %vm4188 = vcmp.lt.s32.totalorder %v4187, 0
        %v4189 = vsub.s32 0, %v4187
        %v4190 = vsel %vm4188, %v4189, %v4187
        %v4191 = vclz %v4190
        %v4192 = vsub.s32 %v4191, 2
        %vm4193 = vcmp.gt.s32.totalorder 0, %v4192
        %v4194 = vsel %vm4193, 0, %v4192
        %v4195 = vsub.s32 32, %v4194
        %v4196 = vshll.u32 %v4187, %v4194
        %v4197 = vshrl.u32 %v4179, %v4195
        %v4198 = vor.u32 %v4196, %v4197
        %v4199 = vsub.s32 4294967266, %v4194
        %v4200 = vadd.s32 %v4199, 127
        %v4201 = vshll.u32 %v4200, 23
        %v4202 = vor.u32 4788187, %v4201
        %v4203 = vand.u32 2147483647, %v4202
        %v4205 = vcvt.s32.f32 %v4198
        %v4206 = vmul.f32 %v4205, %v4203
        %v4207 = vxor.u32 %v4206, 2147483648
        %v4208 = vsel %vm4125, %v4207, %v4206
        %v4209 = vsub.s32 4, %v4185
        %v4210 = vsel %vm4125, %v4209, %v4185
        %v4211 = vsel %vm4124, %v4012, %v4208
        %v4212 = vsel %vm4124, 0, %v4210
        %v4213 = vcosq.f32.pop %v4211
        %v4214 = vsinq.f32.pop %v4211
        %vm4215 = vweird.f32 %v4012
        %v4216 = vadd.s32 %v4212, 3
        %v4217 = vand.u32 %v4216, 3
        %vm4218 = vcmp.lt.s32.totalorder %v4217, 2
        %vm4219 = vcmp.eq.s32.totalorder %v4217, 0
        %v4220 = vxor.u32 %v4214, 2147483648
        %v4221 = vsel %vm4219, %v4213, %v4220
        %vm4222 = vcmp.eq.s32.totalorder %v4217, 2
        %v4223 = vxor.u32 %v4213, 2147483648
        %v4224 = vsel %vm4222, %v4223, %v4214
        %v4225 = vsel %vm4218, %v4221, %v4224
        %v4226 = vsel %vm4215, nan, %v4225
        %v4227 = vand.u32 2147483647, %v4013
        %vm4228 = vcmp.le.f32.partialorder %v4227, 0.7853982
        %vm4229 = vcmp.lt.s32.totalorder %v4013, 0
        %v4230 = vand.u32 %v4013, 2139095040
        %v4231 = vshrl.u32 %v4230, 23
        %v4232 = vsub.s32 %v4231, 127
        %v4233 = vand.u32 2147483647, %v4013
        %v4234 = vand.u32 %v4233, 8388607
        %v4235 = vor.u32 %v4234, 8388608
        %v4236 = vsub.s32 0, %v4235
        %v4237 = vadd.s32 %v4232, 1
        %vm4238 = vcmp.gt.s32.totalorder %v4237, 0
        %v4239 = vsel %vm4238, %v4237, 0
        %v4240 = vshrl.u32 %v4239, 5
        %v4241 = vand.u32 %v4239, 31
        %v4242 = vsub.s32 32, %v4241
        %v4243 = vshrl.u32 683565275, %v4242
        %v4244 = vshll.u32 683565275, %v4241
        %v4245 = vshrl.u32 2475754826, %v4242
        %v4246 = vor.u32 %v4244, %v4245
        %v4247 = vshll.u32 2475754826, %v4241
        %v4248 = vshrl.u32 2131351028, %v4242
        %v4249 = vor.u32 %v4247, %v4248
        %v4250 = vshll.u32 2131351028, %v4241
        %v4251 = vshrl.u32 2102212464, %v4242
        %v4252 = vor.u32 %v4250, %v4251
        %v4253 = vshll.u32 2102212464, %v4241
        %v4254 = vshrl.u32 920167782, %v4242
        %v4255 = vor.u32 %v4253, %v4254
        %v4256 = vshll.u32 920167782, %v4241
        %v4257 = vshrl.u32 1326507024, %v4242
        %v4258 = vor.u32 %v4256, %v4257
        %vm4259 = vcmp.lt.s32.totalorder %v4240, 1
        %vm4260 = vcmp.lt.s32.totalorder %v4240, 2
        %vm4261 = vcmp.lt.s32.totalorder %v4240, 3
        %vm4262 = vcmp.lt.s32.totalorder %v4240, 4
        %v4263 = vsel %vm4259, %v4243, %v4246
        %v4264 = vsel %vm4262, %v4252, 2102212464
        %v4265 = vsel %vm4261, %v4249, %v4264
        %v4266 = vsel %vm4260, %v4263, %v4265
        %v4267 = vsel %vm4259, %v4246, %v4249
        %v4268 = vsel %vm4262, %v4255, 920167782
        %v4269 = vsel %vm4261, %v4252, %v4268
        %v4270 = vsel %vm4260, %v4267, %v4269
        %v4271 = vsel %vm4259, %v4249, %v4252
        %v4272 = vsel %vm4262, %v4258, 1326507024
        %v4273 = vsel %vm4261, %v4255, %v4272
        %v4274 = vsel %vm4260, %v4271, %v4273
        %v4275 = vshll.u32 %v4235, 8
        %v4276 = vmul.u32.u64.compose %v4275, %v4274
        %v4277 = vextract.low.u32 %v4276
        %v4278 = vextract.high.u32 %v4276
        %v4279 = vmul.u32.u64.compose %v4275, %v4270
        %v4280 = vextract.low.u32 %v4279
        %v4281 = vextract.high.u32 %v4279
        %v4282 = vmul.u32 %v4275, %v4266
        %v4283 = vadd.s32 %v4278, %v4280
        %vm4284 = vc.u32 %v4278, %v4280
        %v4285 = vadd.s32 %v4281, 1
        %v4286 = vsel %vm4284, %v4285, %v4281
        %v4287 = vadd.s32 %v4282, %v4286
        %v4288 = vadd.s32 %v4287, 536870912
        %v4289 = vshrl.u32 %v4288, 30
        %v4290 = vshll.u32 %v4289, 30
        %v4291 = vsub.s32 %v4287, %v4290
        %vm4292 = vcmp.lt.s32.totalorder %v4291, 0
        %v4293 = vsub.s32 0, %v4291
        %v4294 = vsel %vm4292, %v4293, %v4291
        %v4295 = vclz %v4294
        %v4296 = vsub.s32 %v4295, 2
        %vm4297 = vcmp.gt.s32.totalorder 0, %v4296
        %v4298 = vsel %vm4297, 0, %v4296
        %v4299 = vsub.s32 32, %v4298
        %v4300 = vshll.u32 %v4291, %v4298
        %v4301 = vshrl.u32 %v4283, %v4299
        %v4302 = vor.u32 %v4300, %v4301
        %v4303 = vsub.s32 4294967266, %v4298
        %v4304 = vadd.s32 %v4303, 127
        %v4305 = vshll.u32 %v4304, 23
        %v4306 = vor.u32 4788187, %v4305
        %v4307 = vand.u32 2147483647, %v4306
        %v4309 = vcvt.s32.f32 %v4302
        %v4310 = vmul.f32 %v4309, %v4307
        %v4311 = vxor.u32 %v4310, 2147483648
        %v4312 = vsel %vm4229, %v4311, %v4310
        %v4313 = vsub.s32 4, %v4289
        %v4314 = vsel %vm4229, %v4313, %v4289
        %v4315 = vsel %vm4228, %v4013, %v4312
        %v4316 = vsel %vm4228, 0, %v4314
        %v4317 = vcosq.f32.pop %v4315
        %v4318 = vsinq.f32.pop %v4315
        %vm4319 = vweird.f32 %v4013
        %v4320 = vadd.s32 %v4316, 3
        %v4321 = vand.u32 %v4320, 3
        %vm4322 = vcmp.lt.s32.totalorder %v4321, 2
        %vm4323 = vcmp.eq.s32.totalorder %v4321, 0
        %v4324 = vxor.u32 %v4318, 2147483648
        %v4325 = vsel %vm4323, %v4317, %v4324
        %vm4326 = vcmp.eq.s32.totalorder %v4321, 2
        %v4327 = vxor.u32 %v4317, 2147483648
        %v4328 = vsel %vm4326, %v4327, %v4318
        %v4329 = vsel %vm4322, %v4325, %v4328
        %v4330 = vsel %vm4319, nan, %v4329
        %v4331 = vand.u32 2147483647, %v4014
        %vm4332 = vcmp.le.f32.partialorder %v4331, 0.7853982
        %vm4333 = vcmp.lt.s32.totalorder %v4014, 0
        %v4334 = vand.u32 %v4014, 2139095040
        %v4335 = vshrl.u32 %v4334, 23
        %v4336 = vsub.s32 %v4335, 127
        %v4337 = vand.u32 2147483647, %v4014
        %v4338 = vand.u32 %v4337, 8388607
        %v4339 = vor.u32 %v4338, 8388608
        %v4340 = vsub.s32 0, %v4339
        %v4341 = vadd.s32 %v4336, 1
        %vm4342 = vcmp.gt.s32.totalorder %v4341, 0
        %v4343 = vsel %vm4342, %v4341, 0
        %v4344 = vshrl.u32 %v4343, 5
        %v4345 = vand.u32 %v4343, 31
        %v4346 = vsub.s32 32, %v4345
        %v4347 = vshrl.u32 683565275, %v4346
        %v4348 = vshll.u32 683565275, %v4345
        %v4349 = vshrl.u32 2475754826, %v4346
        %v4350 = vor.u32 %v4348, %v4349
        %v4351 = vshll.u32 2475754826, %v4345
        %v4352 = vshrl.u32 2131351028, %v4346
        %v4353 = vor.u32 %v4351, %v4352
        %v4354 = vshll.u32 2131351028, %v4345
        %v4355 = vshrl.u32 2102212464, %v4346
        %v4356 = vor.u32 %v4354, %v4355
        %v4357 = vshll.u32 2102212464, %v4345
        %v4358 = vshrl.u32 920167782, %v4346
        %v4359 = vor.u32 %v4357, %v4358
        %v4360 = vshll.u32 920167782, %v4345
        %v4361 = vshrl.u32 1326507024, %v4346
        %v4362 = vor.u32 %v4360, %v4361
        %vm4363 = vcmp.lt.s32.totalorder %v4344, 1
        %vm4364 = vcmp.lt.s32.totalorder %v4344, 2
        %vm4365 = vcmp.lt.s32.totalorder %v4344, 3
        %vm4366 = vcmp.lt.s32.totalorder %v4344, 4
        %v4367 = vsel %vm4363, %v4347, %v4350
        %v4368 = vsel %vm4366, %v4356, 2102212464
        %v4369 = vsel %vm4365, %v4353, %v4368
        %v4370 = vsel %vm4364, %v4367, %v4369
        %v4371 = vsel %vm4363, %v4350, %v4353
        %v4372 = vsel %vm4366, %v4359, 920167782
        %v4373 = vsel %vm4365, %v4356, %v4372
        %v4374 = vsel %vm4364, %v4371, %v4373
        %v4375 = vsel %vm4363, %v4353, %v4356
        %v4376 = vsel %vm4366, %v4362, 1326507024
        %v4377 = vsel %vm4365, %v4359, %v4376
        %v4378 = vsel %vm4364, %v4375, %v4377
        %v4379 = vshll.u32 %v4339, 8
        %v4380 = vmul.u32.u64.compose %v4379, %v4378
        %v4381 = vextract.low.u32 %v4380
        %v4382 = vextract.high.u32 %v4380
        %v4383 = vmul.u32.u64.compose %v4379, %v4374
        %v4384 = vextract.low.u32 %v4383
        %v4385 = vextract.high.u32 %v4383
        %v4386 = vmul.u32 %v4379, %v4370
        %v4387 = vadd.s32 %v4382, %v4384
        %vm4388 = vc.u32 %v4382, %v4384
        %v4389 = vadd.s32 %v4385, 1
        %v4390 = vsel %vm4388, %v4389, %v4385
        %v4391 = vadd.s32 %v4386, %v4390
        %v4392 = vadd.s32 %v4391, 536870912
        %v4393 = vshrl.u32 %v4392, 30
        %v4394 = vshll.u32 %v4393, 30
        %v4395 = vsub.s32 %v4391, %v4394
        %vm4396 = vcmp.lt.s32.totalorder %v4395, 0
        %v4397 = vsub.s32 0, %v4395
        %v4398 = vsel %vm4396, %v4397, %v4395
        %v4399 = vclz %v4398
        %v4400 = vsub.s32 %v4399, 2
        %vm4401 = vcmp.gt.s32.totalorder 0, %v4400
        %v4402 = vsel %vm4401, 0, %v4400
        %v4403 = vsub.s32 32, %v4402
        %v4404 = vshll.u32 %v4395, %v4402
        %v4405 = vshrl.u32 %v4387, %v4403
        %v4406 = vor.u32 %v4404, %v4405
        %v4407 = vsub.s32 4294967266, %v4402
        %v4408 = vadd.s32 %v4407, 127
        %v4409 = vshll.u32 %v4408, 23
        %v4410 = vor.u32 4788187, %v4409
        %v4411 = vand.u32 2147483647, %v4410
        %v4413 = vcvt.s32.f32 %v4406
        %v4414 = vmul.f32 %v4413, %v4411
        %v4415 = vxor.u32 %v4414, 2147483648
        %v4416 = vsel %vm4333, %v4415, %v4414
        %v4417 = vsub.s32 4, %v4393
        %v4418 = vsel %vm4333, %v4417, %v4393
        %v4419 = vsel %vm4332, %v4014, %v4416
        %v4420 = vsel %vm4332, 0, %v4418
        %v4421 = vcosq.f32.pop %v4419
        %v4422 = vsinq.f32.pop %v4419
        %vm4423 = vweird.f32 %v4014
        %v4424 = vadd.s32 %v4420, 3
        %v4425 = vand.u32 %v4424, 3
        %vm4426 = vcmp.lt.s32.totalorder %v4425, 2
        %vm4427 = vcmp.eq.s32.totalorder %v4425, 0
        %v4428 = vxor.u32 %v4422, 2147483648
        %v4429 = vsel %vm4427, %v4421, %v4428
        %vm4430 = vcmp.eq.s32.totalorder %v4425, 2
        %v4431 = vxor.u32 %v4421, 2147483648
        %v4432 = vsel %vm4430, %v4431, %v4422
        %v4433 = vsel %vm4426, %v4429, %v4432
        %v4434 = vsel %vm4423, nan, %v4433
        %v4435 = vand.u32 2147483647, %v4015
        %vm4436 = vcmp.le.f32.partialorder %v4435, 0.7853982
        %vm4437 = vcmp.lt.s32.totalorder %v4015, 0
        %v4438 = vand.u32 %v4015, 2139095040
        %v4439 = vshrl.u32 %v4438, 23
        %v4440 = vsub.s32 %v4439, 127
        %v4441 = vand.u32 2147483647, %v4015
        %v4442 = vand.u32 %v4441, 8388607
        %v4443 = vor.u32 %v4442, 8388608
        %v4444 = vsub.s32 0, %v4443
        %v4445 = vadd.s32 %v4440, 1
        %vm4446 = vcmp.gt.s32.totalorder %v4445, 0
        %v4447 = vsel %vm4446, %v4445, 0
        %v4448 = vshrl.u32 %v4447, 5
        %v4449 = vand.u32 %v4447, 31
        %v4450 = vsub.s32 32, %v4449
        %v4451 = vshrl.u32 683565275, %v4450
        %v4452 = vshll.u32 683565275, %v4449
        %v4453 = vshrl.u32 2475754826, %v4450
        %v4454 = vor.u32 %v4452, %v4453
        %v4455 = vshll.u32 2475754826, %v4449
        %v4456 = vshrl.u32 2131351028, %v4450
        %v4457 = vor.u32 %v4455, %v4456
        %v4458 = vshll.u32 2131351028, %v4449
        %v4459 = vshrl.u32 2102212464, %v4450
        %v4460 = vor.u32 %v4458, %v4459
        %v4461 = vshll.u32 2102212464, %v4449
        %v4462 = vshrl.u32 920167782, %v4450
        %v4463 = vor.u32 %v4461, %v4462
        %v4464 = vshll.u32 920167782, %v4449
        %v4465 = vshrl.u32 1326507024, %v4450
        %v4466 = vor.u32 %v4464, %v4465
        %vm4467 = vcmp.lt.s32.totalorder %v4448, 1
        %vm4468 = vcmp.lt.s32.totalorder %v4448, 2
        %vm4469 = vcmp.lt.s32.totalorder %v4448, 3
        %vm4470 = vcmp.lt.s32.totalorder %v4448, 4
        %v4471 = vsel %vm4467, %v4451, %v4454
        %v4472 = vsel %vm4470, %v4460, 2102212464
        %v4473 = vsel %vm4469, %v4457, %v4472
        %v4474 = vsel %vm4468, %v4471, %v4473
        %v4475 = vsel %vm4467, %v4454, %v4457
        %v4476 = vsel %vm4470, %v4463, 920167782
        %v4477 = vsel %vm4469, %v4460, %v4476
        %v4478 = vsel %vm4468, %v4475, %v4477
        %v4479 = vsel %vm4467, %v4457, %v4460
        %v4480 = vsel %vm4470, %v4466, 1326507024
        %v4481 = vsel %vm4469, %v4463, %v4480
        %v4482 = vsel %vm4468, %v4479, %v4481
        %v4483 = vshll.u32 %v4443, 8
        %v4484 = vmul.u32.u64.compose %v4483, %v4482
        %v4485 = vextract.low.u32 %v4484
        %v4486 = vextract.high.u32 %v4484
        %v4487 = vmul.u32.u64.compose %v4483, %v4478
        %v4488 = vextract.low.u32 %v4487
        %v4489 = vextract.high.u32 %v4487
        %v4490 = vmul.u32 %v4483, %v4474
        %v4491 = vadd.s32 %v4486, %v4488
        %vm4492 = vc.u32 %v4486, %v4488
        %v4493 = vadd.s32 %v4489, 1
        %v4494 = vsel %vm4492, %v4493, %v4489
        %v4495 = vadd.s32 %v4490, %v4494
        %v4496 = vadd.s32 %v4495, 536870912
        %v4497 = vshrl.u32 %v4496, 30
        %v4498 = vshll.u32 %v4497, 30
        %v4499 = vsub.s32 %v4495, %v4498
        %vm4500 = vcmp.lt.s32.totalorder %v4499, 0
        %v4501 = vsub.s32 0, %v4499
        %v4502 = vsel %vm4500, %v4501, %v4499
        %v4503 = vclz %v4502
        %v4504 = vsub.s32 %v4503, 2
        %vm4505 = vcmp.gt.s32.totalorder 0, %v4504
        %v4506 = vsel %vm4505, 0, %v4504
        %v4507 = vsub.s32 32, %v4506
        %v4508 = vshll.u32 %v4499, %v4506
        %v4509 = vshrl.u32 %v4491, %v4507
        %v4510 = vor.u32 %v4508, %v4509
        %v4511 = vsub.s32 4294967266, %v4506
        %v4512 = vadd.s32 %v4511, 127
        %v4513 = vshll.u32 %v4512, 23
        %v4514 = vor.u32 4788187, %v4513
        %v4515 = vand.u32 2147483647, %v4514
        %v4517 = vcvt.s32.f32 %v4510
        %v4518 = vmul.f32 %v4517, %v4515
        %v4519 = vxor.u32 %v4518, 2147483648
        %v4520 = vsel %vm4437, %v4519, %v4518
        %v4521 = vsub.s32 4, %v4497
        %v4522 = vsel %vm4437, %v4521, %v4497
        %v4523 = vsel %vm4436, %v4015, %v4520
        %v4524 = vsel %vm4436, 0, %v4522
        %v4525 = vcosq.f32.pop %v4523
        %v4526 = vsinq.f32.pop %v4523
        %vm4527 = vweird.f32 %v4015
        %v4528 = vadd.s32 %v4524, 3
        %v4529 = vand.u32 %v4528, 3
        %vm4530 = vcmp.lt.s32.totalorder %v4529, 2
        %vm4531 = vcmp.eq.s32.totalorder %v4529, 0
        %v4532 = vxor.u32 %v4526, 2147483648
        %v4533 = vsel %vm4531, %v4525, %v4532
        %vm4534 = vcmp.eq.s32.totalorder %v4529, 2
        %v4535 = vxor.u32 %v4525, 2147483648
        %v4536 = vsel %vm4534, %v4535, %v4526
        %v4537 = vsel %vm4530, %v4533, %v4536
        %v4538 = vsel %vm4527, nan, %v4537
        %v4539 = vand.u32 2147483647, %v4016
        %vm4540 = vcmp.le.f32.partialorder %v4539, 0.7853982
        %vm4541 = vcmp.lt.s32.totalorder %v4016, 0
        %v4542 = vand.u32 %v4016, 2139095040
        %v4543 = vshrl.u32 %v4542, 23
        %v4544 = vsub.s32 %v4543, 127
        %v4545 = vand.u32 2147483647, %v4016
        %v4546 = vand.u32 %v4545, 8388607
        %v4547 = vor.u32 %v4546, 8388608
        %v4548 = vsub.s32 0, %v4547
        %v4549 = vadd.s32 %v4544, 1
        %vm4550 = vcmp.gt.s32.totalorder %v4549, 0
        %v4551 = vsel %vm4550, %v4549, 0
        %v4552 = vshrl.u32 %v4551, 5
        %v4553 = vand.u32 %v4551, 31
        %v4554 = vsub.s32 32, %v4553
        %v4555 = vshrl.u32 683565275, %v4554
        %v4556 = vshll.u32 683565275, %v4553
        %v4557 = vshrl.u32 2475754826, %v4554
        %v4558 = vor.u32 %v4556, %v4557
        %v4559 = vshll.u32 2475754826, %v4553
        %v4560 = vshrl.u32 2131351028, %v4554
        %v4561 = vor.u32 %v4559, %v4560
        %v4562 = vshll.u32 2131351028, %v4553
        %v4563 = vshrl.u32 2102212464, %v4554
        %v4564 = vor.u32 %v4562, %v4563
        %v4565 = vshll.u32 2102212464, %v4553
        %v4566 = vshrl.u32 920167782, %v4554
        %v4567 = vor.u32 %v4565, %v4566
        %v4568 = vshll.u32 920167782, %v4553
        %v4569 = vshrl.u32 1326507024, %v4554
        %v4570 = vor.u32 %v4568, %v4569
        %vm4571 = vcmp.lt.s32.totalorder %v4552, 1
        %vm4572 = vcmp.lt.s32.totalorder %v4552, 2
        %vm4573 = vcmp.lt.s32.totalorder %v4552, 3
        %vm4574 = vcmp.lt.s32.totalorder %v4552, 4
        %v4575 = vsel %vm4571, %v4555, %v4558
        %v4576 = vsel %vm4574, %v4564, 2102212464
        %v4577 = vsel %vm4573, %v4561, %v4576
        %v4578 = vsel %vm4572, %v4575, %v4577
        %v4579 = vsel %vm4571, %v4558, %v4561
        %v4580 = vsel %vm4574, %v4567, 920167782
        %v4581 = vsel %vm4573, %v4564, %v4580
        %v4582 = vsel %vm4572, %v4579, %v4581
        %v4583 = vsel %vm4571, %v4561, %v4564
        %v4584 = vsel %vm4574, %v4570, 1326507024
        %v4585 = vsel %vm4573, %v4567, %v4584
        %v4586 = vsel %vm4572, %v4583, %v4585
        %v4587 = vshll.u32 %v4547, 8
        %v4588 = vmul.u32.u64.compose %v4587, %v4586
        %v4589 = vextract.low.u32 %v4588
        %v4590 = vextract.high.u32 %v4588
        %v4591 = vmul.u32.u64.compose %v4587, %v4582
        %v4592 = vextract.low.u32 %v4591
        %v4593 = vextract.high.u32 %v4591
        %v4594 = vmul.u32 %v4587, %v4578
        %v4595 = vadd.s32 %v4590, %v4592
        %vm4596 = vc.u32 %v4590, %v4592
        %v4597 = vadd.s32 %v4593, 1
        %v4598 = vsel %vm4596, %v4597, %v4593
        %v4599 = vadd.s32 %v4594, %v4598
        %v4600 = vadd.s32 %v4599, 536870912
        %v4601 = vshrl.u32 %v4600, 30
        %v4602 = vshll.u32 %v4601, 30
        %v4603 = vsub.s32 %v4599, %v4602
        %vm4604 = vcmp.lt.s32.totalorder %v4603, 0
        %v4605 = vsub.s32 0, %v4603
        %v4606 = vsel %vm4604, %v4605, %v4603
        %v4607 = vclz %v4606
        %v4608 = vsub.s32 %v4607, 2
        %vm4609 = vcmp.gt.s32.totalorder 0, %v4608
        %v4610 = vsel %vm4609, 0, %v4608
        %v4611 = vsub.s32 32, %v4610
        %v4612 = vshll.u32 %v4603, %v4610
        %v4613 = vshrl.u32 %v4595, %v4611
        %v4614 = vor.u32 %v4612, %v4613
        %v4615 = vsub.s32 4294967266, %v4610
        %v4616 = vadd.s32 %v4615, 127
        %v4617 = vshll.u32 %v4616, 23
        %v4618 = vor.u32 4788187, %v4617
        %v4619 = vand.u32 2147483647, %v4618
        %v4621 = vcvt.s32.f32 %v4614
        %v4622 = vmul.f32 %v4621, %v4619
        %v4623 = vxor.u32 %v4622, 2147483648
        %v4624 = vsel %vm4541, %v4623, %v4622
        %v4625 = vsub.s32 4, %v4601
        %v4626 = vsel %vm4541, %v4625, %v4601
        %v4627 = vsel %vm4540, %v4016, %v4624
        %v4628 = vsel %vm4540, 0, %v4626
        %v4629 = vcosq.f32.pop %v4627
        %v4630 = vsinq.f32.pop %v4627
        %vm4631 = vweird.f32 %v4016
        %v4632 = vadd.s32 %v4628, 3
        %v4633 = vand.u32 %v4632, 3
        %vm4634 = vcmp.lt.s32.totalorder %v4633, 2
        %vm4635 = vcmp.eq.s32.totalorder %v4633, 0
        %v4636 = vxor.u32 %v4630, 2147483648
        %v4637 = vsel %vm4635, %v4629, %v4636
        %vm4638 = vcmp.eq.s32.totalorder %v4633, 2
        %v4639 = vxor.u32 %v4629, 2147483648
        %v4640 = vsel %vm4638, %v4639, %v4630
        %v4641 = vsel %vm4634, %v4637, %v4640
        %v4642 = vsel %vm4631, nan, %v4641
        %v4643 = vand.u32 2147483647, %v4017
        %vm4644 = vcmp.le.f32.partialorder %v4643, 0.7853982
        %vm4645 = vcmp.lt.s32.totalorder %v4017, 0
        %v4646 = vand.u32 %v4017, 2139095040
        %v4647 = vshrl.u32 %v4646, 23
        %v4648 = vsub.s32 %v4647, 127
        %v4649 = vand.u32 2147483647, %v4017
        %v4650 = vand.u32 %v4649, 8388607
        %v4651 = vor.u32 %v4650, 8388608
        %v4652 = vsub.s32 0, %v4651
        %v4653 = vadd.s32 %v4648, 1
        %vm4654 = vcmp.gt.s32.totalorder %v4653, 0
        %v4655 = vsel %vm4654, %v4653, 0
        %v4656 = vshrl.u32 %v4655, 5
        %v4657 = vand.u32 %v4655, 31
        %v4658 = vsub.s32 32, %v4657
        %v4659 = vshrl.u32 683565275, %v4658
        %v4660 = vshll.u32 683565275, %v4657
        %v4661 = vshrl.u32 2475754826, %v4658
        %v4662 = vor.u32 %v4660, %v4661
        %v4663 = vshll.u32 2475754826, %v4657
        %v4664 = vshrl.u32 2131351028, %v4658
        %v4665 = vor.u32 %v4663, %v4664
        %v4666 = vshll.u32 2131351028, %v4657
        %v4667 = vshrl.u32 2102212464, %v4658
        %v4668 = vor.u32 %v4666, %v4667
        %v4669 = vshll.u32 2102212464, %v4657
        %v4670 = vshrl.u32 920167782, %v4658
        %v4671 = vor.u32 %v4669, %v4670
        %v4672 = vshll.u32 920167782, %v4657
        %v4673 = vshrl.u32 1326507024, %v4658
        %v4674 = vor.u32 %v4672, %v4673
        %vm4675 = vcmp.lt.s32.totalorder %v4656, 1
        %vm4676 = vcmp.lt.s32.totalorder %v4656, 2
        %vm4677 = vcmp.lt.s32.totalorder %v4656, 3
        %vm4678 = vcmp.lt.s32.totalorder %v4656, 4
        %v4679 = vsel %vm4675, %v4659, %v4662
        %v4680 = vsel %vm4678, %v4668, 2102212464
        %v4681 = vsel %vm4677, %v4665, %v4680
        %v4682 = vsel %vm4676, %v4679, %v4681
        %v4683 = vsel %vm4675, %v4662, %v4665
        %v4684 = vsel %vm4678, %v4671, 920167782
        %v4685 = vsel %vm4677, %v4668, %v4684
        %v4686 = vsel %vm4676, %v4683, %v4685
        %v4687 = vsel %vm4675, %v4665, %v4668
        %v4688 = vsel %vm4678, %v4674, 1326507024
        %v4689 = vsel %vm4677, %v4671, %v4688
        %v4690 = vsel %vm4676, %v4687, %v4689
        %v4691 = vshll.u32 %v4651, 8
        %v4692 = vmul.u32.u64.compose %v4691, %v4690
        %v4693 = vextract.low.u32 %v4692
        %v4694 = vextract.high.u32 %v4692
        %v4695 = vmul.u32.u64.compose %v4691, %v4686
        %v4696 = vextract.low.u32 %v4695
        %v4697 = vextract.high.u32 %v4695
        %v4698 = vmul.u32 %v4691, %v4682
        %v4699 = vadd.s32 %v4694, %v4696
        %vm4700 = vc.u32 %v4694, %v4696
        %v4701 = vadd.s32 %v4697, 1
        %v4702 = vsel %vm4700, %v4701, %v4697
        %v4703 = vadd.s32 %v4698, %v4702
        %v4704 = vadd.s32 %v4703, 536870912
        %v4705 = vshrl.u32 %v4704, 30
        %v4706 = vshll.u32 %v4705, 30
        %v4707 = vsub.s32 %v4703, %v4706
        %vm4708 = vcmp.lt.s32.totalorder %v4707, 0
        %v4709 = vsub.s32 0, %v4707
        %v4710 = vsel %vm4708, %v4709, %v4707
        %v4711 = vclz %v4710
        %v4712 = vsub.s32 %v4711, 2
        %vm4713 = vcmp.gt.s32.totalorder 0, %v4712
        %v4714 = vsel %vm4713, 0, %v4712
        %v4715 = vsub.s32 32, %v4714
        %v4716 = vshll.u32 %v4707, %v4714
        %v4717 = vshrl.u32 %v4699, %v4715
        %v4718 = vor.u32 %v4716, %v4717
        %v4719 = vsub.s32 4294967266, %v4714
        %v4720 = vadd.s32 %v4719, 127
        %v4721 = vshll.u32 %v4720, 23
        %v4722 = vor.u32 4788187, %v4721
        %v4723 = vand.u32 2147483647, %v4722
        %v4725 = vcvt.s32.f32 %v4718
        %v4726 = vmul.f32 %v4725, %v4723
        %v4727 = vxor.u32 %v4726, 2147483648
        %v4728 = vsel %vm4645, %v4727, %v4726
        %v4729 = vsub.s32 4, %v4705
        %v4730 = vsel %vm4645, %v4729, %v4705
        %v4731 = vsel %vm4644, %v4017, %v4728
        %v4732 = vsel %vm4644, 0, %v4730
        %v4733 = vcosq.f32.pop %v4731
        %v4734 = vsinq.f32.pop %v4731
        %vm4735 = vweird.f32 %v4017
        %v4736 = vadd.s32 %v4732, 3
        %v4737 = vand.u32 %v4736, 3
        %vm4738 = vcmp.lt.s32.totalorder %v4737, 2
        %vm4739 = vcmp.eq.s32.totalorder %v4737, 0
        %v4740 = vxor.u32 %v4734, 2147483648
        %v4741 = vsel %vm4739, %v4733, %v4740
        %vm4742 = vcmp.eq.s32.totalorder %v4737, 2
        %v4743 = vxor.u32 %v4733, 2147483648
        %v4744 = vsel %vm4742, %v4743, %v4734
        %v4745 = vsel %vm4738, %v4741, %v4744
        %v4746 = vsel %vm4735, nan, %v4745
        %v4747 = vand.u32 2147483647, %v4018
        %vm4748 = vcmp.le.f32.partialorder %v4747, 0.7853982
        %vm4749 = vcmp.lt.s32.totalorder %v4018, 0
        %v4750 = vand.u32 %v4018, 2139095040
        %v4751 = vshrl.u32 %v4750, 23
        %v4752 = vsub.s32 %v4751, 127
        %v4753 = vand.u32 2147483647, %v4018
        %v4754 = vand.u32 %v4753, 8388607
        %v4755 = vor.u32 %v4754, 8388608
        %v4756 = vsub.s32 0, %v4755
        %v4757 = vadd.s32 %v4752, 1
        %vm4758 = vcmp.gt.s32.totalorder %v4757, 0
        %v4759 = vsel %vm4758, %v4757, 0
        %v4760 = vshrl.u32 %v4759, 5
        %v4761 = vand.u32 %v4759, 31
        %v4762 = vsub.s32 32, %v4761
        %v4763 = vshrl.u32 683565275, %v4762
        %v4764 = vshll.u32 683565275, %v4761
        %v4765 = vshrl.u32 2475754826, %v4762
        %v4766 = vor.u32 %v4764, %v4765
        %v4767 = vshll.u32 2475754826, %v4761
        %v4768 = vshrl.u32 2131351028, %v4762
        %v4769 = vor.u32 %v4767, %v4768
        %v4770 = vshll.u32 2131351028, %v4761
        %v4771 = vshrl.u32 2102212464, %v4762
        %v4772 = vor.u32 %v4770, %v4771
        %v4773 = vshll.u32 2102212464, %v4761
        %v4774 = vshrl.u32 920167782, %v4762
        %v4775 = vor.u32 %v4773, %v4774
        %v4776 = vshll.u32 920167782, %v4761
        %v4777 = vshrl.u32 1326507024, %v4762
        %v4778 = vor.u32 %v4776, %v4777
        %vm4779 = vcmp.lt.s32.totalorder %v4760, 1
        %vm4780 = vcmp.lt.s32.totalorder %v4760, 2
        %vm4781 = vcmp.lt.s32.totalorder %v4760, 3
        %vm4782 = vcmp.lt.s32.totalorder %v4760, 4
        %v4783 = vsel %vm4779, %v4763, %v4766
        %v4784 = vsel %vm4782, %v4772, 2102212464
        %v4785 = vsel %vm4781, %v4769, %v4784
        %v4786 = vsel %vm4780, %v4783, %v4785
        %v4787 = vsel %vm4779, %v4766, %v4769
        %v4788 = vsel %vm4782, %v4775, 920167782
        %v4789 = vsel %vm4781, %v4772, %v4788
        %v4790 = vsel %vm4780, %v4787, %v4789
        %v4791 = vsel %vm4779, %v4769, %v4772
        %v4792 = vsel %vm4782, %v4778, 1326507024
        %v4793 = vsel %vm4781, %v4775, %v4792
        %v4794 = vsel %vm4780, %v4791, %v4793
        %v4795 = vshll.u32 %v4755, 8
        %v4796 = vmul.u32.u64.compose %v4795, %v4794
        %v4797 = vextract.low.u32 %v4796
        %v4798 = vextract.high.u32 %v4796
        %v4799 = vmul.u32.u64.compose %v4795, %v4790
        %v4800 = vextract.low.u32 %v4799
        %v4801 = vextract.high.u32 %v4799
        %v4802 = vmul.u32 %v4795, %v4786
        %v4803 = vadd.s32 %v4798, %v4800
        %vm4804 = vc.u32 %v4798, %v4800
        %v4805 = vadd.s32 %v4801, 1
        %v4806 = vsel %vm4804, %v4805, %v4801
        %v4807 = vadd.s32 %v4802, %v4806
        %v4808 = vadd.s32 %v4807, 536870912
        %v4809 = vshrl.u32 %v4808, 30
        %v4810 = vshll.u32 %v4809, 30
        %v4811 = vsub.s32 %v4807, %v4810
        %vm4812 = vcmp.lt.s32.totalorder %v4811, 0
        %v4813 = vsub.s32 0, %v4811
        %v4814 = vsel %vm4812, %v4813, %v4811
        %v4815 = vclz %v4814
        %v4816 = vsub.s32 %v4815, 2
        %vm4817 = vcmp.gt.s32.totalorder 0, %v4816
        %v4818 = vsel %vm4817, 0, %v4816
        %v4819 = vsub.s32 32, %v4818
        %v4820 = vshll.u32 %v4811, %v4818
        %v4821 = vshrl.u32 %v4803, %v4819
        %v4822 = vor.u32 %v4820, %v4821
        %v4823 = vsub.s32 4294967266, %v4818
        %v4824 = vadd.s32 %v4823, 127
        %v4825 = vshll.u32 %v4824, 23
        %v4826 = vor.u32 4788187, %v4825
        %v4827 = vand.u32 2147483647, %v4826
        %v4829 = vcvt.s32.f32 %v4822
        %v4830 = vmul.f32 %v4829, %v4827
        %v4831 = vxor.u32 %v4830, 2147483648
        %v4832 = vsel %vm4749, %v4831, %v4830
        %v4833 = vsub.s32 4, %v4809
        %v4834 = vsel %vm4749, %v4833, %v4809
        %v4835 = vsel %vm4748, %v4018, %v4832
        %v4836 = vsel %vm4748, 0, %v4834
        %v4837 = vcosq.f32.pop %v4835
        %v4838 = vsinq.f32.pop %v4835
        %vm4839 = vweird.f32 %v4018
        %v4840 = vadd.s32 %v4836, 3
        %v4841 = vand.u32 %v4840, 3
        %vm4842 = vcmp.lt.s32.totalorder %v4841, 2
        %vm4843 = vcmp.eq.s32.totalorder %v4841, 0
        %v4844 = vxor.u32 %v4838, 2147483648
        %v4845 = vsel %vm4843, %v4837, %v4844
        %vm4846 = vcmp.eq.s32.totalorder %v4841, 2
        %v4847 = vxor.u32 %v4837, 2147483648
        %v4848 = vsel %vm4846, %v4847, %v4838
        %v4849 = vsel %vm4842, %v4845, %v4848
        %v4850 = vsel %vm4839, nan, %v4849
        %s4851 = scalar_lea.vmem [#allocation2], 20
        %v4852 = vld [vmem:[%s4851] sm:$0x1]
        %v4853 = vld [vmem:[%s4851 + $0x1] sm:$0x1]
        %v4854 = vld [vmem:[%s4851 + $0x2] sm:$0x1]
        %v4855 = vld [vmem:[%s4851 + $0x3] sm:$0x1]
        %4856 = vrot.lane.b32.xlu0 %v4122, 1
        %v4857 = vpop.permute.xlu0 %4856
        %4858 = vrot.lane.b32.xlu0 %v4226, 1
        %v4859 = vpop.permute.xlu0 %4858
        %4860 = vrot.lane.b32.xlu0 %v4330, 1
        %v4861 = vpop.permute.xlu0 %4860
        %4862 = vrot.lane.b32.xlu0 %v4434, 1
        %v4863 = vpop.permute.xlu0 %4862
        %4864 = vrot.lane.b32.xlu0 %v4538, 1
        %v4865 = vpop.permute.xlu0 %4864
        %4866 = vrot.lane.b32.xlu0 %v4642, 1
        %v4867 = vpop.permute.xlu0 %4866
        %4868 = vrot.lane.b32.xlu0 %v4746, 1
        %v4869 = vpop.permute.xlu0 %4868
        %4870 = vrot.lane.b32.xlu0 %v4850, 1
        %v4871 = vpop.permute.xlu0 %4870
        %4872 = vrot.lane.b32.xlu0 %v4122, 127
        %v4873 = vpop.permute.xlu0 %4872
        %4874 = vrot.lane.b32.xlu0 %v4226, 127
        %v4875 = vpop.permute.xlu0 %4874
        %4876 = vrot.lane.b32.xlu0 %v4330, 127
        %v4877 = vpop.permute.xlu0 %4876
        %4878 = vrot.lane.b32.xlu0 %v4434, 127
        %v4879 = vpop.permute.xlu0 %4878
        %4880 = vrot.lane.b32.xlu0 %v4538, 127
        %v4881 = vpop.permute.xlu0 %4880
        %4882 = vrot.lane.b32.xlu0 %v4642, 127
        %v4883 = vpop.permute.xlu0 %4882
        %4884 = vrot.lane.b32.xlu0 %v4746, 127
        %v4885 = vpop.permute.xlu0 %4884
        %4886 = vrot.lane.b32.xlu0 %v4850, 127
        %v4887 = vpop.permute.xlu0 %4886
        %v4888 = vlaneseq
        %v4889 = vshrl.u32 %v4888, 7
        %v4890 = vsub.s32 0, %v4889
        %v4891 = vrot.slane %v4852, %v4890
        %v4892 = vmul.f32 %v4891, %v4857
        %v4893 = vmul.f32 %v4891, %v4859
        %v4894 = vmul.f32 %v4891, %v4861
        %v4895 = vmul.f32 %v4891, %v4863
        %v4896 = vmul.f32 %v4891, %v4865
        %v4897 = vmul.f32 %v4891, %v4867
        %v4898 = vmul.f32 %v4891, %v4869
        %v4899 = vmul.f32 %v4891, %v4871
        %v4900 = vlaneseq
        %v4901 = vshrl.u32 %v4900, 7
        %v4902 = vsub.s32 0, %v4901
        %v4903 = vrot.slane %v4853, %v4902
        %v4904 = vmul.f32 %v4903, %v4122
        %v4905 = vmul.f32 %v4903, %v4226
        %v4906 = vmul.f32 %v4903, %v4330
        %v4907 = vmul.f32 %v4903, %v4434
        %v4908 = vmul.f32 %v4903, %v4538
        %v4909 = vmul.f32 %v4903, %v4642
        %v4910 = vmul.f32 %v4903, %v4746
        %v4911 = vmul.f32 %v4903, %v4850
        %v4912 = vadd.f32 %v4892, %v4904
        %v4913 = vadd.f32 %v4893, %v4905
        %v4914 = vadd.f32 %v4894, %v4906
        %v4915 = vadd.f32 %v4895, %v4907
        %v4916 = vadd.f32 %v4896, %v4908
        %v4917 = vadd.f32 %v4897, %v4909
        %v4918 = vadd.f32 %v4898, %v4910
        %v4919 = vadd.f32 %v4899, %v4911
        %v4920 = vlaneseq
        %v4921 = vshrl.u32 %v4920, 7
        %v4922 = vsub.s32 0, %v4921
        %v4923 = vrot.slane %v4854, %v4922
        %v4924 = vmul.f32 %v4923, %v4873
        %v4925 = vmul.f32 %v4923, %v4875
        %v4926 = vmul.f32 %v4923, %v4877
        %v4927 = vmul.f32 %v4923, %v4879
        %v4928 = vmul.f32 %v4923, %v4881
        %v4929 = vmul.f32 %v4923, %v4883
        %v4930 = vmul.f32 %v4923, %v4885
        %v4931 = vmul.f32 %v4923, %v4887
        %v4932 = vadd.f32 %v4912, %v4924
        %v4933 = vadd.f32 %v4913, %v4925
        %v4934 = vadd.f32 %v4914, %v4926
        %v4935 = vadd.f32 %v4915, %v4927
        %v4936 = vadd.f32 %v4916, %v4928
        %v4937 = vadd.f32 %v4917, %v4929
        %v4938 = vadd.f32 %v4918, %v4930
        %v4939 = vadd.f32 %v4919, %v4931
        %v4940 = vlaneseq
        %v4941 = vshrl.u32 %v4940, 7
        %v4942 = vsub.s32 0, %v4941
        %v4943 = vrot.slane %v4855, %v4942
        %v4944 = vadd.f32 %v4932, %v4943
        %v4945 = vadd.f32 %v4933, %v4943
        %v4946 = vadd.f32 %v4934, %v4943
        %v4947 = vadd.f32 %v4935, %v4943
        %v4948 = vadd.f32 %v4936, %v4943
        %v4949 = vadd.f32 %v4937, %v4943
        %v4950 = vadd.f32 %v4938, %v4943
        %v4951 = vadd.f32 %v4939, %v4943
        %v4952 = vand.u32 2147483647, %v4944
        %vm4953 = vcmp.le.f32.partialorder %v4952, 0.7853982
        %vm4954 = vcmp.lt.s32.totalorder %v4944, 0
        %v4955 = vand.u32 %v4944, 2139095040
        %v4956 = vshrl.u32 %v4955, 23
        %v4957 = vsub.s32 %v4956, 127
        %v4958 = vand.u32 2147483647, %v4944
        %v4959 = vand.u32 %v4958, 8388607
        %v4960 = vor.u32 %v4959, 8388608
        %v4961 = vsub.s32 0, %v4960
        %v4962 = vadd.s32 %v4957, 1
        %vm4963 = vcmp.gt.s32.totalorder %v4962, 0
        %v4964 = vsel %vm4963, %v4962, 0
        %v4965 = vshrl.u32 %v4964, 5
        %v4966 = vand.u32 %v4964, 31
        %v4967 = vsub.s32 32, %v4966
        %v4968 = vshrl.u32 683565275, %v4967
        %v4969 = vshll.u32 683565275, %v4966
        %v4970 = vshrl.u32 2475754826, %v4967
        %v4971 = vor.u32 %v4969, %v4970
        %v4972 = vshll.u32 2475754826, %v4966
        %v4973 = vshrl.u32 2131351028, %v4967
        %v4974 = vor.u32 %v4972, %v4973
        %v4975 = vshll.u32 2131351028, %v4966
        %v4976 = vshrl.u32 2102212464, %v4967
        %v4977 = vor.u32 %v4975, %v4976
        %v4978 = vshll.u32 2102212464, %v4966
        %v4979 = vshrl.u32 920167782, %v4967
        %v4980 = vor.u32 %v4978, %v4979
        %v4981 = vshll.u32 920167782, %v4966
        %v4982 = vshrl.u32 1326507024, %v4967
        %v4983 = vor.u32 %v4981, %v4982
        %vm4984 = vcmp.lt.s32.totalorder %v4965, 1
        %vm4985 = vcmp.lt.s32.totalorder %v4965, 2
        %vm4986 = vcmp.lt.s32.totalorder %v4965, 3
        %vm4987 = vcmp.lt.s32.totalorder %v4965, 4
        %v4988 = vsel %vm4984, %v4968, %v4971
        %v4989 = vsel %vm4987, %v4977, 2102212464
        %v4990 = vsel %vm4986, %v4974, %v4989
        %v4991 = vsel %vm4985, %v4988, %v4990
        %v4992 = vsel %vm4984, %v4971, %v4974
        %v4993 = vsel %vm4987, %v4980, 920167782
        %v4994 = vsel %vm4986, %v4977, %v4993
        %v4995 = vsel %vm4985, %v4992, %v4994
        %v4996 = vsel %vm4984, %v4974, %v4977
        %v4997 = vsel %vm4987, %v4983, 1326507024
        %v4998 = vsel %vm4986, %v4980, %v4997
        %v4999 = vsel %vm4985, %v4996, %v4998
        %v5000 = vshll.u32 %v4960, 8
        %v5001 = vmul.u32.u64.compose %v5000, %v4999
        %v5002 = vextract.low.u32 %v5001
        %v5003 = vextract.high.u32 %v5001
        %v5004 = vmul.u32.u64.compose %v5000, %v4995
        %v5005 = vextract.low.u32 %v5004
        %v5006 = vextract.high.u32 %v5004
        %v5007 = vmul.u32 %v5000, %v4991
        %v5008 = vadd.s32 %v5003, %v5005
        %vm5009 = vc.u32 %v5003, %v5005
        %v5010 = vadd.s32 %v5006, 1
        %v5011 = vsel %vm5009, %v5010, %v5006
        %v5012 = vadd.s32 %v5007, %v5011
        %v5013 = vadd.s32 %v5012, 536870912
        %v5014 = vshrl.u32 %v5013, 30
        %v5015 = vshll.u32 %v5014, 30
        %v5016 = vsub.s32 %v5012, %v5015
        %vm5017 = vcmp.lt.s32.totalorder %v5016, 0
        %v5018 = vsub.s32 0, %v5016
        %v5019 = vsel %vm5017, %v5018, %v5016
        %v5020 = vclz %v5019
        %v5021 = vsub.s32 %v5020, 2
        %vm5022 = vcmp.gt.s32.totalorder 0, %v5021
        %v5023 = vsel %vm5022, 0, %v5021
        %v5024 = vsub.s32 32, %v5023
        %v5025 = vshll.u32 %v5016, %v5023
        %v5026 = vshrl.u32 %v5008, %v5024
        %v5027 = vor.u32 %v5025, %v5026
        %v5028 = vsub.s32 4294967266, %v5023
        %v5029 = vadd.s32 %v5028, 127
        %v5030 = vshll.u32 %v5029, 23
        %v5031 = vor.u32 4788187, %v5030
        %v5032 = vand.u32 2147483647, %v5031
        %v5034 = vcvt.s32.f32 %v5027
        %v5035 = vmul.f32 %v5034, %v5032
        %v5036 = vxor.u32 %v5035, 2147483648
        %v5037 = vsel %vm4954, %v5036, %v5035
        %v5038 = vsub.s32 4, %v5014
        %v5039 = vsel %vm4954, %v5038, %v5014
        %v5040 = vsel %vm4953, %v4944, %v5037
        %v5041 = vsel %vm4953, 0, %v5039
        %v5042 = vcosq.f32.pop %v5040
        %v5043 = vsinq.f32.pop %v5040
        %vm5044 = vweird.f32 %v4944
        %v5045 = vadd.s32 %v5041, 3
        %v5046 = vand.u32 %v5045, 3
        %vm5047 = vcmp.lt.s32.totalorder %v5046, 2
        %vm5048 = vcmp.eq.s32.totalorder %v5046, 0
        %v5049 = vxor.u32 %v5043, 2147483648
        %v5050 = vsel %vm5048, %v5042, %v5049
        %vm5051 = vcmp.eq.s32.totalorder %v5046, 2
        %v5052 = vxor.u32 %v5042, 2147483648
        %v5053 = vsel %vm5051, %v5052, %v5043
        %v5054 = vsel %vm5047, %v5050, %v5053
        %v5055 = vsel %vm5044, nan, %v5054
        %v5056 = vand.u32 2147483647, %v4945
        %vm5057 = vcmp.le.f32.partialorder %v5056, 0.7853982
        %vm5058 = vcmp.lt.s32.totalorder %v4945, 0
        %v5059 = vand.u32 %v4945, 2139095040
        %v5060 = vshrl.u32 %v5059, 23
        %v5061 = vsub.s32 %v5060, 127
        %v5062 = vand.u32 2147483647, %v4945
        %v5063 = vand.u32 %v5062, 8388607
        %v5064 = vor.u32 %v5063, 8388608
        %v5065 = vsub.s32 0, %v5064
        %v5066 = vadd.s32 %v5061, 1
        %vm5067 = vcmp.gt.s32.totalorder %v5066, 0
        %v5068 = vsel %vm5067, %v5066, 0
        %v5069 = vshrl.u32 %v5068, 5
        %v5070 = vand.u32 %v5068, 31
        %v5071 = vsub.s32 32, %v5070
        %v5072 = vshrl.u32 683565275, %v5071
        %v5073 = vshll.u32 683565275, %v5070
        %v5074 = vshrl.u32 2475754826, %v5071
        %v5075 = vor.u32 %v5073, %v5074
        %v5076 = vshll.u32 2475754826, %v5070
        %v5077 = vshrl.u32 2131351028, %v5071
        %v5078 = vor.u32 %v5076, %v5077
        %v5079 = vshll.u32 2131351028, %v5070
        %v5080 = vshrl.u32 2102212464, %v5071
        %v5081 = vor.u32 %v5079, %v5080
        %v5082 = vshll.u32 2102212464, %v5070
        %v5083 = vshrl.u32 920167782, %v5071
        %v5084 = vor.u32 %v5082, %v5083
        %v5085 = vshll.u32 920167782, %v5070
        %v5086 = vshrl.u32 1326507024, %v5071
        %v5087 = vor.u32 %v5085, %v5086
        %vm5088 = vcmp.lt.s32.totalorder %v5069, 1
        %vm5089 = vcmp.lt.s32.totalorder %v5069, 2
        %vm5090 = vcmp.lt.s32.totalorder %v5069, 3
        %vm5091 = vcmp.lt.s32.totalorder %v5069, 4
        %v5092 = vsel %vm5088, %v5072, %v5075
        %v5093 = vsel %vm5091, %v5081, 2102212464
        %v5094 = vsel %vm5090, %v5078, %v5093
        %v5095 = vsel %vm5089, %v5092, %v5094
        %v5096 = vsel %vm5088, %v5075, %v5078
        %v5097 = vsel %vm5091, %v5084, 920167782
        %v5098 = vsel %vm5090, %v5081, %v5097
        %v5099 = vsel %vm5089, %v5096, %v5098
        %v5100 = vsel %vm5088, %v5078, %v5081
        %v5101 = vsel %vm5091, %v5087, 1326507024
        %v5102 = vsel %vm5090, %v5084, %v5101
        %v5103 = vsel %vm5089, %v5100, %v5102
        %v5104 = vshll.u32 %v5064, 8
        %v5105 = vmul.u32.u64.compose %v5104, %v5103
        %v5106 = vextract.low.u32 %v5105
        %v5107 = vextract.high.u32 %v5105
        %v5108 = vmul.u32.u64.compose %v5104, %v5099
        %v5109 = vextract.low.u32 %v5108
        %v5110 = vextract.high.u32 %v5108
        %v5111 = vmul.u32 %v5104, %v5095
        %v5112 = vadd.s32 %v5107, %v5109
        %vm5113 = vc.u32 %v5107, %v5109
        %v5114 = vadd.s32 %v5110, 1
        %v5115 = vsel %vm5113, %v5114, %v5110
        %v5116 = vadd.s32 %v5111, %v5115
        %v5117 = vadd.s32 %v5116, 536870912
        %v5118 = vshrl.u32 %v5117, 30
        %v5119 = vshll.u32 %v5118, 30
        %v5120 = vsub.s32 %v5116, %v5119
        %vm5121 = vcmp.lt.s32.totalorder %v5120, 0
        %v5122 = vsub.s32 0, %v5120
        %v5123 = vsel %vm5121, %v5122, %v5120
        %v5124 = vclz %v5123
        %v5125 = vsub.s32 %v5124, 2
        %vm5126 = vcmp.gt.s32.totalorder 0, %v5125
        %v5127 = vsel %vm5126, 0, %v5125
        %v5128 = vsub.s32 32, %v5127
        %v5129 = vshll.u32 %v5120, %v5127
        %v5130 = vshrl.u32 %v5112, %v5128
        %v5131 = vor.u32 %v5129, %v5130
        %v5132 = vsub.s32 4294967266, %v5127
        %v5133 = vadd.s32 %v5132, 127
        %v5134 = vshll.u32 %v5133, 23
        %v5135 = vor.u32 4788187, %v5134
        %v5136 = vand.u32 2147483647, %v5135
        %v5138 = vcvt.s32.f32 %v5131
        %v5139 = vmul.f32 %v5138, %v5136
        %v5140 = vxor.u32 %v5139, 2147483648
        %v5141 = vsel %vm5058, %v5140, %v5139
        %v5142 = vsub.s32 4, %v5118
        %v5143 = vsel %vm5058, %v5142, %v5118
        %v5144 = vsel %vm5057, %v4945, %v5141
        %v5145 = vsel %vm5057, 0, %v5143
        %v5146 = vcosq.f32.pop %v5144
        %v5147 = vsinq.f32.pop %v5144
        %vm5148 = vweird.f32 %v4945
        %v5149 = vadd.s32 %v5145, 3
        %v5150 = vand.u32 %v5149, 3
        %vm5151 = vcmp.lt.s32.totalorder %v5150, 2
        %vm5152 = vcmp.eq.s32.totalorder %v5150, 0
        %v5153 = vxor.u32 %v5147, 2147483648
        %v5154 = vsel %vm5152, %v5146, %v5153
        %vm5155 = vcmp.eq.s32.totalorder %v5150, 2
        %v5156 = vxor.u32 %v5146, 2147483648
        %v5157 = vsel %vm5155, %v5156, %v5147
        %v5158 = vsel %vm5151, %v5154, %v5157
        %v5159 = vsel %vm5148, nan, %v5158
        %v5160 = vand.u32 2147483647, %v4946
        %vm5161 = vcmp.le.f32.partialorder %v5160, 0.7853982
        %vm5162 = vcmp.lt.s32.totalorder %v4946, 0
        %v5163 = vand.u32 %v4946, 2139095040
        %v5164 = vshrl.u32 %v5163, 23
        %v5165 = vsub.s32 %v5164, 127
        %v5166 = vand.u32 2147483647, %v4946
        %v5167 = vand.u32 %v5166, 8388607
        %v5168 = vor.u32 %v5167, 8388608
        %v5169 = vsub.s32 0, %v5168
        %v5170 = vadd.s32 %v5165, 1
        %vm5171 = vcmp.gt.s32.totalorder %v5170, 0
        %v5172 = vsel %vm5171, %v5170, 0
        %v5173 = vshrl.u32 %v5172, 5
        %v5174 = vand.u32 %v5172, 31
        %v5175 = vsub.s32 32, %v5174
        %v5176 = vshrl.u32 683565275, %v5175
        %v5177 = vshll.u32 683565275, %v5174
        %v5178 = vshrl.u32 2475754826, %v5175
        %v5179 = vor.u32 %v5177, %v5178
        %v5180 = vshll.u32 2475754826, %v5174
        %v5181 = vshrl.u32 2131351028, %v5175
        %v5182 = vor.u32 %v5180, %v5181
        %v5183 = vshll.u32 2131351028, %v5174
        %v5184 = vshrl.u32 2102212464, %v5175
        %v5185 = vor.u32 %v5183, %v5184
        %v5186 = vshll.u32 2102212464, %v5174
        %v5187 = vshrl.u32 920167782, %v5175
        %v5188 = vor.u32 %v5186, %v5187
        %v5189 = vshll.u32 920167782, %v5174
        %v5190 = vshrl.u32 1326507024, %v5175
        %v5191 = vor.u32 %v5189, %v5190
        %vm5192 = vcmp.lt.s32.totalorder %v5173, 1
        %vm5193 = vcmp.lt.s32.totalorder %v5173, 2
        %vm5194 = vcmp.lt.s32.totalorder %v5173, 3
        %vm5195 = vcmp.lt.s32.totalorder %v5173, 4
        %v5196 = vsel %vm5192, %v5176, %v5179
        %v5197 = vsel %vm5195, %v5185, 2102212464
        %v5198 = vsel %vm5194, %v5182, %v5197
        %v5199 = vsel %vm5193, %v5196, %v5198
        %v5200 = vsel %vm5192, %v5179, %v5182
        %v5201 = vsel %vm5195, %v5188, 920167782
        %v5202 = vsel %vm5194, %v5185, %v5201
        %v5203 = vsel %vm5193, %v5200, %v5202
        %v5204 = vsel %vm5192, %v5182, %v5185
        %v5205 = vsel %vm5195, %v5191, 1326507024
        %v5206 = vsel %vm5194, %v5188, %v5205
        %v5207 = vsel %vm5193, %v5204, %v5206
        %v5208 = vshll.u32 %v5168, 8
        %v5209 = vmul.u32.u64.compose %v5208, %v5207
        %v5210 = vextract.low.u32 %v5209
        %v5211 = vextract.high.u32 %v5209
        %v5212 = vmul.u32.u64.compose %v5208, %v5203
        %v5213 = vextract.low.u32 %v5212
        %v5214 = vextract.high.u32 %v5212
        %v5215 = vmul.u32 %v5208, %v5199
        %v5216 = vadd.s32 %v5211, %v5213
        %vm5217 = vc.u32 %v5211, %v5213
        %v5218 = vadd.s32 %v5214, 1
        %v5219 = vsel %vm5217, %v5218, %v5214
        %v5220 = vadd.s32 %v5215, %v5219
        %v5221 = vadd.s32 %v5220, 536870912
        %v5222 = vshrl.u32 %v5221, 30
        %v5223 = vshll.u32 %v5222, 30
        %v5224 = vsub.s32 %v5220, %v5223
        %vm5225 = vcmp.lt.s32.totalorder %v5224, 0
        %v5226 = vsub.s32 0, %v5224
        %v5227 = vsel %vm5225, %v5226, %v5224
        %v5228 = vclz %v5227
        %v5229 = vsub.s32 %v5228, 2
        %vm5230 = vcmp.gt.s32.totalorder 0, %v5229
        %v5231 = vsel %vm5230, 0, %v5229
        %v5232 = vsub.s32 32, %v5231
        %v5233 = vshll.u32 %v5224, %v5231
        %v5234 = vshrl.u32 %v5216, %v5232
        %v5235 = vor.u32 %v5233, %v5234
        %v5236 = vsub.s32 4294967266, %v5231
        %v5237 = vadd.s32 %v5236, 127
        %v5238 = vshll.u32 %v5237, 23
        %v5239 = vor.u32 4788187, %v5238
        %v5240 = vand.u32 2147483647, %v5239
        %v5242 = vcvt.s32.f32 %v5235
        %v5243 = vmul.f32 %v5242, %v5240
        %v5244 = vxor.u32 %v5243, 2147483648
        %v5245 = vsel %vm5162, %v5244, %v5243
        %v5246 = vsub.s32 4, %v5222
        %v5247 = vsel %vm5162, %v5246, %v5222
        %v5248 = vsel %vm5161, %v4946, %v5245
        %v5249 = vsel %vm5161, 0, %v5247
        %v5250 = vcosq.f32.pop %v5248
        %v5251 = vsinq.f32.pop %v5248
        %vm5252 = vweird.f32 %v4946
        %v5253 = vadd.s32 %v5249, 3
        %v5254 = vand.u32 %v5253, 3
        %vm5255 = vcmp.lt.s32.totalorder %v5254, 2
        %vm5256 = vcmp.eq.s32.totalorder %v5254, 0
        %v5257 = vxor.u32 %v5251, 2147483648
        %v5258 = vsel %vm5256, %v5250, %v5257
        %vm5259 = vcmp.eq.s32.totalorder %v5254, 2
        %v5260 = vxor.u32 %v5250, 2147483648
        %v5261 = vsel %vm5259, %v5260, %v5251
        %v5262 = vsel %vm5255, %v5258, %v5261
        %v5263 = vsel %vm5252, nan, %v5262
        %v5264 = vand.u32 2147483647, %v4947
        %vm5265 = vcmp.le.f32.partialorder %v5264, 0.7853982
        %vm5266 = vcmp.lt.s32.totalorder %v4947, 0
        %v5267 = vand.u32 %v4947, 2139095040
        %v5268 = vshrl.u32 %v5267, 23
        %v5269 = vsub.s32 %v5268, 127
        %v5270 = vand.u32 2147483647, %v4947
        %v5271 = vand.u32 %v5270, 8388607
        %v5272 = vor.u32 %v5271, 8388608
        %v5273 = vsub.s32 0, %v5272
        %v5274 = vadd.s32 %v5269, 1
        %vm5275 = vcmp.gt.s32.totalorder %v5274, 0
        %v5276 = vsel %vm5275, %v5274, 0
        %v5277 = vshrl.u32 %v5276, 5
        %v5278 = vand.u32 %v5276, 31
        %v5279 = vsub.s32 32, %v5278
        %v5280 = vshrl.u32 683565275, %v5279
        %v5281 = vshll.u32 683565275, %v5278
        %v5282 = vshrl.u32 2475754826, %v5279
        %v5283 = vor.u32 %v5281, %v5282
        %v5284 = vshll.u32 2475754826, %v5278
        %v5285 = vshrl.u32 2131351028, %v5279
        %v5286 = vor.u32 %v5284, %v5285
        %v5287 = vshll.u32 2131351028, %v5278
        %v5288 = vshrl.u32 2102212464, %v5279
        %v5289 = vor.u32 %v5287, %v5288
        %v5290 = vshll.u32 2102212464, %v5278
        %v5291 = vshrl.u32 920167782, %v5279
        %v5292 = vor.u32 %v5290, %v5291
        %v5293 = vshll.u32 920167782, %v5278
        %v5294 = vshrl.u32 1326507024, %v5279
        %v5295 = vor.u32 %v5293, %v5294
        %vm5296 = vcmp.lt.s32.totalorder %v5277, 1
        %vm5297 = vcmp.lt.s32.totalorder %v5277, 2
        %vm5298 = vcmp.lt.s32.totalorder %v5277, 3
        %vm5299 = vcmp.lt.s32.totalorder %v5277, 4
        %v5300 = vsel %vm5296, %v5280, %v5283
        %v5301 = vsel %vm5299, %v5289, 2102212464
        %v5302 = vsel %vm5298, %v5286, %v5301
        %v5303 = vsel %vm5297, %v5300, %v5302
        %v5304 = vsel %vm5296, %v5283, %v5286
        %v5305 = vsel %vm5299, %v5292, 920167782
        %v5306 = vsel %vm5298, %v5289, %v5305
        %v5307 = vsel %vm5297, %v5304, %v5306
        %v5308 = vsel %vm5296, %v5286, %v5289
        %v5309 = vsel %vm5299, %v5295, 1326507024
        %v5310 = vsel %vm5298, %v5292, %v5309
        %v5311 = vsel %vm5297, %v5308, %v5310
        %v5312 = vshll.u32 %v5272, 8
        %v5313 = vmul.u32.u64.compose %v5312, %v5311
        %v5314 = vextract.low.u32 %v5313
        %v5315 = vextract.high.u32 %v5313
        %v5316 = vmul.u32.u64.compose %v5312, %v5307
        %v5317 = vextract.low.u32 %v5316
        %v5318 = vextract.high.u32 %v5316
        %v5319 = vmul.u32 %v5312, %v5303
        %v5320 = vadd.s32 %v5315, %v5317
        %vm5321 = vc.u32 %v5315, %v5317
        %v5322 = vadd.s32 %v5318, 1
        %v5323 = vsel %vm5321, %v5322, %v5318
        %v5324 = vadd.s32 %v5319, %v5323
        %v5325 = vadd.s32 %v5324, 536870912
        %v5326 = vshrl.u32 %v5325, 30
        %v5327 = vshll.u32 %v5326, 30
        %v5328 = vsub.s32 %v5324, %v5327
        %vm5329 = vcmp.lt.s32.totalorder %v5328, 0
        %v5330 = vsub.s32 0, %v5328
        %v5331 = vsel %vm5329, %v5330, %v5328
        %v5332 = vclz %v5331
        %v5333 = vsub.s32 %v5332, 2
        %vm5334 = vcmp.gt.s32.totalorder 0, %v5333
        %v5335 = vsel %vm5334, 0, %v5333
        %v5336 = vsub.s32 32, %v5335
        %v5337 = vshll.u32 %v5328, %v5335
        %v5338 = vshrl.u32 %v5320, %v5336
        %v5339 = vor.u32 %v5337, %v5338
        %v5340 = vsub.s32 4294967266, %v5335
        %v5341 = vadd.s32 %v5340, 127
        %v5342 = vshll.u32 %v5341, 23
        %v5343 = vor.u32 4788187, %v5342
        %v5344 = vand.u32 2147483647, %v5343
        %v5346 = vcvt.s32.f32 %v5339
        %v5347 = vmul.f32 %v5346, %v5344
        %v5348 = vxor.u32 %v5347, 2147483648
        %v5349 = vsel %vm5266, %v5348, %v5347
        %v5350 = vsub.s32 4, %v5326
        %v5351 = vsel %vm5266, %v5350, %v5326
        %v5352 = vsel %vm5265, %v4947, %v5349
        %v5353 = vsel %vm5265, 0, %v5351
        %v5354 = vcosq.f32.pop %v5352
        %v5355 = vsinq.f32.pop %v5352
        %vm5356 = vweird.f32 %v4947
        %v5357 = vadd.s32 %v5353, 3
        %v5358 = vand.u32 %v5357, 3
        %vm5359 = vcmp.lt.s32.totalorder %v5358, 2
        %vm5360 = vcmp.eq.s32.totalorder %v5358, 0
        %v5361 = vxor.u32 %v5355, 2147483648
        %v5362 = vsel %vm5360, %v5354, %v5361
        %vm5363 = vcmp.eq.s32.totalorder %v5358, 2
        %v5364 = vxor.u32 %v5354, 2147483648
        %v5365 = vsel %vm5363, %v5364, %v5355
        %v5366 = vsel %vm5359, %v5362, %v5365
        %v5367 = vsel %vm5356, nan, %v5366
        %v5368 = vand.u32 2147483647, %v4948
        %vm5369 = vcmp.le.f32.partialorder %v5368, 0.7853982
        %vm5370 = vcmp.lt.s32.totalorder %v4948, 0
        %v5371 = vand.u32 %v4948, 2139095040
        %v5372 = vshrl.u32 %v5371, 23
        %v5373 = vsub.s32 %v5372, 127
        %v5374 = vand.u32 2147483647, %v4948
        %v5375 = vand.u32 %v5374, 8388607
        %v5376 = vor.u32 %v5375, 8388608
        %v5377 = vsub.s32 0, %v5376
        %v5378 = vadd.s32 %v5373, 1
        %vm5379 = vcmp.gt.s32.totalorder %v5378, 0
        %v5380 = vsel %vm5379, %v5378, 0
        %v5381 = vshrl.u32 %v5380, 5
        %v5382 = vand.u32 %v5380, 31
        %v5383 = vsub.s32 32, %v5382
        %v5384 = vshrl.u32 683565275, %v5383
        %v5385 = vshll.u32 683565275, %v5382
        %v5386 = vshrl.u32 2475754826, %v5383
        %v5387 = vor.u32 %v5385, %v5386
        %v5388 = vshll.u32 2475754826, %v5382
        %v5389 = vshrl.u32 2131351028, %v5383
        %v5390 = vor.u32 %v5388, %v5389
        %v5391 = vshll.u32 2131351028, %v5382
        %v5392 = vshrl.u32 2102212464, %v5383
        %v5393 = vor.u32 %v5391, %v5392
        %v5394 = vshll.u32 2102212464, %v5382
        %v5395 = vshrl.u32 920167782, %v5383
        %v5396 = vor.u32 %v5394, %v5395
        %v5397 = vshll.u32 920167782, %v5382
        %v5398 = vshrl.u32 1326507024, %v5383
        %v5399 = vor.u32 %v5397, %v5398
        %vm5400 = vcmp.lt.s32.totalorder %v5381, 1
        %vm5401 = vcmp.lt.s32.totalorder %v5381, 2
        %vm5402 = vcmp.lt.s32.totalorder %v5381, 3
        %vm5403 = vcmp.lt.s32.totalorder %v5381, 4
        %v5404 = vsel %vm5400, %v5384, %v5387
        %v5405 = vsel %vm5403, %v5393, 2102212464
        %v5406 = vsel %vm5402, %v5390, %v5405
        %v5407 = vsel %vm5401, %v5404, %v5406
        %v5408 = vsel %vm5400, %v5387, %v5390
        %v5409 = vsel %vm5403, %v5396, 920167782
        %v5410 = vsel %vm5402, %v5393, %v5409
        %v5411 = vsel %vm5401, %v5408, %v5410
        %v5412 = vsel %vm5400, %v5390, %v5393
        %v5413 = vsel %vm5403, %v5399, 1326507024
        %v5414 = vsel %vm5402, %v5396, %v5413
        %v5415 = vsel %vm5401, %v5412, %v5414
        %v5416 = vshll.u32 %v5376, 8
        %v5417 = vmul.u32.u64.compose %v5416, %v5415
        %v5418 = vextract.low.u32 %v5417
        %v5419 = vextract.high.u32 %v5417
        %v5420 = vmul.u32.u64.compose %v5416, %v5411
        %v5421 = vextract.low.u32 %v5420
        %v5422 = vextract.high.u32 %v5420
        %v5423 = vmul.u32 %v5416, %v5407
        %v5424 = vadd.s32 %v5419, %v5421
        %vm5425 = vc.u32 %v5419, %v5421
        %v5426 = vadd.s32 %v5422, 1
        %v5427 = vsel %vm5425, %v5426, %v5422
        %v5428 = vadd.s32 %v5423, %v5427
        %v5429 = vadd.s32 %v5428, 536870912
        %v5430 = vshrl.u32 %v5429, 30
        %v5431 = vshll.u32 %v5430, 30
        %v5432 = vsub.s32 %v5428, %v5431
        %vm5433 = vcmp.lt.s32.totalorder %v5432, 0
        %v5434 = vsub.s32 0, %v5432
        %v5435 = vsel %vm5433, %v5434, %v5432
        %v5436 = vclz %v5435
        %v5437 = vsub.s32 %v5436, 2
        %vm5438 = vcmp.gt.s32.totalorder 0, %v5437
        %v5439 = vsel %vm5438, 0, %v5437
        %v5440 = vsub.s32 32, %v5439
        %v5441 = vshll.u32 %v5432, %v5439
        %v5442 = vshrl.u32 %v5424, %v5440
        %v5443 = vor.u32 %v5441, %v5442
        %v5444 = vsub.s32 4294967266, %v5439
        %v5445 = vadd.s32 %v5444, 127
        %v5446 = vshll.u32 %v5445, 23
        %v5447 = vor.u32 4788187, %v5446
        %v5448 = vand.u32 2147483647, %v5447
        %v5450 = vcvt.s32.f32 %v5443
        %v5451 = vmul.f32 %v5450, %v5448
        %v5452 = vxor.u32 %v5451, 2147483648
        %v5453 = vsel %vm5370, %v5452, %v5451
        %v5454 = vsub.s32 4, %v5430
        %v5455 = vsel %vm5370, %v5454, %v5430
        %v5456 = vsel %vm5369, %v4948, %v5453
        %v5457 = vsel %vm5369, 0, %v5455
        %v5458 = vcosq.f32.pop %v5456
        %v5459 = vsinq.f32.pop %v5456
        %vm5460 = vweird.f32 %v4948
        %v5461 = vadd.s32 %v5457, 3
        %v5462 = vand.u32 %v5461, 3
        %vm5463 = vcmp.lt.s32.totalorder %v5462, 2
        %vm5464 = vcmp.eq.s32.totalorder %v5462, 0
        %v5465 = vxor.u32 %v5459, 2147483648
        %v5466 = vsel %vm5464, %v5458, %v5465
        %vm5467 = vcmp.eq.s32.totalorder %v5462, 2
        %v5468 = vxor.u32 %v5458, 2147483648
        %v5469 = vsel %vm5467, %v5468, %v5459
        %v5470 = vsel %vm5463, %v5466, %v5469
        %v5471 = vsel %vm5460, nan, %v5470
        %v5472 = vand.u32 2147483647, %v4949
        %vm5473 = vcmp.le.f32.partialorder %v5472, 0.7853982
        %vm5474 = vcmp.lt.s32.totalorder %v4949, 0
        %v5475 = vand.u32 %v4949, 2139095040
        %v5476 = vshrl.u32 %v5475, 23
        %v5477 = vsub.s32 %v5476, 127
        %v5478 = vand.u32 2147483647, %v4949
        %v5479 = vand.u32 %v5478, 8388607
        %v5480 = vor.u32 %v5479, 8388608
        %v5481 = vsub.s32 0, %v5480
        %v5482 = vadd.s32 %v5477, 1
        %vm5483 = vcmp.gt.s32.totalorder %v5482, 0
        %v5484 = vsel %vm5483, %v5482, 0
        %v5485 = vshrl.u32 %v5484, 5
        %v5486 = vand.u32 %v5484, 31
        %v5487 = vsub.s32 32, %v5486
        %v5488 = vshrl.u32 683565275, %v5487
        %v5489 = vshll.u32 683565275, %v5486
        %v5490 = vshrl.u32 2475754826, %v5487
        %v5491 = vor.u32 %v5489, %v5490
        %v5492 = vshll.u32 2475754826, %v5486
        %v5493 = vshrl.u32 2131351028, %v5487
        %v5494 = vor.u32 %v5492, %v5493
        %v5495 = vshll.u32 2131351028, %v5486
        %v5496 = vshrl.u32 2102212464, %v5487
        %v5497 = vor.u32 %v5495, %v5496
        %v5498 = vshll.u32 2102212464, %v5486
        %v5499 = vshrl.u32 920167782, %v5487
        %v5500 = vor.u32 %v5498, %v5499
        %v5501 = vshll.u32 920167782, %v5486
        %v5502 = vshrl.u32 1326507024, %v5487
        %v5503 = vor.u32 %v5501, %v5502
        %vm5504 = vcmp.lt.s32.totalorder %v5485, 1
        %vm5505 = vcmp.lt.s32.totalorder %v5485, 2
        %vm5506 = vcmp.lt.s32.totalorder %v5485, 3
        %vm5507 = vcmp.lt.s32.totalorder %v5485, 4
        %v5508 = vsel %vm5504, %v5488, %v5491
        %v5509 = vsel %vm5507, %v5497, 2102212464
        %v5510 = vsel %vm5506, %v5494, %v5509
        %v5511 = vsel %vm5505, %v5508, %v5510
        %v5512 = vsel %vm5504, %v5491, %v5494
        %v5513 = vsel %vm5507, %v5500, 920167782
        %v5514 = vsel %vm5506, %v5497, %v5513
        %v5515 = vsel %vm5505, %v5512, %v5514
        %v5516 = vsel %vm5504, %v5494, %v5497
        %v5517 = vsel %vm5507, %v5503, 1326507024
        %v5518 = vsel %vm5506, %v5500, %v5517
        %v5519 = vsel %vm5505, %v5516, %v5518
        %v5520 = vshll.u32 %v5480, 8
        %v5521 = vmul.u32.u64.compose %v5520, %v5519
        %v5522 = vextract.low.u32 %v5521
        %v5523 = vextract.high.u32 %v5521
        %v5524 = vmul.u32.u64.compose %v5520, %v5515
        %v5525 = vextract.low.u32 %v5524
        %v5526 = vextract.high.u32 %v5524
        %v5527 = vmul.u32 %v5520, %v5511
        %v5528 = vadd.s32 %v5523, %v5525
        %vm5529 = vc.u32 %v5523, %v5525
        %v5530 = vadd.s32 %v5526, 1
        %v5531 = vsel %vm5529, %v5530, %v5526
        %v5532 = vadd.s32 %v5527, %v5531
        %v5533 = vadd.s32 %v5532, 536870912
        %v5534 = vshrl.u32 %v5533, 30
        %v5535 = vshll.u32 %v5534, 30
        %v5536 = vsub.s32 %v5532, %v5535
        %vm5537 = vcmp.lt.s32.totalorder %v5536, 0
        %v5538 = vsub.s32 0, %v5536
        %v5539 = vsel %vm5537, %v5538, %v5536
        %v5540 = vclz %v5539
        %v5541 = vsub.s32 %v5540, 2
        %vm5542 = vcmp.gt.s32.totalorder 0, %v5541
        %v5543 = vsel %vm5542, 0, %v5541
        %v5544 = vsub.s32 32, %v5543
        %v5545 = vshll.u32 %v5536, %v5543
        %v5546 = vshrl.u32 %v5528, %v5544
        %v5547 = vor.u32 %v5545, %v5546
        %v5548 = vsub.s32 4294967266, %v5543
        %v5549 = vadd.s32 %v5548, 127
        %v5550 = vshll.u32 %v5549, 23
        %v5551 = vor.u32 4788187, %v5550
        %v5552 = vand.u32 2147483647, %v5551
        %v5554 = vcvt.s32.f32 %v5547
        %v5555 = vmul.f32 %v5554, %v5552
        %v5556 = vxor.u32 %v5555, 2147483648
        %v5557 = vsel %vm5474, %v5556, %v5555
        %v5558 = vsub.s32 4, %v5534
        %v5559 = vsel %vm5474, %v5558, %v5534
        %v5560 = vsel %vm5473, %v4949, %v5557
        %v5561 = vsel %vm5473, 0, %v5559
        %v5562 = vcosq.f32.pop %v5560
        %v5563 = vsinq.f32.pop %v5560
        %vm5564 = vweird.f32 %v4949
        %v5565 = vadd.s32 %v5561, 3
        %v5566 = vand.u32 %v5565, 3
        %vm5567 = vcmp.lt.s32.totalorder %v5566, 2
        %vm5568 = vcmp.eq.s32.totalorder %v5566, 0
        %v5569 = vxor.u32 %v5563, 2147483648
        %v5570 = vsel %vm5568, %v5562, %v5569
        %vm5571 = vcmp.eq.s32.totalorder %v5566, 2
        %v5572 = vxor.u32 %v5562, 2147483648
        %v5573 = vsel %vm5571, %v5572, %v5563
        %v5574 = vsel %vm5567, %v5570, %v5573
        %v5575 = vsel %vm5564, nan, %v5574
        %v5576 = vand.u32 2147483647, %v4950
        %vm5577 = vcmp.le.f32.partialorder %v5576, 0.7853982
        %vm5578 = vcmp.lt.s32.totalorder %v4950, 0
        %v5579 = vand.u32 %v4950, 2139095040
        %v5580 = vshrl.u32 %v5579, 23
        %v5581 = vsub.s32 %v5580, 127
        %v5582 = vand.u32 2147483647, %v4950
        %v5583 = vand.u32 %v5582, 8388607
        %v5584 = vor.u32 %v5583, 8388608
        %v5585 = vsub.s32 0, %v5584
        %v5586 = vadd.s32 %v5581, 1
        %vm5587 = vcmp.gt.s32.totalorder %v5586, 0
        %v5588 = vsel %vm5587, %v5586, 0
        %v5589 = vshrl.u32 %v5588, 5
        %v5590 = vand.u32 %v5588, 31
        %v5591 = vsub.s32 32, %v5590
        %v5592 = vshrl.u32 683565275, %v5591
        %v5593 = vshll.u32 683565275, %v5590
        %v5594 = vshrl.u32 2475754826, %v5591
        %v5595 = vor.u32 %v5593, %v5594
        %v5596 = vshll.u32 2475754826, %v5590
        %v5597 = vshrl.u32 2131351028, %v5591
        %v5598 = vor.u32 %v5596, %v5597
        %v5599 = vshll.u32 2131351028, %v5590
        %v5600 = vshrl.u32 2102212464, %v5591
        %v5601 = vor.u32 %v5599, %v5600
        %v5602 = vshll.u32 2102212464, %v5590
        %v5603 = vshrl.u32 920167782, %v5591
        %v5604 = vor.u32 %v5602, %v5603
        %v5605 = vshll.u32 920167782, %v5590
        %v5606 = vshrl.u32 1326507024, %v5591
        %v5607 = vor.u32 %v5605, %v5606
        %vm5608 = vcmp.lt.s32.totalorder %v5589, 1
        %vm5609 = vcmp.lt.s32.totalorder %v5589, 2
        %vm5610 = vcmp.lt.s32.totalorder %v5589, 3
        %vm5611 = vcmp.lt.s32.totalorder %v5589, 4
        %v5612 = vsel %vm5608, %v5592, %v5595
        %v5613 = vsel %vm5611, %v5601, 2102212464
        %v5614 = vsel %vm5610, %v5598, %v5613
        %v5615 = vsel %vm5609, %v5612, %v5614
        %v5616 = vsel %vm5608, %v5595, %v5598
        %v5617 = vsel %vm5611, %v5604, 920167782
        %v5618 = vsel %vm5610, %v5601, %v5617
        %v5619 = vsel %vm5609, %v5616, %v5618
        %v5620 = vsel %vm5608, %v5598, %v5601
        %v5621 = vsel %vm5611, %v5607, 1326507024
        %v5622 = vsel %vm5610, %v5604, %v5621
        %v5623 = vsel %vm5609, %v5620, %v5622
        %v5624 = vshll.u32 %v5584, 8
        %v5625 = vmul.u32.u64.compose %v5624, %v5623
        %v5626 = vextract.low.u32 %v5625
        %v5627 = vextract.high.u32 %v5625
        %v5628 = vmul.u32.u64.compose %v5624, %v5619
        %v5629 = vextract.low.u32 %v5628
        %v5630 = vextract.high.u32 %v5628
        %v5631 = vmul.u32 %v5624, %v5615
        %v5632 = vadd.s32 %v5627, %v5629
        %vm5633 = vc.u32 %v5627, %v5629
        %v5634 = vadd.s32 %v5630, 1
        %v5635 = vsel %vm5633, %v5634, %v5630
        %v5636 = vadd.s32 %v5631, %v5635
        %v5637 = vadd.s32 %v5636, 536870912
        %v5638 = vshrl.u32 %v5637, 30
        %v5639 = vshll.u32 %v5638, 30
        %v5640 = vsub.s32 %v5636, %v5639
        %vm5641 = vcmp.lt.s32.totalorder %v5640, 0
        %v5642 = vsub.s32 0, %v5640
        %v5643 = vsel %vm5641, %v5642, %v5640
        %v5644 = vclz %v5643
        %v5645 = vsub.s32 %v5644, 2
        %vm5646 = vcmp.gt.s32.totalorder 0, %v5645
        %v5647 = vsel %vm5646, 0, %v5645
        %v5648 = vsub.s32 32, %v5647
        %v5649 = vshll.u32 %v5640, %v5647
        %v5650 = vshrl.u32 %v5632, %v5648
        %v5651 = vor.u32 %v5649, %v5650
        %v5652 = vsub.s32 4294967266, %v5647
        %v5653 = vadd.s32 %v5652, 127
        %v5654 = vshll.u32 %v5653, 23
        %v5655 = vor.u32 4788187, %v5654
        %v5656 = vand.u32 2147483647, %v5655
        %v5658 = vcvt.s32.f32 %v5651
        %v5659 = vmul.f32 %v5658, %v5656
        %v5660 = vxor.u32 %v5659, 2147483648
        %v5661 = vsel %vm5578, %v5660, %v5659
        %v5662 = vsub.s32 4, %v5638
        %v5663 = vsel %vm5578, %v5662, %v5638
        %v5664 = vsel %vm5577, %v4950, %v5661
        %v5665 = vsel %vm5577, 0, %v5663
        %v5666 = vcosq.f32.pop %v5664
        %v5667 = vsinq.f32.pop %v5664
        %vm5668 = vweird.f32 %v4950
        %v5669 = vadd.s32 %v5665, 3
        %v5670 = vand.u32 %v5669, 3
        %vm5671 = vcmp.lt.s32.totalorder %v5670, 2
        %vm5672 = vcmp.eq.s32.totalorder %v5670, 0
        %v5673 = vxor.u32 %v5667, 2147483648
        %v5674 = vsel %vm5672, %v5666, %v5673
        %vm5675 = vcmp.eq.s32.totalorder %v5670, 2
        %v5676 = vxor.u32 %v5666, 2147483648
        %v5677 = vsel %vm5675, %v5676, %v5667
        %v5678 = vsel %vm5671, %v5674, %v5677
        %v5679 = vsel %vm5668, nan, %v5678
        %v5680 = vand.u32 2147483647, %v4951
        %vm5681 = vcmp.le.f32.partialorder %v5680, 0.7853982
        %vm5682 = vcmp.lt.s32.totalorder %v4951, 0
        %v5683 = vand.u32 %v4951, 2139095040
        %v5684 = vshrl.u32 %v5683, 23
        %v5685 = vsub.s32 %v5684, 127
        %v5686 = vand.u32 2147483647, %v4951
        %v5687 = vand.u32 %v5686, 8388607
        %v5688 = vor.u32 %v5687, 8388608
        %v5689 = vsub.s32 0, %v5688
        %v5690 = vadd.s32 %v5685, 1
        %vm5691 = vcmp.gt.s32.totalorder %v5690, 0
        %v5692 = vsel %vm5691, %v5690, 0
        %v5693 = vshrl.u32 %v5692, 5
        %v5694 = vand.u32 %v5692, 31
        %v5695 = vsub.s32 32, %v5694
        %v5696 = vshrl.u32 683565275, %v5695
        %v5697 = vshll.u32 683565275, %v5694
        %v5698 = vshrl.u32 2475754826, %v5695
        %v5699 = vor.u32 %v5697, %v5698
        %v5700 = vshll.u32 2475754826, %v5694
        %v5701 = vshrl.u32 2131351028, %v5695
        %v5702 = vor.u32 %v5700, %v5701
        %v5703 = vshll.u32 2131351028, %v5694
        %v5704 = vshrl.u32 2102212464, %v5695
        %v5705 = vor.u32 %v5703, %v5704
        %v5706 = vshll.u32 2102212464, %v5694
        %v5707 = vshrl.u32 920167782, %v5695
        %v5708 = vor.u32 %v5706, %v5707
        %v5709 = vshll.u32 920167782, %v5694
        %v5710 = vshrl.u32 1326507024, %v5695
        %v5711 = vor.u32 %v5709, %v5710
        %vm5712 = vcmp.lt.s32.totalorder %v5693, 1
        %vm5713 = vcmp.lt.s32.totalorder %v5693, 2
        %vm5714 = vcmp.lt.s32.totalorder %v5693, 3
        %vm5715 = vcmp.lt.s32.totalorder %v5693, 4
        %v5716 = vsel %vm5712, %v5696, %v5699
        %v5717 = vsel %vm5715, %v5705, 2102212464
        %v5718 = vsel %vm5714, %v5702, %v5717
        %v5719 = vsel %vm5713, %v5716, %v5718
        %v5720 = vsel %vm5712, %v5699, %v5702
        %v5721 = vsel %vm5715, %v5708, 920167782
        %v5722 = vsel %vm5714, %v5705, %v5721
        %v5723 = vsel %vm5713, %v5720, %v5722
        %v5724 = vsel %vm5712, %v5702, %v5705
        %v5725 = vsel %vm5715, %v5711, 1326507024
        %v5726 = vsel %vm5714, %v5708, %v5725
        %v5727 = vsel %vm5713, %v5724, %v5726
        %v5728 = vshll.u32 %v5688, 8
        %v5729 = vmul.u32.u64.compose %v5728, %v5727
        %v5730 = vextract.low.u32 %v5729
        %v5731 = vextract.high.u32 %v5729
        %v5732 = vmul.u32.u64.compose %v5728, %v5723
        %v5733 = vextract.low.u32 %v5732
        %v5734 = vextract.high.u32 %v5732
        %v5735 = vmul.u32 %v5728, %v5719
        %v5736 = vadd.s32 %v5731, %v5733
        %vm5737 = vc.u32 %v5731, %v5733
        %v5738 = vadd.s32 %v5734, 1
        %v5739 = vsel %vm5737, %v5738, %v5734
        %v5740 = vadd.s32 %v5735, %v5739
        %v5741 = vadd.s32 %v5740, 536870912
        %v5742 = vshrl.u32 %v5741, 30
        %v5743 = vshll.u32 %v5742, 30
        %v5744 = vsub.s32 %v5740, %v5743
        %vm5745 = vcmp.lt.s32.totalorder %v5744, 0
        %v5746 = vsub.s32 0, %v5744
        %v5747 = vsel %vm5745, %v5746, %v5744
        %v5748 = vclz %v5747
        %v5749 = vsub.s32 %v5748, 2
        %vm5750 = vcmp.gt.s32.totalorder 0, %v5749
        %v5751 = vsel %vm5750, 0, %v5749
        %v5752 = vsub.s32 32, %v5751
        %v5753 = vshll.u32 %v5744, %v5751
        %v5754 = vshrl.u32 %v5736, %v5752
        %v5755 = vor.u32 %v5753, %v5754
        %v5756 = vsub.s32 4294967266, %v5751
        %v5757 = vadd.s32 %v5756, 127
        %v5758 = vshll.u32 %v5757, 23
        %v5759 = vor.u32 4788187, %v5758
        %v5760 = vand.u32 2147483647, %v5759
        %v5762 = vcvt.s32.f32 %v5755
        %v5763 = vmul.f32 %v5762, %v5760
        %v5764 = vxor.u32 %v5763, 2147483648
        %v5765 = vsel %vm5682, %v5764, %v5763
        %v5766 = vsub.s32 4, %v5742
        %v5767 = vsel %vm5682, %v5766, %v5742
        %v5768 = vsel %vm5681, %v4951, %v5765
        %v5769 = vsel %vm5681, 0, %v5767
        %v5770 = vcosq.f32.pop %v5768
        %v5771 = vsinq.f32.pop %v5768
        %vm5772 = vweird.f32 %v4951
        %v5773 = vadd.s32 %v5769, 3
        %v5774 = vand.u32 %v5773, 3
        %vm5775 = vcmp.lt.s32.totalorder %v5774, 2
        %vm5776 = vcmp.eq.s32.totalorder %v5774, 0
        %v5777 = vxor.u32 %v5771, 2147483648
        %v5778 = vsel %vm5776, %v5770, %v5777
        %vm5779 = vcmp.eq.s32.totalorder %v5774, 2
        %v5780 = vxor.u32 %v5770, 2147483648
        %v5781 = vsel %vm5779, %v5780, %v5771
        %v5782 = vsel %vm5775, %v5778, %v5781
        %v5783 = vsel %vm5772, nan, %v5782
        %s5784 = scalar_lea.vmem [#allocation2], 24
        %v5785 = vld [vmem:[%s5784] sm:$0x1]
        %v5786 = vld [vmem:[%s5784 + $0x1] sm:$0x1]
        %v5787 = vld [vmem:[%s5784 + $0x2] sm:$0x1]
        %v5788 = vld [vmem:[%s5784 + $0x3] sm:$0x1]
        %5789 = vrot.lane.b32.xlu0 %v5055, 1
        %v5790 = vpop.permute.xlu0 %5789
        %5791 = vrot.lane.b32.xlu0 %v5159, 1
        %v5792 = vpop.permute.xlu0 %5791
        %5793 = vrot.lane.b32.xlu0 %v5263, 1
        %v5794 = vpop.permute.xlu0 %5793
        %5795 = vrot.lane.b32.xlu0 %v5367, 1
        %v5796 = vpop.permute.xlu0 %5795
        %5797 = vrot.lane.b32.xlu0 %v5471, 1
        %v5798 = vpop.permute.xlu0 %5797
        %5799 = vrot.lane.b32.xlu0 %v5575, 1
        %v5800 = vpop.permute.xlu0 %5799
        %5801 = vrot.lane.b32.xlu0 %v5679, 1
        %v5802 = vpop.permute.xlu0 %5801
        %5803 = vrot.lane.b32.xlu0 %v5783, 1
        %v5804 = vpop.permute.xlu0 %5803
        %5805 = vrot.lane.b32.xlu0 %v5055, 127
        %v5806 = vpop.permute.xlu0 %5805
        %5807 = vrot.lane.b32.xlu0 %v5159, 127
        %v5808 = vpop.permute.xlu0 %5807
        %5809 = vrot.lane.b32.xlu0 %v5263, 127
        %v5810 = vpop.permute.xlu0 %5809
        %5811 = vrot.lane.b32.xlu0 %v5367, 127
        %v5812 = vpop.permute.xlu0 %5811
        %5813 = vrot.lane.b32.xlu0 %v5471, 127
        %v5814 = vpop.permute.xlu0 %5813
        %5815 = vrot.lane.b32.xlu0 %v5575, 127
        %v5816 = vpop.permute.xlu0 %5815
        %5817 = vrot.lane.b32.xlu0 %v5679, 127
        %v5818 = vpop.permute.xlu0 %5817
        %5819 = vrot.lane.b32.xlu0 %v5783, 127
        %v5820 = vpop.permute.xlu0 %5819
        %v5821 = vlaneseq
        %v5822 = vshrl.u32 %v5821, 7
        %v5823 = vsub.s32 0, %v5822
        %v5824 = vrot.slane %v5785, %v5823
        %v5825 = vmul.f32 %v5824, %v5790
        %v5826 = vmul.f32 %v5824, %v5792
        %v5827 = vmul.f32 %v5824, %v5794
        %v5828 = vmul.f32 %v5824, %v5796
        %v5829 = vmul.f32 %v5824, %v5798
        %v5830 = vmul.f32 %v5824, %v5800
        %v5831 = vmul.f32 %v5824, %v5802
        %v5832 = vmul.f32 %v5824, %v5804
        %v5833 = vlaneseq
        %v5834 = vshrl.u32 %v5833, 7
        %v5835 = vsub.s32 0, %v5834
        %v5836 = vrot.slane %v5786, %v5835
        %v5837 = vmul.f32 %v5836, %v5055
        %v5838 = vmul.f32 %v5836, %v5159
        %v5839 = vmul.f32 %v5836, %v5263
        %v5840 = vmul.f32 %v5836, %v5367
        %v5841 = vmul.f32 %v5836, %v5471
        %v5842 = vmul.f32 %v5836, %v5575
        %v5843 = vmul.f32 %v5836, %v5679
        %v5844 = vmul.f32 %v5836, %v5783
        %v5845 = vadd.f32 %v5825, %v5837
        %v5846 = vadd.f32 %v5826, %v5838
        %v5847 = vadd.f32 %v5827, %v5839
        %v5848 = vadd.f32 %v5828, %v5840
        %v5849 = vadd.f32 %v5829, %v5841
        %v5850 = vadd.f32 %v5830, %v5842
        %v5851 = vadd.f32 %v5831, %v5843
        %v5852 = vadd.f32 %v5832, %v5844
        %v5853 = vlaneseq
        %v5854 = vshrl.u32 %v5853, 7
        %v5855 = vsub.s32 0, %v5854
        %v5856 = vrot.slane %v5787, %v5855
        %v5857 = vmul.f32 %v5856, %v5806
        %v5858 = vmul.f32 %v5856, %v5808
        %v5859 = vmul.f32 %v5856, %v5810
        %v5860 = vmul.f32 %v5856, %v5812
        %v5861 = vmul.f32 %v5856, %v5814
        %v5862 = vmul.f32 %v5856, %v5816
        %v5863 = vmul.f32 %v5856, %v5818
        %v5864 = vmul.f32 %v5856, %v5820
        %v5865 = vadd.f32 %v5845, %v5857
        %v5866 = vadd.f32 %v5846, %v5858
        %v5867 = vadd.f32 %v5847, %v5859
        %v5868 = vadd.f32 %v5848, %v5860
        %v5869 = vadd.f32 %v5849, %v5861
        %v5870 = vadd.f32 %v5850, %v5862
        %v5871 = vadd.f32 %v5851, %v5863
        %v5872 = vadd.f32 %v5852, %v5864
        %v5873 = vlaneseq
        %v5874 = vshrl.u32 %v5873, 7
        %v5875 = vsub.s32 0, %v5874
        %v5876 = vrot.slane %v5788, %v5875
        %v5877 = vadd.f32 %v5865, %v5876
        %v5878 = vadd.f32 %v5866, %v5876
        %v5879 = vadd.f32 %v5867, %v5876
        %v5880 = vadd.f32 %v5868, %v5876
        %v5881 = vadd.f32 %v5869, %v5876
        %v5882 = vadd.f32 %v5870, %v5876
        %v5883 = vadd.f32 %v5871, %v5876
        %v5884 = vadd.f32 %v5872, %v5876
        %v5885 = vand.u32 2147483647, %v5877
        %vm5886 = vcmp.le.f32.partialorder %v5885, 0.7853982
        %vm5887 = vcmp.lt.s32.totalorder %v5877, 0
        %v5888 = vand.u32 %v5877, 2139095040
        %v5889 = vshrl.u32 %v5888, 23
        %v5890 = vsub.s32 %v5889, 127
        %v5891 = vand.u32 2147483647, %v5877
        %v5892 = vand.u32 %v5891, 8388607
        %v5893 = vor.u32 %v5892, 8388608
        %v5894 = vsub.s32 0, %v5893
        %v5895 = vadd.s32 %v5890, 1
        %vm5896 = vcmp.gt.s32.totalorder %v5895, 0
        %v5897 = vsel %vm5896, %v5895, 0
        %v5898 = vshrl.u32 %v5897, 5
        %v5899 = vand.u32 %v5897, 31
        %v5900 = vsub.s32 32, %v5899
        %v5901 = vshrl.u32 683565275, %v5900
        %v5902 = vshll.u32 683565275, %v5899
        %v5903 = vshrl.u32 2475754826, %v5900
        %v5904 = vor.u32 %v5902, %v5903
        %v5905 = vshll.u32 2475754826, %v5899
        %v5906 = vshrl.u32 2131351028, %v5900
        %v5907 = vor.u32 %v5905, %v5906
        %v5908 = vshll.u32 2131351028, %v5899
        %v5909 = vshrl.u32 2102212464, %v5900
        %v5910 = vor.u32 %v5908, %v5909
        %v5911 = vshll.u32 2102212464, %v5899
        %v5912 = vshrl.u32 920167782, %v5900
        %v5913 = vor.u32 %v5911, %v5912
        %v5914 = vshll.u32 920167782, %v5899
        %v5915 = vshrl.u32 1326507024, %v5900
        %v5916 = vor.u32 %v5914, %v5915
        %vm5917 = vcmp.lt.s32.totalorder %v5898, 1
        %vm5918 = vcmp.lt.s32.totalorder %v5898, 2
        %vm5919 = vcmp.lt.s32.totalorder %v5898, 3
        %vm5920 = vcmp.lt.s32.totalorder %v5898, 4
        %v5921 = vsel %vm5917, %v5901, %v5904
        %v5922 = vsel %vm5920, %v5910, 2102212464
        %v5923 = vsel %vm5919, %v5907, %v5922
        %v5924 = vsel %vm5918, %v5921, %v5923
        %v5925 = vsel %vm5917, %v5904, %v5907
        %v5926 = vsel %vm5920, %v5913, 920167782
        %v5927 = vsel %vm5919, %v5910, %v5926
        %v5928 = vsel %vm5918, %v5925, %v5927
        %v5929 = vsel %vm5917, %v5907, %v5910
        %v5930 = vsel %vm5920, %v5916, 1326507024
        %v5931 = vsel %vm5919, %v5913, %v5930
        %v5932 = vsel %vm5918, %v5929, %v5931
        %v5933 = vshll.u32 %v5893, 8
        %v5934 = vmul.u32.u64.compose %v5933, %v5932
        %v5935 = vextract.low.u32 %v5934
        %v5936 = vextract.high.u32 %v5934
        %v5937 = vmul.u32.u64.compose %v5933, %v5928
        %v5938 = vextract.low.u32 %v5937
        %v5939 = vextract.high.u32 %v5937
        %v5940 = vmul.u32 %v5933, %v5924
        %v5941 = vadd.s32 %v5936, %v5938
        %vm5942 = vc.u32 %v5936, %v5938
        %v5943 = vadd.s32 %v5939, 1
        %v5944 = vsel %vm5942, %v5943, %v5939
        %v5945 = vadd.s32 %v5940, %v5944
        %v5946 = vadd.s32 %v5945, 536870912
        %v5947 = vshrl.u32 %v5946, 30
        %v5948 = vshll.u32 %v5947, 30
        %v5949 = vsub.s32 %v5945, %v5948
        %vm5950 = vcmp.lt.s32.totalorder %v5949, 0
        %v5951 = vsub.s32 0, %v5949
        %v5952 = vsel %vm5950, %v5951, %v5949
        %v5953 = vclz %v5952
        %v5954 = vsub.s32 %v5953, 2
        %vm5955 = vcmp.gt.s32.totalorder 0, %v5954
        %v5956 = vsel %vm5955, 0, %v5954
        %v5957 = vsub.s32 32, %v5956
        %v5958 = vshll.u32 %v5949, %v5956
        %v5959 = vshrl.u32 %v5941, %v5957
        %v5960 = vor.u32 %v5958, %v5959
        %v5961 = vsub.s32 4294967266, %v5956
        %v5962 = vadd.s32 %v5961, 127
        %v5963 = vshll.u32 %v5962, 23
        %v5964 = vor.u32 4788187, %v5963
        %v5965 = vand.u32 2147483647, %v5964
        %v5967 = vcvt.s32.f32 %v5960
        %v5968 = vmul.f32 %v5967, %v5965
        %v5969 = vxor.u32 %v5968, 2147483648
        %v5970 = vsel %vm5887, %v5969, %v5968
        %v5971 = vsub.s32 4, %v5947
        %v5972 = vsel %vm5887, %v5971, %v5947
        %v5973 = vsel %vm5886, %v5877, %v5970
        %v5974 = vsel %vm5886, 0, %v5972
        %v5975 = vcosq.f32.pop %v5973
        %v5976 = vsinq.f32.pop %v5973
        %vm5977 = vweird.f32 %v5877
        %v5978 = vadd.s32 %v5974, 3
        %v5979 = vand.u32 %v5978, 3
        %vm5980 = vcmp.lt.s32.totalorder %v5979, 2
        %vm5981 = vcmp.eq.s32.totalorder %v5979, 0
        %v5982 = vxor.u32 %v5976, 2147483648
        %v5983 = vsel %vm5981, %v5975, %v5982
        %vm5984 = vcmp.eq.s32.totalorder %v5979, 2
        %v5985 = vxor.u32 %v5975, 2147483648
        %v5986 = vsel %vm5984, %v5985, %v5976
        %v5987 = vsel %vm5980, %v5983, %v5986
        %v5988 = vsel %vm5977, nan, %v5987
        %v5989 = vand.u32 2147483647, %v5878
        %vm5990 = vcmp.le.f32.partialorder %v5989, 0.7853982
        %vm5991 = vcmp.lt.s32.totalorder %v5878, 0
        %v5992 = vand.u32 %v5878, 2139095040
        %v5993 = vshrl.u32 %v5992, 23
        %v5994 = vsub.s32 %v5993, 127
        %v5995 = vand.u32 2147483647, %v5878
        %v5996 = vand.u32 %v5995, 8388607
        %v5997 = vor.u32 %v5996, 8388608
        %v5998 = vsub.s32 0, %v5997
        %v5999 = vadd.s32 %v5994, 1
        %vm6000 = vcmp.gt.s32.totalorder %v5999, 0
        %v6001 = vsel %vm6000, %v5999, 0
        %v6002 = vshrl.u32 %v6001, 5
        %v6003 = vand.u32 %v6001, 31
        %v6004 = vsub.s32 32, %v6003
        %v6005 = vshrl.u32 683565275, %v6004
        %v6006 = vshll.u32 683565275, %v6003
        %v6007 = vshrl.u32 2475754826, %v6004
        %v6008 = vor.u32 %v6006, %v6007
        %v6009 = vshll.u32 2475754826, %v6003
        %v6010 = vshrl.u32 2131351028, %v6004
        %v6011 = vor.u32 %v6009, %v6010
        %v6012 = vshll.u32 2131351028, %v6003
        %v6013 = vshrl.u32 2102212464, %v6004
        %v6014 = vor.u32 %v6012, %v6013
        %v6015 = vshll.u32 2102212464, %v6003
        %v6016 = vshrl.u32 920167782, %v6004
        %v6017 = vor.u32 %v6015, %v6016
        %v6018 = vshll.u32 920167782, %v6003
        %v6019 = vshrl.u32 1326507024, %v6004
        %v6020 = vor.u32 %v6018, %v6019
        %vm6021 = vcmp.lt.s32.totalorder %v6002, 1
        %vm6022 = vcmp.lt.s32.totalorder %v6002, 2
        %vm6023 = vcmp.lt.s32.totalorder %v6002, 3
        %vm6024 = vcmp.lt.s32.totalorder %v6002, 4
        %v6025 = vsel %vm6021, %v6005, %v6008
        %v6026 = vsel %vm6024, %v6014, 2102212464
        %v6027 = vsel %vm6023, %v6011, %v6026
        %v6028 = vsel %vm6022, %v6025, %v6027
        %v6029 = vsel %vm6021, %v6008, %v6011
        %v6030 = vsel %vm6024, %v6017, 920167782
        %v6031 = vsel %vm6023, %v6014, %v6030
        %v6032 = vsel %vm6022, %v6029, %v6031
        %v6033 = vsel %vm6021, %v6011, %v6014
        %v6034 = vsel %vm6024, %v6020, 1326507024
        %v6035 = vsel %vm6023, %v6017, %v6034
        %v6036 = vsel %vm6022, %v6033, %v6035
        %v6037 = vshll.u32 %v5997, 8
        %v6038 = vmul.u32.u64.compose %v6037, %v6036
        %v6039 = vextract.low.u32 %v6038
        %v6040 = vextract.high.u32 %v6038
        %v6041 = vmul.u32.u64.compose %v6037, %v6032
        %v6042 = vextract.low.u32 %v6041
        %v6043 = vextract.high.u32 %v6041
        %v6044 = vmul.u32 %v6037, %v6028
        %v6045 = vadd.s32 %v6040, %v6042
        %vm6046 = vc.u32 %v6040, %v6042
        %v6047 = vadd.s32 %v6043, 1
        %v6048 = vsel %vm6046, %v6047, %v6043
        %v6049 = vadd.s32 %v6044, %v6048
        %v6050 = vadd.s32 %v6049, 536870912
        %v6051 = vshrl.u32 %v6050, 30
        %v6052 = vshll.u32 %v6051, 30
        %v6053 = vsub.s32 %v6049, %v6052
        %vm6054 = vcmp.lt.s32.totalorder %v6053, 0
        %v6055 = vsub.s32 0, %v6053
        %v6056 = vsel %vm6054, %v6055, %v6053
        %v6057 = vclz %v6056
        %v6058 = vsub.s32 %v6057, 2
        %vm6059 = vcmp.gt.s32.totalorder 0, %v6058
        %v6060 = vsel %vm6059, 0, %v6058
        %v6061 = vsub.s32 32, %v6060
        %v6062 = vshll.u32 %v6053, %v6060
        %v6063 = vshrl.u32 %v6045, %v6061
        %v6064 = vor.u32 %v6062, %v6063
        %v6065 = vsub.s32 4294967266, %v6060
        %v6066 = vadd.s32 %v6065, 127
        %v6067 = vshll.u32 %v6066, 23
        %v6068 = vor.u32 4788187, %v6067
        %v6069 = vand.u32 2147483647, %v6068
        %v6071 = vcvt.s32.f32 %v6064
        %v6072 = vmul.f32 %v6071, %v6069
        %v6073 = vxor.u32 %v6072, 2147483648
        %v6074 = vsel %vm5991, %v6073, %v6072
        %v6075 = vsub.s32 4, %v6051
        %v6076 = vsel %vm5991, %v6075, %v6051
        %v6077 = vsel %vm5990, %v5878, %v6074
        %v6078 = vsel %vm5990, 0, %v6076
        %v6079 = vcosq.f32.pop %v6077
        %v6080 = vsinq.f32.pop %v6077
        %vm6081 = vweird.f32 %v5878
        %v6082 = vadd.s32 %v6078, 3
        %v6083 = vand.u32 %v6082, 3
        %vm6084 = vcmp.lt.s32.totalorder %v6083, 2
        %vm6085 = vcmp.eq.s32.totalorder %v6083, 0
        %v6086 = vxor.u32 %v6080, 2147483648
        %v6087 = vsel %vm6085, %v6079, %v6086
        %vm6088 = vcmp.eq.s32.totalorder %v6083, 2
        %v6089 = vxor.u32 %v6079, 2147483648
        %v6090 = vsel %vm6088, %v6089, %v6080
        %v6091 = vsel %vm6084, %v6087, %v6090
        %v6092 = vsel %vm6081, nan, %v6091
        %v6093 = vand.u32 2147483647, %v5879
        %vm6094 = vcmp.le.f32.partialorder %v6093, 0.7853982
        %vm6095 = vcmp.lt.s32.totalorder %v5879, 0
        %v6096 = vand.u32 %v5879, 2139095040
        %v6097 = vshrl.u32 %v6096, 23
        %v6098 = vsub.s32 %v6097, 127
        %v6099 = vand.u32 2147483647, %v5879
        %v6100 = vand.u32 %v6099, 8388607
        %v6101 = vor.u32 %v6100, 8388608
        %v6102 = vsub.s32 0, %v6101
        %v6103 = vadd.s32 %v6098, 1
        %vm6104 = vcmp.gt.s32.totalorder %v6103, 0
        %v6105 = vsel %vm6104, %v6103, 0
        %v6106 = vshrl.u32 %v6105, 5
        %v6107 = vand.u32 %v6105, 31
        %v6108 = vsub.s32 32, %v6107
        %v6109 = vshrl.u32 683565275, %v6108
        %v6110 = vshll.u32 683565275, %v6107
        %v6111 = vshrl.u32 2475754826, %v6108
        %v6112 = vor.u32 %v6110, %v6111
        %v6113 = vshll.u32 2475754826, %v6107
        %v6114 = vshrl.u32 2131351028, %v6108
        %v6115 = vor.u32 %v6113, %v6114
        %v6116 = vshll.u32 2131351028, %v6107
        %v6117 = vshrl.u32 2102212464, %v6108
        %v6118 = vor.u32 %v6116, %v6117
        %v6119 = vshll.u32 2102212464, %v6107
        %v6120 = vshrl.u32 920167782, %v6108
        %v6121 = vor.u32 %v6119, %v6120
        %v6122 = vshll.u32 920167782, %v6107
        %v6123 = vshrl.u32 1326507024, %v6108
        %v6124 = vor.u32 %v6122, %v6123
        %vm6125 = vcmp.lt.s32.totalorder %v6106, 1
        %vm6126 = vcmp.lt.s32.totalorder %v6106, 2
        %vm6127 = vcmp.lt.s32.totalorder %v6106, 3
        %vm6128 = vcmp.lt.s32.totalorder %v6106, 4
        %v6129 = vsel %vm6125, %v6109, %v6112
        %v6130 = vsel %vm6128, %v6118, 2102212464
        %v6131 = vsel %vm6127, %v6115, %v6130
        %v6132 = vsel %vm6126, %v6129, %v6131
        %v6133 = vsel %vm6125, %v6112, %v6115
        %v6134 = vsel %vm6128, %v6121, 920167782
        %v6135 = vsel %vm6127, %v6118, %v6134
        %v6136 = vsel %vm6126, %v6133, %v6135
        %v6137 = vsel %vm6125, %v6115, %v6118
        %v6138 = vsel %vm6128, %v6124, 1326507024
        %v6139 = vsel %vm6127, %v6121, %v6138
        %v6140 = vsel %vm6126, %v6137, %v6139
        %v6141 = vshll.u32 %v6101, 8
        %v6142 = vmul.u32.u64.compose %v6141, %v6140
        %v6143 = vextract.low.u32 %v6142
        %v6144 = vextract.high.u32 %v6142
        %v6145 = vmul.u32.u64.compose %v6141, %v6136
        %v6146 = vextract.low.u32 %v6145
        %v6147 = vextract.high.u32 %v6145
        %v6148 = vmul.u32 %v6141, %v6132
        %v6149 = vadd.s32 %v6144, %v6146
        %vm6150 = vc.u32 %v6144, %v6146
        %v6151 = vadd.s32 %v6147, 1
        %v6152 = vsel %vm6150, %v6151, %v6147
        %v6153 = vadd.s32 %v6148, %v6152
        %v6154 = vadd.s32 %v6153, 536870912
        %v6155 = vshrl.u32 %v6154, 30
        %v6156 = vshll.u32 %v6155, 30
        %v6157 = vsub.s32 %v6153, %v6156
        %vm6158 = vcmp.lt.s32.totalorder %v6157, 0
        %v6159 = vsub.s32 0, %v6157
        %v6160 = vsel %vm6158, %v6159, %v6157
        %v6161 = vclz %v6160
        %v6162 = vsub.s32 %v6161, 2
        %vm6163 = vcmp.gt.s32.totalorder 0, %v6162
        %v6164 = vsel %vm6163, 0, %v6162
        %v6165 = vsub.s32 32, %v6164
        %v6166 = vshll.u32 %v6157, %v6164
        %v6167 = vshrl.u32 %v6149, %v6165
        %v6168 = vor.u32 %v6166, %v6167
        %v6169 = vsub.s32 4294967266, %v6164
        %v6170 = vadd.s32 %v6169, 127
        %v6171 = vshll.u32 %v6170, 23
        %v6172 = vor.u32 4788187, %v6171
        %v6173 = vand.u32 2147483647, %v6172
        %v6175 = vcvt.s32.f32 %v6168
        %v6176 = vmul.f32 %v6175, %v6173
        %v6177 = vxor.u32 %v6176, 2147483648
        %v6178 = vsel %vm6095, %v6177, %v6176
        %v6179 = vsub.s32 4, %v6155
        %v6180 = vsel %vm6095, %v6179, %v6155
        %v6181 = vsel %vm6094, %v5879, %v6178
        %v6182 = vsel %vm6094, 0, %v6180
        %v6183 = vcosq.f32.pop %v6181
        %v6184 = vsinq.f32.pop %v6181
        %vm6185 = vweird.f32 %v5879
        %v6186 = vadd.s32 %v6182, 3
        %v6187 = vand.u32 %v6186, 3
        %vm6188 = vcmp.lt.s32.totalorder %v6187, 2
        %vm6189 = vcmp.eq.s32.totalorder %v6187, 0
        %v6190 = vxor.u32 %v6184, 2147483648
        %v6191 = vsel %vm6189, %v6183, %v6190
        %vm6192 = vcmp.eq.s32.totalorder %v6187, 2
        %v6193 = vxor.u32 %v6183, 2147483648
        %v6194 = vsel %vm6192, %v6193, %v6184
        %v6195 = vsel %vm6188, %v6191, %v6194
        %v6196 = vsel %vm6185, nan, %v6195
        %v6197 = vand.u32 2147483647, %v5880
        %vm6198 = vcmp.le.f32.partialorder %v6197, 0.7853982
        %vm6199 = vcmp.lt.s32.totalorder %v5880, 0
        %v6200 = vand.u32 %v5880, 2139095040
        %v6201 = vshrl.u32 %v6200, 23
        %v6202 = vsub.s32 %v6201, 127
        %v6203 = vand.u32 2147483647, %v5880
        %v6204 = vand.u32 %v6203, 8388607
        %v6205 = vor.u32 %v6204, 8388608
        %v6206 = vsub.s32 0, %v6205
        %v6207 = vadd.s32 %v6202, 1
        %vm6208 = vcmp.gt.s32.totalorder %v6207, 0
        %v6209 = vsel %vm6208, %v6207, 0
        %v6210 = vshrl.u32 %v6209, 5
        %v6211 = vand.u32 %v6209, 31
        %v6212 = vsub.s32 32, %v6211
        %v6213 = vshrl.u32 683565275, %v6212
        %v6214 = vshll.u32 683565275, %v6211
        %v6215 = vshrl.u32 2475754826, %v6212
        %v6216 = vor.u32 %v6214, %v6215
        %v6217 = vshll.u32 2475754826, %v6211
        %v6218 = vshrl.u32 2131351028, %v6212
        %v6219 = vor.u32 %v6217, %v6218
        %v6220 = vshll.u32 2131351028, %v6211
        %v6221 = vshrl.u32 2102212464, %v6212
        %v6222 = vor.u32 %v6220, %v6221
        %v6223 = vshll.u32 2102212464, %v6211
        %v6224 = vshrl.u32 920167782, %v6212
        %v6225 = vor.u32 %v6223, %v6224
        %v6226 = vshll.u32 920167782, %v6211
        %v6227 = vshrl.u32 1326507024, %v6212
        %v6228 = vor.u32 %v6226, %v6227
        %vm6229 = vcmp.lt.s32.totalorder %v6210, 1
        %vm6230 = vcmp.lt.s32.totalorder %v6210, 2
        %vm6231 = vcmp.lt.s32.totalorder %v6210, 3
        %vm6232 = vcmp.lt.s32.totalorder %v6210, 4
        %v6233 = vsel %vm6229, %v6213, %v6216
        %v6234 = vsel %vm6232, %v6222, 2102212464
        %v6235 = vsel %vm6231, %v6219, %v6234
        %v6236 = vsel %vm6230, %v6233, %v6235
        %v6237 = vsel %vm6229, %v6216, %v6219
        %v6238 = vsel %vm6232, %v6225, 920167782
        %v6239 = vsel %vm6231, %v6222, %v6238
        %v6240 = vsel %vm6230, %v6237, %v6239
        %v6241 = vsel %vm6229, %v6219, %v6222
        %v6242 = vsel %vm6232, %v6228, 1326507024
        %v6243 = vsel %vm6231, %v6225, %v6242
        %v6244 = vsel %vm6230, %v6241, %v6243
        %v6245 = vshll.u32 %v6205, 8
        %v6246 = vmul.u32.u64.compose %v6245, %v6244
        %v6247 = vextract.low.u32 %v6246
        %v6248 = vextract.high.u32 %v6246
        %v6249 = vmul.u32.u64.compose %v6245, %v6240
        %v6250 = vextract.low.u32 %v6249
        %v6251 = vextract.high.u32 %v6249
        %v6252 = vmul.u32 %v6245, %v6236
        %v6253 = vadd.s32 %v6248, %v6250
        %vm6254 = vc.u32 %v6248, %v6250
        %v6255 = vadd.s32 %v6251, 1
        %v6256 = vsel %vm6254, %v6255, %v6251
        %v6257 = vadd.s32 %v6252, %v6256
        %v6258 = vadd.s32 %v6257, 536870912
        %v6259 = vshrl.u32 %v6258, 30
        %v6260 = vshll.u32 %v6259, 30
        %v6261 = vsub.s32 %v6257, %v6260
        %vm6262 = vcmp.lt.s32.totalorder %v6261, 0
        %v6263 = vsub.s32 0, %v6261
        %v6264 = vsel %vm6262, %v6263, %v6261
        %v6265 = vclz %v6264
        %v6266 = vsub.s32 %v6265, 2
        %vm6267 = vcmp.gt.s32.totalorder 0, %v6266
        %v6268 = vsel %vm6267, 0, %v6266
        %v6269 = vsub.s32 32, %v6268
        %v6270 = vshll.u32 %v6261, %v6268
        %v6271 = vshrl.u32 %v6253, %v6269
        %v6272 = vor.u32 %v6270, %v6271
        %v6273 = vsub.s32 4294967266, %v6268
        %v6274 = vadd.s32 %v6273, 127
        %v6275 = vshll.u32 %v6274, 23
        %v6276 = vor.u32 4788187, %v6275
        %v6277 = vand.u32 2147483647, %v6276
        %v6279 = vcvt.s32.f32 %v6272
        %v6280 = vmul.f32 %v6279, %v6277
        %v6281 = vxor.u32 %v6280, 2147483648
        %v6282 = vsel %vm6199, %v6281, %v6280
        %v6283 = vsub.s32 4, %v6259
        %v6284 = vsel %vm6199, %v6283, %v6259
        %v6285 = vsel %vm6198, %v5880, %v6282
        %v6286 = vsel %vm6198, 0, %v6284
        %v6287 = vcosq.f32.pop %v6285
        %v6288 = vsinq.f32.pop %v6285
        %vm6289 = vweird.f32 %v5880
        %v6290 = vadd.s32 %v6286, 3
        %v6291 = vand.u32 %v6290, 3
        %vm6292 = vcmp.lt.s32.totalorder %v6291, 2
        %vm6293 = vcmp.eq.s32.totalorder %v6291, 0
        %v6294 = vxor.u32 %v6288, 2147483648
        %v6295 = vsel %vm6293, %v6287, %v6294
        %vm6296 = vcmp.eq.s32.totalorder %v6291, 2
        %v6297 = vxor.u32 %v6287, 2147483648
        %v6298 = vsel %vm6296, %v6297, %v6288
        %v6299 = vsel %vm6292, %v6295, %v6298
        %v6300 = vsel %vm6289, nan, %v6299
        %v6301 = vand.u32 2147483647, %v5881
        %vm6302 = vcmp.le.f32.partialorder %v6301, 0.7853982
        %vm6303 = vcmp.lt.s32.totalorder %v5881, 0
        %v6304 = vand.u32 %v5881, 2139095040
        %v6305 = vshrl.u32 %v6304, 23
        %v6306 = vsub.s32 %v6305, 127
        %v6307 = vand.u32 2147483647, %v5881
        %v6308 = vand.u32 %v6307, 8388607
        %v6309 = vor.u32 %v6308, 8388608
        %v6310 = vsub.s32 0, %v6309
        %v6311 = vadd.s32 %v6306, 1
        %vm6312 = vcmp.gt.s32.totalorder %v6311, 0
        %v6313 = vsel %vm6312, %v6311, 0
        %v6314 = vshrl.u32 %v6313, 5
        %v6315 = vand.u32 %v6313, 31
        %v6316 = vsub.s32 32, %v6315
        %v6317 = vshrl.u32 683565275, %v6316
        %v6318 = vshll.u32 683565275, %v6315
        %v6319 = vshrl.u32 2475754826, %v6316
        %v6320 = vor.u32 %v6318, %v6319
        %v6321 = vshll.u32 2475754826, %v6315
        %v6322 = vshrl.u32 2131351028, %v6316
        %v6323 = vor.u32 %v6321, %v6322
        %v6324 = vshll.u32 2131351028, %v6315
        %v6325 = vshrl.u32 2102212464, %v6316
        %v6326 = vor.u32 %v6324, %v6325
        %v6327 = vshll.u32 2102212464, %v6315
        %v6328 = vshrl.u32 920167782, %v6316
        %v6329 = vor.u32 %v6327, %v6328
        %v6330 = vshll.u32 920167782, %v6315
        %v6331 = vshrl.u32 1326507024, %v6316
        %v6332 = vor.u32 %v6330, %v6331
        %vm6333 = vcmp.lt.s32.totalorder %v6314, 1
        %vm6334 = vcmp.lt.s32.totalorder %v6314, 2
        %vm6335 = vcmp.lt.s32.totalorder %v6314, 3
        %vm6336 = vcmp.lt.s32.totalorder %v6314, 4
        %v6337 = vsel %vm6333, %v6317, %v6320
        %v6338 = vsel %vm6336, %v6326, 2102212464
        %v6339 = vsel %vm6335, %v6323, %v6338
        %v6340 = vsel %vm6334, %v6337, %v6339
        %v6341 = vsel %vm6333, %v6320, %v6323
        %v6342 = vsel %vm6336, %v6329, 920167782
        %v6343 = vsel %vm6335, %v6326, %v6342
        %v6344 = vsel %vm6334, %v6341, %v6343
        %v6345 = vsel %vm6333, %v6323, %v6326
        %v6346 = vsel %vm6336, %v6332, 1326507024
        %v6347 = vsel %vm6335, %v6329, %v6346
        %v6348 = vsel %vm6334, %v6345, %v6347
        %v6349 = vshll.u32 %v6309, 8
        %v6350 = vmul.u32.u64.compose %v6349, %v6348
        %v6351 = vextract.low.u32 %v6350
        %v6352 = vextract.high.u32 %v6350
        %v6353 = vmul.u32.u64.compose %v6349, %v6344
        %v6354 = vextract.low.u32 %v6353
        %v6355 = vextract.high.u32 %v6353
        %v6356 = vmul.u32 %v6349, %v6340
        %v6357 = vadd.s32 %v6352, %v6354
        %vm6358 = vc.u32 %v6352, %v6354
        %v6359 = vadd.s32 %v6355, 1
        %v6360 = vsel %vm6358, %v6359, %v6355
        %v6361 = vadd.s32 %v6356, %v6360
        %v6362 = vadd.s32 %v6361, 536870912
        %v6363 = vshrl.u32 %v6362, 30
        %v6364 = vshll.u32 %v6363, 30
        %v6365 = vsub.s32 %v6361, %v6364
        %vm6366 = vcmp.lt.s32.totalorder %v6365, 0
        %v6367 = vsub.s32 0, %v6365
        %v6368 = vsel %vm6366, %v6367, %v6365
        %v6369 = vclz %v6368
        %v6370 = vsub.s32 %v6369, 2
        %vm6371 = vcmp.gt.s32.totalorder 0, %v6370
        %v6372 = vsel %vm6371, 0, %v6370
        %v6373 = vsub.s32 32, %v6372
        %v6374 = vshll.u32 %v6365, %v6372
        %v6375 = vshrl.u32 %v6357, %v6373
        %v6376 = vor.u32 %v6374, %v6375
        %v6377 = vsub.s32 4294967266, %v6372
        %v6378 = vadd.s32 %v6377, 127
        %v6379 = vshll.u32 %v6378, 23
        %v6380 = vor.u32 4788187, %v6379
        %v6381 = vand.u32 2147483647, %v6380
        %v6383 = vcvt.s32.f32 %v6376
        %v6384 = vmul.f32 %v6383, %v6381
        %v6385 = vxor.u32 %v6384, 2147483648
        %v6386 = vsel %vm6303, %v6385, %v6384
        %v6387 = vsub.s32 4, %v6363
        %v6388 = vsel %vm6303, %v6387, %v6363
        %v6389 = vsel %vm6302, %v5881, %v6386
        %v6390 = vsel %vm6302, 0, %v6388
        %v6391 = vcosq.f32.pop %v6389
        %v6392 = vsinq.f32.pop %v6389
        %vm6393 = vweird.f32 %v5881
        %v6394 = vadd.s32 %v6390, 3
        %v6395 = vand.u32 %v6394, 3
        %vm6396 = vcmp.lt.s32.totalorder %v6395, 2
        %vm6397 = vcmp.eq.s32.totalorder %v6395, 0
        %v6398 = vxor.u32 %v6392, 2147483648
        %v6399 = vsel %vm6397, %v6391, %v6398
        %vm6400 = vcmp.eq.s32.totalorder %v6395, 2
        %v6401 = vxor.u32 %v6391, 2147483648
        %v6402 = vsel %vm6400, %v6401, %v6392
        %v6403 = vsel %vm6396, %v6399, %v6402
        %v6404 = vsel %vm6393, nan, %v6403
        %v6405 = vand.u32 2147483647, %v5882
        %vm6406 = vcmp.le.f32.partialorder %v6405, 0.7853982
        %vm6407 = vcmp.lt.s32.totalorder %v5882, 0
        %v6408 = vand.u32 %v5882, 2139095040
        %v6409 = vshrl.u32 %v6408, 23
        %v6410 = vsub.s32 %v6409, 127
        %v6411 = vand.u32 2147483647, %v5882
        %v6412 = vand.u32 %v6411, 8388607
        %v6413 = vor.u32 %v6412, 8388608
        %v6414 = vsub.s32 0, %v6413
        %v6415 = vadd.s32 %v6410, 1
        %vm6416 = vcmp.gt.s32.totalorder %v6415, 0
        %v6417 = vsel %vm6416, %v6415, 0
        %v6418 = vshrl.u32 %v6417, 5
        %v6419 = vand.u32 %v6417, 31
        %v6420 = vsub.s32 32, %v6419
        %v6421 = vshrl.u32 683565275, %v6420
        %v6422 = vshll.u32 683565275, %v6419
        %v6423 = vshrl.u32 2475754826, %v6420
        %v6424 = vor.u32 %v6422, %v6423
        %v6425 = vshll.u32 2475754826, %v6419
        %v6426 = vshrl.u32 2131351028, %v6420
        %v6427 = vor.u32 %v6425, %v6426
        %v6428 = vshll.u32 2131351028, %v6419
        %v6429 = vshrl.u32 2102212464, %v6420
        %v6430 = vor.u32 %v6428, %v6429
        %v6431 = vshll.u32 2102212464, %v6419
        %v6432 = vshrl.u32 920167782, %v6420
        %v6433 = vor.u32 %v6431, %v6432
        %v6434 = vshll.u32 920167782, %v6419
        %v6435 = vshrl.u32 1326507024, %v6420
        %v6436 = vor.u32 %v6434, %v6435
        %vm6437 = vcmp.lt.s32.totalorder %v6418, 1
        %vm6438 = vcmp.lt.s32.totalorder %v6418, 2
        %vm6439 = vcmp.lt.s32.totalorder %v6418, 3
        %vm6440 = vcmp.lt.s32.totalorder %v6418, 4
        %v6441 = vsel %vm6437, %v6421, %v6424
        %v6442 = vsel %vm6440, %v6430, 2102212464
        %v6443 = vsel %vm6439, %v6427, %v6442
        %v6444 = vsel %vm6438, %v6441, %v6443
        %v6445 = vsel %vm6437, %v6424, %v6427
        %v6446 = vsel %vm6440, %v6433, 920167782
        %v6447 = vsel %vm6439, %v6430, %v6446
        %v6448 = vsel %vm6438, %v6445, %v6447
        %v6449 = vsel %vm6437, %v6427, %v6430
        %v6450 = vsel %vm6440, %v6436, 1326507024
        %v6451 = vsel %vm6439, %v6433, %v6450
        %v6452 = vsel %vm6438, %v6449, %v6451
        %v6453 = vshll.u32 %v6413, 8
        %v6454 = vmul.u32.u64.compose %v6453, %v6452
        %v6455 = vextract.low.u32 %v6454
        %v6456 = vextract.high.u32 %v6454
        %v6457 = vmul.u32.u64.compose %v6453, %v6448
        %v6458 = vextract.low.u32 %v6457
        %v6459 = vextract.high.u32 %v6457
        %v6460 = vmul.u32 %v6453, %v6444
        %v6461 = vadd.s32 %v6456, %v6458
        %vm6462 = vc.u32 %v6456, %v6458
        %v6463 = vadd.s32 %v6459, 1
        %v6464 = vsel %vm6462, %v6463, %v6459
        %v6465 = vadd.s32 %v6460, %v6464
        %v6466 = vadd.s32 %v6465, 536870912
        %v6467 = vshrl.u32 %v6466, 30
        %v6468 = vshll.u32 %v6467, 30
        %v6469 = vsub.s32 %v6465, %v6468
        %vm6470 = vcmp.lt.s32.totalorder %v6469, 0
        %v6471 = vsub.s32 0, %v6469
        %v6472 = vsel %vm6470, %v6471, %v6469
        %v6473 = vclz %v6472
        %v6474 = vsub.s32 %v6473, 2
        %vm6475 = vcmp.gt.s32.totalorder 0, %v6474
        %v6476 = vsel %vm6475, 0, %v6474
        %v6477 = vsub.s32 32, %v6476
        %v6478 = vshll.u32 %v6469, %v6476
        %v6479 = vshrl.u32 %v6461, %v6477
        %v6480 = vor.u32 %v6478, %v6479
        %v6481 = vsub.s32 4294967266, %v6476
        %v6482 = vadd.s32 %v6481, 127
        %v6483 = vshll.u32 %v6482, 23
        %v6484 = vor.u32 4788187, %v6483
        %v6485 = vand.u32 2147483647, %v6484
        %v6487 = vcvt.s32.f32 %v6480
        %v6488 = vmul.f32 %v6487, %v6485
        %v6489 = vxor.u32 %v6488, 2147483648
        %v6490 = vsel %vm6407, %v6489, %v6488
        %v6491 = vsub.s32 4, %v6467
        %v6492 = vsel %vm6407, %v6491, %v6467
        %v6493 = vsel %vm6406, %v5882, %v6490
        %v6494 = vsel %vm6406, 0, %v6492
        %v6495 = vcosq.f32.pop %v6493
        %v6496 = vsinq.f32.pop %v6493
        %vm6497 = vweird.f32 %v5882
        %v6498 = vadd.s32 %v6494, 3
        %v6499 = vand.u32 %v6498, 3
        %vm6500 = vcmp.lt.s32.totalorder %v6499, 2
        %vm6501 = vcmp.eq.s32.totalorder %v6499, 0
        %v6502 = vxor.u32 %v6496, 2147483648
        %v6503 = vsel %vm6501, %v6495, %v6502
        %vm6504 = vcmp.eq.s32.totalorder %v6499, 2
        %v6505 = vxor.u32 %v6495, 2147483648
        %v6506 = vsel %vm6504, %v6505, %v6496
        %v6507 = vsel %vm6500, %v6503, %v6506
        %v6508 = vsel %vm6497, nan, %v6507
        %v6509 = vand.u32 2147483647, %v5883
        %vm6510 = vcmp.le.f32.partialorder %v6509, 0.7853982
        %vm6511 = vcmp.lt.s32.totalorder %v5883, 0
        %v6512 = vand.u32 %v5883, 2139095040
        %v6513 = vshrl.u32 %v6512, 23
        %v6514 = vsub.s32 %v6513, 127
        %v6515 = vand.u32 2147483647, %v5883
        %v6516 = vand.u32 %v6515, 8388607
        %v6517 = vor.u32 %v6516, 8388608
        %v6518 = vsub.s32 0, %v6517
        %v6519 = vadd.s32 %v6514, 1
        %vm6520 = vcmp.gt.s32.totalorder %v6519, 0
        %v6521 = vsel %vm6520, %v6519, 0
        %v6522 = vshrl.u32 %v6521, 5
        %v6523 = vand.u32 %v6521, 31
        %v6524 = vsub.s32 32, %v6523
        %v6525 = vshrl.u32 683565275, %v6524
        %v6526 = vshll.u32 683565275, %v6523
        %v6527 = vshrl.u32 2475754826, %v6524
        %v6528 = vor.u32 %v6526, %v6527
        %v6529 = vshll.u32 2475754826, %v6523
        %v6530 = vshrl.u32 2131351028, %v6524
        %v6531 = vor.u32 %v6529, %v6530
        %v6532 = vshll.u32 2131351028, %v6523
        %v6533 = vshrl.u32 2102212464, %v6524
        %v6534 = vor.u32 %v6532, %v6533
        %v6535 = vshll.u32 2102212464, %v6523
        %v6536 = vshrl.u32 920167782, %v6524
        %v6537 = vor.u32 %v6535, %v6536
        %v6538 = vshll.u32 920167782, %v6523
        %v6539 = vshrl.u32 1326507024, %v6524
        %v6540 = vor.u32 %v6538, %v6539
        %vm6541 = vcmp.lt.s32.totalorder %v6522, 1
        %vm6542 = vcmp.lt.s32.totalorder %v6522, 2
        %vm6543 = vcmp.lt.s32.totalorder %v6522, 3
        %vm6544 = vcmp.lt.s32.totalorder %v6522, 4
        %v6545 = vsel %vm6541, %v6525, %v6528
        %v6546 = vsel %vm6544, %v6534, 2102212464
        %v6547 = vsel %vm6543, %v6531, %v6546
        %v6548 = vsel %vm6542, %v6545, %v6547
        %v6549 = vsel %vm6541, %v6528, %v6531
        %v6550 = vsel %vm6544, %v6537, 920167782
        %v6551 = vsel %vm6543, %v6534, %v6550
        %v6552 = vsel %vm6542, %v6549, %v6551
        %v6553 = vsel %vm6541, %v6531, %v6534
        %v6554 = vsel %vm6544, %v6540, 1326507024
        %v6555 = vsel %vm6543, %v6537, %v6554
        %v6556 = vsel %vm6542, %v6553, %v6555
        %v6557 = vshll.u32 %v6517, 8
        %v6558 = vmul.u32.u64.compose %v6557, %v6556
        %v6559 = vextract.low.u32 %v6558
        %v6560 = vextract.high.u32 %v6558
        %v6561 = vmul.u32.u64.compose %v6557, %v6552
        %v6562 = vextract.low.u32 %v6561
        %v6563 = vextract.high.u32 %v6561
        %v6564 = vmul.u32 %v6557, %v6548
        %v6565 = vadd.s32 %v6560, %v6562
        %vm6566 = vc.u32 %v6560, %v6562
        %v6567 = vadd.s32 %v6563, 1
        %v6568 = vsel %vm6566, %v6567, %v6563
        %v6569 = vadd.s32 %v6564, %v6568
        %v6570 = vadd.s32 %v6569, 536870912
        %v6571 = vshrl.u32 %v6570, 30
        %v6572 = vshll.u32 %v6571, 30
        %v6573 = vsub.s32 %v6569, %v6572
        %vm6574 = vcmp.lt.s32.totalorder %v6573, 0
        %v6575 = vsub.s32 0, %v6573
        %v6576 = vsel %vm6574, %v6575, %v6573
        %v6577 = vclz %v6576
        %v6578 = vsub.s32 %v6577, 2
        %vm6579 = vcmp.gt.s32.totalorder 0, %v6578
        %v6580 = vsel %vm6579, 0, %v6578
        %v6581 = vsub.s32 32, %v6580
        %v6582 = vshll.u32 %v6573, %v6580
        %v6583 = vshrl.u32 %v6565, %v6581
        %v6584 = vor.u32 %v6582, %v6583
        %v6585 = vsub.s32 4294967266, %v6580
        %v6586 = vadd.s32 %v6585, 127
        %v6587 = vshll.u32 %v6586, 23
        %v6588 = vor.u32 4788187, %v6587
        %v6589 = vand.u32 2147483647, %v6588
        %v6591 = vcvt.s32.f32 %v6584
        %v6592 = vmul.f32 %v6591, %v6589
        %v6593 = vxor.u32 %v6592, 2147483648
        %v6594 = vsel %vm6511, %v6593, %v6592
        %v6595 = vsub.s32 4, %v6571
        %v6596 = vsel %vm6511, %v6595, %v6571
        %v6597 = vsel %vm6510, %v5883, %v6594
        %v6598 = vsel %vm6510, 0, %v6596
        %v6599 = vcosq.f32.pop %v6597
        %v6600 = vsinq.f32.pop %v6597
        %vm6601 = vweird.f32 %v5883
        %v6602 = vadd.s32 %v6598, 3
        %v6603 = vand.u32 %v6602, 3
        %vm6604 = vcmp.lt.s32.totalorder %v6603, 2
        %vm6605 = vcmp.eq.s32.totalorder %v6603, 0
        %v6606 = vxor.u32 %v6600, 2147483648
        %v6607 = vsel %vm6605, %v6599, %v6606
        %vm6608 = vcmp.eq.s32.totalorder %v6603, 2
        %v6609 = vxor.u32 %v6599, 2147483648
        %v6610 = vsel %vm6608, %v6609, %v6600
        %v6611 = vsel %vm6604, %v6607, %v6610
        %v6612 = vsel %vm6601, nan, %v6611
        %v6613 = vand.u32 2147483647, %v5884
        %vm6614 = vcmp.le.f32.partialorder %v6613, 0.7853982
        %vm6615 = vcmp.lt.s32.totalorder %v5884, 0
        %v6616 = vand.u32 %v5884, 2139095040
        %v6617 = vshrl.u32 %v6616, 23
        %v6618 = vsub.s32 %v6617, 127
        %v6619 = vand.u32 2147483647, %v5884
        %v6620 = vand.u32 %v6619, 8388607
        %v6621 = vor.u32 %v6620, 8388608
        %v6622 = vsub.s32 0, %v6621
        %v6623 = vadd.s32 %v6618, 1
        %vm6624 = vcmp.gt.s32.totalorder %v6623, 0
        %v6625 = vsel %vm6624, %v6623, 0
        %v6626 = vshrl.u32 %v6625, 5
        %v6627 = vand.u32 %v6625, 31
        %v6628 = vsub.s32 32, %v6627
        %v6629 = vshrl.u32 683565275, %v6628
        %v6630 = vshll.u32 683565275, %v6627
        %v6631 = vshrl.u32 2475754826, %v6628
        %v6632 = vor.u32 %v6630, %v6631
        %v6633 = vshll.u32 2475754826, %v6627
        %v6634 = vshrl.u32 2131351028, %v6628
        %v6635 = vor.u32 %v6633, %v6634
        %v6636 = vshll.u32 2131351028, %v6627
        %v6637 = vshrl.u32 2102212464, %v6628
        %v6638 = vor.u32 %v6636, %v6637
        %v6639 = vshll.u32 2102212464, %v6627
        %v6640 = vshrl.u32 920167782, %v6628
        %v6641 = vor.u32 %v6639, %v6640
        %v6642 = vshll.u32 920167782, %v6627
        %v6643 = vshrl.u32 1326507024, %v6628
        %v6644 = vor.u32 %v6642, %v6643
        %vm6645 = vcmp.lt.s32.totalorder %v6626, 1
        %vm6646 = vcmp.lt.s32.totalorder %v6626, 2
        %vm6647 = vcmp.lt.s32.totalorder %v6626, 3
        %vm6648 = vcmp.lt.s32.totalorder %v6626, 4
        %v6649 = vsel %vm6645, %v6629, %v6632
        %v6650 = vsel %vm6648, %v6638, 2102212464
        %v6651 = vsel %vm6647, %v6635, %v6650
        %v6652 = vsel %vm6646, %v6649, %v6651
        %v6653 = vsel %vm6645, %v6632, %v6635
        %v6654 = vsel %vm6648, %v6641, 920167782
        %v6655 = vsel %vm6647, %v6638, %v6654
        %v6656 = vsel %vm6646, %v6653, %v6655
        %v6657 = vsel %vm6645, %v6635, %v6638
        %v6658 = vsel %vm6648, %v6644, 1326507024
        %v6659 = vsel %vm6647, %v6641, %v6658
        %v6660 = vsel %vm6646, %v6657, %v6659
        %v6661 = vshll.u32 %v6621, 8
        %v6662 = vmul.u32.u64.compose %v6661, %v6660
        %v6663 = vextract.low.u32 %v6662
        %v6664 = vextract.high.u32 %v6662
        %v6665 = vmul.u32.u64.compose %v6661, %v6656
        %v6666 = vextract.low.u32 %v6665
        %v6667 = vextract.high.u32 %v6665
        %v6668 = vmul.u32 %v6661, %v6652
        %v6669 = vadd.s32 %v6664, %v6666
        %vm6670 = vc.u32 %v6664, %v6666
        %v6671 = vadd.s32 %v6667, 1
        %v6672 = vsel %vm6670, %v6671, %v6667
        %v6673 = vadd.s32 %v6668, %v6672
        %v6674 = vadd.s32 %v6673, 536870912
        %v6675 = vshrl.u32 %v6674, 30
        %v6676 = vshll.u32 %v6675, 30
        %v6677 = vsub.s32 %v6673, %v6676
        %vm6678 = vcmp.lt.s32.totalorder %v6677, 0
        %v6679 = vsub.s32 0, %v6677
        %v6680 = vsel %vm6678, %v6679, %v6677
        %v6681 = vclz %v6680
        %v6682 = vsub.s32 %v6681, 2
        %vm6683 = vcmp.gt.s32.totalorder 0, %v6682
        %v6684 = vsel %vm6683, 0, %v6682
        %v6685 = vsub.s32 32, %v6684
        %v6686 = vshll.u32 %v6677, %v6684
        %v6687 = vshrl.u32 %v6669, %v6685
        %v6688 = vor.u32 %v6686, %v6687
        %v6689 = vsub.s32 4294967266, %v6684
        %v6690 = vadd.s32 %v6689, 127
        %v6691 = vshll.u32 %v6690, 23
        %v6692 = vor.u32 4788187, %v6691
        %v6693 = vand.u32 2147483647, %v6692
        %v6695 = vcvt.s32.f32 %v6688
        %v6696 = vmul.f32 %v6695, %v6693
        %v6697 = vxor.u32 %v6696, 2147483648
        %v6698 = vsel %vm6615, %v6697, %v6696
        %v6699 = vsub.s32 4, %v6675
        %v6700 = vsel %vm6615, %v6699, %v6675
        %v6701 = vsel %vm6614, %v5884, %v6698
        %v6702 = vsel %vm6614, 0, %v6700
        %v6703 = vcosq.f32.pop %v6701
        %v6704 = vsinq.f32.pop %v6701
        %vm6705 = vweird.f32 %v5884
        %v6706 = vadd.s32 %v6702, 3
        %v6707 = vand.u32 %v6706, 3
        %vm6708 = vcmp.lt.s32.totalorder %v6707, 2
        %vm6709 = vcmp.eq.s32.totalorder %v6707, 0
        %v6710 = vxor.u32 %v6704, 2147483648
        %v6711 = vsel %vm6709, %v6703, %v6710
        %vm6712 = vcmp.eq.s32.totalorder %v6707, 2
        %v6713 = vxor.u32 %v6703, 2147483648
        %v6714 = vsel %vm6712, %v6713, %v6704
        %v6715 = vsel %vm6708, %v6711, %v6714
        %v6716 = vsel %vm6705, nan, %v6715
        %s6717 = scalar_lea.vmem [#allocation2], 28
        %v6718 = vld [vmem:[%s6717] sm:$0x1]
        %v6719 = vld [vmem:[%s6717 + $0x1] sm:$0x1]
        %v6720 = vld [vmem:[%s6717 + $0x2] sm:$0x1]
        %v6721 = vld [vmem:[%s6717 + $0x3] sm:$0x1]
        %6722 = vrot.lane.b32.xlu0 %v5988, 1
        %v6723 = vpop.permute.xlu0 %6722
        %6724 = vrot.lane.b32.xlu0 %v6092, 1
        %v6725 = vpop.permute.xlu0 %6724
        %6726 = vrot.lane.b32.xlu0 %v6196, 1
        %v6727 = vpop.permute.xlu0 %6726
        %6728 = vrot.lane.b32.xlu0 %v6300, 1
        %v6729 = vpop.permute.xlu0 %6728
        %6730 = vrot.lane.b32.xlu0 %v6404, 1
        %v6731 = vpop.permute.xlu0 %6730
        %6732 = vrot.lane.b32.xlu0 %v6508, 1
        %v6733 = vpop.permute.xlu0 %6732
        %6734 = vrot.lane.b32.xlu0 %v6612, 1
        %v6735 = vpop.permute.xlu0 %6734
        %6736 = vrot.lane.b32.xlu0 %v6716, 1
        %v6737 = vpop.permute.xlu0 %6736
        %6738 = vrot.lane.b32.xlu0 %v5988, 127
        %v6739 = vpop.permute.xlu0 %6738
        %6740 = vrot.lane.b32.xlu0 %v6092, 127
        %v6741 = vpop.permute.xlu0 %6740
        %6742 = vrot.lane.b32.xlu0 %v6196, 127
        %v6743 = vpop.permute.xlu0 %6742
        %6744 = vrot.lane.b32.xlu0 %v6300, 127
        %v6745 = vpop.permute.xlu0 %6744
        %6746 = vrot.lane.b32.xlu0 %v6404, 127
        %v6747 = vpop.permute.xlu0 %6746
        %6748 = vrot.lane.b32.xlu0 %v6508, 127
        %v6749 = vpop.permute.xlu0 %6748
        %6750 = vrot.lane.b32.xlu0 %v6612, 127
        %v6751 = vpop.permute.xlu0 %6750
        %6752 = vrot.lane.b32.xlu0 %v6716, 127
        %v6753 = vpop.permute.xlu0 %6752
        %v6754 = vlaneseq
        %v6755 = vshrl.u32 %v6754, 7
        %v6756 = vsub.s32 0, %v6755
        %v6757 = vrot.slane %v6718, %v6756
        %v6758 = vmul.f32 %v6757, %v6723
        %v6759 = vmul.f32 %v6757, %v6725
        %v6760 = vmul.f32 %v6757, %v6727
        %v6761 = vmul.f32 %v6757, %v6729
        %v6762 = vmul.f32 %v6757, %v6731
        %v6763 = vmul.f32 %v6757, %v6733
        %v6764 = vmul.f32 %v6757, %v6735
        %v6765 = vmul.f32 %v6757, %v6737
        %v6766 = vlaneseq
        %v6767 = vshrl.u32 %v6766, 7
        %v6768 = vsub.s32 0, %v6767
        %v6769 = vrot.slane %v6719, %v6768
        %v6770 = vmul.f32 %v6769, %v5988
        %v6771 = vmul.f32 %v6769, %v6092
        %v6772 = vmul.f32 %v6769, %v6196
        %v6773 = vmul.f32 %v6769, %v6300
        %v6774 = vmul.f32 %v6769, %v6404
        %v6775 = vmul.f32 %v6769, %v6508
        %v6776 = vmul.f32 %v6769, %v6612
        %v6777 = vmul.f32 %v6769, %v6716
        %v6778 = vadd.f32 %v6758, %v6770
        %v6779 = vadd.f32 %v6759, %v6771
        %v6780 = vadd.f32 %v6760, %v6772
        %v6781 = vadd.f32 %v6761, %v6773
        %v6782 = vadd.f32 %v6762, %v6774
        %v6783 = vadd.f32 %v6763, %v6775
        %v6784 = vadd.f32 %v6764, %v6776
        %v6785 = vadd.f32 %v6765, %v6777
        %v6786 = vlaneseq
        %v6787 = vshrl.u32 %v6786, 7
        %v6788 = vsub.s32 0, %v6787
        %v6789 = vrot.slane %v6720, %v6788
        %v6790 = vmul.f32 %v6789, %v6739
        %v6791 = vmul.f32 %v6789, %v6741
        %v6792 = vmul.f32 %v6789, %v6743
        %v6793 = vmul.f32 %v6789, %v6745
        %v6794 = vmul.f32 %v6789, %v6747
        %v6795 = vmul.f32 %v6789, %v6749
        %v6796 = vmul.f32 %v6789, %v6751
        %v6797 = vmul.f32 %v6789, %v6753
        %v6798 = vadd.f32 %v6778, %v6790
        %v6799 = vadd.f32 %v6779, %v6791
        %v6800 = vadd.f32 %v6780, %v6792
        %v6801 = vadd.f32 %v6781, %v6793
        %v6802 = vadd.f32 %v6782, %v6794
        %v6803 = vadd.f32 %v6783, %v6795
        %v6804 = vadd.f32 %v6784, %v6796
        %v6805 = vadd.f32 %v6785, %v6797
        %v6806 = vlaneseq
        %v6807 = vshrl.u32 %v6806, 7
        %v6808 = vsub.s32 0, %v6807
        %v6809 = vrot.slane %v6721, %v6808
        %v6810 = vadd.f32 %v6798, %v6809
        %v6811 = vadd.f32 %v6799, %v6809
        %v6812 = vadd.f32 %v6800, %v6809
        %v6813 = vadd.f32 %v6801, %v6809
        %v6814 = vadd.f32 %v6802, %v6809
        %v6815 = vadd.f32 %v6803, %v6809
        %v6816 = vadd.f32 %v6804, %v6809
        %v6817 = vadd.f32 %v6805, %v6809
        %v6818 = vand.u32 2147483647, %v6810
        %vm6819 = vcmp.le.f32.partialorder %v6818, 0.7853982
        %vm6820 = vcmp.lt.s32.totalorder %v6810, 0
        %v6821 = vand.u32 %v6810, 2139095040
        %v6822 = vshrl.u32 %v6821, 23
        %v6823 = vsub.s32 %v6822, 127
        %v6824 = vand.u32 2147483647, %v6810
        %v6825 = vand.u32 %v6824, 8388607
        %v6826 = vor.u32 %v6825, 8388608
        %v6827 = vsub.s32 0, %v6826
        %v6828 = vadd.s32 %v6823, 1
        %vm6829 = vcmp.gt.s32.totalorder %v6828, 0
        %v6830 = vsel %vm6829, %v6828, 0
        %v6831 = vshrl.u32 %v6830, 5
        %v6832 = vand.u32 %v6830, 31
        %v6833 = vsub.s32 32, %v6832
        %v6834 = vshrl.u32 683565275, %v6833
        %v6835 = vshll.u32 683565275, %v6832
        %v6836 = vshrl.u32 2475754826, %v6833
        %v6837 = vor.u32 %v6835, %v6836
        %v6838 = vshll.u32 2475754826, %v6832
        %v6839 = vshrl.u32 2131351028, %v6833
        %v6840 = vor.u32 %v6838, %v6839
        %v6841 = vshll.u32 2131351028, %v6832
        %v6842 = vshrl.u32 2102212464, %v6833
        %v6843 = vor.u32 %v6841, %v6842
        %v6844 = vshll.u32 2102212464, %v6832
        %v6845 = vshrl.u32 920167782, %v6833
        %v6846 = vor.u32 %v6844, %v6845
        %v6847 = vshll.u32 920167782, %v6832
        %v6848 = vshrl.u32 1326507024, %v6833
        %v6849 = vor.u32 %v6847, %v6848
        %vm6850 = vcmp.lt.s32.totalorder %v6831, 1
        %vm6851 = vcmp.lt.s32.totalorder %v6831, 2
        %vm6852 = vcmp.lt.s32.totalorder %v6831, 3
        %vm6853 = vcmp.lt.s32.totalorder %v6831, 4
        %v6854 = vsel %vm6850, %v6834, %v6837
        %v6855 = vsel %vm6853, %v6843, 2102212464
        %v6856 = vsel %vm6852, %v6840, %v6855
        %v6857 = vsel %vm6851, %v6854, %v6856
        %v6858 = vsel %vm6850, %v6837, %v6840
        %v6859 = vsel %vm6853, %v6846, 920167782
        %v6860 = vsel %vm6852, %v6843, %v6859
        %v6861 = vsel %vm6851, %v6858, %v6860
        %v6862 = vsel %vm6850, %v6840, %v6843
        %v6863 = vsel %vm6853, %v6849, 1326507024
        %v6864 = vsel %vm6852, %v6846, %v6863
        %v6865 = vsel %vm6851, %v6862, %v6864
        %v6866 = vshll.u32 %v6826, 8
        %v6867 = vmul.u32.u64.compose %v6866, %v6865
        %v6868 = vextract.low.u32 %v6867
        %v6869 = vextract.high.u32 %v6867
        %v6870 = vmul.u32.u64.compose %v6866, %v6861
        %v6871 = vextract.low.u32 %v6870
        %v6872 = vextract.high.u32 %v6870
        %v6873 = vmul.u32 %v6866, %v6857
        %v6874 = vadd.s32 %v6869, %v6871
        %vm6875 = vc.u32 %v6869, %v6871
        %v6876 = vadd.s32 %v6872, 1
        %v6877 = vsel %vm6875, %v6876, %v6872
        %v6878 = vadd.s32 %v6873, %v6877
        %v6879 = vadd.s32 %v6878, 536870912
        %v6880 = vshrl.u32 %v6879, 30
        %v6881 = vshll.u32 %v6880, 30
        %v6882 = vsub.s32 %v6878, %v6881
        %vm6883 = vcmp.lt.s32.totalorder %v6882, 0
        %v6884 = vsub.s32 0, %v6882
        %v6885 = vsel %vm6883, %v6884, %v6882
        %v6886 = vclz %v6885
        %v6887 = vsub.s32 %v6886, 2
        %vm6888 = vcmp.gt.s32.totalorder 0, %v6887
        %v6889 = vsel %vm6888, 0, %v6887
        %v6890 = vsub.s32 32, %v6889
        %v6891 = vshll.u32 %v6882, %v6889
        %v6892 = vshrl.u32 %v6874, %v6890
        %v6893 = vor.u32 %v6891, %v6892
        %v6894 = vsub.s32 4294967266, %v6889
        %v6895 = vadd.s32 %v6894, 127
        %v6896 = vshll.u32 %v6895, 23
        %v6897 = vor.u32 4788187, %v6896
        %v6898 = vand.u32 2147483647, %v6897
        %v6900 = vcvt.s32.f32 %v6893
        %v6901 = vmul.f32 %v6900, %v6898
        %v6902 = vxor.u32 %v6901, 2147483648
        %v6903 = vsel %vm6820, %v6902, %v6901
        %v6904 = vsub.s32 4, %v6880
        %v6905 = vsel %vm6820, %v6904, %v6880
        %v6906 = vsel %vm6819, %v6810, %v6903
        %v6907 = vsel %vm6819, 0, %v6905
        %v6908 = vcosq.f32.pop %v6906
        %v6909 = vsinq.f32.pop %v6906
        %vm6910 = vweird.f32 %v6810
        %v6911 = vadd.s32 %v6907, 3
        %v6912 = vand.u32 %v6911, 3
        %vm6913 = vcmp.lt.s32.totalorder %v6912, 2
        %vm6914 = vcmp.eq.s32.totalorder %v6912, 0
        %v6915 = vxor.u32 %v6909, 2147483648
        %v6916 = vsel %vm6914, %v6908, %v6915
        %vm6917 = vcmp.eq.s32.totalorder %v6912, 2
        %v6918 = vxor.u32 %v6908, 2147483648
        %v6919 = vsel %vm6917, %v6918, %v6909
        %v6920 = vsel %vm6913, %v6916, %v6919
        %v6921 = vsel %vm6910, nan, %v6920
        %v6922 = vand.u32 2147483647, %v6811
        %vm6923 = vcmp.le.f32.partialorder %v6922, 0.7853982
        %vm6924 = vcmp.lt.s32.totalorder %v6811, 0
        %v6925 = vand.u32 %v6811, 2139095040
        %v6926 = vshrl.u32 %v6925, 23
        %v6927 = vsub.s32 %v6926, 127
        %v6928 = vand.u32 2147483647, %v6811
        %v6929 = vand.u32 %v6928, 8388607
        %v6930 = vor.u32 %v6929, 8388608
        %v6931 = vsub.s32 0, %v6930
        %v6932 = vadd.s32 %v6927, 1
        %vm6933 = vcmp.gt.s32.totalorder %v6932, 0
        %v6934 = vsel %vm6933, %v6932, 0
        %v6935 = vshrl.u32 %v6934, 5
        %v6936 = vand.u32 %v6934, 31
        %v6937 = vsub.s32 32, %v6936
        %v6938 = vshrl.u32 683565275, %v6937
        %v6939 = vshll.u32 683565275, %v6936
        %v6940 = vshrl.u32 2475754826, %v6937
        %v6941 = vor.u32 %v6939, %v6940
        %v6942 = vshll.u32 2475754826, %v6936
        %v6943 = vshrl.u32 2131351028, %v6937
        %v6944 = vor.u32 %v6942, %v6943
        %v6945 = vshll.u32 2131351028, %v6936
        %v6946 = vshrl.u32 2102212464, %v6937
        %v6947 = vor.u32 %v6945, %v6946
        %v6948 = vshll.u32 2102212464, %v6936
        %v6949 = vshrl.u32 920167782, %v6937
        %v6950 = vor.u32 %v6948, %v6949
        %v6951 = vshll.u32 920167782, %v6936
        %v6952 = vshrl.u32 1326507024, %v6937
        %v6953 = vor.u32 %v6951, %v6952
        %vm6954 = vcmp.lt.s32.totalorder %v6935, 1
        %vm6955 = vcmp.lt.s32.totalorder %v6935, 2
        %vm6956 = vcmp.lt.s32.totalorder %v6935, 3
        %vm6957 = vcmp.lt.s32.totalorder %v6935, 4
        %v6958 = vsel %vm6954, %v6938, %v6941
        %v6959 = vsel %vm6957, %v6947, 2102212464
        %v6960 = vsel %vm6956, %v6944, %v6959
        %v6961 = vsel %vm6955, %v6958, %v6960
        %v6962 = vsel %vm6954, %v6941, %v6944
        %v6963 = vsel %vm6957, %v6950, 920167782
        %v6964 = vsel %vm6956, %v6947, %v6963
        %v6965 = vsel %vm6955, %v6962, %v6964
        %v6966 = vsel %vm6954, %v6944, %v6947
        %v6967 = vsel %vm6957, %v6953, 1326507024
        %v6968 = vsel %vm6956, %v6950, %v6967
        %v6969 = vsel %vm6955, %v6966, %v6968
        %v6970 = vshll.u32 %v6930, 8
        %v6971 = vmul.u32.u64.compose %v6970, %v6969
        %v6972 = vextract.low.u32 %v6971
        %v6973 = vextract.high.u32 %v6971
        %v6974 = vmul.u32.u64.compose %v6970, %v6965
        %v6975 = vextract.low.u32 %v6974
        %v6976 = vextract.high.u32 %v6974
        %v6977 = vmul.u32 %v6970, %v6961
        %v6978 = vadd.s32 %v6973, %v6975
        %vm6979 = vc.u32 %v6973, %v6975
        %v6980 = vadd.s32 %v6976, 1
        %v6981 = vsel %vm6979, %v6980, %v6976
        %v6982 = vadd.s32 %v6977, %v6981
        %v6983 = vadd.s32 %v6982, 536870912
        %v6984 = vshrl.u32 %v6983, 30
        %v6985 = vshll.u32 %v6984, 30
        %v6986 = vsub.s32 %v6982, %v6985
        %vm6987 = vcmp.lt.s32.totalorder %v6986, 0
        %v6988 = vsub.s32 0, %v6986
        %v6989 = vsel %vm6987, %v6988, %v6986
        %v6990 = vclz %v6989
        %v6991 = vsub.s32 %v6990, 2
        %vm6992 = vcmp.gt.s32.totalorder 0, %v6991
        %v6993 = vsel %vm6992, 0, %v6991
        %v6994 = vsub.s32 32, %v6993
        %v6995 = vshll.u32 %v6986, %v6993
        %v6996 = vshrl.u32 %v6978, %v6994
        %v6997 = vor.u32 %v6995, %v6996
        %v6998 = vsub.s32 4294967266, %v6993
        %v6999 = vadd.s32 %v6998, 127
        %v7000 = vshll.u32 %v6999, 23
        %v7001 = vor.u32 4788187, %v7000
        %v7002 = vand.u32 2147483647, %v7001
        %v7004 = vcvt.s32.f32 %v6997
        %v7005 = vmul.f32 %v7004, %v7002
        %v7006 = vxor.u32 %v7005, 2147483648
        %v7007 = vsel %vm6924, %v7006, %v7005
        %v7008 = vsub.s32 4, %v6984
        %v7009 = vsel %vm6924, %v7008, %v6984
        %v7010 = vsel %vm6923, %v6811, %v7007
        %v7011 = vsel %vm6923, 0, %v7009
        %v7012 = vcosq.f32.pop %v7010
        %v7013 = vsinq.f32.pop %v7010
        %vm7014 = vweird.f32 %v6811
        %v7015 = vadd.s32 %v7011, 3
        %v7016 = vand.u32 %v7015, 3
        %vm7017 = vcmp.lt.s32.totalorder %v7016, 2
        %vm7018 = vcmp.eq.s32.totalorder %v7016, 0
        %v7019 = vxor.u32 %v7013, 2147483648
        %v7020 = vsel %vm7018, %v7012, %v7019
        %vm7021 = vcmp.eq.s32.totalorder %v7016, 2
        %v7022 = vxor.u32 %v7012, 2147483648
        %v7023 = vsel %vm7021, %v7022, %v7013
        %v7024 = vsel %vm7017, %v7020, %v7023
        %v7025 = vsel %vm7014, nan, %v7024
        %v7026 = vand.u32 2147483647, %v6812
        %vm7027 = vcmp.le.f32.partialorder %v7026, 0.7853982
        %vm7028 = vcmp.lt.s32.totalorder %v6812, 0
        %v7029 = vand.u32 %v6812, 2139095040
        %v7030 = vshrl.u32 %v7029, 23
        %v7031 = vsub.s32 %v7030, 127
        %v7032 = vand.u32 2147483647, %v6812
        %v7033 = vand.u32 %v7032, 8388607
        %v7034 = vor.u32 %v7033, 8388608
        %v7035 = vsub.s32 0, %v7034
        %v7036 = vadd.s32 %v7031, 1
        %vm7037 = vcmp.gt.s32.totalorder %v7036, 0
        %v7038 = vsel %vm7037, %v7036, 0
        %v7039 = vshrl.u32 %v7038, 5
        %v7040 = vand.u32 %v7038, 31
        %v7041 = vsub.s32 32, %v7040
        %v7042 = vshrl.u32 683565275, %v7041
        %v7043 = vshll.u32 683565275, %v7040
        %v7044 = vshrl.u32 2475754826, %v7041
        %v7045 = vor.u32 %v7043, %v7044
        %v7046 = vshll.u32 2475754826, %v7040
        %v7047 = vshrl.u32 2131351028, %v7041
        %v7048 = vor.u32 %v7046, %v7047
        %v7049 = vshll.u32 2131351028, %v7040
        %v7050 = vshrl.u32 2102212464, %v7041
        %v7051 = vor.u32 %v7049, %v7050
        %v7052 = vshll.u32 2102212464, %v7040
        %v7053 = vshrl.u32 920167782, %v7041
        %v7054 = vor.u32 %v7052, %v7053
        %v7055 = vshll.u32 920167782, %v7040
        %v7056 = vshrl.u32 1326507024, %v7041
        %v7057 = vor.u32 %v7055, %v7056
        %vm7058 = vcmp.lt.s32.totalorder %v7039, 1
        %vm7059 = vcmp.lt.s32.totalorder %v7039, 2
        %vm7060 = vcmp.lt.s32.totalorder %v7039, 3
        %vm7061 = vcmp.lt.s32.totalorder %v7039, 4
        %v7062 = vsel %vm7058, %v7042, %v7045
        %v7063 = vsel %vm7061, %v7051, 2102212464
        %v7064 = vsel %vm7060, %v7048, %v7063
        %v7065 = vsel %vm7059, %v7062, %v7064
        %v7066 = vsel %vm7058, %v7045, %v7048
        %v7067 = vsel %vm7061, %v7054, 920167782
        %v7068 = vsel %vm7060, %v7051, %v7067
        %v7069 = vsel %vm7059, %v7066, %v7068
        %v7070 = vsel %vm7058, %v7048, %v7051
        %v7071 = vsel %vm7061, %v7057, 1326507024
        %v7072 = vsel %vm7060, %v7054, %v7071
        %v7073 = vsel %vm7059, %v7070, %v7072
        %v7074 = vshll.u32 %v7034, 8
        %v7075 = vmul.u32.u64.compose %v7074, %v7073
        %v7076 = vextract.low.u32 %v7075
        %v7077 = vextract.high.u32 %v7075
        %v7078 = vmul.u32.u64.compose %v7074, %v7069
        %v7079 = vextract.low.u32 %v7078
        %v7080 = vextract.high.u32 %v7078
        %v7081 = vmul.u32 %v7074, %v7065
        %v7082 = vadd.s32 %v7077, %v7079
        %vm7083 = vc.u32 %v7077, %v7079
        %v7084 = vadd.s32 %v7080, 1
        %v7085 = vsel %vm7083, %v7084, %v7080
        %v7086 = vadd.s32 %v7081, %v7085
        %v7087 = vadd.s32 %v7086, 536870912
        %v7088 = vshrl.u32 %v7087, 30
        %v7089 = vshll.u32 %v7088, 30
        %v7090 = vsub.s32 %v7086, %v7089
        %vm7091 = vcmp.lt.s32.totalorder %v7090, 0
        %v7092 = vsub.s32 0, %v7090
        %v7093 = vsel %vm7091, %v7092, %v7090
        %v7094 = vclz %v7093
        %v7095 = vsub.s32 %v7094, 2
        %vm7096 = vcmp.gt.s32.totalorder 0, %v7095
        %v7097 = vsel %vm7096, 0, %v7095
        %v7098 = vsub.s32 32, %v7097
        %v7099 = vshll.u32 %v7090, %v7097
        %v7100 = vshrl.u32 %v7082, %v7098
        %v7101 = vor.u32 %v7099, %v7100
        %v7102 = vsub.s32 4294967266, %v7097
        %v7103 = vadd.s32 %v7102, 127
        %v7104 = vshll.u32 %v7103, 23
        %v7105 = vor.u32 4788187, %v7104
        %v7106 = vand.u32 2147483647, %v7105
        %v7108 = vcvt.s32.f32 %v7101
        %v7109 = vmul.f32 %v7108, %v7106
        %v7110 = vxor.u32 %v7109, 2147483648
        %v7111 = vsel %vm7028, %v7110, %v7109
        %v7112 = vsub.s32 4, %v7088
        %v7113 = vsel %vm7028, %v7112, %v7088
        %v7114 = vsel %vm7027, %v6812, %v7111
        %v7115 = vsel %vm7027, 0, %v7113
        %v7116 = vcosq.f32.pop %v7114
        %v7117 = vsinq.f32.pop %v7114
        %vm7118 = vweird.f32 %v6812
        %v7119 = vadd.s32 %v7115, 3
        %v7120 = vand.u32 %v7119, 3
        %vm7121 = vcmp.lt.s32.totalorder %v7120, 2
        %vm7122 = vcmp.eq.s32.totalorder %v7120, 0
        %v7123 = vxor.u32 %v7117, 2147483648
        %v7124 = vsel %vm7122, %v7116, %v7123
        %vm7125 = vcmp.eq.s32.totalorder %v7120, 2
        %v7126 = vxor.u32 %v7116, 2147483648
        %v7127 = vsel %vm7125, %v7126, %v7117
        %v7128 = vsel %vm7121, %v7124, %v7127
        %v7129 = vsel %vm7118, nan, %v7128
        %v7130 = vand.u32 2147483647, %v6813
        %vm7131 = vcmp.le.f32.partialorder %v7130, 0.7853982
        %vm7132 = vcmp.lt.s32.totalorder %v6813, 0
        %v7133 = vand.u32 %v6813, 2139095040
        %v7134 = vshrl.u32 %v7133, 23
        %v7135 = vsub.s32 %v7134, 127
        %v7136 = vand.u32 2147483647, %v6813
        %v7137 = vand.u32 %v7136, 8388607
        %v7138 = vor.u32 %v7137, 8388608
        %v7139 = vsub.s32 0, %v7138
        %v7140 = vadd.s32 %v7135, 1
        %vm7141 = vcmp.gt.s32.totalorder %v7140, 0
        %v7142 = vsel %vm7141, %v7140, 0
        %v7143 = vshrl.u32 %v7142, 5
        %v7144 = vand.u32 %v7142, 31
        %v7145 = vsub.s32 32, %v7144
        %v7146 = vshrl.u32 683565275, %v7145
        %v7147 = vshll.u32 683565275, %v7144
        %v7148 = vshrl.u32 2475754826, %v7145
        %v7149 = vor.u32 %v7147, %v7148
        %v7150 = vshll.u32 2475754826, %v7144
        %v7151 = vshrl.u32 2131351028, %v7145
        %v7152 = vor.u32 %v7150, %v7151
        %v7153 = vshll.u32 2131351028, %v7144
        %v7154 = vshrl.u32 2102212464, %v7145
        %v7155 = vor.u32 %v7153, %v7154
        %v7156 = vshll.u32 2102212464, %v7144
        %v7157 = vshrl.u32 920167782, %v7145
        %v7158 = vor.u32 %v7156, %v7157
        %v7159 = vshll.u32 920167782, %v7144
        %v7160 = vshrl.u32 1326507024, %v7145
        %v7161 = vor.u32 %v7159, %v7160
        %vm7162 = vcmp.lt.s32.totalorder %v7143, 1
        %vm7163 = vcmp.lt.s32.totalorder %v7143, 2
        %vm7164 = vcmp.lt.s32.totalorder %v7143, 3
        %vm7165 = vcmp.lt.s32.totalorder %v7143, 4
        %v7166 = vsel %vm7162, %v7146, %v7149
        %v7167 = vsel %vm7165, %v7155, 2102212464
        %v7168 = vsel %vm7164, %v7152, %v7167
        %v7169 = vsel %vm7163, %v7166, %v7168
        %v7170 = vsel %vm7162, %v7149, %v7152
        %v7171 = vsel %vm7165, %v7158, 920167782
        %v7172 = vsel %vm7164, %v7155, %v7171
        %v7173 = vsel %vm7163, %v7170, %v7172
        %v7174 = vsel %vm7162, %v7152, %v7155
        %v7175 = vsel %vm7165, %v7161, 1326507024
        %v7176 = vsel %vm7164, %v7158, %v7175
        %v7177 = vsel %vm7163, %v7174, %v7176
        %v7178 = vshll.u32 %v7138, 8
        %v7179 = vmul.u32.u64.compose %v7178, %v7177
        %v7180 = vextract.low.u32 %v7179
        %v7181 = vextract.high.u32 %v7179
        %v7182 = vmul.u32.u64.compose %v7178, %v7173
        %v7183 = vextract.low.u32 %v7182
        %v7184 = vextract.high.u32 %v7182
        %v7185 = vmul.u32 %v7178, %v7169
        %v7186 = vadd.s32 %v7181, %v7183
        %vm7187 = vc.u32 %v7181, %v7183
        %v7188 = vadd.s32 %v7184, 1
        %v7189 = vsel %vm7187, %v7188, %v7184
        %v7190 = vadd.s32 %v7185, %v7189
        %v7191 = vadd.s32 %v7190, 536870912
        %v7192 = vshrl.u32 %v7191, 30
        %v7193 = vshll.u32 %v7192, 30
        %v7194 = vsub.s32 %v7190, %v7193
        %vm7195 = vcmp.lt.s32.totalorder %v7194, 0
        %v7196 = vsub.s32 0, %v7194
        %v7197 = vsel %vm7195, %v7196, %v7194
        %v7198 = vclz %v7197
        %v7199 = vsub.s32 %v7198, 2
        %vm7200 = vcmp.gt.s32.totalorder 0, %v7199
        %v7201 = vsel %vm7200, 0, %v7199
        %v7202 = vsub.s32 32, %v7201
        %v7203 = vshll.u32 %v7194, %v7201
        %v7204 = vshrl.u32 %v7186, %v7202
        %v7205 = vor.u32 %v7203, %v7204
        %v7206 = vsub.s32 4294967266, %v7201
        %v7207 = vadd.s32 %v7206, 127
        %v7208 = vshll.u32 %v7207, 23
        %v7209 = vor.u32 4788187, %v7208
        %v7210 = vand.u32 2147483647, %v7209
        %v7212 = vcvt.s32.f32 %v7205
        %v7213 = vmul.f32 %v7212, %v7210
        %v7214 = vxor.u32 %v7213, 2147483648
        %v7215 = vsel %vm7132, %v7214, %v7213
        %v7216 = vsub.s32 4, %v7192
        %v7217 = vsel %vm7132, %v7216, %v7192
        %v7218 = vsel %vm7131, %v6813, %v7215
        %v7219 = vsel %vm7131, 0, %v7217
        %v7220 = vcosq.f32.pop %v7218
        %v7221 = vsinq.f32.pop %v7218
        %vm7222 = vweird.f32 %v6813
        %v7223 = vadd.s32 %v7219, 3
        %v7224 = vand.u32 %v7223, 3
        %vm7225 = vcmp.lt.s32.totalorder %v7224, 2
        %vm7226 = vcmp.eq.s32.totalorder %v7224, 0
        %v7227 = vxor.u32 %v7221, 2147483648
        %v7228 = vsel %vm7226, %v7220, %v7227
        %vm7229 = vcmp.eq.s32.totalorder %v7224, 2
        %v7230 = vxor.u32 %v7220, 2147483648
        %v7231 = vsel %vm7229, %v7230, %v7221
        %v7232 = vsel %vm7225, %v7228, %v7231
        %v7233 = vsel %vm7222, nan, %v7232
        %v7234 = vand.u32 2147483647, %v6814
        %vm7235 = vcmp.le.f32.partialorder %v7234, 0.7853982
        %vm7236 = vcmp.lt.s32.totalorder %v6814, 0
        %v7237 = vand.u32 %v6814, 2139095040
        %v7238 = vshrl.u32 %v7237, 23
        %v7239 = vsub.s32 %v7238, 127
        %v7240 = vand.u32 2147483647, %v6814
        %v7241 = vand.u32 %v7240, 8388607
        %v7242 = vor.u32 %v7241, 8388608
        %v7243 = vsub.s32 0, %v7242
        %v7244 = vadd.s32 %v7239, 1
        %vm7245 = vcmp.gt.s32.totalorder %v7244, 0
        %v7246 = vsel %vm7245, %v7244, 0
        %v7247 = vshrl.u32 %v7246, 5
        %v7248 = vand.u32 %v7246, 31
        %v7249 = vsub.s32 32, %v7248
        %v7250 = vshrl.u32 683565275, %v7249
        %v7251 = vshll.u32 683565275, %v7248
        %v7252 = vshrl.u32 2475754826, %v7249
        %v7253 = vor.u32 %v7251, %v7252
        %v7254 = vshll.u32 2475754826, %v7248
        %v7255 = vshrl.u32 2131351028, %v7249
        %v7256 = vor.u32 %v7254, %v7255
        %v7257 = vshll.u32 2131351028, %v7248
        %v7258 = vshrl.u32 2102212464, %v7249
        %v7259 = vor.u32 %v7257, %v7258
        %v7260 = vshll.u32 2102212464, %v7248
        %v7261 = vshrl.u32 920167782, %v7249
        %v7262 = vor.u32 %v7260, %v7261
        %v7263 = vshll.u32 920167782, %v7248
        %v7264 = vshrl.u32 1326507024, %v7249
        %v7265 = vor.u32 %v7263, %v7264
        %vm7266 = vcmp.lt.s32.totalorder %v7247, 1
        %vm7267 = vcmp.lt.s32.totalorder %v7247, 2
        %vm7268 = vcmp.lt.s32.totalorder %v7247, 3
        %vm7269 = vcmp.lt.s32.totalorder %v7247, 4
        %v7270 = vsel %vm7266, %v7250, %v7253
        %v7271 = vsel %vm7269, %v7259, 2102212464
        %v7272 = vsel %vm7268, %v7256, %v7271
        %v7273 = vsel %vm7267, %v7270, %v7272
        %v7274 = vsel %vm7266, %v7253, %v7256
        %v7275 = vsel %vm7269, %v7262, 920167782
        %v7276 = vsel %vm7268, %v7259, %v7275
        %v7277 = vsel %vm7267, %v7274, %v7276
        %v7278 = vsel %vm7266, %v7256, %v7259
        %v7279 = vsel %vm7269, %v7265, 1326507024
        %v7280 = vsel %vm7268, %v7262, %v7279
        %v7281 = vsel %vm7267, %v7278, %v7280
        %v7282 = vshll.u32 %v7242, 8
        %v7283 = vmul.u32.u64.compose %v7282, %v7281
        %v7284 = vextract.low.u32 %v7283
        %v7285 = vextract.high.u32 %v7283
        %v7286 = vmul.u32.u64.compose %v7282, %v7277
        %v7287 = vextract.low.u32 %v7286
        %v7288 = vextract.high.u32 %v7286
        %v7289 = vmul.u32 %v7282, %v7273
        %v7290 = vadd.s32 %v7285, %v7287
        %vm7291 = vc.u32 %v7285, %v7287
        %v7292 = vadd.s32 %v7288, 1
        %v7293 = vsel %vm7291, %v7292, %v7288
        %v7294 = vadd.s32 %v7289, %v7293
        %v7295 = vadd.s32 %v7294, 536870912
        %v7296 = vshrl.u32 %v7295, 30
        %v7297 = vshll.u32 %v7296, 30
        %v7298 = vsub.s32 %v7294, %v7297
        %vm7299 = vcmp.lt.s32.totalorder %v7298, 0
        %v7300 = vsub.s32 0, %v7298
        %v7301 = vsel %vm7299, %v7300, %v7298
        %v7302 = vclz %v7301
        %v7303 = vsub.s32 %v7302, 2
        %vm7304 = vcmp.gt.s32.totalorder 0, %v7303
        %v7305 = vsel %vm7304, 0, %v7303
        %v7306 = vsub.s32 32, %v7305
        %v7307 = vshll.u32 %v7298, %v7305
        %v7308 = vshrl.u32 %v7290, %v7306
        %v7309 = vor.u32 %v7307, %v7308
        %v7310 = vsub.s32 4294967266, %v7305
        %v7311 = vadd.s32 %v7310, 127
        %v7312 = vshll.u32 %v7311, 23
        %v7313 = vor.u32 4788187, %v7312
        %v7314 = vand.u32 2147483647, %v7313
        %v7316 = vcvt.s32.f32 %v7309
        %v7317 = vmul.f32 %v7316, %v7314
        %v7318 = vxor.u32 %v7317, 2147483648
        %v7319 = vsel %vm7236, %v7318, %v7317
        %v7320 = vsub.s32 4, %v7296
        %v7321 = vsel %vm7236, %v7320, %v7296
        %v7322 = vsel %vm7235, %v6814, %v7319
        %v7323 = vsel %vm7235, 0, %v7321
        %v7324 = vcosq.f32.pop %v7322
        %v7325 = vsinq.f32.pop %v7322
        %vm7326 = vweird.f32 %v6814
        %v7327 = vadd.s32 %v7323, 3
        %v7328 = vand.u32 %v7327, 3
        %vm7329 = vcmp.lt.s32.totalorder %v7328, 2
        %vm7330 = vcmp.eq.s32.totalorder %v7328, 0
        %v7331 = vxor.u32 %v7325, 2147483648
        %v7332 = vsel %vm7330, %v7324, %v7331
        %vm7333 = vcmp.eq.s32.totalorder %v7328, 2
        %v7334 = vxor.u32 %v7324, 2147483648
        %v7335 = vsel %vm7333, %v7334, %v7325
        %v7336 = vsel %vm7329, %v7332, %v7335
        %v7337 = vsel %vm7326, nan, %v7336
        %v7338 = vand.u32 2147483647, %v6815
        %vm7339 = vcmp.le.f32.partialorder %v7338, 0.7853982
        %vm7340 = vcmp.lt.s32.totalorder %v6815, 0
        %v7341 = vand.u32 %v6815, 2139095040
        %v7342 = vshrl.u32 %v7341, 23
        %v7343 = vsub.s32 %v7342, 127
        %v7344 = vand.u32 2147483647, %v6815
        %v7345 = vand.u32 %v7344, 8388607
        %v7346 = vor.u32 %v7345, 8388608
        %v7347 = vsub.s32 0, %v7346
        %v7348 = vadd.s32 %v7343, 1
        %vm7349 = vcmp.gt.s32.totalorder %v7348, 0
        %v7350 = vsel %vm7349, %v7348, 0
        %v7351 = vshrl.u32 %v7350, 5
        %v7352 = vand.u32 %v7350, 31
        %v7353 = vsub.s32 32, %v7352
        %v7354 = vshrl.u32 683565275, %v7353
        %v7355 = vshll.u32 683565275, %v7352
        %v7356 = vshrl.u32 2475754826, %v7353
        %v7357 = vor.u32 %v7355, %v7356
        %v7358 = vshll.u32 2475754826, %v7352
        %v7359 = vshrl.u32 2131351028, %v7353
        %v7360 = vor.u32 %v7358, %v7359
        %v7361 = vshll.u32 2131351028, %v7352
        %v7362 = vshrl.u32 2102212464, %v7353
        %v7363 = vor.u32 %v7361, %v7362
        %v7364 = vshll.u32 2102212464, %v7352
        %v7365 = vshrl.u32 920167782, %v7353
        %v7366 = vor.u32 %v7364, %v7365
        %v7367 = vshll.u32 920167782, %v7352
        %v7368 = vshrl.u32 1326507024, %v7353
        %v7369 = vor.u32 %v7367, %v7368
        %vm7370 = vcmp.lt.s32.totalorder %v7351, 1
        %vm7371 = vcmp.lt.s32.totalorder %v7351, 2
        %vm7372 = vcmp.lt.s32.totalorder %v7351, 3
        %vm7373 = vcmp.lt.s32.totalorder %v7351, 4
        %v7374 = vsel %vm7370, %v7354, %v7357
        %v7375 = vsel %vm7373, %v7363, 2102212464
        %v7376 = vsel %vm7372, %v7360, %v7375
        %v7377 = vsel %vm7371, %v7374, %v7376
        %v7378 = vsel %vm7370, %v7357, %v7360
        %v7379 = vsel %vm7373, %v7366, 920167782
        %v7380 = vsel %vm7372, %v7363, %v7379
        %v7381 = vsel %vm7371, %v7378, %v7380
        %v7382 = vsel %vm7370, %v7360, %v7363
        %v7383 = vsel %vm7373, %v7369, 1326507024
        %v7384 = vsel %vm7372, %v7366, %v7383
        %v7385 = vsel %vm7371, %v7382, %v7384
        %v7386 = vshll.u32 %v7346, 8
        %v7387 = vmul.u32.u64.compose %v7386, %v7385
        %v7388 = vextract.low.u32 %v7387
        %v7389 = vextract.high.u32 %v7387
        %v7390 = vmul.u32.u64.compose %v7386, %v7381
        %v7391 = vextract.low.u32 %v7390
        %v7392 = vextract.high.u32 %v7390
        %v7393 = vmul.u32 %v7386, %v7377
        %v7394 = vadd.s32 %v7389, %v7391
        %vm7395 = vc.u32 %v7389, %v7391
        %v7396 = vadd.s32 %v7392, 1
        %v7397 = vsel %vm7395, %v7396, %v7392
        %v7398 = vadd.s32 %v7393, %v7397
        %v7399 = vadd.s32 %v7398, 536870912
        %v7400 = vshrl.u32 %v7399, 30
        %v7401 = vshll.u32 %v7400, 30
        %v7402 = vsub.s32 %v7398, %v7401
        %vm7403 = vcmp.lt.s32.totalorder %v7402, 0
        %v7404 = vsub.s32 0, %v7402
        %v7405 = vsel %vm7403, %v7404, %v7402
        %v7406 = vclz %v7405
        %v7407 = vsub.s32 %v7406, 2
        %vm7408 = vcmp.gt.s32.totalorder 0, %v7407
        %v7409 = vsel %vm7408, 0, %v7407
        %v7410 = vsub.s32 32, %v7409
        %v7411 = vshll.u32 %v7402, %v7409
        %v7412 = vshrl.u32 %v7394, %v7410
        %v7413 = vor.u32 %v7411, %v7412
        %v7414 = vsub.s32 4294967266, %v7409
        %v7415 = vadd.s32 %v7414, 127
        %v7416 = vshll.u32 %v7415, 23
        %v7417 = vor.u32 4788187, %v7416
        %v7418 = vand.u32 2147483647, %v7417
        %v7420 = vcvt.s32.f32 %v7413
        %v7421 = vmul.f32 %v7420, %v7418
        %v7422 = vxor.u32 %v7421, 2147483648
        %v7423 = vsel %vm7340, %v7422, %v7421
        %v7424 = vsub.s32 4, %v7400
        %v7425 = vsel %vm7340, %v7424, %v7400
        %v7426 = vsel %vm7339, %v6815, %v7423
        %v7427 = vsel %vm7339, 0, %v7425
        %v7428 = vcosq.f32.pop %v7426
        %v7429 = vsinq.f32.pop %v7426
        %vm7430 = vweird.f32 %v6815
        %v7431 = vadd.s32 %v7427, 3
        %v7432 = vand.u32 %v7431, 3
        %vm7433 = vcmp.lt.s32.totalorder %v7432, 2
        %vm7434 = vcmp.eq.s32.totalorder %v7432, 0
        %v7435 = vxor.u32 %v7429, 2147483648
        %v7436 = vsel %vm7434, %v7428, %v7435
        %vm7437 = vcmp.eq.s32.totalorder %v7432, 2
        %v7438 = vxor.u32 %v7428, 2147483648
        %v7439 = vsel %vm7437, %v7438, %v7429
        %v7440 = vsel %vm7433, %v7436, %v7439
        %v7441 = vsel %vm7430, nan, %v7440
        %v7442 = vand.u32 2147483647, %v6816
        %vm7443 = vcmp.le.f32.partialorder %v7442, 0.7853982
        %vm7444 = vcmp.lt.s32.totalorder %v6816, 0
        %v7445 = vand.u32 %v6816, 2139095040
        %v7446 = vshrl.u32 %v7445, 23
        %v7447 = vsub.s32 %v7446, 127
        %v7448 = vand.u32 2147483647, %v6816
        %v7449 = vand.u32 %v7448, 8388607
        %v7450 = vor.u32 %v7449, 8388608
        %v7451 = vsub.s32 0, %v7450
        %v7452 = vadd.s32 %v7447, 1
        %vm7453 = vcmp.gt.s32.totalorder %v7452, 0
        %v7454 = vsel %vm7453, %v7452, 0
        %v7455 = vshrl.u32 %v7454, 5
        %v7456 = vand.u32 %v7454, 31
        %v7457 = vsub.s32 32, %v7456
        %v7458 = vshrl.u32 683565275, %v7457
        %v7459 = vshll.u32 683565275, %v7456
        %v7460 = vshrl.u32 2475754826, %v7457
        %v7461 = vor.u32 %v7459, %v7460
        %v7462 = vshll.u32 2475754826, %v7456
        %v7463 = vshrl.u32 2131351028, %v7457
        %v7464 = vor.u32 %v7462, %v7463
        %v7465 = vshll.u32 2131351028, %v7456
        %v7466 = vshrl.u32 2102212464, %v7457
        %v7467 = vor.u32 %v7465, %v7466
        %v7468 = vshll.u32 2102212464, %v7456
        %v7469 = vshrl.u32 920167782, %v7457
        %v7470 = vor.u32 %v7468, %v7469
        %v7471 = vshll.u32 920167782, %v7456
        %v7472 = vshrl.u32 1326507024, %v7457
        %v7473 = vor.u32 %v7471, %v7472
        %vm7474 = vcmp.lt.s32.totalorder %v7455, 1
        %vm7475 = vcmp.lt.s32.totalorder %v7455, 2
        %vm7476 = vcmp.lt.s32.totalorder %v7455, 3
        %vm7477 = vcmp.lt.s32.totalorder %v7455, 4
        %v7478 = vsel %vm7474, %v7458, %v7461
        %v7479 = vsel %vm7477, %v7467, 2102212464
        %v7480 = vsel %vm7476, %v7464, %v7479
        %v7481 = vsel %vm7475, %v7478, %v7480
        %v7482 = vsel %vm7474, %v7461, %v7464
        %v7483 = vsel %vm7477, %v7470, 920167782
        %v7484 = vsel %vm7476, %v7467, %v7483
        %v7485 = vsel %vm7475, %v7482, %v7484
        %v7486 = vsel %vm7474, %v7464, %v7467
        %v7487 = vsel %vm7477, %v7473, 1326507024
        %v7488 = vsel %vm7476, %v7470, %v7487
        %v7489 = vsel %vm7475, %v7486, %v7488
        %v7490 = vshll.u32 %v7450, 8
        %v7491 = vmul.u32.u64.compose %v7490, %v7489
        %v7492 = vextract.low.u32 %v7491
        %v7493 = vextract.high.u32 %v7491
        %v7494 = vmul.u32.u64.compose %v7490, %v7485
        %v7495 = vextract.low.u32 %v7494
        %v7496 = vextract.high.u32 %v7494
        %v7497 = vmul.u32 %v7490, %v7481
        %v7498 = vadd.s32 %v7493, %v7495
        %vm7499 = vc.u32 %v7493, %v7495
        %v7500 = vadd.s32 %v7496, 1
        %v7501 = vsel %vm7499, %v7500, %v7496
        %v7502 = vadd.s32 %v7497, %v7501
        %v7503 = vadd.s32 %v7502, 536870912
        %v7504 = vshrl.u32 %v7503, 30
        %v7505 = vshll.u32 %v7504, 30
        %v7506 = vsub.s32 %v7502, %v7505
        %vm7507 = vcmp.lt.s32.totalorder %v7506, 0
        %v7508 = vsub.s32 0, %v7506
        %v7509 = vsel %vm7507, %v7508, %v7506
        %v7510 = vclz %v7509
        %v7511 = vsub.s32 %v7510, 2
        %vm7512 = vcmp.gt.s32.totalorder 0, %v7511
        %v7513 = vsel %vm7512, 0, %v7511
        %v7514 = vsub.s32 32, %v7513
        %v7515 = vshll.u32 %v7506, %v7513
        %v7516 = vshrl.u32 %v7498, %v7514
        %v7517 = vor.u32 %v7515, %v7516
        %v7518 = vsub.s32 4294967266, %v7513
        %v7519 = vadd.s32 %v7518, 127
        %v7520 = vshll.u32 %v7519, 23
        %v7521 = vor.u32 4788187, %v7520
        %v7522 = vand.u32 2147483647, %v7521
        %v7524 = vcvt.s32.f32 %v7517
        %v7525 = vmul.f32 %v7524, %v7522
        %v7526 = vxor.u32 %v7525, 2147483648
        %v7527 = vsel %vm7444, %v7526, %v7525
        %v7528 = vsub.s32 4, %v7504
        %v7529 = vsel %vm7444, %v7528, %v7504
        %v7530 = vsel %vm7443, %v6816, %v7527
        %v7531 = vsel %vm7443, 0, %v7529
        %v7532 = vcosq.f32.pop %v7530
        %v7533 = vsinq.f32.pop %v7530
        %vm7534 = vweird.f32 %v6816
        %v7535 = vadd.s32 %v7531, 3
        %v7536 = vand.u32 %v7535, 3
        %vm7537 = vcmp.lt.s32.totalorder %v7536, 2
        %vm7538 = vcmp.eq.s32.totalorder %v7536, 0
        %v7539 = vxor.u32 %v7533, 2147483648
        %v7540 = vsel %vm7538, %v7532, %v7539
        %vm7541 = vcmp.eq.s32.totalorder %v7536, 2
        %v7542 = vxor.u32 %v7532, 2147483648
        %v7543 = vsel %vm7541, %v7542, %v7533
        %v7544 = vsel %vm7537, %v7540, %v7543
        %v7545 = vsel %vm7534, nan, %v7544
        %v7546 = vand.u32 2147483647, %v6817
        %vm7547 = vcmp.le.f32.partialorder %v7546, 0.7853982
        %vm7548 = vcmp.lt.s32.totalorder %v6817, 0
        %v7549 = vand.u32 %v6817, 2139095040
        %v7550 = vshrl.u32 %v7549, 23
        %v7551 = vsub.s32 %v7550, 127
        %v7552 = vand.u32 2147483647, %v6817
        %v7553 = vand.u32 %v7552, 8388607
        %v7554 = vor.u32 %v7553, 8388608
        %v7555 = vsub.s32 0, %v7554
        %v7556 = vadd.s32 %v7551, 1
        %vm7557 = vcmp.gt.s32.totalorder %v7556, 0
        %v7558 = vsel %vm7557, %v7556, 0
        %v7559 = vshrl.u32 %v7558, 5
        %v7560 = vand.u32 %v7558, 31
        %v7561 = vsub.s32 32, %v7560
        %v7562 = vshrl.u32 683565275, %v7561
        %v7563 = vshll.u32 683565275, %v7560
        %v7564 = vshrl.u32 2475754826, %v7561
        %v7565 = vor.u32 %v7563, %v7564
        %v7566 = vshll.u32 2475754826, %v7560
        %v7567 = vshrl.u32 2131351028, %v7561
        %v7568 = vor.u32 %v7566, %v7567
        %v7569 = vshll.u32 2131351028, %v7560
        %v7570 = vshrl.u32 2102212464, %v7561
        %v7571 = vor.u32 %v7569, %v7570
        %v7572 = vshll.u32 2102212464, %v7560
        %v7573 = vshrl.u32 920167782, %v7561
        %v7574 = vor.u32 %v7572, %v7573
        %v7575 = vshll.u32 920167782, %v7560
        %v7576 = vshrl.u32 1326507024, %v7561
        %v7577 = vor.u32 %v7575, %v7576
        %vm7578 = vcmp.lt.s32.totalorder %v7559, 1
        %vm7579 = vcmp.lt.s32.totalorder %v7559, 2
        %vm7580 = vcmp.lt.s32.totalorder %v7559, 3
        %vm7581 = vcmp.lt.s32.totalorder %v7559, 4
        %v7582 = vsel %vm7578, %v7562, %v7565
        %v7583 = vsel %vm7581, %v7571, 2102212464
        %v7584 = vsel %vm7580, %v7568, %v7583
        %v7585 = vsel %vm7579, %v7582, %v7584
        %v7586 = vsel %vm7578, %v7565, %v7568
        %v7587 = vsel %vm7581, %v7574, 920167782
        %v7588 = vsel %vm7580, %v7571, %v7587
        %v7589 = vsel %vm7579, %v7586, %v7588
        %v7590 = vsel %vm7578, %v7568, %v7571
        %v7591 = vsel %vm7581, %v7577, 1326507024
        %v7592 = vsel %vm7580, %v7574, %v7591
        %v7593 = vsel %vm7579, %v7590, %v7592
        %v7594 = vshll.u32 %v7554, 8
        %v7595 = vmul.u32.u64.compose %v7594, %v7593
        %v7596 = vextract.low.u32 %v7595
        %v7597 = vextract.high.u32 %v7595
        %v7598 = vmul.u32.u64.compose %v7594, %v7589
        %v7599 = vextract.low.u32 %v7598
        %v7600 = vextract.high.u32 %v7598
        %v7601 = vmul.u32 %v7594, %v7585
        %v7602 = vadd.s32 %v7597, %v7599
        %vm7603 = vc.u32 %v7597, %v7599
        %v7604 = vadd.s32 %v7600, 1
        %v7605 = vsel %vm7603, %v7604, %v7600
        %v7606 = vadd.s32 %v7601, %v7605
        %v7607 = vadd.s32 %v7606, 536870912
        %v7608 = vshrl.u32 %v7607, 30
        %v7609 = vshll.u32 %v7608, 30
        %v7610 = vsub.s32 %v7606, %v7609
        %vm7611 = vcmp.lt.s32.totalorder %v7610, 0
        %v7612 = vsub.s32 0, %v7610
        %v7613 = vsel %vm7611, %v7612, %v7610
        %v7614 = vclz %v7613
        %v7615 = vsub.s32 %v7614, 2
        %vm7616 = vcmp.gt.s32.totalorder 0, %v7615
        %v7617 = vsel %vm7616, 0, %v7615
        %v7618 = vsub.s32 32, %v7617
        %v7619 = vshll.u32 %v7610, %v7617
        %v7620 = vshrl.u32 %v7602, %v7618
        %v7621 = vor.u32 %v7619, %v7620
        %v7622 = vsub.s32 4294967266, %v7617
        %v7623 = vadd.s32 %v7622, 127
        %v7624 = vshll.u32 %v7623, 23
        %v7625 = vor.u32 4788187, %v7624
        %v7626 = vand.u32 2147483647, %v7625
        %v7628 = vcvt.s32.f32 %v7621
        %v7629 = vmul.f32 %v7628, %v7626
        %v7630 = vxor.u32 %v7629, 2147483648
        %v7631 = vsel %vm7548, %v7630, %v7629
        %v7632 = vsub.s32 4, %v7608
        %v7633 = vsel %vm7548, %v7632, %v7608
        %v7634 = vsel %vm7547, %v6817, %v7631
        %v7635 = vsel %vm7547, 0, %v7633
        %v7636 = vcosq.f32.pop %v7634
        %v7637 = vsinq.f32.pop %v7634
        %vm7638 = vweird.f32 %v6817
        %v7639 = vadd.s32 %v7635, 3
        %v7640 = vand.u32 %v7639, 3
        %vm7641 = vcmp.lt.s32.totalorder %v7640, 2
        %vm7642 = vcmp.eq.s32.totalorder %v7640, 0
        %v7643 = vxor.u32 %v7637, 2147483648
        %v7644 = vsel %vm7642, %v7636, %v7643
        %vm7645 = vcmp.eq.s32.totalorder %v7640, 2
        %v7646 = vxor.u32 %v7636, 2147483648
        %v7647 = vsel %vm7645, %v7646, %v7637
        %v7648 = vsel %vm7641, %v7644, %v7647
        %v7649 = vsel %vm7638, nan, %v7648
        %7650 = vst [vmem:[%s176] sm:$0xff] %v6921
        %7651 = vst [vmem:[%s176 + $0x8] sm:$0xff] %v7025
        %7652 = vst [vmem:[%s176 + $0x10] sm:$0xff] %v7129
        %7653 = vst [vmem:[%s176 + $0x18] sm:$0xff] %v7233
        %7654 = vst [vmem:[%s176 + $0x20] sm:$0xff] %v7337
        %7655 = vst [vmem:[%s176 + $0x28] sm:$0xff] %v7441
        %7656 = vst [vmem:[%s176 + $0x30] sm:$0xff] %v7545
        %7657 = vst [vmem:[%s176 + $0x38] sm:$0xff] %v7649
        %s7658 = sand.u32 %s75, 1
        %s7659 = scalar_lea.sflag [#allocation4], %s7658
        %s7660 = sand.u32 %s75, 1
        %s7661 = smul.addr %s7660, 64
        %s7662 = scalar_lea.vmem [#allocation7], %s7661
        // Predicated region
        $region37: #{tpu_custom_call.1} parent=27 // pred_check
          %p7663 = pneg %p85
        $region38: #{tpu_custom_call.1} parent=27 // pred_check_branch
          %7665 = sbr.rel (%p7663) target = $region40
        $region39: #{tpu_custom_call.1} parent=27 // pred_region
          %s7666 = smul.u32 8, %s20
          %s7668 = ssub.s32 1024, 1024
          %7669 = vsyncadd %s7659, %s7668
          %s7670 = smul.addr %s7666, 128
          %s7671 = scalar_lea.hbm %s2, %s7670
          %s7672 = sshll.u32 %s7662, 4
          %s7673 = int_to_ptr.vmem [resolvable:$true] %s7672
          %7678 = dma.vmem_to_hbm [thread:$0]  %s7673, 1024, %s7671, %s7659, 128, 128, 8
        $region40: #{tpu_custom_call.1} parent=27 // pred_fallthru
          _
      $region28: #{tpu_custom_call.1} parent=5 // pred_fallthru
        _
      %p7679 = scmp.le.s32.totalorder 2, %s15
      // Predicated region
      $region41: #{tpu_custom_call.1} parent=5 // pred_check
        %p7680 = pneg %p7679
      $region42: #{tpu_custom_call.1} parent=5 // pred_check_branch
        %7682 = sbr.rel (%p7680) target = $region44
      $region43: #{tpu_custom_call.1} parent=5 // pred_region
        %s7683 = ssub.s32 %s15, 2
        // Predicated region
        $region45: #{tpu_custom_call.1} parent=43 // pred_check
          %p7684 = pneg %p91
        $region46: #{tpu_custom_call.1} parent=43 // pred_check_branch
          %7686 = sbr.rel (%p7684) target = $region48
        $region47: #{tpu_custom_call.1} parent=43 // pred_region
          %s7687 = sand.u32 %s76, 1
          %s7688 = scalar_lea.sflag [#allocation4], %s7687
          %s7689 = sand.u32 %s76, 1
          %s7690 = smul.addr %s7689, 64
          %s7691 = scalar_lea.vmem [#allocation7], %s7690
          %7692 = dma.done %s7688, 1024
        $region48: #{tpu_custom_call.1} parent=43 // pred_fallthru
          _
      $region44: #{tpu_custom_call.1} parent=5 // pred_fallthru
        _
    $region6: #{tpu_custom_call.1} parent=1 // loop_footer
      %s19 = sadd.s32 1, %s15
    $region7: #{tpu_custom_call.1} parent=1 // loop_footer_branch
      %14 = sbr.rel target = $region3
    $region8: #{tpu_custom_call.1} parent=1 // loop_exit
      _
    %7693 = vsyncpa [#allocation3], 1
    %s7694 = scalar_lea.sflag [#allocation3], 1
    %7695 = vsyncpa %s7694, 1
    %7696 = vsyncpa [#allocation6], 1
    %s7697 = scalar_lea.sflag [#allocation6], 1
    %7698 = vsyncpa %s7697, 1
    %7699 = vsyncpa [#allocation4], 1
    %s7700 = scalar_lea.sflag [#allocation4], 1
    %7701 = vsyncpa %s7700, 1

</llo_original>
